<compile_context>
chip_gen: v7x
topology: tpu7x:2x2x1
jax: 0.10.0
libtpu: 0.0.40
codegen_flags: <defaults>
</compile_context>

<pallas_src>
import functools

import jax
import jax.numpy as jnp
from jax.experimental import pallas as pl


# --------------------------------------------------------------------------
# Pallas kernels (all operate on (rows, M) tiles, M = N*H*W in lanes)
# --------------------------------------------------------------------------

def _conv_act_kernel(p_ref, w_ref, b_ref, o_ref, *, act):
    # out = act(W @ patches + b);  W:(R,K) bf16, patches:(K,M) bf16, b:(R,1) f32
    acc = jnp.dot(w_ref[...], p_ref[...], preferred_element_type=jnp.float32)
    acc = acc + b_ref[...]
    if act == "relu":
        acc = jnp.maximum(acc, 0.0)
    elif act == "sigmoid":
        acc = jax.nn.sigmoid(acc)
    o_ref[...] = acc


def _conv_bn_relu_kernel(p_ref, w_ref, b_ref, g_ref, bt_ref, o_ref, *, inv_m):
    # Fused Conv(as matmul) + bias + BatchNorm(train: batch mean, biased var,
    # eps=1e-5) + ReLU.  The (Cout, M) conv result never leaves VMEM.
    acc = jnp.dot(w_ref[...], p_ref[...], preferred_element_type=jnp.float32)
    acc = acc + b_ref[...]
    mean = jnp.sum(acc, axis=1, keepdims=True) * inv_m
    xc = acc - mean
    var = jnp.sum(xc * xc, axis=1, keepdims=True) * inv_m
    y = xc * jax.lax.rsqrt(var + 1e-5) * g_ref[...] + bt_ref[...]
    o_ref[...] = jnp.maximum(y, 0.0)


def _att_sigma_kernel(tp_ref, tw_ref, g_ref, pw_ref, pb_ref, psw_ref, psb_ref,
                      o_ref):
    # sigma = sigmoid(psi(relu(theta(x) + phi(g) + phi_bias)))  -- fully fused.
    theta = jnp.dot(tw_ref[...], tp_ref[...], preferred_element_type=jnp.float32)
    phi = jnp.dot(pw_ref[...], g_ref[...], preferred_element_type=jnp.float32)
    f = jnp.maximum(theta + phi + pb_ref[...], 0.0)
    s = jnp.dot(psw_ref[...], f, preferred_element_type=jnp.float32) + psb_ref[...]
    o_ref[...] = jax.nn.sigmoid(s)


def _att_out_kernel(x_ref, s_ref, w_ref, b_ref, g_ref, bt_ref, o_ref, *, inv_m):
    # y = x * sigma ; out = BatchNorm(W_1x1 @ y + b)  (no ReLU) -- fused.
    y = x_ref[...] * s_ref[...]
    acc = jnp.dot(w_ref[...], y, preferred_element_type=jnp.float32) + b_ref[...]
    mean = jnp.sum(acc, axis=1, keepdims=True) * inv_m
    xc = acc - mean
    var = jnp.sum(xc * xc, axis=1, keepdims=True) * inv_m
    o_ref[...] = xc * jax.lax.rsqrt(var + 1e-5) * g_ref[...] + bt_ref[...]


def _maxpool_kernel(x_ref, o_ref):
    # x: (4, M) -- the 2x2 window offsets stacked in sublanes; max over them.
    o_ref[...] = jnp.max(x_ref[...], axis=0, keepdims=True)


# --------------------------------------------------------------------------
# pallas_call wrappers (single VMEM tile, grid=(1,))
# --------------------------------------------------------------------------

def _spec2d(shape):
    return pl.BlockSpec(shape, lambda i: (0, 0))


def conv_mm(p, wm, b, act="none"):
    rows, k = wm.shape
    m = p.shape[1]
    return pl.pallas_call(
        functools.partial(_conv_act_kernel, act=act),
        out_shape=jax.ShapeDtypeStruct((rows, m), jnp.float32),
        grid=(1,),
        in_specs=[_spec2d((k, m)), _spec2d((rows, k)), _spec2d((rows, 1))],
        out_specs=_spec2d((rows, m)),
    )(p.astype(jnp.bfloat16), wm.astype(jnp.bfloat16),
      b.reshape(rows, 1).astype(jnp.float32))


def conv_mm_bn_relu(p, wm, b, gamma, beta):
    rows, k = wm.shape
    m = p.shape[1]
    return pl.pallas_call(
        functools.partial(_conv_bn_relu_kernel, inv_m=1.0 / m),
        out_shape=jax.ShapeDtypeStruct((rows, m), jnp.float32),
        grid=(1,),
        in_specs=[_spec2d((k, m)), _spec2d((rows, k)),
                  _spec2d((rows, 1)), _spec2d((rows, 1)), _spec2d((rows, 1))],
        out_specs=_spec2d((rows, m)),
    )(p.astype(jnp.bfloat16), wm.astype(jnp.bfloat16),
      b.reshape(rows, 1).astype(jnp.float32),
      gamma.reshape(rows, 1).astype(jnp.float32),
      beta.reshape(rows, 1).astype(jnp.float32))


# --------------------------------------------------------------------------
# JAX glue: im2col / layout plumbing (data rearrangement only)
# --------------------------------------------------------------------------

def _im2col3x3(x):
    """x: channel-major (C, N, H, W) -> patches (9C, N*H*W) in bf16."""
    c, n, h, w = x.shape
    xp = jnp.pad(x.astype(jnp.bfloat16), ((0, 0), (0, 0), (1, 1), (1, 1)))
    pat = jnp.concatenate([xp[:, :, ki:ki + h, kj:kj + w]
                           for ki in range(3) for kj in range(3)], axis=0)
    return pat.reshape(9 * c, n * h * w)


def conv3x3_act(x, w, b, act="none"):
    c, n, h, wd = x.shape
    cout = w.shape[0]
    p = _im2col3x3(x)
    wm = jnp.transpose(w, (0, 2, 3, 1)).reshape(cout, 9 * c)
    return conv_mm(p, wm, b, act).reshape(cout, n, h, wd)


def conv3x3_bn_relu(x, w, b, gamma, beta):
    c, n, h, wd = x.shape
    cout = w.shape[0]
    p = _im2col3x3(x)
    wm = jnp.transpose(w, (0, 2, 3, 1)).reshape(cout, 9 * c)
    return conv_mm_bn_relu(p, wm, b, gamma, beta).reshape(cout, n, h, wd)


def conv1x1(x, w, b, act="none"):
    c, n, h, wd = x.shape
    cout = w.shape[0]
    return conv_mm(x.reshape(c, -1), w.reshape(cout, c), b, act).reshape(cout, n, h, wd)


def deconv4x4_s2(x, w, b):
    """ConvTranspose2d(k=4, s=2, p=1) as 4 output-parity phases over a dense
    3x3-offset patch matrix (no 75%-zero zero-insertion im2col).
    x: (Cin, N, H, W), w: (Cin, Cout, 4, 4) (PyTorch layout)."""
    c, n, h, wd = x.shape
    cout = w.shape[1]
    zp = jnp.pad(x.astype(jnp.bfloat16), ((0, 0), (0, 0), (1, 1), (1, 1)))
    pat = jnp.concatenate([zp[:, :, dh:dh + h, dw:dw + wd]
                           for dh in range(3) for dw in range(3)], axis=0)
    pat = pat.reshape(9 * c, n * h * wd)

    # padded-input offset <-> kernel tap, per output parity:
    #   even outputs (a=0): offset 0 <-> tap 3, offset 1 <-> tap 1
    #   odd  outputs (a=1): offset 1 <-> tap 2, offset 2 <-> tap 0
    pairs = {0: ((0, 3), (1, 1)), 1: ((1, 2), (2, 0))}
    wbig = jnp.zeros((4 * cout, 9 * c), jnp.float32)
    for a in (0, 1):
        for bpar in (0, 1):
            phase = 2 * a + bpar
            for dh, kh in pairs[a]:
                for dw, kw in pairs[bpar]:
                    off = 3 * dh + dw
                    wbig = wbig.at[phase * cout:(phase + 1) * cout,
                                   off * c:(off + 1) * c].set(w[:, :, kh, kw].T)
    b4 = jnp.tile(b, 4)

    out = conv_mm(pat, wbig, b4, act="none")            # (4*Cout, N*H*W)
    out = out.reshape(2, 2, cout, n, h, wd)
    out = out.transpose(2, 3, 4, 0, 5, 1).reshape(cout, n, 2 * h, 2 * wd)
    return out


def maxpool2x2(x):
    c, n, h, w = x.shape
    assert h % 2 == 0 and w % 2 == 0, (h, w)
    ho, wo = h // 2, w // 2
    m = c * n * ho * wo
    xr = x.reshape(c, n, ho, 2, wo, 2).transpose(3, 5, 0, 1, 2, 4).reshape(4, m)
    out = pl.pallas_call(
        _maxpool_kernel,
        out_shape=jax.ShapeDtypeStruct((1, m), jnp.float32),
        grid=(1,),
        in_specs=[_spec2d((4, m))],
        out_specs=_spec2d((1, m)),
    )(xr.astype(jnp.float32))
    return out.reshape(c, n, ho, wo)


def bilinear_up(x, ht, wt):
    """Bilinear resize with align_corners=True on channel-major (C, N, H, W)."""
    c, n, hs, ws = x.shape
    if hs == ht and ws == wt:
        return x

    def coords(s, t):
        if t == 1:
            z = jnp.zeros((1,), jnp.int32)
            return z, z, jnp.zeros((1,), jnp.float32)
        src = jnp.arange(t, dtype=jnp.float32) * ((s - 1) / (t - 1))
        i0 = jnp.clip(jnp.floor(src).astype(jnp.int32), 0, s - 1)
        i1 = jnp.clip(i0 + 1, 0, s - 1)
        return i0, i1, src - i0.astype(jnp.float32)

    r0, r1, rw = coords(hs, ht)
    c0, c1, cw = coords(ws, wt)
    xr = (jnp.take(x, r0, axis=2) * (1.0 - rw)[None, None, :, None]
          + jnp.take(x, r1, axis=2) * rw[None, None, :, None])
    out = (jnp.take(xr, c0, axis=3) * (1.0 - cw)[None, None, None, :]
           + jnp.take(xr, c1, axis=3) * cw[None, None, None, :])
    return out


# --------------------------------------------------------------------------
# Model blocks (channel-major activations: (C, N, H, W))
# --------------------------------------------------------------------------

def unet_conv2_bn(x, p):
    x = conv3x3_bn_relu(x, p["w1"], p["bb1"], p["g1"], p["be1"])
    x = conv3x3_bn_relu(x, p["w2"], p["bb2"], p["g2"], p["be2"])
    return x


def unet_conv2_plain(x, p):
    x = conv3x3_act(x, p["w1"], p["bb1"], act="relu")
    x = conv3x3_act(x, p["w2"], p["bb2"], act="relu")
    return x


def grid_attention(x, g, p):
    """GridAttentionBlock2D, mode='concatenation', sub_sample_factor=(2, 2)."""
    cx, n, h, w = x.shape
    assert h % 2 == 0 and w % 2 == 0, (h, w)
    th_h, th_w = h // 2, w // 2
    mh = n * th_h * th_w

    # theta: 2x2 stride-2 conv -> im2col patches (4*Cx, Mh)
    tp = x.astype(jnp.bfloat16).reshape(cx, n, th_h, 2, th_w, 2)
    tp = tp.transpose(3, 5, 0, 1, 2, 4).reshape(4 * cx, mh)
    tw = jnp.transpose(p["theta_w"], (0, 2, 3, 1)).reshape(-1, 4 * cx)
    cint = tw.shape[0]

    if g.shape[2] == th_h and g.shape[3] == th_w:
        # phi 1x1 conv is fused directly into the gate kernel (no resize needed)
        gsrc = g.reshape(g.shape[0], -1)
        pw = p["phi_w"].reshape(cint, g.shape[0])
        pb = p["phi_b"]
    else:
        # general path: phi conv + align_corners resize in glue, identity into kernel
        phi = conv1x1(g, p["phi_w"], p["phi_b"])
        phi = bilinear_up(phi, th_h, th_w)
        gsrc = phi.reshape(cint, mh)
        pw = jnp.eye(cint, dtype=jnp.float32)
        pb = jnp.zeros((cint,), jnp.float32)

    sigma = pl.pallas_call(
        _att_sigma_kernel,
        out_shape=jax.ShapeDtypeStruct((1, mh), jnp.float32),
        grid=(1,),
        in_specs=[_spec2d(tp.shape), _spec2d(tw.shape), _spec2d(gsrc.shape),
                  _spec2d((cint, gsrc.shape[0])), _spec2d((cint, 1)),
                  _spec2d((1, cint)), _spec2d((1, 1))],
        out_specs=_spec2d((1, mh)),
    )(tp, tw.astype(jnp.bfloat16), gsrc.astype(jnp.float32),
      pw.astype(jnp.float32), pb.reshape(cint, 1).astype(jnp.float32),
      p["psi_w"].reshape(1, cint).astype(jnp.float32),
      p["psi_b"].reshape(1, 1).astype(jnp.float32))

    # sigma upsample back to x's resolution (align_corners=True), pure glue
    sigma_up = bilinear_up(sigma.reshape(1, n, th_h, th_w), h, w).reshape(1, n * h * w)

    m = n * h * w
    out = pl.pallas_call(
        functools.partial(_att_out_kernel, inv_m=1.0 / m),
        out_shape=jax.ShapeDtypeStruct((cx, m), jnp.float32),
        grid=(1,),
        in_specs=[_spec2d((cx, m)), _spec2d((1, m)), _spec2d((cx, cx)),
                  _spec2d((cx, 1)), _spec2d((cx, 1)), _spec2d((cx, 1))],
        out_specs=_spec2d((cx, m)),
    )(x.reshape(cx, m).astype(jnp.float32), sigma_up.astype(jnp.float32),
      p["W_w"].reshape(cx, cx).astype(jnp.float32),
      p["W_b"].reshape(cx, 1).astype(jnp.float32),
      p["W_bn_g"].reshape(cx, 1).astype(jnp.float32),
      p["W_bn_b"].reshape(cx, 1).astype(jnp.float32))
    return out.reshape(cx, n, h, w)


def unet_up(inputs1, inputs2, p):
    up = deconv4x4_s2(inputs2, p["up_w"], p["up_b"])
    off = up.shape[2] - inputs1.shape[2]
    if off != 0:
        ph = off // 2
        inputs1 = jnp.pad(inputs1, ((0, 0), (0, 0), (ph, ph), (ph, ph)))
    cat = jnp.concatenate([inputs1, up], axis=0)
    return unet_conv2_plain(cat, p)


def attention_unet_forward(x_nchw, params):
    # NCHW -> channel-major (C, N, H, W)
    x = jnp.transpose(x_nchw, (1, 0, 2, 3)).astype(jnp.float32)

    conv1 = unet_conv2_bn(x, params["conv1"])
    mp1 = maxpool2x2(conv1)
    conv2 = unet_conv2_bn(mp1, params["conv2"])
    mp2 = maxpool2x2(conv2)
    in_center = unet_conv2_bn(mp2, params["in_center"])
    center = conv3x3_act(in_center, params["center_w"], params["center_b"],
                         act="sigmoid")
    out_center = unet_conv2_bn(center, params["out_center"])

    atten2 = grid_attention(conv2, out_center, params["att2"])
    up2 = unet_up(atten2, out_center, params["up2"])
    atten1 = grid_attention(conv1, up2, params["att1"])
    up1 = unet_up(atten1, up2, params["up1"])

    final = conv1x1(up1, params["final_w"], params["final_b"], act="sigmoid")

    return (jnp.transpose(center, (1, 0, 2, 3)),     # channel-major -> NCHW
            jnp.transpose(final, (1, 0, 2, 3)))


# --------------------------------------------------------------------------
# Deterministic parameter construction (kaiming-like, synthetic)
# --------------------------------------------------------------------------

def make_params(key):
    keys = iter(jax.random.split(key, 128))

    def nk():
        return next(keys)

    def conv_w(cout, cin, kh, kw):
        fan_in = cin * kh * kw
        return jax.random.normal(nk(), (cout, cin, kh, kw), jnp.float32) * jnp.sqrt(2.0 / fan_in)

    def vec(c, std=0.05):
        return jax.random.normal(nk(), (c,), jnp.float32) * std

    def bn_pair(c):
        g = 1.0 + 0.02 * jax.random.normal(nk(), (c,), jnp.float32)
        return g, jnp.zeros((c,), jnp.float32)

    def unet_conv_bn(cin, cout):
        g1, be1 = bn_pair(cout)
        g2, be2 = bn_pair(cout)
        return dict(w1=conv_w(cout, cin, 3, 3), bb1=vec(cout), g1=g1, be1=be1,
                    w2=conv_w(cout, cout, 3, 3), bb2=vec(cout), g2=g2, be2=be2)

    def unet_conv_plain(cin, cout):
        return dict(w1=conv_w(cout, cin, 3, 3), bb1=vec(cout),
                    w2=conv_w(cout, cout, 3, 3), bb2=vec(cout))

    def attention(cin, cgate):
        cint = max(cin // 2, 1)
        gw, gb = bn_pair(cin)
        return dict(theta_w=conv_w(cint, cin, 2, 2),
                    phi_w=conv_w(cint, cgate, 1, 1), phi_b=vec(cint),
                    psi_w=conv_w(1, cint, 1, 1), psi_b=vec(1),
                    W_w=conv_w(cin, cin, 1, 1), W_b=vec(cin),
                    W_bn_g=gw, W_bn_b=gb)

    def unet_up_params(cin, cout):
        fan_in = cout * 16      # ConvTranspose2d weight (cin, cout, 4, 4)
        up_w = jax.random.normal(nk(), (cin, cout, 4, 4), jnp.float32) * jnp.sqrt(2.0 / fan_in)
        d = dict(up_w=up_w, up_b=vec(cout))
        d.update(unet_conv_plain(cin, cout))
        return d

    f = [8, 16, 32]     # filters = [32, 64, 128] / feature_scale(4)
    cin = 1
    return dict(
        conv1=unet_conv_bn(cin, f[0]),
        conv2=unet_conv_bn(f[0], f[1]),
        in_center=unet_conv_bn(f[1], f[2]),
        center_w=conv_w(cin, f[2], 3, 3), center_b=vec(cin),
        out_center=unet_conv_bn(cin, f[2]),
        att2=attention(f[1], f[2]),
        att1=attention(f[0], f[1]),
        up2=unet_up_params(f[2], f[1]),
        up1=unet_up_params(f[1], f[0]),
        final_w=conv_w(cin, f[0], 1, 1), final_b=vec(cin),
    )


# --------------------------------------------------------------------------

if __name__ == "__main__":
    key = jax.random.PRNGKey(0)
    pkey, xkey = jax.random.split(key)
    params = make_params(pkey)

    # input matches AttentionUnet2D(in_channels=1): NCHW
    x = jax.random.normal(xkey, (2, 1, 16, 16), jnp.float32)

    fwd = jax.jit(lambda inp: attention_unet_forward(inp, params))
    center, final = fwd(x)
    jax.block_until_ready((center, final))

    assert center.shape == (2, 1, 4, 4), center.shape
    assert final.shape == (2, 1, 16, 16), final.shape
    assert bool(jnp.all(jnp.isfinite(center))) and bool(jnp.all(jnp.isfinite(final)))
    print("KERNEL_OK")
</pallas_src>

<mosaic_0001>
module attributes {stable_mosaic.version = 11 : i64} {
  func.func @_conv_bn_relu_kernel(%arg0: i32, %arg1: memref<9x512xbf16, #tpu.memory_space<vmem>>, %arg2: memref<8x9xbf16, #tpu.memory_space<vmem>>, %arg3: memref<8x1xf32, #tpu.memory_space<vmem>>, %arg4: memref<8x1xf32, #tpu.memory_space<vmem>>, %arg5: memref<8x1xf32, #tpu.memory_space<vmem>>, %arg6: memref<8x512xf32, #tpu.memory_space<vmem>>) attributes {dimension_semantics = [#tpu.dimension_semantics<arbitrary>], iteration_bounds = array<i64: 1>, scalar_prefetch = 0 : i64, scratch_operands = 0 : i64, tpu.core_type = #tpu.core_type<tc>, window_params = [{pipeline_mode = #tpu.pipeline_mode<synchronous>, transform_indices = @transform_0, window_bounds = array<i64: 9, 512>}, {pipeline_mode = #tpu.pipeline_mode<synchronous>, transform_indices = @transform_1, window_bounds = array<i64: 8, 9>}, {pipeline_mode = #tpu.pipeline_mode<synchronous>, transform_indices = @transform_2, window_bounds = array<i64: 8, 1>}, {pipeline_mode = #tpu.pipeline_mode<synchronous>, transform_indices = @transform_3, window_bounds = array<i64: 8, 1>}, {pipeline_mode = #tpu.pipeline_mode<synchronous>, transform_indices = @transform_4, window_bounds = array<i64: 8, 1>}, {pipeline_mode = #tpu.pipeline_mode<synchronous>, transform_indices = @transform_5, window_bounds = array<i64: 8, 512>}]} {
    %c0 = arith.constant 0 : index
    %c0_0 = arith.constant 0 : index
    %0 = vector.load %arg2[%c0, %c0_0] : memref<8x9xbf16, #tpu.memory_space<vmem>>, vector<8x9xbf16>
    %c0_1 = arith.constant 0 : index
    %c0_2 = arith.constant 0 : index
    %1 = vector.load %arg1[%c0_1, %c0_2] : memref<9x512xbf16, #tpu.memory_space<vmem>>, vector<9x512xbf16>
    %cst = arith.constant dense<0.000000e+00> : vector<8x512xf32>
    %2 = tpu.matmul %0, %1, %cst {dimension_numbers = #tpu.dot_dimension_numbers<[1], [0], [0], [1], [0, 0, 1, 1], [], []>} : vector<8x9xbf16>, vector<9x512xbf16>, vector<8x512xf32> -> vector<8x512xf32>
    %c0_3 = arith.constant 0 : index
    %c0_4 = arith.constant 0 : index
    %3 = vector.load %arg3[%c0_3, %c0_4] : memref<8x1xf32, #tpu.memory_space<vmem>>, vector<8x1xf32>
    %4 = vector.broadcast %3 : vector<8x1xf32> to vector<8x512xf32>
    %5 = arith.addf %2, %4 : vector<8x512xf32>
    %cst_5 = arith.constant dense<0.000000e+00> : vector<8xf32>
    %6 = vector.multi_reduction <add>, %5, %cst_5 [1] : vector<8x512xf32> to vector<8xf32>
    %7 = vector.shape_cast %6 : vector<8xf32> to vector<8x1xf32>
    %cst_6 = arith.constant 0.001953125 : f32
    %8 = vector.broadcast %cst_6 : f32 to vector<8x1xf32>
    %9 = arith.mulf %7, %8 : vector<8x1xf32>
    %10 = vector.broadcast %9 : vector<8x1xf32> to vector<8x512xf32>
    %11 = arith.subf %5, %10 : vector<8x512xf32>
    %12 = arith.mulf %11, %11 : vector<8x512xf32>
    %cst_7 = arith.constant dense<0.000000e+00> : vector<8xf32>
    %13 = vector.multi_reduction <add>, %12, %cst_7 [1] : vector<8x512xf32> to vector<8xf32>
    %14 = vector.shape_cast %13 : vector<8xf32> to vector<8x1xf32>
    %cst_8 = arith.constant 0.001953125 : f32
    %15 = vector.broadcast %cst_8 : f32 to vector<8x1xf32>
    %16 = arith.mulf %14, %15 : vector<8x1xf32>
    %cst_9 = arith.constant 9.99999974E-6 : f32
    %17 = vector.broadcast %cst_9 : f32 to vector<8x1xf32>
    %18 = arith.addf %16, %17 : vector<8x1xf32>
    %19 = math.rsqrt %18 : vector<8x1xf32>
    %20 = vector.broadcast %19 : vector<8x1xf32> to vector<8x512xf32>
    %21 = arith.mulf %11, %20 : vector<8x512xf32>
    %c0_10 = arith.constant 0 : index
    %c0_11 = arith.constant 0 : index
    %22 = vector.load %arg4[%c0_10, %c0_11] : memref<8x1xf32, #tpu.memory_space<vmem>>, vector<8x1xf32>
    %23 = vector.broadcast %22 : vector<8x1xf32> to vector<8x512xf32>
    %24 = arith.mulf %21, %23 : vector<8x512xf32>
    %c0_12 = arith.constant 0 : index
    %c0_13 = arith.constant 0 : index
    %25 = vector.load %arg5[%c0_12, %c0_13] : memref<8x1xf32, #tpu.memory_space<vmem>>, vector<8x1xf32>
    %26 = vector.broadcast %25 : vector<8x1xf32> to vector<8x512xf32>
    %27 = arith.addf %24, %26 : vector<8x512xf32>
    %cst_14 = arith.constant 0.000000e+00 : f32
    %28 = vector.broadcast %cst_14 : f32 to vector<8x512xf32>
    %29 = arith.maximumf %27, %28 : vector<8x512xf32>
    %c0_15 = arith.constant 0 : index
    %c0_16 = arith.constant 0 : index
    %30 = vector.load %arg6[%c0_15, %c0_16] : memref<8x512xf32, #tpu.memory_space<vmem>>, vector<8x512xf32>
    tpu.vector_store %arg6[%c0_15, %c0_16], %29 {strides = array<i32>} : memref<8x512xf32, #tpu.memory_space<vmem>>, vector<8x512xf32>,
    return
  }
  func.func @transform_0(%arg0: i32) -> (i32, i32) {
    %c0_i32 = arith.constant 0 : i32
    %c0_i32_0 = arith.constant 0 : i32
    %c0_i32_1 = arith.constant 0 : i32
    return %c0_i32, %c0_i32_0 : i32, i32
  }
  func.func @transform_1(%arg0: i32) -> (i32, i32) {
    %c0_i32 = arith.constant 0 : i32
    %c0_i32_0 = arith.constant 0 : i32
    %c0_i32_1 = arith.constant 0 : i32
    return %c0_i32, %c0_i32_0 : i32, i32
  }
  func.func @transform_2(%arg0: i32) -> (i32, i32) {
    %c0_i32 = arith.constant 0 : i32
    %c0_i32_0 = arith.constant 0 : i32
    %c0_i32_1 = arith.constant 0 : i32
    return %c0_i32, %c0_i32_0 : i32, i32
  }
  func.func @transform_3(%arg0: i32) -> (i32, i32) {
    %c0_i32 = arith.constant 0 : i32
    %c0_i32_0 = arith.constant 0 : i32
    %c0_i32_1 = arith.constant 0 : i32
    return %c0_i32, %c0_i32_0 : i32, i32
  }
  func.func @transform_4(%arg0: i32) -> (i32, i32) {
    %c0_i32 = arith.constant 0 : i32
    %c0_i32_0 = arith.constant 0 : i32
    %c0_i32_1 = arith.constant 0 : i32
    return %c0_i32, %c0_i32_0 : i32, i32
  }
  func.func @transform_5(%arg0: i32) -> (i32, i32) {
    %c0_i32 = arith.constant 0 : i32
    %c0_i32_0 = arith.constant 0 : i32
    %c0_i32_1 = arith.constant 0 : i32
    return %c0_i32, %c0_i32_0 : i32, i32
  }
}

module attributes {stable_mosaic.version = 11 : i64} {
  func.func @_conv_bn_relu_kernel(%arg0: i32, %arg1: memref<72x512xbf16, #tpu.memory_space<vmem>>, %arg2: memref<8x72xbf16, #tpu.memory_space<vmem>>, %arg3: memref<8x1xf32, #tpu.memory_space<vmem>>, %arg4: memref<8x1xf32, #tpu.memory_space<vmem>>, %arg5: memref<8x1xf32, #tpu.memory_space<vmem>>, %arg6: memref<8x512xf32, #tpu.memory_space<vmem>>) attributes {dimension_semantics = [#tpu.dimension_semantics<arbitrary>], iteration_bounds = array<i64: 1>, scalar_prefetch = 0 : i64, scratch_operands = 0 : i64, tpu.core_type = #tpu.core_type<tc>, window_params = [{pipeline_mode = #tpu.pipeline_mode<synchronous>, transform_indices = @transform_0, window_bounds = array<i64: 72, 512>}, {pipeline_mode = #tpu.pipeline_mode<synchronous>, transform_indices = @transform_1, window_bounds = array<i64: 8, 72>}, {pipeline_mode = #tpu.pipeline_mode<synchronous>, transform_indices = @transform_2, window_bounds = array<i64: 8, 1>}, {pipeline_mode = #tpu.pipeline_mode<synchronous>, transform_indices = @transform_3, window_bounds = array<i64: 8, 1>}, {pipeline_mode = #tpu.pipeline_mode<synchronous>, transform_indices = @transform_4, window_bounds = array<i64: 8, 1>}, {pipeline_mode = #tpu.pipeline_mode<synchronous>, transform_indices = @transform_5, window_bounds = array<i64: 8, 512>}]} {
    %c0 = arith.constant 0 : index
    %c0_0 = arith.constant 0 : index
    %0 = vector.load %arg2[%c0, %c0_0] : memref<8x72xbf16, #tpu.memory_space<vmem>>, vector<8x72xbf16>
    %c0_1 = arith.constant 0 : index
    %c0_2 = arith.constant 0 : index
    %1 = vector.load %arg1[%c0_1, %c0_2] : memref<72x512xbf16, #tpu.memory_space<vmem>>, vector<72x512xbf16>
    %cst = arith.constant dense<0.000000e+00> : vector<8x512xf32>
    %2 = tpu.matmul %0, %1, %cst {dimension_numbers = #tpu.dot_dimension_numbers<[1], [0], [0], [1], [0, 0, 1, 1], [], []>} : vector<8x72xbf16>, vector<72x512xbf16>, vector<8x512xf32> -> vector<8x512xf32>
    %c0_3 = arith.constant 0 : index
    %c0_4 = arith.constant 0 : index
    %3 = vector.load %arg3[%c0_3, %c0_4] : memref<8x1xf32, #tpu.memory_space<vmem>>, vector<8x1xf32>
    %4 = vector.broadcast %3 : vector<8x1xf32> to vector<8x512xf32>
    %5 = arith.addf %2, %4 : vector<8x512xf32>
    %cst_5 = arith.constant dense<0.000000e+00> : vector<8xf32>
    %6 = vector.multi_reduction <add>, %5, %cst_5 [1] : vector<8x512xf32> to vector<8xf32>
    %7 = vector.shape_cast %6 : vector<8xf32> to vector<8x1xf32>
    %cst_6 = arith.constant 0.001953125 : f32
    %8 = vector.broadcast %cst_6 : f32 to vector<8x1xf32>
    %9 = arith.mulf %7, %8 : vector<8x1xf32>
    %10 = vector.broadcast %9 : vector<8x1xf32> to vector<8x512xf32>
    %11 = arith.subf %5, %10 : vector<8x512xf32>
    %12 = arith.mulf %11, %11 : vector<8x512xf32>
    %cst_7 = arith.constant dense<0.000000e+00> : vector<8xf32>
    %13 = vector.multi_reduction <add>, %12, %cst_7 [1] : vector<8x512xf32> to vector<8xf32>
    %14 = vector.shape_cast %13 : vector<8xf32> to vector<8x1xf32>
    %cst_8 = arith.constant 0.001953125 : f32
    %15 = vector.broadcast %cst_8 : f32 to vector<8x1xf32>
    %16 = arith.mulf %14, %15 : vector<8x1xf32>
    %cst_9 = arith.constant 9.99999974E-6 : f32
    %17 = vector.broadcast %cst_9 : f32 to vector<8x1xf32>
    %18 = arith.addf %16, %17 : vector<8x1xf32>
    %19 = math.rsqrt %18 : vector<8x1xf32>
    %20 = vector.broadcast %19 : vector<8x1xf32> to vector<8x512xf32>
    %21 = arith.mulf %11, %20 : vector<8x512xf32>
    %c0_10 = arith.constant 0 : index
    %c0_11 = arith.constant 0 : index
    %22 = vector.load %arg4[%c0_10, %c0_11] : memref<8x1xf32, #tpu.memory_space<vmem>>, vector<8x1xf32>
    %23 = vector.broadcast %22 : vector<8x1xf32> to vector<8x512xf32>
    %24 = arith.mulf %21, %23 : vector<8x512xf32>
    %c0_12 = arith.constant 0 : index
    %c0_13 = arith.constant 0 : index
    %25 = vector.load %arg5[%c0_12, %c0_13] : memref<8x1xf32, #tpu.memory_space<vmem>>, vector<8x1xf32>
    %26 = vector.broadcast %25 : vector<8x1xf32> to vector<8x512xf32>
    %27 = arith.addf %24, %26 : vector<8x512xf32>
    %cst_14 = arith.constant 0.000000e+00 : f32
    %28 = vector.broadcast %cst_14 : f32 to vector<8x512xf32>
    %29 = arith.maximumf %27, %28 : vector<8x512xf32>
    %c0_15 = arith.constant 0 : index
    %c0_16 = arith.constant 0 : index
    %30 = vector.load %arg6[%c0_15, %c0_16] : memref<8x512xf32, #tpu.memory_space<vmem>>, vector<8x512xf32>
    tpu.vector_store %arg6[%c0_15, %c0_16], %29 {strides = array<i32>} : memref<8x512xf32, #tpu.memory_space<vmem>>, vector<8x512xf32>,
    return
  }
  func.func @transform_0(%arg0: i32) -> (i32, i32) {
    %c0_i32 = arith.constant 0 : i32
    %c0_i32_0 = arith.constant 0 : i32
    %c0_i32_1 = arith.constant 0 : i32
    return %c0_i32, %c0_i32_0 : i32, i32
  }
  func.func @transform_1(%arg0: i32) -> (i32, i32) {
    %c0_i32 = arith.constant 0 : i32
    %c0_i32_0 = arith.constant 0 : i32
    %c0_i32_1 = arith.constant 0 : i32
    return %c0_i32, %c0_i32_0 : i32, i32
  }
  func.func @transform_2(%arg0: i32) -> (i32, i32) {
    %c0_i32 = arith.constant 0 : i32
    %c0_i32_0 = arith.constant 0 : i32
    %c0_i32_1 = arith.constant 0 : i32
    return %c0_i32, %c0_i32_0 : i32, i32
  }
  func.func @transform_3(%arg0: i32) -> (i32, i32) {
    %c0_i32 = arith.constant 0 : i32
    %c0_i32_0 = arith.constant 0 : i32
    %c0_i32_1 = arith.constant 0 : i32
    return %c0_i32, %c0_i32_0 : i32, i32
  }
  func.func @transform_4(%arg0: i32) -> (i32, i32) {
    %c0_i32 = arith.constant 0 : i32
    %c0_i32_0 = arith.constant 0 : i32
    %c0_i32_1 = arith.constant 0 : i32
    return %c0_i32, %c0_i32_0 : i32, i32
  }
  func.func @transform_5(%arg0: i32) -> (i32, i32) {
    %c0_i32 = arith.constant 0 : i32
    %c0_i32_0 = arith.constant 0 : i32
    %c0_i32_1 = arith.constant 0 : i32
    return %c0_i32, %c0_i32_0 : i32, i32
  }
}

module attributes {stable_mosaic.version = 11 : i64} {
  func.func @_maxpool_kernel(%arg0: i32, %arg1: memref<4x1024xf32, #tpu.memory_space<vmem>>, %arg2: memref<1x1024xf32, #tpu.memory_space<vmem>>) attributes {dimension_semantics = [#tpu.dimension_semantics<arbitrary>], iteration_bounds = array<i64: 1>, scalar_prefetch = 0 : i64, scratch_operands = 0 : i64, tpu.core_type = #tpu.core_type<tc>, window_params = [{pipeline_mode = #tpu.pipeline_mode<synchronous>, transform_indices = @transform_0, window_bounds = array<i64: 4, 1024>}, {pipeline_mode = #tpu.pipeline_mode<synchronous>, transform_indices = @transform_1, window_bounds = array<i64: 1, 1024>}]} {
    %c0 = arith.constant 0 : index
    %c0_0 = arith.constant 0 : index
    %0 = vector.load %arg1[%c0, %c0_0] : memref<4x1024xf32, #tpu.memory_space<vmem>>, vector<4x1024xf32>
    %cst = arith.constant dense<0xFF800000> : vector<1024xf32>
    %1 = vector.multi_reduction <maximumf>, %0, %cst [0] : vector<4x1024xf32> to vector<1024xf32>
    %2 = vector.shape_cast %1 : vector<1024xf32> to vector<1x1024xf32>
    %c0_1 = arith.constant 0 : index
    %c0_2 = arith.constant 0 : index
    %3 = vector.load %arg2[%c0_1, %c0_2] : memref<1x1024xf32, #tpu.memory_space<vmem>>, vector<1x1024xf32>
    tpu.vector_store %arg2[%c0_1, %c0_2], %2 {strides = array<i32>} : memref<1x1024xf32, #tpu.memory_space<vmem>>, vector<1x1024xf32>,
    return
  }
  func.func @transform_0(%arg0: i32) -> (i32, i32) {
    %c0_i32 = arith.constant 0 : i32
    %c0_i32_0 = arith.constant 0 : i32
    %c0_i32_1 = arith.constant 0 : i32
    return %c0_i32, %c0_i32_0 : i32, i32
  }
  func.func @transform_1(%arg0: i32) -> (i32, i32) {
    %c0_i32 = arith.constant 0 : i32
    %c0_i32_0 = arith.constant 0 : i32
    %c0_i32_1 = arith.constant 0 : i32
    return %c0_i32, %c0_i32_0 : i32, i32
  }
}

module attributes {stable_mosaic.version = 11 : i64} {
  func.func @_conv_bn_relu_kernel(%arg0: i32, %arg1: memref<72x128xbf16, #tpu.memory_space<vmem>>, %arg2: memref<16x72xbf16, #tpu.memory_space<vmem>>, %arg3: memref<16x1xf32, #tpu.memory_space<vmem>>, %arg4: memref<16x1xf32, #tpu.memory_space<vmem>>, %arg5: memref<16x1xf32, #tpu.memory_space<vmem>>, %arg6: memref<16x128xf32, #tpu.memory_space<vmem>>) attributes {dimension_semantics = [#tpu.dimension_semantics<arbitrary>], iteration_bounds = array<i64: 1>, scalar_prefetch = 0 : i64, scratch_operands = 0 : i64, tpu.core_type = #tpu.core_type<tc>, window_params = [{pipeline_mode = #tpu.pipeline_mode<synchronous>, transform_indices = @transform_0, window_bounds = array<i64: 72, 128>}, {pipeline_mode = #tpu.pipeline_mode<synchronous>, transform_indices = @transform_1, window_bounds = array<i64: 16, 72>}, {pipeline_mode = #tpu.pipeline_mode<synchronous>, transform_indices = @transform_2, window_bounds = array<i64: 16, 1>}, {pipeline_mode = #tpu.pipeline_mode<synchronous>, transform_indices = @transform_3, window_bounds = array<i64: 16, 1>}, {pipeline_mode = #tpu.pipeline_mode<synchronous>, transform_indices = @transform_4, window_bounds = array<i64: 16, 1>}, {pipeline_mode = #tpu.pipeline_mode<synchronous>, transform_indices = @transform_5, window_bounds = array<i64: 16, 128>}]} {
    %c0 = arith.constant 0 : index
    %c0_0 = arith.constant 0 : index
    %0 = vector.load %arg2[%c0, %c0_0] : memref<16x72xbf16, #tpu.memory_space<vmem>>, vector<16x72xbf16>
    %c0_1 = arith.constant 0 : index
    %c0_2 = arith.constant 0 : index
    %1 = vector.load %arg1[%c0_1, %c0_2] : memref<72x128xbf16, #tpu.memory_space<vmem>>, vector<72x128xbf16>
    %cst = arith.constant dense<0.000000e+00> : vector<16x128xf32>
    %2 = tpu.matmul %0, %1, %cst {dimension_numbers = #tpu.dot_dimension_numbers<[1], [0], [0], [1], [0, 0, 1, 1], [], []>} : vector<16x72xbf16>, vector<72x128xbf16>, vector<16x128xf32> -> vector<16x128xf32>
    %c0_3 = arith.constant 0 : index
    %c0_4 = arith.constant 0 : index
    %3 = vector.load %arg3[%c0_3, %c0_4] : memref<16x1xf32, #tpu.memory_space<vmem>>, vector<16x1xf32>
    %4 = vector.broadcast %3 : vector<16x1xf32> to vector<16x128xf32>
    %5 = arith.addf %2, %4 : vector<16x128xf32>
    %cst_5 = arith.constant dense<0.000000e+00> : vector<16xf32>
    %6 = vector.multi_reduction <add>, %5, %cst_5 [1] : vector<16x128xf32> to vector<16xf32>
    %7 = vector.shape_cast %6 : vector<16xf32> to vector<16x1xf32>
    %cst_6 = arith.constant 7.812500e-03 : f32
    %8 = vector.broadcast %cst_6 : f32 to vector<16x1xf32>
    %9 = arith.mulf %7, %8 : vector<16x1xf32>
    %10 = vector.broadcast %9 : vector<16x1xf32> to vector<16x128xf32>
    %11 = arith.subf %5, %10 : vector<16x128xf32>
    %12 = arith.mulf %11, %11 : vector<16x128xf32>
    %cst_7 = arith.constant dense<0.000000e+00> : vector<16xf32>
    %13 = vector.multi_reduction <add>, %12, %cst_7 [1] : vector<16x128xf32> to vector<16xf32>
    %14 = vector.shape_cast %13 : vector<16xf32> to vector<16x1xf32>
    %cst_8 = arith.constant 7.812500e-03 : f32
    %15 = vector.broadcast %cst_8 : f32 to vector<16x1xf32>
    %16 = arith.mulf %14, %15 : vector<16x1xf32>
    %cst_9 = arith.constant 9.99999974E-6 : f32
    %17 = vector.broadcast %cst_9 : f32 to vector<16x1xf32>
    %18 = arith.addf %16, %17 : vector<16x1xf32>
    %19 = math.rsqrt %18 : vector<16x1xf32>
    %20 = vector.broadcast %19 : vector<16x1xf32> to vector<16x128xf32>
    %21 = arith.mulf %11, %20 : vector<16x128xf32>
    %c0_10 = arith.constant 0 : index
    %c0_11 = arith.constant 0 : index
    %22 = vector.load %arg4[%c0_10, %c0_11] : memref<16x1xf32, #tpu.memory_space<vmem>>, vector<16x1xf32>
    %23 = vector.broadcast %22 : vector<16x1xf32> to vector<16x128xf32>
    %24 = arith.mulf %21, %23 : vector<16x128xf32>
    %c0_12 = arith.constant 0 : index
    %c0_13 = arith.constant 0 : index
    %25 = vector.load %arg5[%c0_12, %c0_13] : memref<16x1xf32, #tpu.memory_space<vmem>>, vector<16x1xf32>
    %26 = vector.broadcast %25 : vector<16x1xf32> to vector<16x128xf32>
    %27 = arith.addf %24, %26 : vector<16x128xf32>
    %cst_14 = arith.constant 0.000000e+00 : f32
    %28 = vector.broadcast %cst_14 : f32 to vector<16x128xf32>
    %29 = arith.maximumf %27, %28 : vector<16x128xf32>
    %c0_15 = arith.constant 0 : index
    %c0_16 = arith.constant 0 : index
    %30 = vector.load %arg6[%c0_15, %c0_16] : memref<16x128xf32, #tpu.memory_space<vmem>>, vector<16x128xf32>
    tpu.vector_store %arg6[%c0_15, %c0_16], %29 {strides = array<i32>} : memref<16x128xf32, #tpu.memory_space<vmem>>, vector<16x128xf32>,
    return
  }
  func.func @transform_0(%arg0: i32) -> (i32, i32) {
    %c0_i32 = arith.constant 0 : i32
    %c0_i32_0 = arith.constant 0 : i32
    %c0_i32_1 = arith.constant 0 : i32
    return %c0_i32, %c0_i32_0 : i32, i32
  }
  func.func @transform_1(%arg0: i32) -> (i32, i32) {
    %c0_i32 = arith.constant 0 : i32
    %c0_i32_0 = arith.constant 0 : i32
    %c0_i32_1 = arith.constant 0 : i32
    return %c0_i32, %c0_i32_0 : i32, i32
  }
  func.func @transform_2(%arg0: i32) -> (i32, i32) {
    %c0_i32 = arith.constant 0 : i32
    %c0_i32_0 = arith.constant 0 : i32
    %c0_i32_1 = arith.constant 0 : i32
    return %c0_i32, %c0_i32_0 : i32, i32
  }
  func.func @transform_3(%arg0: i32) -> (i32, i32) {
    %c0_i32 = arith.constant 0 : i32
    %c0_i32_0 = arith.constant 0 : i32
    %c0_i32_1 = arith.constant 0 : i32
    return %c0_i32, %c0_i32_0 : i32, i32
  }
  func.func @transform_4(%arg0: i32) -> (i32, i32) {
    %c0_i32 = arith.constant 0 : i32
    %c0_i32_0 = arith.constant 0 : i32
    %c0_i32_1 = arith.constant 0 : i32
    return %c0_i32, %c0_i32_0 : i32, i32
  }
  func.func @transform_5(%arg0: i32) -> (i32, i32) {
    %c0_i32 = arith.constant 0 : i32
    %c0_i32_0 = arith.constant 0 : i32
    %c0_i32_1 = arith.constant 0 : i32
    return %c0_i32, %c0_i32_0 : i32, i32
  }
}

module attributes {stable_mosaic.version = 11 : i64} {
  func.func @_maxpool_kernel(%arg0: i32, %arg1: memref<4x512xf32, #tpu.memory_space<vmem>>, %arg2: memref<1x512xf32, #tpu.memory_space<vmem>>) attributes {dimension_semantics = [#tpu.dimension_semantics<arbitrary>], iteration_bounds = array<i64: 1>, scalar_prefetch = 0 : i64, scratch_operands = 0 : i64, tpu.core_type = #tpu.core_type<tc>, window_params = [{pipeline_mode = #tpu.pipeline_mode<synchronous>, transform_indices = @transform_0, window_bounds = array<i64: 4, 512>}, {pipeline_mode = #tpu.pipeline_mode<synchronous>, transform_indices = @transform_1, window_bounds = array<i64: 1, 512>}]} {
    %c0 = arith.constant 0 : index
    %c0_0 = arith.constant 0 : index
    %0 = vector.load %arg1[%c0, %c0_0] : memref<4x512xf32, #tpu.memory_space<vmem>>, vector<4x512xf32>
    %cst = arith.constant dense<0xFF800000> : vector<512xf32>
    %1 = vector.multi_reduction <maximumf>, %0, %cst [0] : vector<4x512xf32> to vector<512xf32>
    %2 = vector.shape_cast %1 : vector<512xf32> to vector<1x512xf32>
    %c0_1 = arith.constant 0 : index
    %c0_2 = arith.constant 0 : index
    %3 = vector.load %arg2[%c0_1, %c0_2] : memref<1x512xf32, #tpu.memory_space<vmem>>, vector<1x512xf32>
    tpu.vector_store %arg2[%c0_1, %c0_2], %2 {strides = array<i32>} : memref<1x512xf32, #tpu.memory_space<vmem>>, vector<1x512xf32>,
    return
  }
  func.func @transform_0(%arg0: i32) -> (i32, i32) {
    %c0_i32 = arith.constant 0 : i32
    %c0_i32_0 = arith.constant 0 : i32
    %c0_i32_1 = arith.constant 0 : i32
    return %c0_i32, %c0_i32_0 : i32, i32
  }
  func.func @transform_1(%arg0: i32) -> (i32, i32) {
    %c0_i32 = arith.constant 0 : i32
    %c0_i32_0 = arith.constant 0 : i32
    %c0_i32_1 = arith.constant 0 : i32
    return %c0_i32, %c0_i32_0 : i32, i32
  }
}

module attributes {stable_mosaic.version = 11 : i64} {
  func.func @_conv_bn_relu_kernel(%arg0: i32, %arg1: memref<144x128xbf16, #tpu.memory_space<vmem>>, %arg2: memref<16x144xbf16, #tpu.memory_space<vmem>>, %arg3: memref<16x1xf32, #tpu.memory_space<vmem>>, %arg4: memref<16x1xf32, #tpu.memory_space<vmem>>, %arg5: memref<16x1xf32, #tpu.memory_space<vmem>>, %arg6: memref<16x128xf32, #tpu.memory_space<vmem>>) attributes {dimension_semantics = [#tpu.dimension_semantics<arbitrary>], iteration_bounds = array<i64: 1>, scalar_prefetch = 0 : i64, scratch_operands = 0 : i64, tpu.core_type = #tpu.core_type<tc>, window_params = [{pipeline_mode = #tpu.pipeline_mode<synchronous>, transform_indices = @transform_0, window_bounds = array<i64: 144, 128>}, {pipeline_mode = #tpu.pipeline_mode<synchronous>, transform_indices = @transform_1, window_bounds = array<i64: 16, 144>}, {pipeline_mode = #tpu.pipeline_mode<synchronous>, transform_indices = @transform_2, window_bounds = array<i64: 16, 1>}, {pipeline_mode = #tpu.pipeline_mode<synchronous>, transform_indices = @transform_3, window_bounds = array<i64: 16, 1>}, {pipeline_mode = #tpu.pipeline_mode<synchronous>, transform_indices = @transform_4, window_bounds = array<i64: 16, 1>}, {pipeline_mode = #tpu.pipeline_mode<synchronous>, transform_indices = @transform_5, window_bounds = array<i64: 16, 128>}]} {
    %c0 = arith.constant 0 : index
    %c0_0 = arith.constant 0 : index
    %0 = vector.load %arg2[%c0, %c0_0] : memref<16x144xbf16, #tpu.memory_space<vmem>>, vector<16x144xbf16>
    %c0_1 = arith.constant 0 : index
    %c0_2 = arith.constant 0 : index
    %1 = vector.load %arg1[%c0_1, %c0_2] : memref<144x128xbf16, #tpu.memory_space<vmem>>, vector<144x128xbf16>
    %cst = arith.constant dense<0.000000e+00> : vector<16x128xf32>
    %2 = tpu.matmul %0, %1, %cst {dimension_numbers = #tpu.dot_dimension_numbers<[1], [0], [0], [1], [0, 0, 1, 1], [], []>} : vector<16x144xbf16>, vector<144x128xbf16>, vector<16x128xf32> -> vector<16x128xf32>
    %c0_3 = arith.constant 0 : index
    %c0_4 = arith.constant 0 : index
    %3 = vector.load %arg3[%c0_3, %c0_4] : memref<16x1xf32, #tpu.memory_space<vmem>>, vector<16x1xf32>
    %4 = vector.broadcast %3 : vector<16x1xf32> to vector<16x128xf32>
    %5 = arith.addf %2, %4 : vector<16x128xf32>
    %cst_5 = arith.constant dense<0.000000e+00> : vector<16xf32>
    %6 = vector.multi_reduction <add>, %5, %cst_5 [1] : vector<16x128xf32> to vector<16xf32>
    %7 = vector.shape_cast %6 : vector<16xf32> to vector<16x1xf32>
    %cst_6 = arith.constant 7.812500e-03 : f32
    %8 = vector.broadcast %cst_6 : f32 to vector<16x1xf32>
    %9 = arith.mulf %7, %8 : vector<16x1xf32>
    %10 = vector.broadcast %9 : vector<16x1xf32> to vector<16x128xf32>
    %11 = arith.subf %5, %10 : vector<16x128xf32>
    %12 = arith.mulf %11, %11 : vector<16x128xf32>
    %cst_7 = arith.constant dense<0.000000e+00> : vector<16xf32>
    %13 = vector.multi_reduction <add>, %12, %cst_7 [1] : vector<16x128xf32> to vector<16xf32>
    %14 = vector.shape_cast %13 : vector<16xf32> to vector<16x1xf32>
    %cst_8 = arith.constant 7.812500e-03 : f32
    %15 = vector.broadcast %cst_8 : f32 to vector<16x1xf32>
    %16 = arith.mulf %14, %15 : vector<16x1xf32>
    %cst_9 = arith.constant 9.99999974E-6 : f32
    %17 = vector.broadcast %cst_9 : f32 to vector<16x1xf32>
    %18 = arith.addf %16, %17 : vector<16x1xf32>
    %19 = math.rsqrt %18 : vector<16x1xf32>
    %20 = vector.broadcast %19 : vector<16x1xf32> to vector<16x128xf32>
    %21 = arith.mulf %11, %20 : vector<16x128xf32>
    %c0_10 = arith.constant 0 : index
    %c0_11 = arith.constant 0 : index
    %22 = vector.load %arg4[%c0_10, %c0_11] : memref<16x1xf32, #tpu.memory_space<vmem>>, vector<16x1xf32>
    %23 = vector.broadcast %22 : vector<16x1xf32> to vector<16x128xf32>
    %24 = arith.mulf %21, %23 : vector<16x128xf32>
    %c0_12 = arith.constant 0 : index
    %c0_13 = arith.constant 0 : index
    %25 = vector.load %arg5[%c0_12, %c0_13] : memref<16x1xf32, #tpu.memory_space<vmem>>, vector<16x1xf32>
    %26 = vector.broadcast %25 : vector<16x1xf32> to vector<16x128xf32>
    %27 = arith.addf %24, %26 : vector<16x128xf32>
    %cst_14 = arith.constant 0.000000e+00 : f32
    %28 = vector.broadcast %cst_14 : f32 to vector<16x128xf32>
    %29 = arith.maximumf %27, %28 : vector<16x128xf32>
    %c0_15 = arith.constant 0 : index
    %c0_16 = arith.constant 0 : index
    %30 = vector.load %arg6[%c0_15, %c0_16] : memref<16x128xf32, #tpu.memory_space<vmem>>, vector<16x128xf32>
    tpu.vector_store %arg6[%c0_15, %c0_16], %29 {strides = array<i32>} : memref<16x128xf32, #tpu.memory_space<vmem>>, vector<16x128xf32>,
    return
  }
  func.func @transform_0(%arg0: i32) -> (i32, i32) {
    %c0_i32 = arith.constant 0 : i32
    %c0_i32_0 = arith.constant 0 : i32
    %c0_i32_1 = arith.constant 0 : i32
    return %c0_i32, %c0_i32_0 : i32, i32
  }
  func.func @transform_1(%arg0: i32) -> (i32, i32) {
    %c0_i32 = arith.constant 0 : i32
    %c0_i32_0 = arith.constant 0 : i32
    %c0_i32_1 = arith.constant 0 : i32
    return %c0_i32, %c0_i32_0 : i32, i32
  }
  func.func @transform_2(%arg0: i32) -> (i32, i32) {
    %c0_i32 = arith.constant 0 : i32
    %c0_i32_0 = arith.constant 0 : i32
    %c0_i32_1 = arith.constant 0 : i32
    return %c0_i32, %c0_i32_0 : i32, i32
  }
  func.func @transform_3(%arg0: i32) -> (i32, i32) {
    %c0_i32 = arith.constant 0 : i32
    %c0_i32_0 = arith.constant 0 : i32
    %c0_i32_1 = arith.constant 0 : i32
    return %c0_i32, %c0_i32_0 : i32, i32
  }
  func.func @transform_4(%arg0: i32) -> (i32, i32) {
    %c0_i32 = arith.constant 0 : i32
    %c0_i32_0 = arith.constant 0 : i32
    %c0_i32_1 = arith.constant 0 : i32
    return %c0_i32, %c0_i32_0 : i32, i32
  }
  func.func @transform_5(%arg0: i32) -> (i32, i32) {
    %c0_i32 = arith.constant 0 : i32
    %c0_i32_0 = arith.constant 0 : i32
    %c0_i32_1 = arith.constant 0 : i32
    return %c0_i32, %c0_i32_0 : i32, i32
  }
}

module attributes {stable_mosaic.version = 11 : i64} {
  func.func @_conv_bn_relu_kernel(%arg0: i32, %arg1: memref<144x32xbf16, #tpu.memory_space<vmem>>, %arg2: memref<32x144xbf16, #tpu.memory_space<vmem>>, %arg3: memref<32x1xf32, #tpu.memory_space<vmem>>, %arg4: memref<32x1xf32, #tpu.memory_space<vmem>>, %arg5: memref<32x1xf32, #tpu.memory_space<vmem>>, %arg6: memref<32x32xf32, #tpu.memory_space<vmem>>) attributes {dimension_semantics = [#tpu.dimension_semantics<arbitrary>], iteration_bounds = array<i64: 1>, scalar_prefetch = 0 : i64, scratch_operands = 0 : i64, tpu.core_type = #tpu.core_type<tc>, window_params = [{pipeline_mode = #tpu.pipeline_mode<synchronous>, transform_indices = @transform_0, window_bounds = array<i64: 144, 32>}, {pipeline_mode = #tpu.pipeline_mode<synchronous>, transform_indices = @transform_1, window_bounds = array<i64: 32, 144>}, {pipeline_mode = #tpu.pipeline_mode<synchronous>, transform_indices = @transform_2, window_bounds = array<i64: 32, 1>}, {pipeline_mode = #tpu.pipeline_mode<synchronous>, transform_indices = @transform_3, window_bounds = array<i64: 32, 1>}, {pipeline_mode = #tpu.pipeline_mode<synchronous>, transform_indices = @transform_4, window_bounds = array<i64: 32, 1>}, {pipeline_mode = #tpu.pipeline_mode<synchronous>, transform_indices = @transform_5, window_bounds = array<i64: 32, 32>}]} {
    %c0 = arith.constant 0 : index
    %c0_0 = arith.constant 0 : index
    %0 = vector.load %arg2[%c0, %c0_0] : memref<32x144xbf16, #tpu.memory_space<vmem>>, vector<32x144xbf16>
    %c0_1 = arith.constant 0 : index
    %c0_2 = arith.constant 0 : index
    %1 = vector.load %arg1[%c0_1, %c0_2] : memref<144x32xbf16, #tpu.memory_space<vmem>>, vector<144x32xbf16>
    %cst = arith.constant dense<0.000000e+00> : vector<32x32xf32>
    %2 = tpu.matmul %0, %1, %cst {dimension_numbers = #tpu.dot_dimension_numbers<[1], [0], [0], [1], [0, 0, 1, 1], [], []>} : vector<32x144xbf16>, vector<144x32xbf16>, vector<32x32xf32> -> vector<32x32xf32>
    %c0_3 = arith.constant 0 : index
    %c0_4 = arith.constant 0 : index
    %3 = vector.load %arg3[%c0_3, %c0_4] : memref<32x1xf32, #tpu.memory_space<vmem>>, vector<32x1xf32>
    %4 = vector.broadcast %3 : vector<32x1xf32> to vector<32x32xf32>
    %5 = arith.addf %2, %4 : vector<32x32xf32>
    %cst_5 = arith.constant dense<0.000000e+00> : vector<32xf32>
    %6 = vector.multi_reduction <add>, %5, %cst_5 [1] : vector<32x32xf32> to vector<32xf32>
    %7 = vector.shape_cast %6 : vector<32xf32> to vector<32x1xf32>
    %cst_6 = arith.constant 3.125000e-02 : f32
    %8 = vector.broadcast %cst_6 : f32 to vector<32x1xf32>
    %9 = arith.mulf %7, %8 : vector<32x1xf32>
    %10 = vector.broadcast %9 : vector<32x1xf32> to vector<32x32xf32>
    %11 = arith.subf %5, %10 : vector<32x32xf32>
    %12 = arith.mulf %11, %11 : vector<32x32xf32>
    %cst_7 = arith.constant dense<0.000000e+00> : vector<32xf32>
    %13 = vector.multi_reduction <add>, %12, %cst_7 [1] : vector<32x32xf32> to vector<32xf32>
    %14 = vector.shape_cast %13 : vector<32xf32> to vector<32x1xf32>
    %cst_8 = arith.constant 3.125000e-02 : f32
    %15 = vector.broadcast %cst_8 : f32 to vector<32x1xf32>
    %16 = arith.mulf %14, %15 : vector<32x1xf32>
    %cst_9 = arith.constant 9.99999974E-6 : f32
    %17 = vector.broadcast %cst_9 : f32 to vector<32x1xf32>
    %18 = arith.addf %16, %17 : vector<32x1xf32>
    %19 = math.rsqrt %18 : vector<32x1xf32>
    %20 = vector.broadcast %19 : vector<32x1xf32> to vector<32x32xf32>
    %21 = arith.mulf %11, %20 : vector<32x32xf32>
    %c0_10 = arith.constant 0 : index
    %c0_11 = arith.constant 0 : index
    %22 = vector.load %arg4[%c0_10, %c0_11] : memref<32x1xf32, #tpu.memory_space<vmem>>, vector<32x1xf32>
    %23 = vector.broadcast %22 : vector<32x1xf32> to vector<32x32xf32>
    %24 = arith.mulf %21, %23 : vector<32x32xf32>
    %c0_12 = arith.constant 0 : index
    %c0_13 = arith.constant 0 : index
    %25 = vector.load %arg5[%c0_12, %c0_13] : memref<32x1xf32, #tpu.memory_space<vmem>>, vector<32x1xf32>
    %26 = vector.broadcast %25 : vector<32x1xf32> to vector<32x32xf32>
    %27 = arith.addf %24, %26 : vector<32x32xf32>
    %cst_14 = arith.constant 0.000000e+00 : f32
    %28 = vector.broadcast %cst_14 : f32 to vector<32x32xf32>
    %29 = arith.maximumf %27, %28 : vector<32x32xf32>
    %c0_15 = arith.constant 0 : index
    %c0_16 = arith.constant 0 : index
    %30 = vector.load %arg6[%c0_15, %c0_16] : memref<32x32xf32, #tpu.memory_space<vmem>>, vector<32x32xf32>
    tpu.vector_store %arg6[%c0_15, %c0_16], %29 {strides = array<i32>} : memref<32x32xf32, #tpu.memory_space<vmem>>, vector<32x32xf32>,
    return
  }
  func.func @transform_0(%arg0: i32) -> (i32, i32) {
    %c0_i32 = arith.constant 0 : i32
    %c0_i32_0 = arith.constant 0 : i32
    %c0_i32_1 = arith.constant 0 : i32
    return %c0_i32, %c0_i32_0 : i32, i32
  }
  func.func @transform_1(%arg0: i32) -> (i32, i32) {
    %c0_i32 = arith.constant 0 : i32
    %c0_i32_0 = arith.constant 0 : i32
    %c0_i32_1 = arith.constant 0 : i32
    return %c0_i32, %c0_i32_0 : i32, i32
  }
  func.func @transform_2(%arg0: i32) -> (i32, i32) {
    %c0_i32 = arith.constant 0 : i32
    %c0_i32_0 = arith.constant 0 : i32
    %c0_i32_1 = arith.constant 0 : i32
    return %c0_i32, %c0_i32_0 : i32, i32
  }
  func.func @transform_3(%arg0: i32) -> (i32, i32) {
    %c0_i32 = arith.constant 0 : i32
    %c0_i32_0 = arith.constant 0 : i32
    %c0_i32_1 = arith.constant 0 : i32
    return %c0_i32, %c0_i32_0 : i32, i32
  }
  func.func @transform_4(%arg0: i32) -> (i32, i32) {
    %c0_i32 = arith.constant 0 : i32
    %c0_i32_0 = arith.constant 0 : i32
    %c0_i32_1 = arith.constant 0 : i32
    return %c0_i32, %c0_i32_0 : i32, i32
  }
  func.func @transform_5(%arg0: i32) -> (i32, i32) {
    %c0_i32 = arith.constant 0 : i32
    %c0_i32_0 = arith.constant 0 : i32
    %c0_i32_1 = arith.constant 0 : i32
    return %c0_i32, %c0_i32_0 : i32, i32
  }
}

module attributes {stable_mosaic.version = 11 : i64} {
  func.func @_conv_bn_relu_kernel(%arg0: i32, %arg1: memref<288x32xbf16, #tpu.memory_space<vmem>>, %arg2: memref<32x288xbf16, #tpu.memory_space<vmem>>, %arg3: memref<32x1xf32, #tpu.memory_space<vmem>>, %arg4: memref<32x1xf32, #tpu.memory_space<vmem>>, %arg5: memref<32x1xf32, #tpu.memory_space<vmem>>, %arg6: memref<32x32xf32, #tpu.memory_space<vmem>>) attributes {dimension_semantics = [#tpu.dimension_semantics<arbitrary>], iteration_bounds = array<i64: 1>, scalar_prefetch = 0 : i64, scratch_operands = 0 : i64, tpu.core_type = #tpu.core_type<tc>, window_params = [{pipeline_mode = #tpu.pipeline_mode<synchronous>, transform_indices = @transform_0, window_bounds = array<i64: 288, 32>}, {pipeline_mode = #tpu.pipeline_mode<synchronous>, transform_indices = @transform_1, window_bounds = array<i64: 32, 288>}, {pipeline_mode = #tpu.pipeline_mode<synchronous>, transform_indices = @transform_2, window_bounds = array<i64: 32, 1>}, {pipeline_mode = #tpu.pipeline_mode<synchronous>, transform_indices = @transform_3, window_bounds = array<i64: 32, 1>}, {pipeline_mode = #tpu.pipeline_mode<synchronous>, transform_indices = @transform_4, window_bounds = array<i64: 32, 1>}, {pipeline_mode = #tpu.pipeline_mode<synchronous>, transform_indices = @transform_5, window_bounds = array<i64: 32, 32>}]} {
    %c0 = arith.constant 0 : index
    %c0_0 = arith.constant 0 : index
    %0 = vector.load %arg2[%c0, %c0_0] : memref<32x288xbf16, #tpu.memory_space<vmem>>, vector<32x288xbf16>
    %c0_1 = arith.constant 0 : index
    %c0_2 = arith.constant 0 : index
    %1 = vector.load %arg1[%c0_1, %c0_2] : memref<288x32xbf16, #tpu.memory_space<vmem>>, vector<288x32xbf16>
    %cst = arith.constant dense<0.000000e+00> : vector<32x32xf32>
    %2 = tpu.matmul %0, %1, %cst {dimension_numbers = #tpu.dot_dimension_numbers<[1], [0], [0], [1], [0, 0, 1, 1], [], []>} : vector<32x288xbf16>, vector<288x32xbf16>, vector<32x32xf32> -> vector<32x32xf32>
    %c0_3 = arith.constant 0 : index
    %c0_4 = arith.constant 0 : index
    %3 = vector.load %arg3[%c0_3, %c0_4] : memref<32x1xf32, #tpu.memory_space<vmem>>, vector<32x1xf32>
    %4 = vector.broadcast %3 : vector<32x1xf32> to vector<32x32xf32>
    %5 = arith.addf %2, %4 : vector<32x32xf32>
    %cst_5 = arith.constant dense<0.000000e+00> : vector<32xf32>
    %6 = vector.multi_reduction <add>, %5, %cst_5 [1] : vector<32x32xf32> to vector<32xf32>
    %7 = vector.shape_cast %6 : vector<32xf32> to vector<32x1xf32>
    %cst_6 = arith.constant 3.125000e-02 : f32
    %8 = vector.broadcast %cst_6 : f32 to vector<32x1xf32>
    %9 = arith.mulf %7, %8 : vector<32x1xf32>
    %10 = vector.broadcast %9 : vector<32x1xf32> to vector<32x32xf32>
    %11 = arith.subf %5, %10 : vector<32x32xf32>
    %12 = arith.mulf %11, %11 : vector<32x32xf32>
    %cst_7 = arith.constant dense<0.000000e+00> : vector<32xf32>
    %13 = vector.multi_reduction <add>, %12, %cst_7 [1] : vector<32x32xf32> to vector<32xf32>
    %14 = vector.shape_cast %13 : vector<32xf32> to vector<32x1xf32>
    %cst_8 = arith.constant 3.125000e-02 : f32
    %15 = vector.broadcast %cst_8 : f32 to vector<32x1xf32>
    %16 = arith.mulf %14, %15 : vector<32x1xf32>
    %cst_9 = arith.constant 9.99999974E-6 : f32
    %17 = vector.broadcast %cst_9 : f32 to vector<32x1xf32>
    %18 = arith.addf %16, %17 : vector<32x1xf32>
    %19 = math.rsqrt %18 : vector<32x1xf32>
    %20 = vector.broadcast %19 : vector<32x1xf32> to vector<32x32xf32>
    %21 = arith.mulf %11, %20 : vector<32x32xf32>
    %c0_10 = arith.constant 0 : index
    %c0_11 = arith.constant 0 : index
    %22 = vector.load %arg4[%c0_10, %c0_11] : memref<32x1xf32, #tpu.memory_space<vmem>>, vector<32x1xf32>
    %23 = vector.broadcast %22 : vector<32x1xf32> to vector<32x32xf32>
    %24 = arith.mulf %21, %23 : vector<32x32xf32>
    %c0_12 = arith.constant 0 : index
    %c0_13 = arith.constant 0 : index
    %25 = vector.load %arg5[%c0_12, %c0_13] : memref<32x1xf32, #tpu.memory_space<vmem>>, vector<32x1xf32>
    %26 = vector.broadcast %25 : vector<32x1xf32> to vector<32x32xf32>
    %27 = arith.addf %24, %26 : vector<32x32xf32>
    %cst_14 = arith.constant 0.000000e+00 : f32
    %28 = vector.broadcast %cst_14 : f32 to vector<32x32xf32>
    %29 = arith.maximumf %27, %28 : vector<32x32xf32>
    %c0_15 = arith.constant 0 : index
    %c0_16 = arith.constant 0 : index
    %30 = vector.load %arg6[%c0_15, %c0_16] : memref<32x32xf32, #tpu.memory_space<vmem>>, vector<32x32xf32>
    tpu.vector_store %arg6[%c0_15, %c0_16], %29 {strides = array<i32>} : memref<32x32xf32, #tpu.memory_space<vmem>>, vector<32x32xf32>,
    return
  }
  func.func @transform_0(%arg0: i32) -> (i32, i32) {
    %c0_i32 = arith.constant 0 : i32
    %c0_i32_0 = arith.constant 0 : i32
    %c0_i32_1 = arith.constant 0 : i32
    return %c0_i32, %c0_i32_0 : i32, i32
  }
  func.func @transform_1(%arg0: i32) -> (i32, i32) {
    %c0_i32 = arith.constant 0 : i32
    %c0_i32_0 = arith.constant 0 : i32
    %c0_i32_1 = arith.constant 0 : i32
    return %c0_i32, %c0_i32_0 : i32, i32
  }
  func.func @transform_2(%arg0: i32) -> (i32, i32) {
    %c0_i32 = arith.constant 0 : i32
    %c0_i32_0 = arith.constant 0 : i32
    %c0_i32_1 = arith.constant 0 : i32
    return %c0_i32, %c0_i32_0 : i32, i32
  }
  func.func @transform_3(%arg0: i32) -> (i32, i32) {
    %c0_i32 = arith.constant 0 : i32
    %c0_i32_0 = arith.constant 0 : i32
    %c0_i32_1 = arith.constant 0 : i32
    return %c0_i32, %c0_i32_0 : i32, i32
  }
  func.func @transform_4(%arg0: i32) -> (i32, i32) {
    %c0_i32 = arith.constant 0 : i32
    %c0_i32_0 = arith.constant 0 : i32
    %c0_i32_1 = arith.constant 0 : i32
    return %c0_i32, %c0_i32_0 : i32, i32
  }
  func.func @transform_5(%arg0: i32) -> (i32, i32) {
    %c0_i32 = arith.constant 0 : i32
    %c0_i32_0 = arith.constant 0 : i32
    %c0_i32_1 = arith.constant 0 : i32
    return %c0_i32, %c0_i32_0 : i32, i32
  }
}

module attributes {stable_mosaic.version = 11 : i64} {
  func.func @_conv_act_kernel(%arg0: i32, %arg1: memref<288x32xbf16, #tpu.memory_space<vmem>>, %arg2: memref<1x288xbf16, #tpu.memory_space<vmem>>, %arg3: memref<1x1xf32, #tpu.memory_space<vmem>>, %arg4: memref<1x32xf32, #tpu.memory_space<vmem>>) attributes {dimension_semantics = [#tpu.dimension_semantics<arbitrary>], iteration_bounds = array<i64: 1>, scalar_prefetch = 0 : i64, scratch_operands = 0 : i64, tpu.core_type = #tpu.core_type<tc>, window_params = [{pipeline_mode = #tpu.pipeline_mode<synchronous>, transform_indices = @transform_0, window_bounds = array<i64: 288, 32>}, {pipeline_mode = #tpu.pipeline_mode<synchronous>, transform_indices = @transform_1, window_bounds = array<i64: 1, 288>}, {pipeline_mode = #tpu.pipeline_mode<synchronous>, transform_indices = @transform_2, window_bounds = array<i64: 1, 1>}, {pipeline_mode = #tpu.pipeline_mode<synchronous>, transform_indices = @transform_3, window_bounds = array<i64: 1, 32>}]} {
    %c0 = arith.constant 0 : index
    %c0_0 = arith.constant 0 : index
    %0 = vector.load %arg2[%c0, %c0_0] : memref<1x288xbf16, #tpu.memory_space<vmem>>, vector<1x288xbf16>
    %c0_1 = arith.constant 0 : index
    %c0_2 = arith.constant 0 : index
    %1 = vector.load %arg1[%c0_1, %c0_2] : memref<288x32xbf16, #tpu.memory_space<vmem>>, vector<288x32xbf16>
    %cst = arith.constant dense<0.000000e+00> : vector<1x32xf32>
    %2 = tpu.matmul %0, %1, %cst {dimension_numbers = #tpu.dot_dimension_numbers<[1], [0], [0], [1], [0, 0, 1, 1], [], []>} : vector<1x288xbf16>, vector<288x32xbf16>, vector<1x32xf32> -> vector<1x32xf32>
    %c0_3 = arith.constant 0 : index
    %c0_4 = arith.constant 0 : index
    %3 = vector.load %arg3[%c0_3, %c0_4] : memref<1x1xf32, #tpu.memory_space<vmem>>, vector<1x1xf32>
    %4 = vector.broadcast %3 : vector<1x1xf32> to vector<1x32xf32>
    %5 = arith.addf %2, %4 : vector<1x32xf32>
    %6 = arith.negf %5 : vector<1x32xf32>
    %7 = math.exp %6 : vector<1x32xf32>
    %cst_5 = arith.constant 1.000000e+00 : f32
    %8 = vector.broadcast %cst_5 : f32 to vector<1x32xf32>
    %9 = arith.addf %8, %7 : vector<1x32xf32>
    %10 = arith.divf %8, %9 : vector<1x32xf32>
    %c0_6 = arith.constant 0 : index
    %c0_7 = arith.constant 0 : index
    %11 = vector.load %arg4[%c0_6, %c0_7] : memref<1x32xf32, #tpu.memory_space<vmem>>, vector<1x32xf32>
    tpu.vector_store %arg4[%c0_6, %c0_7], %10 {strides = array<i32>} : memref<1x32xf32, #tpu.memory_space<vmem>>, vector<1x32xf32>,
    return
  }
  func.func @transform_0(%arg0: i32) -> (i32, i32) {
    %c0_i32 = arith.constant 0 : i32
    %c0_i32_0 = arith.constant 0 : i32
    %c0_i32_1 = arith.constant 0 : i32
    return %c0_i32, %c0_i32_0 : i32, i32
  }
  func.func @transform_1(%arg0: i32) -> (i32, i32) {
    %c0_i32 = arith.constant 0 : i32
    %c0_i32_0 = arith.constant 0 : i32
    %c0_i32_1 = arith.constant 0 : i32
    return %c0_i32, %c0_i32_0 : i32, i32
  }
  func.func @transform_2(%arg0: i32) -> (i32, i32) {
    %c0_i32 = arith.constant 0 : i32
    %c0_i32_0 = arith.constant 0 : i32
    %c0_i32_1 = arith.constant 0 : i32
    return %c0_i32, %c0_i32_0 : i32, i32
  }
  func.func @transform_3(%arg0: i32) -> (i32, i32) {
    %c0_i32 = arith.constant 0 : i32
    %c0_i32_0 = arith.constant 0 : i32
    %c0_i32_1 = arith.constant 0 : i32
    return %c0_i32, %c0_i32_0 : i32, i32
  }
}

module attributes {stable_mosaic.version = 11 : i64} {
  func.func @_conv_bn_relu_kernel(%arg0: i32, %arg1: memref<9x32xbf16, #tpu.memory_space<vmem>>, %arg2: memref<32x9xbf16, #tpu.memory_space<vmem>>, %arg3: memref<32x1xf32, #tpu.memory_space<vmem>>, %arg4: memref<32x1xf32, #tpu.memory_space<vmem>>, %arg5: memref<32x1xf32, #tpu.memory_space<vmem>>, %arg6: memref<32x32xf32, #tpu.memory_space<vmem>>) attributes {dimension_semantics = [#tpu.dimension_semantics<arbitrary>], iteration_bounds = array<i64: 1>, scalar_prefetch = 0 : i64, scratch_operands = 0 : i64, tpu.core_type = #tpu.core_type<tc>, window_params = [{pipeline_mode = #tpu.pipeline_mode<synchronous>, transform_indices = @transform_0, window_bounds = array<i64: 9, 32>}, {pipeline_mode = #tpu.pipeline_mode<synchronous>, transform_indices = @transform_1, window_bounds = array<i64: 32, 9>}, {pipeline_mode = #tpu.pipeline_mode<synchronous>, transform_indices = @transform_2, window_bounds = array<i64: 32, 1>}, {pipeline_mode = #tpu.pipeline_mode<synchronous>, transform_indices = @transform_3, window_bounds = array<i64: 32, 1>}, {pipeline_mode = #tpu.pipeline_mode<synchronous>, transform_indices = @transform_4, window_bounds = array<i64: 32, 1>}, {pipeline_mode = #tpu.pipeline_mode<synchronous>, transform_indices = @transform_5, window_bounds = array<i64: 32, 32>}]} {
    %c0 = arith.constant 0 : index
    %c0_0 = arith.constant 0 : index
    %0 = vector.load %arg2[%c0, %c0_0] : memref<32x9xbf16, #tpu.memory_space<vmem>>, vector<32x9xbf16>
    %c0_1 = arith.constant 0 : index
    %c0_2 = arith.constant 0 : index
    %1 = vector.load %arg1[%c0_1, %c0_2] : memref<9x32xbf16, #tpu.memory_space<vmem>>, vector<9x32xbf16>
    %cst = arith.constant dense<0.000000e+00> : vector<32x32xf32>
    %2 = tpu.matmul %0, %1, %cst {dimension_numbers = #tpu.dot_dimension_numbers<[1], [0], [0], [1], [0, 0, 1, 1], [], []>} : vector<32x9xbf16>, vector<9x32xbf16>, vector<32x32xf32> -> vector<32x32xf32>
    %c0_3 = arith.constant 0 : index
    %c0_4 = arith.constant 0 : index
    %3 = vector.load %arg3[%c0_3, %c0_4] : memref<32x1xf32, #tpu.memory_space<vmem>>, vector<32x1xf32>
    %4 = vector.broadcast %3 : vector<32x1xf32> to vector<32x32xf32>
    %5 = arith.addf %2, %4 : vector<32x32xf32>
    %cst_5 = arith.constant dense<0.000000e+00> : vector<32xf32>
    %6 = vector.multi_reduction <add>, %5, %cst_5 [1] : vector<32x32xf32> to vector<32xf32>
    %7 = vector.shape_cast %6 : vector<32xf32> to vector<32x1xf32>
    %cst_6 = arith.constant 3.125000e-02 : f32
    %8 = vector.broadcast %cst_6 : f32 to vector<32x1xf32>
    %9 = arith.mulf %7, %8 : vector<32x1xf32>
    %10 = vector.broadcast %9 : vector<32x1xf32> to vector<32x32xf32>
    %11 = arith.subf %5, %10 : vector<32x32xf32>
    %12 = arith.mulf %11, %11 : vector<32x32xf32>
    %cst_7 = arith.constant dense<0.000000e+00> : vector<32xf32>
    %13 = vector.multi_reduction <add>, %12, %cst_7 [1] : vector<32x32xf32> to vector<32xf32>
    %14 = vector.shape_cast %13 : vector<32xf32> to vector<32x1xf32>
    %cst_8 = arith.constant 3.125000e-02 : f32
    %15 = vector.broadcast %cst_8 : f32 to vector<32x1xf32>
    %16 = arith.mulf %14, %15 : vector<32x1xf32>
    %cst_9 = arith.constant 9.99999974E-6 : f32
    %17 = vector.broadcast %cst_9 : f32 to vector<32x1xf32>
    %18 = arith.addf %16, %17 : vector<32x1xf32>
    %19 = math.rsqrt %18 : vector<32x1xf32>
    %20 = vector.broadcast %19 : vector<32x1xf32> to vector<32x32xf32>
    %21 = arith.mulf %11, %20 : vector<32x32xf32>
    %c0_10 = arith.constant 0 : index
    %c0_11 = arith.constant 0 : index
    %22 = vector.load %arg4[%c0_10, %c0_11] : memref<32x1xf32, #tpu.memory_space<vmem>>, vector<32x1xf32>
    %23 = vector.broadcast %22 : vector<32x1xf32> to vector<32x32xf32>
    %24 = arith.mulf %21, %23 : vector<32x32xf32>
    %c0_12 = arith.constant 0 : index
    %c0_13 = arith.constant 0 : index
    %25 = vector.load %arg5[%c0_12, %c0_13] : memref<32x1xf32, #tpu.memory_space<vmem>>, vector<32x1xf32>
    %26 = vector.broadcast %25 : vector<32x1xf32> to vector<32x32xf32>
    %27 = arith.addf %24, %26 : vector<32x32xf32>
    %cst_14 = arith.constant 0.000000e+00 : f32
    %28 = vector.broadcast %cst_14 : f32 to vector<32x32xf32>
    %29 = arith.maximumf %27, %28 : vector<32x32xf32>
    %c0_15 = arith.constant 0 : index
    %c0_16 = arith.constant 0 : index
    %30 = vector.load %arg6[%c0_15, %c0_16] : memref<32x32xf32, #tpu.memory_space<vmem>>, vector<32x32xf32>
    tpu.vector_store %arg6[%c0_15, %c0_16], %29 {strides = array<i32>} : memref<32x32xf32, #tpu.memory_space<vmem>>, vector<32x32xf32>,
    return
  }
  func.func @transform_0(%arg0: i32) -> (i32, i32) {
    %c0_i32 = arith.constant 0 : i32
    %c0_i32_0 = arith.constant 0 : i32
    %c0_i32_1 = arith.constant 0 : i32
    return %c0_i32, %c0_i32_0 : i32, i32
  }
  func.func @transform_1(%arg0: i32) -> (i32, i32) {
    %c0_i32 = arith.constant 0 : i32
    %c0_i32_0 = arith.constant 0 : i32
    %c0_i32_1 = arith.constant 0 : i32
    return %c0_i32, %c0_i32_0 : i32, i32
  }
  func.func @transform_2(%arg0: i32) -> (i32, i32) {
    %c0_i32 = arith.constant 0 : i32
    %c0_i32_0 = arith.constant 0 : i32
    %c0_i32_1 = arith.constant 0 : i32
    return %c0_i32, %c0_i32_0 : i32, i32
  }
  func.func @transform_3(%arg0: i32) -> (i32, i32) {
    %c0_i32 = arith.constant 0 : i32
    %c0_i32_0 = arith.constant 0 : i32
    %c0_i32_1 = arith.constant 0 : i32
    return %c0_i32, %c0_i32_0 : i32, i32
  }
  func.func @transform_4(%arg0: i32) -> (i32, i32) {
    %c0_i32 = arith.constant 0 : i32
    %c0_i32_0 = arith.constant 0 : i32
    %c0_i32_1 = arith.constant 0 : i32
    return %c0_i32, %c0_i32_0 : i32, i32
  }
  func.func @transform_5(%arg0: i32) -> (i32, i32) {
    %c0_i32 = arith.constant 0 : i32
    %c0_i32_0 = arith.constant 0 : i32
    %c0_i32_1 = arith.constant 0 : i32
    return %c0_i32, %c0_i32_0 : i32, i32
  }
}

module attributes {stable_mosaic.version = 11 : i64} {
  func.func @_att_out_kernel(%arg0: i32, %arg1: memref<16x128xf32, #tpu.memory_space<vmem>>, %arg2: memref<1x128xf32, #tpu.memory_space<vmem>>, %arg3: memref<16x16xf32, #tpu.memory_space<vmem>>, %arg4: memref<16x1xf32, #tpu.memory_space<vmem>>, %arg5: memref<16x1xf32, #tpu.memory_space<vmem>>, %arg6: memref<16x1xf32, #tpu.memory_space<vmem>>, %arg7: memref<16x128xf32, #tpu.memory_space<vmem>>) attributes {dimension_semantics = [#tpu.dimension_semantics<arbitrary>], iteration_bounds = array<i64: 1>, scalar_prefetch = 0 : i64, scratch_operands = 0 : i64, tpu.core_type = #tpu.core_type<tc>, window_params = [{pipeline_mode = #tpu.pipeline_mode<synchronous>, transform_indices = @transform_0, window_bounds = array<i64: 16, 128>}, {pipeline_mode = #tpu.pipeline_mode<synchronous>, transform_indices = @transform_1, window_bounds = array<i64: 1, 128>}, {pipeline_mode = #tpu.pipeline_mode<synchronous>, transform_indices = @transform_2, window_bounds = array<i64: 16, 16>}, {pipeline_mode = #tpu.pipeline_mode<synchronous>, transform_indices = @transform_3, window_bounds = array<i64: 16, 1>}, {pipeline_mode = #tpu.pipeline_mode<synchronous>, transform_indices = @transform_4, window_bounds = array<i64: 16, 1>}, {pipeline_mode = #tpu.pipeline_mode<synchronous>, transform_indices = @transform_5, window_bounds = array<i64: 16, 1>}, {pipeline_mode = #tpu.pipeline_mode<synchronous>, transform_indices = @transform_6, window_bounds = array<i64: 16, 128>}]} {
    %c0 = arith.constant 0 : index
    %c0_0 = arith.constant 0 : index
    %0 = vector.load %arg1[%c0, %c0_0] : memref<16x128xf32, #tpu.memory_space<vmem>>, vector<16x128xf32>
    %c0_1 = arith.constant 0 : index
    %c0_2 = arith.constant 0 : index
    %1 = vector.load %arg2[%c0_1, %c0_2] : memref<1x128xf32, #tpu.memory_space<vmem>>, vector<1x128xf32>
    %2 = vector.broadcast %1 : vector<1x128xf32> to vector<16x128xf32>
    %3 = arith.mulf %0, %2 : vector<16x128xf32>
    %c0_3 = arith.constant 0 : index
    %c0_4 = arith.constant 0 : index
    %4 = vector.load %arg3[%c0_3, %c0_4] : memref<16x16xf32, #tpu.memory_space<vmem>>, vector<16x16xf32>
    %cst = arith.constant dense<0.000000e+00> : vector<16x128xf32>
    %5 = tpu.matmul %4, %3, %cst {dimension_numbers = #tpu.dot_dimension_numbers<[1], [0], [0], [1], [0, 0, 1, 1], [], []>} : vector<16x16xf32>, vector<16x128xf32>, vector<16x128xf32> -> vector<16x128xf32>
    %c0_5 = arith.constant 0 : index
    %c0_6 = arith.constant 0 : index
    %6 = vector.load %arg4[%c0_5, %c0_6] : memref<16x1xf32, #tpu.memory_space<vmem>>, vector<16x1xf32>
    %7 = vector.broadcast %6 : vector<16x1xf32> to vector<16x128xf32>
    %8 = arith.addf %5, %7 : vector<16x128xf32>
    %cst_7 = arith.constant dense<0.000000e+00> : vector<16xf32>
    %9 = vector.multi_reduction <add>, %8, %cst_7 [1] : vector<16x128xf32> to vector<16xf32>
    %10 = vector.shape_cast %9 : vector<16xf32> to vector<16x1xf32>
    %cst_8 = arith.constant 7.812500e-03 : f32
    %11 = vector.broadcast %cst_8 : f32 to vector<16x1xf32>
    %12 = arith.mulf %10, %11 : vector<16x1xf32>
    %13 = vector.broadcast %12 : vector<16x1xf32> to vector<16x128xf32>
    %14 = arith.subf %8, %13 : vector<16x128xf32>
    %15 = arith.mulf %14, %14 : vector<16x128xf32>
    %cst_9 = arith.constant dense<0.000000e+00> : vector<16xf32>
    %16 = vector.multi_reduction <add>, %15, %cst_9 [1] : vector<16x128xf32> to vector<16xf32>
    %17 = vector.shape_cast %16 : vector<16xf32> to vector<16x1xf32>
    %cst_10 = arith.constant 7.812500e-03 : f32
    %18 = vector.broadcast %cst_10 : f32 to vector<16x1xf32>
    %19 = arith.mulf %17, %18 : vector<16x1xf32>
    %cst_11 = arith.constant 9.99999974E-6 : f32
    %20 = vector.broadcast %cst_11 : f32 to vector<16x1xf32>
    %21 = arith.addf %19, %20 : vector<16x1xf32>
    %22 = math.rsqrt %21 : vector<16x1xf32>
    %23 = vector.broadcast %22 : vector<16x1xf32> to vector<16x128xf32>
    %24 = arith.mulf %14, %23 : vector<16x128xf32>
    %c0_12 = arith.constant 0 : index
    %c0_13 = arith.constant 0 : index
    %25 = vector.load %arg5[%c0_12, %c0_13] : memref<16x1xf32, #tpu.memory_space<vmem>>, vector<16x1xf32>
    %26 = vector.broadcast %25 : vector<16x1xf32> to vector<16x128xf32>
    %27 = arith.mulf %24, %26 : vector<16x128xf32>
    %c0_14 = arith.constant 0 : index
    %c0_15 = arith.constant 0 : index
    %28 = vector.load %arg6[%c0_14, %c0_15] : memref<16x1xf32, #tpu.memory_space<vmem>>, vector<16x1xf32>
    %29 = vector.broadcast %28 : vector<16x1xf32> to vector<16x128xf32>
    %30 = arith.addf %27, %29 : vector<16x128xf32>
    %c0_16 = arith.constant 0 : index
    %c0_17 = arith.constant 0 : index
    %31 = vector.load %arg7[%c0_16, %c0_17] : memref<16x128xf32, #tpu.memory_space<vmem>>, vector<16x128xf32>
    tpu.vector_store %arg7[%c0_16, %c0_17], %30 {strides = array<i32>} : memref<16x128xf32, #tpu.memory_space<vmem>>, vector<16x128xf32>,
    return
  }
  func.func @transform_0(%arg0: i32) -> (i32, i32) {
    %c0_i32 = arith.constant 0 : i32
    %c0_i32_0 = arith.constant 0 : i32
    %c0_i32_1 = arith.constant 0 : i32
    return %c0_i32, %c0_i32_0 : i32, i32
  }
  func.func @transform_1(%arg0: i32) -> (i32, i32) {
    %c0_i32 = arith.constant 0 : i32
    %c0_i32_0 = arith.constant 0 : i32
    %c0_i32_1 = arith.constant 0 : i32
    return %c0_i32, %c0_i32_0 : i32, i32
  }
  func.func @transform_2(%arg0: i32) -> (i32, i32) {
    %c0_i32 = arith.constant 0 : i32
    %c0_i32_0 = arith.constant 0 : i32
    %c0_i32_1 = arith.constant 0 : i32
    return %c0_i32, %c0_i32_0 : i32, i32
  }
  func.func @transform_3(%arg0: i32) -> (i32, i32) {
    %c0_i32 = arith.constant 0 : i32
    %c0_i32_0 = arith.constant 0 : i32
    %c0_i32_1 = arith.constant 0 : i32
    return %c0_i32, %c0_i32_0 : i32, i32
  }
  func.func @transform_4(%arg0: i32) -> (i32, i32) {
    %c0_i32 = arith.constant 0 : i32
    %c0_i32_0 = arith.constant 0 : i32
    %c0_i32_1 = arith.constant 0 : i32
    return %c0_i32, %c0_i32_0 : i32, i32
  }
  func.func @transform_5(%arg0: i32) -> (i32, i32) {
    %c0_i32 = arith.constant 0 : i32
    %c0_i32_0 = arith.constant 0 : i32
    %c0_i32_1 = arith.constant 0 : i32
    return %c0_i32, %c0_i32_0 : i32, i32
  }
  func.func @transform_6(%arg0: i32) -> (i32, i32) {
    %c0_i32 = arith.constant 0 : i32
    %c0_i32_0 = arith.constant 0 : i32
    %c0_i32_1 = arith.constant 0 : i32
    return %c0_i32, %c0_i32_0 : i32, i32
  }
}

module attributes {stable_mosaic.version = 11 : i64} {
  func.func @_att_sigma_kernel(%arg0: i32, %arg1: memref<64x32xbf16, #tpu.memory_space<vmem>>, %arg2: memref<8x64xbf16, #tpu.memory_space<vmem>>, %arg3: memref<32x32xf32, #tpu.memory_space<vmem>>, %arg4: memref<8x32xf32, #tpu.memory_space<vmem>>, %arg5: memref<8x1xf32, #tpu.memory_space<vmem>>, %arg6: memref<1x8xf32, #tpu.memory_space<vmem>>, %arg7: memref<1x1xf32, #tpu.memory_space<vmem>>, %arg8: memref<1x32xf32, #tpu.memory_space<vmem>>) attributes {dimension_semantics = [#tpu.dimension_semantics<arbitrary>], iteration_bounds = array<i64: 1>, scalar_prefetch = 0 : i64, scratch_operands = 0 : i64, tpu.core_type = #tpu.core_type<tc>, window_params = [{pipeline_mode = #tpu.pipeline_mode<synchronous>, transform_indices = @transform_0, window_bounds = array<i64: 64, 32>}, {pipeline_mode = #tpu.pipeline_mode<synchronous>, transform_indices = @transform_1, window_bounds = array<i64: 8, 64>}, {pipeline_mode = #tpu.pipeline_mode<synchronous>, transform_indices = @transform_2, window_bounds = array<i64: 32, 32>}, {pipeline_mode = #tpu.pipeline_mode<synchronous>, transform_indices = @transform_3, window_bounds = array<i64: 8, 32>}, {pipeline_mode = #tpu.pipeline_mode<synchronous>, transform_indices = @transform_4, window_bounds = array<i64: 8, 1>}, {pipeline_mode = #tpu.pipeline_mode<synchronous>, transform_indices = @transform_5, window_bounds = array<i64: 1, 8>}, {pipeline_mode = #tpu.pipeline_mode<synchronous>, transform_indices = @transform_6, window_bounds = array<i64: 1, 1>}, {pipeline_mode = #tpu.pipeline_mode<synchronous>, transform_indices = @transform_7, window_bounds = array<i64: 1, 32>}]} {
    %c0 = arith.constant 0 : index
    %c0_0 = arith.constant 0 : index
    %0 = vector.load %arg2[%c0, %c0_0] : memref<8x64xbf16, #tpu.memory_space<vmem>>, vector<8x64xbf16>
    %c0_1 = arith.constant 0 : index
    %c0_2 = arith.constant 0 : index
    %1 = vector.load %arg1[%c0_1, %c0_2] : memref<64x32xbf16, #tpu.memory_space<vmem>>, vector<64x32xbf16>
    %cst = arith.constant dense<0.000000e+00> : vector<8x32xf32>
    %2 = tpu.matmul %0, %1, %cst {dimension_numbers = #tpu.dot_dimension_numbers<[1], [0], [0], [1], [0, 0, 1, 1], [], []>} : vector<8x64xbf16>, vector<64x32xbf16>, vector<8x32xf32> -> vector<8x32xf32>
    %c0_3 = arith.constant 0 : index
    %c0_4 = arith.constant 0 : index
    %3 = vector.load %arg4[%c0_3, %c0_4] : memref<8x32xf32, #tpu.memory_space<vmem>>, vector<8x32xf32>
    %c0_5 = arith.constant 0 : index
    %c0_6 = arith.constant 0 : index
    %4 = vector.load %arg3[%c0_5, %c0_6] : memref<32x32xf32, #tpu.memory_space<vmem>>, vector<32x32xf32>
    %cst_7 = arith.constant dense<0.000000e+00> : vector<8x32xf32>
    %5 = tpu.matmul %3, %4, %cst_7 {dimension_numbers = #tpu.dot_dimension_numbers<[1], [0], [0], [1], [0, 0, 1, 1], [], []>} : vector<8x32xf32>, vector<32x32xf32>, vector<8x32xf32> -> vector<8x32xf32>
    %6 = arith.addf %2, %5 : vector<8x32xf32>
    %c0_8 = arith.constant 0 : index
    %c0_9 = arith.constant 0 : index
    %7 = vector.load %arg5[%c0_8, %c0_9] : memref<8x1xf32, #tpu.memory_space<vmem>>, vector<8x1xf32>
    %8 = vector.broadcast %7 : vector<8x1xf32> to vector<8x32xf32>
    %9 = arith.addf %6, %8 : vector<8x32xf32>
    %cst_10 = arith.constant 0.000000e+00 : f32
    %10 = vector.broadcast %cst_10 : f32 to vector<8x32xf32>
    %11 = arith.maximumf %9, %10 : vector<8x32xf32>
    %c0_11 = arith.constant 0 : index
    %c0_12 = arith.constant 0 : index
    %12 = vector.load %arg6[%c0_11, %c0_12] : memref<1x8xf32, #tpu.memory_space<vmem>>, vector<1x8xf32>
    %cst_13 = arith.constant dense<0.000000e+00> : vector<1x32xf32>
    %13 = tpu.matmul %12, %11, %cst_13 {dimension_numbers = #tpu.dot_dimension_numbers<[1], [0], [0], [1], [0, 0, 1, 1], [], []>} : vector<1x8xf32>, vector<8x32xf32>, vector<1x32xf32> -> vector<1x32xf32>
    %c0_14 = arith.constant 0 : index
    %c0_15 = arith.constant 0 : index
    %14 = vector.load %arg7[%c0_14, %c0_15] : memref<1x1xf32, #tpu.memory_space<vmem>>, vector<1x1xf32>
    %15 = vector.broadcast %14 : vector<1x1xf32> to vector<1x32xf32>
    %16 = arith.addf %13, %15 : vector<1x32xf32>
    %17 = arith.negf %16 : vector<1x32xf32>
    %18 = math.exp %17 : vector<1x32xf32>
    %cst_16 = arith.constant 1.000000e+00 : f32
    %19 = vector.broadcast %cst_16 : f32 to vector<1x32xf32>
    %20 = arith.addf %19, %18 : vector<1x32xf32>
    %21 = arith.divf %19, %20 : vector<1x32xf32>
    %c0_17 = arith.constant 0 : index
    %c0_18 = arith.constant 0 : index
    %22 = vector.load %arg8[%c0_17, %c0_18] : memref<1x32xf32, #tpu.memory_space<vmem>>, vector<1x32xf32>
    tpu.vector_store %arg8[%c0_17, %c0_18], %21 {strides = array<i32>} : memref<1x32xf32, #tpu.memory_space<vmem>>, vector<1x32xf32>,
    return
  }
  func.func @transform_0(%arg0: i32) -> (i32, i32) {
    %c0_i32 = arith.constant 0 : i32
    %c0_i32_0 = arith.constant 0 : i32
    %c0_i32_1 = arith.constant 0 : i32
    return %c0_i32, %c0_i32_0 : i32, i32
  }
  func.func @transform_1(%arg0: i32) -> (i32, i32) {
    %c0_i32 = arith.constant 0 : i32
    %c0_i32_0 = arith.constant 0 : i32
    %c0_i32_1 = arith.constant 0 : i32
    return %c0_i32, %c0_i32_0 : i32, i32
  }
  func.func @transform_2(%arg0: i32) -> (i32, i32) {
    %c0_i32 = arith.constant 0 : i32
    %c0_i32_0 = arith.constant 0 : i32
    %c0_i32_1 = arith.constant 0 : i32
    return %c0_i32, %c0_i32_0 : i32, i32
  }
  func.func @transform_3(%arg0: i32) -> (i32, i32) {
    %c0_i32 = arith.constant 0 : i32
    %c0_i32_0 = arith.constant 0 : i32
    %c0_i32_1 = arith.constant 0 : i32
    return %c0_i32, %c0_i32_0 : i32, i32
  }
  func.func @transform_4(%arg0: i32) -> (i32, i32) {
    %c0_i32 = arith.constant 0 : i32
    %c0_i32_0 = arith.constant 0 : i32
    %c0_i32_1 = arith.constant 0 : i32
    return %c0_i32, %c0_i32_0 : i32, i32
  }
  func.func @transform_5(%arg0: i32) -> (i32, i32) {
    %c0_i32 = arith.constant 0 : i32
    %c0_i32_0 = arith.constant 0 : i32
    %c0_i32_1 = arith.constant 0 : i32
    return %c0_i32, %c0_i32_0 : i32, i32
  }
  func.func @transform_6(%arg0: i32) -> (i32, i32) {
    %c0_i32 = arith.constant 0 : i32
    %c0_i32_0 = arith.constant 0 : i32
    %c0_i32_1 = arith.constant 0 : i32
    return %c0_i32, %c0_i32_0 : i32, i32
  }
  func.func @transform_7(%arg0: i32) -> (i32, i32) {
    %c0_i32 = arith.constant 0 : i32
    %c0_i32_0 = arith.constant 0 : i32
    %c0_i32_1 = arith.constant 0 : i32
    return %c0_i32, %c0_i32_0 : i32, i32
  }
}

module attributes {stable_mosaic.version = 11 : i64} {
  func.func @_conv_act_kernel(%arg0: i32, %arg1: memref<288x32xbf16, #tpu.memory_space<vmem>>, %arg2: memref<64x288xbf16, #tpu.memory_space<vmem>>, %arg3: memref<64x1xf32, #tpu.memory_space<vmem>>, %arg4: memref<64x32xf32, #tpu.memory_space<vmem>>) attributes {dimension_semantics = [#tpu.dimension_semantics<arbitrary>], iteration_bounds = array<i64: 1>, scalar_prefetch = 0 : i64, scratch_operands = 0 : i64, tpu.core_type = #tpu.core_type<tc>, window_params = [{pipeline_mode = #tpu.pipeline_mode<synchronous>, transform_indices = @transform_0, window_bounds = array<i64: 288, 32>}, {pipeline_mode = #tpu.pipeline_mode<synchronous>, transform_indices = @transform_1, window_bounds = array<i64: 64, 288>}, {pipeline_mode = #tpu.pipeline_mode<synchronous>, transform_indices = @transform_2, window_bounds = array<i64: 64, 1>}, {pipeline_mode = #tpu.pipeline_mode<synchronous>, transform_indices = @transform_3, window_bounds = array<i64: 64, 32>}]} {
    %c0 = arith.constant 0 : index
    %c0_0 = arith.constant 0 : index
    %0 = vector.load %arg2[%c0, %c0_0] : memref<64x288xbf16, #tpu.memory_space<vmem>>, vector<64x288xbf16>
    %c0_1 = arith.constant 0 : index
    %c0_2 = arith.constant 0 : index
    %1 = vector.load %arg1[%c0_1, %c0_2] : memref<288x32xbf16, #tpu.memory_space<vmem>>, vector<288x32xbf16>
    %cst = arith.constant dense<0.000000e+00> : vector<64x32xf32>
    %2 = tpu.matmul %0, %1, %cst {dimension_numbers = #tpu.dot_dimension_numbers<[1], [0], [0], [1], [0, 0, 1, 1], [], []>} : vector<64x288xbf16>, vector<288x32xbf16>, vector<64x32xf32> -> vector<64x32xf32>
    %c0_3 = arith.constant 0 : index
    %c0_4 = arith.constant 0 : index
    %3 = vector.load %arg3[%c0_3, %c0_4] : memref<64x1xf32, #tpu.memory_space<vmem>>, vector<64x1xf32>
    %4 = vector.broadcast %3 : vector<64x1xf32> to vector<64x32xf32>
    %5 = arith.addf %2, %4 : vector<64x32xf32>
    %c0_5 = arith.constant 0 : index
    %c0_6 = arith.constant 0 : index
    %6 = vector.load %arg4[%c0_5, %c0_6] : memref<64x32xf32, #tpu.memory_space<vmem>>, vector<64x32xf32>
    tpu.vector_store %arg4[%c0_5, %c0_6], %5 {strides = array<i32>} : memref<64x32xf32, #tpu.memory_space<vmem>>, vector<64x32xf32>,
    return
  }
  func.func @transform_0(%arg0: i32) -> (i32, i32) {
    %c0_i32 = arith.constant 0 : i32
    %c0_i32_0 = arith.constant 0 : i32
    %c0_i32_1 = arith.constant 0 : i32
    return %c0_i32, %c0_i32_0 : i32, i32
  }
  func.func @transform_1(%arg0: i32) -> (i32, i32) {
    %c0_i32 = arith.constant 0 : i32
    %c0_i32_0 = arith.constant 0 : i32
    %c0_i32_1 = arith.constant 0 : i32
    return %c0_i32, %c0_i32_0 : i32, i32
  }
  func.func @transform_2(%arg0: i32) -> (i32, i32) {
    %c0_i32 = arith.constant 0 : i32
    %c0_i32_0 = arith.constant 0 : i32
    %c0_i32_1 = arith.constant 0 : i32
    return %c0_i32, %c0_i32_0 : i32, i32
  }
  func.func @transform_3(%arg0: i32) -> (i32, i32) {
    %c0_i32 = arith.constant 0 : i32
    %c0_i32_0 = arith.constant 0 : i32
    %c0_i32_1 = arith.constant 0 : i32
    return %c0_i32, %c0_i32_0 : i32, i32
  }
}

module attributes {stable_mosaic.version = 11 : i64} {
  func.func @_conv_act_kernel(%arg0: i32, %arg1: memref<288x128xbf16, #tpu.memory_space<vmem>>, %arg2: memref<16x288xbf16, #tpu.memory_space<vmem>>, %arg3: memref<16x1xf32, #tpu.memory_space<vmem>>, %arg4: memref<16x128xf32, #tpu.memory_space<vmem>>) attributes {dimension_semantics = [#tpu.dimension_semantics<arbitrary>], iteration_bounds = array<i64: 1>, scalar_prefetch = 0 : i64, scratch_operands = 0 : i64, tpu.core_type = #tpu.core_type<tc>, window_params = [{pipeline_mode = #tpu.pipeline_mode<synchronous>, transform_indices = @transform_0, window_bounds = array<i64: 288, 128>}, {pipeline_mode = #tpu.pipeline_mode<synchronous>, transform_indices = @transform_1, window_bounds = array<i64: 16, 288>}, {pipeline_mode = #tpu.pipeline_mode<synchronous>, transform_indices = @transform_2, window_bounds = array<i64: 16, 1>}, {pipeline_mode = #tpu.pipeline_mode<synchronous>, transform_indices = @transform_3, window_bounds = array<i64: 16, 128>}]} {
    %c0 = arith.constant 0 : index
    %c0_0 = arith.constant 0 : index
    %0 = vector.load %arg2[%c0, %c0_0] : memref<16x288xbf16, #tpu.memory_space<vmem>>, vector<16x288xbf16>
    %c0_1 = arith.constant 0 : index
    %c0_2 = arith.constant 0 : index
    %1 = vector.load %arg1[%c0_1, %c0_2] : memref<288x128xbf16, #tpu.memory_space<vmem>>, vector<288x128xbf16>
    %cst = arith.constant dense<0.000000e+00> : vector<16x128xf32>
    %2 = tpu.matmul %0, %1, %cst {dimension_numbers = #tpu.dot_dimension_numbers<[1], [0], [0], [1], [0, 0, 1, 1], [], []>} : vector<16x288xbf16>, vector<288x128xbf16>, vector<16x128xf32> -> vector<16x128xf32>
    %c0_3 = arith.constant 0 : index
    %c0_4 = arith.constant 0 : index
    %3 = vector.load %arg3[%c0_3, %c0_4] : memref<16x1xf32, #tpu.memory_space<vmem>>, vector<16x1xf32>
    %4 = vector.broadcast %3 : vector<16x1xf32> to vector<16x128xf32>
    %5 = arith.addf %2, %4 : vector<16x128xf32>
    %cst_5 = arith.constant 0.000000e+00 : f32
    %6 = vector.broadcast %cst_5 : f32 to vector<16x128xf32>
    %7 = arith.maximumf %5, %6 : vector<16x128xf32>
    %c0_6 = arith.constant 0 : index
    %c0_7 = arith.constant 0 : index
    %8 = vector.load %arg4[%c0_6, %c0_7] : memref<16x128xf32, #tpu.memory_space<vmem>>, vector<16x128xf32>
    tpu.vector_store %arg4[%c0_6, %c0_7], %7 {strides = array<i32>} : memref<16x128xf32, #tpu.memory_space<vmem>>, vector<16x128xf32>,
    return
  }
  func.func @transform_0(%arg0: i32) -> (i32, i32) {
    %c0_i32 = arith.constant 0 : i32
    %c0_i32_0 = arith.constant 0 : i32
    %c0_i32_1 = arith.constant 0 : i32
    return %c0_i32, %c0_i32_0 : i32, i32
  }
  func.func @transform_1(%arg0: i32) -> (i32, i32) {
    %c0_i32 = arith.constant 0 : i32
    %c0_i32_0 = arith.constant 0 : i32
    %c0_i32_1 = arith.constant 0 : i32
    return %c0_i32, %c0_i32_0 : i32, i32
  }
  func.func @transform_2(%arg0: i32) -> (i32, i32) {
    %c0_i32 = arith.constant 0 : i32
    %c0_i32_0 = arith.constant 0 : i32
    %c0_i32_1 = arith.constant 0 : i32
    return %c0_i32, %c0_i32_0 : i32, i32
  }
  func.func @transform_3(%arg0: i32) -> (i32, i32) {
    %c0_i32 = arith.constant 0 : i32
    %c0_i32_0 = arith.constant 0 : i32
    %c0_i32_1 = arith.constant 0 : i32
    return %c0_i32, %c0_i32_0 : i32, i32
  }
}

module attributes {stable_mosaic.version = 11 : i64} {
  func.func @_conv_act_kernel(%arg0: i32, %arg1: memref<144x128xbf16, #tpu.memory_space<vmem>>, %arg2: memref<16x144xbf16, #tpu.memory_space<vmem>>, %arg3: memref<16x1xf32, #tpu.memory_space<vmem>>, %arg4: memref<16x128xf32, #tpu.memory_space<vmem>>) attributes {dimension_semantics = [#tpu.dimension_semantics<arbitrary>], iteration_bounds = array<i64: 1>, scalar_prefetch = 0 : i64, scratch_operands = 0 : i64, tpu.core_type = #tpu.core_type<tc>, window_params = [{pipeline_mode = #tpu.pipeline_mode<synchronous>, transform_indices = @transform_0, window_bounds = array<i64: 144, 128>}, {pipeline_mode = #tpu.pipeline_mode<synchronous>, transform_indices = @transform_1, window_bounds = array<i64: 16, 144>}, {pipeline_mode = #tpu.pipeline_mode<synchronous>, transform_indices = @transform_2, window_bounds = array<i64: 16, 1>}, {pipeline_mode = #tpu.pipeline_mode<synchronous>, transform_indices = @transform_3, window_bounds = array<i64: 16, 128>}]} {
    %c0 = arith.constant 0 : index
    %c0_0 = arith.constant 0 : index
    %0 = vector.load %arg2[%c0, %c0_0] : memref<16x144xbf16, #tpu.memory_space<vmem>>, vector<16x144xbf16>
    %c0_1 = arith.constant 0 : index
    %c0_2 = arith.constant 0 : index
    %1 = vector.load %arg1[%c0_1, %c0_2] : memref<144x128xbf16, #tpu.memory_space<vmem>>, vector<144x128xbf16>
    %cst = arith.constant dense<0.000000e+00> : vector<16x128xf32>
    %2 = tpu.matmul %0, %1, %cst {dimension_numbers = #tpu.dot_dimension_numbers<[1], [0], [0], [1], [0, 0, 1, 1], [], []>} : vector<16x144xbf16>, vector<144x128xbf16>, vector<16x128xf32> -> vector<16x128xf32>
    %c0_3 = arith.constant 0 : index
    %c0_4 = arith.constant 0 : index
    %3 = vector.load %arg3[%c0_3, %c0_4] : memref<16x1xf32, #tpu.memory_space<vmem>>, vector<16x1xf32>
    %4 = vector.broadcast %3 : vector<16x1xf32> to vector<16x128xf32>
    %5 = arith.addf %2, %4 : vector<16x128xf32>
    %cst_5 = arith.constant 0.000000e+00 : f32
    %6 = vector.broadcast %cst_5 : f32 to vector<16x128xf32>
    %7 = arith.maximumf %5, %6 : vector<16x128xf32>
    %c0_6 = arith.constant 0 : index
    %c0_7 = arith.constant 0 : index
    %8 = vector.load %arg4[%c0_6, %c0_7] : memref<16x128xf32, #tpu.memory_space<vmem>>, vector<16x128xf32>
    tpu.vector_store %arg4[%c0_6, %c0_7], %7 {strides = array<i32>} : memref<16x128xf32, #tpu.memory_space<vmem>>, vector<16x128xf32>,
    return
  }
  func.func @transform_0(%arg0: i32) -> (i32, i32) {
    %c0_i32 = arith.constant 0 : i32
    %c0_i32_0 = arith.constant 0 : i32
    %c0_i32_1 = arith.constant 0 : i32
    return %c0_i32, %c0_i32_0 : i32, i32
  }
  func.func @transform_1(%arg0: i32) -> (i32, i32) {
    %c0_i32 = arith.constant 0 : i32
    %c0_i32_0 = arith.constant 0 : i32
    %c0_i32_1 = arith.constant 0 : i32
    return %c0_i32, %c0_i32_0 : i32, i32
  }
  func.func @transform_2(%arg0: i32) -> (i32, i32) {
    %c0_i32 = arith.constant 0 : i32
    %c0_i32_0 = arith.constant 0 : i32
    %c0_i32_1 = arith.constant 0 : i32
    return %c0_i32, %c0_i32_0 : i32, i32
  }
  func.func @transform_3(%arg0: i32) -> (i32, i32) {
    %c0_i32 = arith.constant 0 : i32
    %c0_i32_0 = arith.constant 0 : i32
    %c0_i32_1 = arith.constant 0 : i32
    return %c0_i32, %c0_i32_0 : i32, i32
  }
}

module attributes {stable_mosaic.version = 11 : i64} {
  func.func @_att_sigma_kernel(%arg0: i32, %arg1: memref<32x128xbf16, #tpu.memory_space<vmem>>, %arg2: memref<4x32xbf16, #tpu.memory_space<vmem>>, %arg3: memref<16x128xf32, #tpu.memory_space<vmem>>, %arg4: memref<4x16xf32, #tpu.memory_space<vmem>>, %arg5: memref<4x1xf32, #tpu.memory_space<vmem>>, %arg6: memref<1x4xf32, #tpu.memory_space<vmem>>, %arg7: memref<1x1xf32, #tpu.memory_space<vmem>>, %arg8: memref<1x128xf32, #tpu.memory_space<vmem>>) attributes {dimension_semantics = [#tpu.dimension_semantics<arbitrary>], iteration_bounds = array<i64: 1>, scalar_prefetch = 0 : i64, scratch_operands = 0 : i64, tpu.core_type = #tpu.core_type<tc>, window_params = [{pipeline_mode = #tpu.pipeline_mode<synchronous>, transform_indices = @transform_0, window_bounds = array<i64: 32, 128>}, {pipeline_mode = #tpu.pipeline_mode<synchronous>, transform_indices = @transform_1, window_bounds = array<i64: 4, 32>}, {pipeline_mode = #tpu.pipeline_mode<synchronous>, transform_indices = @transform_2, window_bounds = array<i64: 16, 128>}, {pipeline_mode = #tpu.pipeline_mode<synchronous>, transform_indices = @transform_3, window_bounds = array<i64: 4, 16>}, {pipeline_mode = #tpu.pipeline_mode<synchronous>, transform_indices = @transform_4, window_bounds = array<i64: 4, 1>}, {pipeline_mode = #tpu.pipeline_mode<synchronous>, transform_indices = @transform_5, window_bounds = array<i64: 1, 4>}, {pipeline_mode = #tpu.pipeline_mode<synchronous>, transform_indices = @transform_6, window_bounds = array<i64: 1, 1>}, {pipeline_mode = #tpu.pipeline_mode<synchronous>, transform_indices = @transform_7, window_bounds = array<i64: 1, 128>}]} {
    %c0 = arith.constant 0 : index
    %c0_0 = arith.constant 0 : index
    %0 = vector.load %arg2[%c0, %c0_0] : memref<4x32xbf16, #tpu.memory_space<vmem>>, vector<4x32xbf16>
    %c0_1 = arith.constant 0 : index
    %c0_2 = arith.constant 0 : index
    %1 = vector.load %arg1[%c0_1, %c0_2] : memref<32x128xbf16, #tpu.memory_space<vmem>>, vector<32x128xbf16>
    %cst = arith.constant dense<0.000000e+00> : vector<4x128xf32>
    %2 = tpu.matmul %0, %1, %cst {dimension_numbers = #tpu.dot_dimension_numbers<[1], [0], [0], [1], [0, 0, 1, 1], [], []>} : vector<4x32xbf16>, vector<32x128xbf16>, vector<4x128xf32> -> vector<4x128xf32>
    %c0_3 = arith.constant 0 : index
    %c0_4 = arith.constant 0 : index
    %3 = vector.load %arg4[%c0_3, %c0_4] : memref<4x16xf32, #tpu.memory_space<vmem>>, vector<4x16xf32>
    %c0_5 = arith.constant 0 : index
    %c0_6 = arith.constant 0 : index
    %4 = vector.load %arg3[%c0_5, %c0_6] : memref<16x128xf32, #tpu.memory_space<vmem>>, vector<16x128xf32>
    %cst_7 = arith.constant dense<0.000000e+00> : vector<4x128xf32>
    %5 = tpu.matmul %3, %4, %cst_7 {dimension_numbers = #tpu.dot_dimension_numbers<[1], [0], [0], [1], [0, 0, 1, 1], [], []>} : vector<4x16xf32>, vector<16x128xf32>, vector<4x128xf32> -> vector<4x128xf32>
    %6 = arith.addf %2, %5 : vector<4x128xf32>
    %c0_8 = arith.constant 0 : index
    %c0_9 = arith.constant 0 : index
    %7 = vector.load %arg5[%c0_8, %c0_9] : memref<4x1xf32, #tpu.memory_space<vmem>>, vector<4x1xf32>
    %8 = vector.broadcast %7 : vector<4x1xf32> to vector<4x128xf32>
    %9 = arith.addf %6, %8 : vector<4x128xf32>
    %cst_10 = arith.constant 0.000000e+00 : f32
    %10 = vector.broadcast %cst_10 : f32 to vector<4x128xf32>
    %11 = arith.maximumf %9, %10 : vector<4x128xf32>
    %c0_11 = arith.constant 0 : index
    %c0_12 = arith.constant 0 : index
    %12 = vector.load %arg6[%c0_11, %c0_12] : memref<1x4xf32, #tpu.memory_space<vmem>>, vector<1x4xf32>
    %cst_13 = arith.constant dense<0.000000e+00> : vector<1x128xf32>
    %13 = tpu.matmul %12, %11, %cst_13 {dimension_numbers = #tpu.dot_dimension_numbers<[1], [0], [0], [1], [0, 0, 1, 1], [], []>} : vector<1x4xf32>, vector<4x128xf32>, vector<1x128xf32> -> vector<1x128xf32>
    %c0_14 = arith.constant 0 : index
    %c0_15 = arith.constant 0 : index
    %14 = vector.load %arg7[%c0_14, %c0_15] : memref<1x1xf32, #tpu.memory_space<vmem>>, vector<1x1xf32>
    %15 = vector.broadcast %14 : vector<1x1xf32> to vector<1x128xf32>
    %16 = arith.addf %13, %15 : vector<1x128xf32>
    %17 = arith.negf %16 : vector<1x128xf32>
    %18 = math.exp %17 : vector<1x128xf32>
    %cst_16 = arith.constant 1.000000e+00 : f32
    %19 = vector.broadcast %cst_16 : f32 to vector<1x128xf32>
    %20 = arith.addf %19, %18 : vector<1x128xf32>
    %21 = arith.divf %19, %20 : vector<1x128xf32>
    %c0_17 = arith.constant 0 : index
    %c0_18 = arith.constant 0 : index
    %22 = vector.load %arg8[%c0_17, %c0_18] : memref<1x128xf32, #tpu.memory_space<vmem>>, vector<1x128xf32>
    tpu.vector_store %arg8[%c0_17, %c0_18], %21 {strides = array<i32>} : memref<1x128xf32, #tpu.memory_space<vmem>>, vector<1x128xf32>,
    return
  }
  func.func @transform_0(%arg0: i32) -> (i32, i32) {
    %c0_i32 = arith.constant 0 : i32
    %c0_i32_0 = arith.constant 0 : i32
    %c0_i32_1 = arith.constant 0 : i32
    return %c0_i32, %c0_i32_0 : i32, i32
  }
  func.func @transform_1(%arg0: i32) -> (i32, i32) {
    %c0_i32 = arith.constant 0 : i32
    %c0_i32_0 = arith.constant 0 : i32
    %c0_i32_1 = arith.constant 0 : i32
    return %c0_i32, %c0_i32_0 : i32, i32
  }
  func.func @transform_2(%arg0: i32) -> (i32, i32) {
    %c0_i32 = arith.constant 0 : i32
    %c0_i32_0 = arith.constant 0 : i32
    %c0_i32_1 = arith.constant 0 : i32
    return %c0_i32, %c0_i32_0 : i32, i32
  }
  func.func @transform_3(%arg0: i32) -> (i32, i32) {
    %c0_i32 = arith.constant 0 : i32
    %c0_i32_0 = arith.constant 0 : i32
    %c0_i32_1 = arith.constant 0 : i32
    return %c0_i32, %c0_i32_0 : i32, i32
  }
  func.func @transform_4(%arg0: i32) -> (i32, i32) {
    %c0_i32 = arith.constant 0 : i32
    %c0_i32_0 = arith.constant 0 : i32
    %c0_i32_1 = arith.constant 0 : i32
    return %c0_i32, %c0_i32_0 : i32, i32
  }
  func.func @transform_5(%arg0: i32) -> (i32, i32) {
    %c0_i32 = arith.constant 0 : i32
    %c0_i32_0 = arith.constant 0 : i32
    %c0_i32_1 = arith.constant 0 : i32
    return %c0_i32, %c0_i32_0 : i32, i32
  }
  func.func @transform_6(%arg0: i32) -> (i32, i32) {
    %c0_i32 = arith.constant 0 : i32
    %c0_i32_0 = arith.constant 0 : i32
    %c0_i32_1 = arith.constant 0 : i32
    return %c0_i32, %c0_i32_0 : i32, i32
  }
  func.func @transform_7(%arg0: i32) -> (i32, i32) {
    %c0_i32 = arith.constant 0 : i32
    %c0_i32_0 = arith.constant 0 : i32
    %c0_i32_1 = arith.constant 0 : i32
    return %c0_i32, %c0_i32_0 : i32, i32
  }
}

module attributes {stable_mosaic.version = 11 : i64} {
  func.func @_att_out_kernel(%arg0: i32, %arg1: memref<8x512xf32, #tpu.memory_space<vmem>>, %arg2: memref<1x512xf32, #tpu.memory_space<vmem>>, %arg3: memref<8x8xf32, #tpu.memory_space<vmem>>, %arg4: memref<8x1xf32, #tpu.memory_space<vmem>>, %arg5: memref<8x1xf32, #tpu.memory_space<vmem>>, %arg6: memref<8x1xf32, #tpu.memory_space<vmem>>, %arg7: memref<8x512xf32, #tpu.memory_space<vmem>>) attributes {dimension_semantics = [#tpu.dimension_semantics<arbitrary>], iteration_bounds = array<i64: 1>, scalar_prefetch = 0 : i64, scratch_operands = 0 : i64, tpu.core_type = #tpu.core_type<tc>, window_params = [{pipeline_mode = #tpu.pipeline_mode<synchronous>, transform_indices = @transform_0, window_bounds = array<i64: 8, 512>}, {pipeline_mode = #tpu.pipeline_mode<synchronous>, transform_indices = @transform_1, window_bounds = array<i64: 1, 512>}, {pipeline_mode = #tpu.pipeline_mode<synchronous>, transform_indices = @transform_2, window_bounds = array<i64: 8, 8>}, {pipeline_mode = #tpu.pipeline_mode<synchronous>, transform_indices = @transform_3, window_bounds = array<i64: 8, 1>}, {pipeline_mode = #tpu.pipeline_mode<synchronous>, transform_indices = @transform_4, window_bounds = array<i64: 8, 1>}, {pipeline_mode = #tpu.pipeline_mode<synchronous>, transform_indices = @transform_5, window_bounds = array<i64: 8, 1>}, {pipeline_mode = #tpu.pipeline_mode<synchronous>, transform_indices = @transform_6, window_bounds = array<i64: 8, 512>}]} {
    %c0 = arith.constant 0 : index
    %c0_0 = arith.constant 0 : index
    %0 = vector.load %arg1[%c0, %c0_0] : memref<8x512xf32, #tpu.memory_space<vmem>>, vector<8x512xf32>
    %c0_1 = arith.constant 0 : index
    %c0_2 = arith.constant 0 : index
    %1 = vector.load %arg2[%c0_1, %c0_2] : memref<1x512xf32, #tpu.memory_space<vmem>>, vector<1x512xf32>
    %2 = vector.broadcast %1 : vector<1x512xf32> to vector<8x512xf32>
    %3 = arith.mulf %0, %2 : vector<8x512xf32>
    %c0_3 = arith.constant 0 : index
    %c0_4 = arith.constant 0 : index
    %4 = vector.load %arg3[%c0_3, %c0_4] : memref<8x8xf32, #tpu.memory_space<vmem>>, vector<8x8xf32>
    %cst = arith.constant dense<0.000000e+00> : vector<8x512xf32>
    %5 = tpu.matmul %4, %3, %cst {dimension_numbers = #tpu.dot_dimension_numbers<[1], [0], [0], [1], [0, 0, 1, 1], [], []>} : vector<8x8xf32>, vector<8x512xf32>, vector<8x512xf32> -> vector<8x512xf32>
    %c0_5 = arith.constant 0 : index
    %c0_6 = arith.constant 0 : index
    %6 = vector.load %arg4[%c0_5, %c0_6] : memref<8x1xf32, #tpu.memory_space<vmem>>, vector<8x1xf32>
    %7 = vector.broadcast %6 : vector<8x1xf32> to vector<8x512xf32>
    %8 = arith.addf %5, %7 : vector<8x512xf32>
    %cst_7 = arith.constant dense<0.000000e+00> : vector<8xf32>
    %9 = vector.multi_reduction <add>, %8, %cst_7 [1] : vector<8x512xf32> to vector<8xf32>
    %10 = vector.shape_cast %9 : vector<8xf32> to vector<8x1xf32>
    %cst_8 = arith.constant 0.001953125 : f32
    %11 = vector.broadcast %cst_8 : f32 to vector<8x1xf32>
    %12 = arith.mulf %10, %11 : vector<8x1xf32>
    %13 = vector.broadcast %12 : vector<8x1xf32> to vector<8x512xf32>
    %14 = arith.subf %8, %13 : vector<8x512xf32>
    %15 = arith.mulf %14, %14 : vector<8x512xf32>
    %cst_9 = arith.constant dense<0.000000e+00> : vector<8xf32>
    %16 = vector.multi_reduction <add>, %15, %cst_9 [1] : vector<8x512xf32> to vector<8xf32>
    %17 = vector.shape_cast %16 : vector<8xf32> to vector<8x1xf32>
    %cst_10 = arith.constant 0.001953125 : f32
    %18 = vector.broadcast %cst_10 : f32 to vector<8x1xf32>
    %19 = arith.mulf %17, %18 : vector<8x1xf32>
    %cst_11 = arith.constant 9.99999974E-6 : f32
    %20 = vector.broadcast %cst_11 : f32 to vector<8x1xf32>
    %21 = arith.addf %19, %20 : vector<8x1xf32>
    %22 = math.rsqrt %21 : vector<8x1xf32>
    %23 = vector.broadcast %22 : vector<8x1xf32> to vector<8x512xf32>
    %24 = arith.mulf %14, %23 : vector<8x512xf32>
    %c0_12 = arith.constant 0 : index
    %c0_13 = arith.constant 0 : index
    %25 = vector.load %arg5[%c0_12, %c0_13] : memref<8x1xf32, #tpu.memory_space<vmem>>, vector<8x1xf32>
    %26 = vector.broadcast %25 : vector<8x1xf32> to vector<8x512xf32>
    %27 = arith.mulf %24, %26 : vector<8x512xf32>
    %c0_14 = arith.constant 0 : index
    %c0_15 = arith.constant 0 : index
    %28 = vector.load %arg6[%c0_14, %c0_15] : memref<8x1xf32, #tpu.memory_space<vmem>>, vector<8x1xf32>
    %29 = vector.broadcast %28 : vector<8x1xf32> to vector<8x512xf32>
    %30 = arith.addf %27, %29 : vector<8x512xf32>
    %c0_16 = arith.constant 0 : index
    %c0_17 = arith.constant 0 : index
    %31 = vector.load %arg7[%c0_16, %c0_17] : memref<8x512xf32, #tpu.memory_space<vmem>>, vector<8x512xf32>
    tpu.vector_store %arg7[%c0_16, %c0_17], %30 {strides = array<i32>} : memref<8x512xf32, #tpu.memory_space<vmem>>, vector<8x512xf32>,
    return
  }
  func.func @transform_0(%arg0: i32) -> (i32, i32) {
    %c0_i32 = arith.constant 0 : i32
    %c0_i32_0 = arith.constant 0 : i32
    %c0_i32_1 = arith.constant 0 : i32
    return %c0_i32, %c0_i32_0 : i32, i32
  }
  func.func @transform_1(%arg0: i32) -> (i32, i32) {
    %c0_i32 = arith.constant 0 : i32
    %c0_i32_0 = arith.constant 0 : i32
    %c0_i32_1 = arith.constant 0 : i32
    return %c0_i32, %c0_i32_0 : i32, i32
  }
  func.func @transform_2(%arg0: i32) -> (i32, i32) {
    %c0_i32 = arith.constant 0 : i32
    %c0_i32_0 = arith.constant 0 : i32
    %c0_i32_1 = arith.constant 0 : i32
    return %c0_i32, %c0_i32_0 : i32, i32
  }
  func.func @transform_3(%arg0: i32) -> (i32, i32) {
    %c0_i32 = arith.constant 0 : i32
    %c0_i32_0 = arith.constant 0 : i32
    %c0_i32_1 = arith.constant 0 : i32
    return %c0_i32, %c0_i32_0 : i32, i32
  }
  func.func @transform_4(%arg0: i32) -> (i32, i32) {
    %c0_i32 = arith.constant 0 : i32
    %c0_i32_0 = arith.constant 0 : i32
    %c0_i32_1 = arith.constant 0 : i32
    return %c0_i32, %c0_i32_0 : i32, i32
  }
  func.func @transform_5(%arg0: i32) -> (i32, i32) {
    %c0_i32 = arith.constant 0 : i32
    %c0_i32_0 = arith.constant 0 : i32
    %c0_i32_1 = arith.constant 0 : i32
    return %c0_i32, %c0_i32_0 : i32, i32
  }
  func.func @transform_6(%arg0: i32) -> (i32, i32) {
    %c0_i32 = arith.constant 0 : i32
    %c0_i32_0 = arith.constant 0 : i32
    %c0_i32_1 = arith.constant 0 : i32
    return %c0_i32, %c0_i32_0 : i32, i32
  }
}

module attributes {stable_mosaic.version = 11 : i64} {
  func.func @_conv_act_kernel(%arg0: i32, %arg1: memref<144x128xbf16, #tpu.memory_space<vmem>>, %arg2: memref<32x144xbf16, #tpu.memory_space<vmem>>, %arg3: memref<32x1xf32, #tpu.memory_space<vmem>>, %arg4: memref<32x128xf32, #tpu.memory_space<vmem>>) attributes {dimension_semantics = [#tpu.dimension_semantics<arbitrary>], iteration_bounds = array<i64: 1>, scalar_prefetch = 0 : i64, scratch_operands = 0 : i64, tpu.core_type = #tpu.core_type<tc>, window_params = [{pipeline_mode = #tpu.pipeline_mode<synchronous>, transform_indices = @transform_0, window_bounds = array<i64: 144, 128>}, {pipeline_mode = #tpu.pipeline_mode<synchronous>, transform_indices = @transform_1, window_bounds = array<i64: 32, 144>}, {pipeline_mode = #tpu.pipeline_mode<synchronous>, transform_indices = @transform_2, window_bounds = array<i64: 32, 1>}, {pipeline_mode = #tpu.pipeline_mode<synchronous>, transform_indices = @transform_3, window_bounds = array<i64: 32, 128>}]} {
    %c0 = arith.constant 0 : index
    %c0_0 = arith.constant 0 : index
    %0 = vector.load %arg2[%c0, %c0_0] : memref<32x144xbf16, #tpu.memory_space<vmem>>, vector<32x144xbf16>
    %c0_1 = arith.constant 0 : index
    %c0_2 = arith.constant 0 : index
    %1 = vector.load %arg1[%c0_1, %c0_2] : memref<144x128xbf16, #tpu.memory_space<vmem>>, vector<144x128xbf16>
    %cst = arith.constant dense<0.000000e+00> : vector<32x128xf32>
    %2 = tpu.matmul %0, %1, %cst {dimension_numbers = #tpu.dot_dimension_numbers<[1], [0], [0], [1], [0, 0, 1, 1], [], []>} : vector<32x144xbf16>, vector<144x128xbf16>, vector<32x128xf32> -> vector<32x128xf32>
    %c0_3 = arith.constant 0 : index
    %c0_4 = arith.constant 0 : index
    %3 = vector.load %arg3[%c0_3, %c0_4] : memref<32x1xf32, #tpu.memory_space<vmem>>, vector<32x1xf32>
    %4 = vector.broadcast %3 : vector<32x1xf32> to vector<32x128xf32>
    %5 = arith.addf %2, %4 : vector<32x128xf32>
    %c0_5 = arith.constant 0 : index
    %c0_6 = arith.constant 0 : index
    %6 = vector.load %arg4[%c0_5, %c0_6] : memref<32x128xf32, #tpu.memory_space<vmem>>, vector<32x128xf32>
    tpu.vector_store %arg4[%c0_5, %c0_6], %5 {strides = array<i32>} : memref<32x128xf32, #tpu.memory_space<vmem>>, vector<32x128xf32>,
    return
  }
  func.func @transform_0(%arg0: i32) -> (i32, i32) {
    %c0_i32 = arith.constant 0 : i32
    %c0_i32_0 = arith.constant 0 : i32
    %c0_i32_1 = arith.constant 0 : i32
    return %c0_i32, %c0_i32_0 : i32, i32
  }
  func.func @transform_1(%arg0: i32) -> (i32, i32) {
    %c0_i32 = arith.constant 0 : i32
    %c0_i32_0 = arith.constant 0 : i32
    %c0_i32_1 = arith.constant 0 : i32
    return %c0_i32, %c0_i32_0 : i32, i32
  }
  func.func @transform_2(%arg0: i32) -> (i32, i32) {
    %c0_i32 = arith.constant 0 : i32
    %c0_i32_0 = arith.constant 0 : i32
    %c0_i32_1 = arith.constant 0 : i32
    return %c0_i32, %c0_i32_0 : i32, i32
  }
  func.func @transform_3(%arg0: i32) -> (i32, i32) {
    %c0_i32 = arith.constant 0 : i32
    %c0_i32_0 = arith.constant 0 : i32
    %c0_i32_1 = arith.constant 0 : i32
    return %c0_i32, %c0_i32_0 : i32, i32
  }
}

module attributes {stable_mosaic.version = 11 : i64} {
  func.func @_conv_act_kernel(%arg0: i32, %arg1: memref<72x512xbf16, #tpu.memory_space<vmem>>, %arg2: memref<8x72xbf16, #tpu.memory_space<vmem>>, %arg3: memref<8x1xf32, #tpu.memory_space<vmem>>, %arg4: memref<8x512xf32, #tpu.memory_space<vmem>>) attributes {dimension_semantics = [#tpu.dimension_semantics<arbitrary>], iteration_bounds = array<i64: 1>, scalar_prefetch = 0 : i64, scratch_operands = 0 : i64, tpu.core_type = #tpu.core_type<tc>, window_params = [{pipeline_mode = #tpu.pipeline_mode<synchronous>, transform_indices = @transform_0, window_bounds = array<i64: 72, 512>}, {pipeline_mode = #tpu.pipeline_mode<synchronous>, transform_indices = @transform_1, window_bounds = array<i64: 8, 72>}, {pipeline_mode = #tpu.pipeline_mode<synchronous>, transform_indices = @transform_2, window_bounds = array<i64: 8, 1>}, {pipeline_mode = #tpu.pipeline_mode<synchronous>, transform_indices = @transform_3, window_bounds = array<i64: 8, 512>}]} {
    %c0 = arith.constant 0 : index
    %c0_0 = arith.constant 0 : index
    %0 = vector.load %arg2[%c0, %c0_0] : memref<8x72xbf16, #tpu.memory_space<vmem>>, vector<8x72xbf16>
    %c0_1 = arith.constant 0 : index
    %c0_2 = arith.constant 0 : index
    %1 = vector.load %arg1[%c0_1, %c0_2] : memref<72x512xbf16, #tpu.memory_space<vmem>>, vector<72x512xbf16>
    %cst = arith.constant dense<0.000000e+00> : vector<8x512xf32>
    %2 = tpu.matmul %0, %1, %cst {dimension_numbers = #tpu.dot_dimension_numbers<[1], [0], [0], [1], [0, 0, 1, 1], [], []>} : vector<8x72xbf16>, vector<72x512xbf16>, vector<8x512xf32> -> vector<8x512xf32>
    %c0_3 = arith.constant 0 : index
    %c0_4 = arith.constant 0 : index
    %3 = vector.load %arg3[%c0_3, %c0_4] : memref<8x1xf32, #tpu.memory_space<vmem>>, vector<8x1xf32>
    %4 = vector.broadcast %3 : vector<8x1xf32> to vector<8x512xf32>
    %5 = arith.addf %2, %4 : vector<8x512xf32>
    %cst_5 = arith.constant 0.000000e+00 : f32
    %6 = vector.broadcast %cst_5 : f32 to vector<8x512xf32>
    %7 = arith.maximumf %5, %6 : vector<8x512xf32>
    %c0_6 = arith.constant 0 : index
    %c0_7 = arith.constant 0 : index
    %8 = vector.load %arg4[%c0_6, %c0_7] : memref<8x512xf32, #tpu.memory_space<vmem>>, vector<8x512xf32>
    tpu.vector_store %arg4[%c0_6, %c0_7], %7 {strides = array<i32>} : memref<8x512xf32, #tpu.memory_space<vmem>>, vector<8x512xf32>,
    return
  }
  func.func @transform_0(%arg0: i32) -> (i32, i32) {
    %c0_i32 = arith.constant 0 : i32
    %c0_i32_0 = arith.constant 0 : i32
    %c0_i32_1 = arith.constant 0 : i32
    return %c0_i32, %c0_i32_0 : i32, i32
  }
  func.func @transform_1(%arg0: i32) -> (i32, i32) {
    %c0_i32 = arith.constant 0 : i32
    %c0_i32_0 = arith.constant 0 : i32
    %c0_i32_1 = arith.constant 0 : i32
    return %c0_i32, %c0_i32_0 : i32, i32
  }
  func.func @transform_2(%arg0: i32) -> (i32, i32) {
    %c0_i32 = arith.constant 0 : i32
    %c0_i32_0 = arith.constant 0 : i32
    %c0_i32_1 = arith.constant 0 : i32
    return %c0_i32, %c0_i32_0 : i32, i32
  }
  func.func @transform_3(%arg0: i32) -> (i32, i32) {
    %c0_i32 = arith.constant 0 : i32
    %c0_i32_0 = arith.constant 0 : i32
    %c0_i32_1 = arith.constant 0 : i32
    return %c0_i32, %c0_i32_0 : i32, i32
  }
}

module attributes {stable_mosaic.version = 11 : i64} {
  func.func @_conv_act_kernel(%arg0: i32, %arg1: memref<144x512xbf16, #tpu.memory_space<vmem>>, %arg2: memref<8x144xbf16, #tpu.memory_space<vmem>>, %arg3: memref<8x1xf32, #tpu.memory_space<vmem>>, %arg4: memref<8x512xf32, #tpu.memory_space<vmem>>) attributes {dimension_semantics = [#tpu.dimension_semantics<arbitrary>], iteration_bounds = array<i64: 1>, scalar_prefetch = 0 : i64, scratch_operands = 0 : i64, tpu.core_type = #tpu.core_type<tc>, window_params = [{pipeline_mode = #tpu.pipeline_mode<synchronous>, transform_indices = @transform_0, window_bounds = array<i64: 144, 512>}, {pipeline_mode = #tpu.pipeline_mode<synchronous>, transform_indices = @transform_1, window_bounds = array<i64: 8, 144>}, {pipeline_mode = #tpu.pipeline_mode<synchronous>, transform_indices = @transform_2, window_bounds = array<i64: 8, 1>}, {pipeline_mode = #tpu.pipeline_mode<synchronous>, transform_indices = @transform_3, window_bounds = array<i64: 8, 512>}]} {
    %c0 = arith.constant 0 : index
    %c0_0 = arith.constant 0 : index
    %0 = vector.load %arg2[%c0, %c0_0] : memref<8x144xbf16, #tpu.memory_space<vmem>>, vector<8x144xbf16>
    %c0_1 = arith.constant 0 : index
    %c0_2 = arith.constant 0 : index
    %1 = vector.load %arg1[%c0_1, %c0_2] : memref<144x512xbf16, #tpu.memory_space<vmem>>, vector<144x512xbf16>
    %cst = arith.constant dense<0.000000e+00> : vector<8x512xf32>
    %2 = tpu.matmul %0, %1, %cst {dimension_numbers = #tpu.dot_dimension_numbers<[1], [0], [0], [1], [0, 0, 1, 1], [], []>} : vector<8x144xbf16>, vector<144x512xbf16>, vector<8x512xf32> -> vector<8x512xf32>
    %c0_3 = arith.constant 0 : index
    %c0_4 = arith.constant 0 : index
    %3 = vector.load %arg3[%c0_3, %c0_4] : memref<8x1xf32, #tpu.memory_space<vmem>>, vector<8x1xf32>
    %4 = vector.broadcast %3 : vector<8x1xf32> to vector<8x512xf32>
    %5 = arith.addf %2, %4 : vector<8x512xf32>
    %cst_5 = arith.constant 0.000000e+00 : f32
    %6 = vector.broadcast %cst_5 : f32 to vector<8x512xf32>
    %7 = arith.maximumf %5, %6 : vector<8x512xf32>
    %c0_6 = arith.constant 0 : index
    %c0_7 = arith.constant 0 : index
    %8 = vector.load %arg4[%c0_6, %c0_7] : memref<8x512xf32, #tpu.memory_space<vmem>>, vector<8x512xf32>
    tpu.vector_store %arg4[%c0_6, %c0_7], %7 {strides = array<i32>} : memref<8x512xf32, #tpu.memory_space<vmem>>, vector<8x512xf32>,
    return
  }
  func.func @transform_0(%arg0: i32) -> (i32, i32) {
    %c0_i32 = arith.constant 0 : i32
    %c0_i32_0 = arith.constant 0 : i32
    %c0_i32_1 = arith.constant 0 : i32
    return %c0_i32, %c0_i32_0 : i32, i32
  }
  func.func @transform_1(%arg0: i32) -> (i32, i32) {
    %c0_i32 = arith.constant 0 : i32
    %c0_i32_0 = arith.constant 0 : i32
    %c0_i32_1 = arith.constant 0 : i32
    return %c0_i32, %c0_i32_0 : i32, i32
  }
  func.func @transform_2(%arg0: i32) -> (i32, i32) {
    %c0_i32 = arith.constant 0 : i32
    %c0_i32_0 = arith.constant 0 : i32
    %c0_i32_1 = arith.constant 0 : i32
    return %c0_i32, %c0_i32_0 : i32, i32
  }
  func.func @transform_3(%arg0: i32) -> (i32, i32) {
    %c0_i32 = arith.constant 0 : i32
    %c0_i32_0 = arith.constant 0 : i32
    %c0_i32_1 = arith.constant 0 : i32
    return %c0_i32, %c0_i32_0 : i32, i32
  }
}

module attributes {stable_mosaic.version = 11 : i64} {
  func.func @_conv_act_kernel(%arg0: i32, %arg1: memref<8x512xbf16, #tpu.memory_space<vmem>>, %arg2: memref<1x8xbf16, #tpu.memory_space<vmem>>, %arg3: memref<1x1xf32, #tpu.memory_space<vmem>>, %arg4: memref<1x512xf32, #tpu.memory_space<vmem>>) attributes {dimension_semantics = [#tpu.dimension_semantics<arbitrary>], iteration_bounds = array<i64: 1>, scalar_prefetch = 0 : i64, scratch_operands = 0 : i64, tpu.core_type = #tpu.core_type<tc>, window_params = [{pipeline_mode = #tpu.pipeline_mode<synchronous>, transform_indices = @transform_0, window_bounds = array<i64: 8, 512>}, {pipeline_mode = #tpu.pipeline_mode<synchronous>, transform_indices = @transform_1, window_bounds = array<i64: 1, 8>}, {pipeline_mode = #tpu.pipeline_mode<synchronous>, transform_indices = @transform_2, window_bounds = array<i64: 1, 1>}, {pipeline_mode = #tpu.pipeline_mode<synchronous>, transform_indices = @transform_3, window_bounds = array<i64: 1, 512>}]} {
    %c0 = arith.constant 0 : index
    %c0_0 = arith.constant 0 : index
    %0 = vector.load %arg2[%c0, %c0_0] : memref<1x8xbf16, #tpu.memory_space<vmem>>, vector<1x8xbf16>
    %c0_1 = arith.constant 0 : index
    %c0_2 = arith.constant 0 : index
    %1 = vector.load %arg1[%c0_1, %c0_2] : memref<8x512xbf16, #tpu.memory_space<vmem>>, vector<8x512xbf16>
    %cst = arith.constant dense<0.000000e+00> : vector<1x512xf32>
    %2 = tpu.matmul %0, %1, %cst {dimension_numbers = #tpu.dot_dimension_numbers<[1], [0], [0], [1], [0, 0, 1, 1], [], []>} : vector<1x8xbf16>, vector<8x512xbf16>, vector<1x512xf32> -> vector<1x512xf32>
    %c0_3 = arith.constant 0 : index
    %c0_4 = arith.constant 0 : index
    %3 = vector.load %arg3[%c0_3, %c0_4] : memref<1x1xf32, #tpu.memory_space<vmem>>, vector<1x1xf32>
    %4 = vector.broadcast %3 : vector<1x1xf32> to vector<1x512xf32>
    %5 = arith.addf %2, %4 : vector<1x512xf32>
    %6 = arith.negf %5 : vector<1x512xf32>
    %7 = math.exp %6 : vector<1x512xf32>
    %cst_5 = arith.constant 1.000000e+00 : f32
    %8 = vector.broadcast %cst_5 : f32 to vector<1x512xf32>
    %9 = arith.addf %8, %7 : vector<1x512xf32>
    %10 = arith.divf %8, %9 : vector<1x512xf32>
    %c0_6 = arith.constant 0 : index
    %c0_7 = arith.constant 0 : index
    %11 = vector.load %arg4[%c0_6, %c0_7] : memref<1x512xf32, #tpu.memory_space<vmem>>, vector<1x512xf32>
    tpu.vector_store %arg4[%c0_6, %c0_7], %10 {strides = array<i32>} : memref<1x512xf32, #tpu.memory_space<vmem>>, vector<1x512xf32>,
    return
  }
  func.func @transform_0(%arg0: i32) -> (i32, i32) {
    %c0_i32 = arith.constant 0 : i32
    %c0_i32_0 = arith.constant 0 : i32
    %c0_i32_1 = arith.constant 0 : i32
    return %c0_i32, %c0_i32_0 : i32, i32
  }
  func.func @transform_1(%arg0: i32) -> (i32, i32) {
    %c0_i32 = arith.constant 0 : i32
    %c0_i32_0 = arith.constant 0 : i32
    %c0_i32_1 = arith.constant 0 : i32
    return %c0_i32, %c0_i32_0 : i32, i32
  }
  func.func @transform_2(%arg0: i32) -> (i32, i32) {
    %c0_i32 = arith.constant 0 : i32
    %c0_i32_0 = arith.constant 0 : i32
    %c0_i32_1 = arith.constant 0 : i32
    return %c0_i32, %c0_i32_0 : i32, i32
  }
  func.func @transform_3(%arg0: i32) -> (i32, i32) {
    %c0_i32 = arith.constant 0 : i32
    %c0_i32_0 = arith.constant 0 : i32
    %c0_i32_1 = arith.constant 0 : i32
    return %c0_i32, %c0_i32_0 : i32, i32
  }
}

</mosaic_0001>

<llo_original>
// kernel: _lambda_.22
$region0: #{_lambda_.22}
  #allocation0 [shape = 'u32[]', space=smem, size = 0x4, offset = 0x4, fixed_abs, tag = 'smem constant byte address 0x4 - core index']
  #allocation1 [shape = 'u32[144,128]{1,0:T(1,128)}', space=vmem, size = 0x12000, scoped, tag = 'internal scratch']
  %s0 = inlined_call_operand.vmem [shape: bf16[9,512], index: 0, kind: input, shape index: {}]
  %s1 = inlined_call_operand.vmem [shape: bf16[8,9], index: 1, kind: input, shape index: {}]
  %s2 = inlined_call_operand.vmem [shape: f32[8,1], index: 2, kind: input, shape index: {}]
  %s3 = inlined_call_operand.vmem [shape: f32[8,1], index: 3, kind: input, shape index: {}]
  %s4 = inlined_call_operand.vmem [shape: f32[8,1], index: 4, kind: input, shape index: {}]
  %s5 = inlined_call_operand.vmem [shape: f32[8,512], index: 5, kind: output, shape index: {}]
  %s6 = sld [smem:[#allocation0]]
  $region30: #{_lambda_.22} parent=0
    _
  %s8 = ssub.s32 1, %s6
  %s9 = scalar_select 0, %s8, %s6
  // Predicated region
  $region2: #{_lambda_.22} parent=0 // pred_check
    _
  $region3: #{_lambda_.22} parent=0 // pred_check_branch
    %11 = sbr.rel (0) target = $region5
  $region4: #{_lambda_.22} parent=0 // pred_region
    _
  $region5: #{_lambda_.22} parent=0 // pred_fallthru
    _
  // Predicated region
  $region6: #{_lambda_.22} parent=0 // pred_check
    _
  $region7: #{_lambda_.22} parent=0 // pred_check_branch
    %13 = sbr.rel (0) target = $region9
  $region8: #{_lambda_.22} parent=0 // pred_region
    _
  $region9: #{_lambda_.22} parent=0 // pred_fallthru
    _
  // Predicated region
  $region10: #{_lambda_.22} parent=0 // pred_check
    _
  $region11: #{_lambda_.22} parent=0 // pred_check_branch
    %15 = sbr.rel (0) target = $region13
  $region12: #{_lambda_.22} parent=0 // pred_region
    _
  $region13: #{_lambda_.22} parent=0 // pred_fallthru
    _
  // Predicated region
  $region14: #{_lambda_.22} parent=0 // pred_check
    _
  $region15: #{_lambda_.22} parent=0 // pred_check_branch
    %17 = sbr.rel (0) target = $region17
  $region16: #{_lambda_.22} parent=0 // pred_region
    _
  $region17: #{_lambda_.22} parent=0 // pred_fallthru
    _
  // Predicated region
  $region18: #{_lambda_.22} parent=0 // pred_check
    _
  $region19: #{_lambda_.22} parent=0 // pred_check_branch
    %19 = sbr.rel (0) target = $region21
  $region20: #{_lambda_.22} parent=0 // pred_region
    _
  $region21: #{_lambda_.22} parent=0 // pred_fallthru
    _
  %v21 = vld [vmem:[%s1] sm:$0xf]
  %v22 = vld [vmem:[%s0] sm:$0xff]
  %v23 = vld [vmem:[%s0 + $0x8] sm:$0xff]
  %v24 = vld [vmem:[%s0 + $0x10] sm:$0x11]
  %v25 = vld [vmem:[%s0 + $0x18] sm:$0x11]
  %v26 = vld [vmem:[%s2] sm:$0xff]
  %28 = vset.pattern.permute.xlu0 0
  %29 = vperm.xlu0 %28, %v26
  %v30 = vpop.permute.xlu0 %29
  %v36 = vunpack.c.l.b16 %v22
  %v37 = vunpack.c.h.b16 %v22
  %v38 = vunpack.c.l.b16 %v23
  %v39 = vunpack.c.h.b16 %v23
  %v40 = vunpack.c.l.b16 %v24
  %v41 = vunpack.c.h.b16 %v24
  %v42 = vunpack.c.l.b16 %v25
  %v43 = vunpack.c.h.b16 %v25
  %v44 = vpack.c.b16 %v40, %v36
  %v45 = vpack.c.b16 %v41, %v37
  %v46 = vpack.c.b16 %v42, %v38
  %v47 = vpack.c.b16 %v43, %v39
  %vm48 = vcmask 72704
  %v50 = vsel %vm48, %v21, 0
  %vm52 = vcmask 1043456
  %vm53 = vcmask 1044480
  %v54 = vsel %vm52, 4294967295, 65535
  %v55 = vsel %vm53, %v54, 0
  %v57 = vand.u32 %v44, %v55
  %v60 = vand.u32 %v45, %v55
  %v63 = vand.u32 %v46, %v55
  %v66 = vand.u32 %v47, %v55
  %68 = vmatprep.subr.bf16.mxu0 %v60
  %69 = vmatpush1.bf16.msra.mxu0 %v57
  %70 = vmatprep.subr.bf16.mxu0 0
  %71 = vmatpush1.bf16.msra.mxu0 0
  %72 = vmatprep.subr.bf16.mxu0 0
  %73 = vmatpush1.bf16.msra.mxu0 0
  %74 = vmatprep.subr.bf16.mxu0 0
  %75 = vmatpush1.bf16.msra.mxu0 0
  %76 = vmatprep.subr.bf16.mxu0 0
  %77 = vmatpush1.bf16.msra.mxu0 0
  %78 = vmatprep.subr.bf16.mxu0 0
  %79 = vmatpush1.bf16.msra.mxu0 0
  %80 = vmatprep.subr.bf16.mxu0 0
  %81 = vmatpush1.bf16.msra.mxu0 0
  %82 = vmatprep.subr.bf16.mxu0 0
  %83 = vmatpush1.bf16.msra.mxu0 0
  %84 = vmatprep.subr.bf16.mxu0 0
  %85 = vmatpush1.bf16.msra.mxu0 0
  %86 = vmatprep.subr.bf16.mxu0 0
  %87 = vmatpush1.bf16.msra.mxu0 0
  %88 = vmatprep.subr.bf16.mxu0 0
  %89 = vmatpush1.bf16.msra.mxu0 0
  %90 = vmatprep.subr.bf16.mxu0 0
  %91 = vmatpush1.bf16.msra.mxu0 0
  %92 = vmatprep.subr.bf16.mxu0 0
  %93 = vmatpush1.bf16.msra.mxu0 0
  %94 = vmatprep.subr.bf16.mxu0 0
  %95 = vmatpush1.bf16.msra.mxu0 0
  %96 = vmatprep.subr.bf16.mxu0 0
  %97 = vmatpush1.bf16.msra.mxu0 0
  %98 = vmatprep.subr.bf16.mxu0 0
  %99 = vmatpush1.bf16.msra.mxu0 0
  %100 = vmatprep.mubr.bf16.mxu0 0
  %101 = vmatmul.mubr.bf16.gmra.mrb[0].mxu0 %v50
  %v102 = vpop.f32.mrb[0].mxu0
  %v103 = vadd.f32 %v30, %v102
  %v104 = vpop.f32.mrb[0].mxu0
  %v105 = vadd.f32 %v30, %v104
  %v106 = vpop.f32.mrb[0].mxu0
  %v107 = vpop.f32.mrb[0].mxu0
  %108 = vdwg.mxu0
  %109 = vmatprep.subr.bf16.mxu0 %v66
  %110 = vmatpush1.bf16.msra.mxu0 %v63
  %111 = vmatprep.subr.bf16.mxu0 0
  %112 = vmatpush1.bf16.msra.mxu0 0
  %113 = vmatprep.subr.bf16.mxu0 0
  %114 = vmatpush1.bf16.msra.mxu0 0
  %115 = vmatprep.subr.bf16.mxu0 0
  %116 = vmatpush1.bf16.msra.mxu0 0
  %117 = vmatprep.subr.bf16.mxu0 0
  %118 = vmatpush1.bf16.msra.mxu0 0
  %119 = vmatprep.subr.bf16.mxu0 0
  %120 = vmatpush1.bf16.msra.mxu0 0
  %121 = vmatprep.subr.bf16.mxu0 0
  %122 = vmatpush1.bf16.msra.mxu0 0
  %123 = vmatprep.subr.bf16.mxu0 0
  %124 = vmatpush1.bf16.msra.mxu0 0
  %125 = vmatprep.subr.bf16.mxu0 0
  %126 = vmatpush1.bf16.msra.mxu0 0
  %127 = vmatprep.subr.bf16.mxu0 0
  %128 = vmatpush1.bf16.msra.mxu0 0
  %129 = vmatprep.subr.bf16.mxu0 0
  %130 = vmatpush1.bf16.msra.mxu0 0
  %131 = vmatprep.subr.bf16.mxu0 0
  %132 = vmatpush1.bf16.msra.mxu0 0
  %133 = vmatprep.subr.bf16.mxu0 0
  %134 = vmatpush1.bf16.msra.mxu0 0
  %135 = vmatprep.subr.bf16.mxu0 0
  %136 = vmatpush1.bf16.msra.mxu0 0
  %137 = vmatprep.subr.bf16.mxu0 0
  %138 = vmatpush1.bf16.msra.mxu0 0
  %139 = vmatprep.subr.bf16.mxu0 0
  %140 = vmatpush1.bf16.msra.mxu0 0
  %141 = vmatprep.mubr.bf16.mxu0 0
  %142 = vmatmul.mubr.bf16.gmra.mrb[0].mxu0 %v50
  %v143 = vpop.f32.mrb[0].mxu0
  %v144 = vadd.f32 %v30, %v143
  %v145 = vpop.f32.mrb[0].mxu0
  %v146 = vadd.f32 %v30, %v145
  %v147 = vpop.f32.mrb[0].mxu0
  %v148 = vpop.f32.mrb[0].mxu0
  %149 = vdwg.mxu0
  %v150 = vadd.f32 %v103, %v105
  %v151 = vadd.f32 %v150, %v144
  %v152 = vadd.f32 %v151, %v146
  %153 = vadd.xlane.f32.xlu0 %v152
  %v154 = vpop.xlane.xlu0 %153
  %v155 = vmul.f32 %v154, 0.001953125
  %v156 = vsub.f32 %v103, %v155
  %v157 = vsub.f32 %v105, %v155
  %v158 = vsub.f32 %v144, %v155
  %v159 = vsub.f32 %v146, %v155
  %v160 = vmul.f32 %v156, %v156
  %v161 = vmul.f32 %v157, %v157
  %v162 = vmul.f32 %v158, %v158
  %v163 = vmul.f32 %v159, %v159
  %v164 = vadd.f32 %v160, %v161
  %v165 = vadd.f32 %v164, %v162
  %v166 = vadd.f32 %v165, %v163
  %167 = vadd.xlane.f32.xlu0 %v166
  %v168 = vpop.xlane.xlu0 %167
  %v169 = vmul.f32 %v168, 0.001953125
  %v170 = vadd.f32 %v169, 1e-05
  %v171 = vrsqrt.pop %v170
  %v172 = vmul.f32 %v156, %v171
  %v173 = vmul.f32 %v157, %v171
  %v174 = vmul.f32 %v158, %v171
  %v175 = vmul.f32 %v159, %v171
  %v176 = vld [vmem:[%s3] sm:$0xff]
  %178 = vset.pattern.permute.xlu0 0
  %179 = vperm.xlu0 %178, %v176
  %v180 = vpop.permute.xlu0 %179
  %v182 = vmul.f32 %v172, %v180
  %v183 = vmul.f32 %v173, %v180
  %v184 = vmul.f32 %v174, %v180
  %v185 = vmul.f32 %v175, %v180
  %v186 = vld [vmem:[%s4] sm:$0xff]
  %188 = vset.pattern.permute.xlu0 0
  %189 = vperm.xlu0 %188, %v186
  %v190 = vpop.permute.xlu0 %189
  %v192 = vadd.f32 %v182, %v190
  %v193 = vadd.f32 %v183, %v190
  %v194 = vadd.f32 %v184, %v190
  %v195 = vadd.f32 %v185, %v190
  %v196 = vmax.f32 %v192, 0.0
  %v197 = vmax.f32 %v193, 0.0
  %v198 = vmax.f32 %v194, 0.0
  %v199 = vmax.f32 %v195, 0.0
  %200 = vst [vmem:[%s5] sm:$0xff] %v196
  %201 = vst [vmem:[%s5 + $0x8] sm:$0xff] %v197
  %202 = vst [vmem:[%s5 + $0x10] sm:$0xff] %v198
  %203 = vst [vmem:[%s5 + $0x18] sm:$0xff] %v199
  // Predicated region
  $region22: #{_lambda_.22} parent=0 // pred_check
    _
  $region23: #{_lambda_.22} parent=0 // pred_check_branch
    %205 = sbr.rel (0) target = $region25
  $region24: #{_lambda_.22} parent=0 // pred_region
    _
  $region25: #{_lambda_.22} parent=0 // pred_fallthru
    _
  // Predicated region
  $region26: #{_lambda_.22} parent=0 // pred_check
    _
  $region27: #{_lambda_.22} parent=0 // pred_check_branch
    %207 = sbr.rel (0) target = $region29
  $region28: #{_lambda_.22} parent=0 // pred_region
    _
  $region29: #{_lambda_.22} parent=0 // pred_fallthru
    _

// kernel: _lambda_.23
$region0: #{_lambda_.23}
  #allocation0 [shape = 'u32[]', space=smem, size = 0x4, offset = 0x4, fixed_abs, tag = 'smem constant byte address 0x4 - core index']
  #allocation1 [shape = 'u32[144,128]{1,0:T(1,128)}', space=vmem, size = 0x12000, scoped, tag = 'internal scratch']
  %s0 = inlined_call_operand.vmem [shape: bf16[72,512], index: 0, kind: input, shape index: {}]
  %s1 = inlined_call_operand.vmem [shape: bf16[8,72], index: 1, kind: input, shape index: {}]
  %s2 = inlined_call_operand.vmem [shape: f32[8,1], index: 2, kind: input, shape index: {}]
  %s3 = inlined_call_operand.vmem [shape: f32[8,1], index: 3, kind: input, shape index: {}]
  %s4 = inlined_call_operand.vmem [shape: f32[8,1], index: 4, kind: input, shape index: {}]
  %s5 = inlined_call_operand.vmem [shape: f32[8,512], index: 5, kind: output, shape index: {}]
  %s6 = sld [smem:[#allocation0]]
  $region30: #{_lambda_.23} parent=0
    _
  %s8 = ssub.s32 1, %s6
  %s9 = scalar_select 0, %s8, %s6
  // Predicated region
  $region2: #{_lambda_.23} parent=0 // pred_check
    _
  $region3: #{_lambda_.23} parent=0 // pred_check_branch
    %11 = sbr.rel (0) target = $region5
  $region4: #{_lambda_.23} parent=0 // pred_region
    _
  $region5: #{_lambda_.23} parent=0 // pred_fallthru
    _
  // Predicated region
  $region6: #{_lambda_.23} parent=0 // pred_check
    _
  $region7: #{_lambda_.23} parent=0 // pred_check_branch
    %13 = sbr.rel (0) target = $region9
  $region8: #{_lambda_.23} parent=0 // pred_region
    _
  $region9: #{_lambda_.23} parent=0 // pred_fallthru
    _
  // Predicated region
  $region10: #{_lambda_.23} parent=0 // pred_check
    _
  $region11: #{_lambda_.23} parent=0 // pred_check_branch
    %15 = sbr.rel (0) target = $region13
  $region12: #{_lambda_.23} parent=0 // pred_region
    _
  $region13: #{_lambda_.23} parent=0 // pred_fallthru
    _
  // Predicated region
  $region14: #{_lambda_.23} parent=0 // pred_check
    _
  $region15: #{_lambda_.23} parent=0 // pred_check_branch
    %17 = sbr.rel (0) target = $region17
  $region16: #{_lambda_.23} parent=0 // pred_region
    _
  $region17: #{_lambda_.23} parent=0 // pred_fallthru
    _
  // Predicated region
  $region18: #{_lambda_.23} parent=0 // pred_check
    _
  $region19: #{_lambda_.23} parent=0 // pred_check_branch
    %19 = sbr.rel (0) target = $region21
  $region20: #{_lambda_.23} parent=0 // pred_region
    _
  $region21: #{_lambda_.23} parent=0 // pred_fallthru
    _
  %v21 = vld [vmem:[%s1] sm:$0xf]
  %v22 = vld [vmem:[%s0] sm:$0xff]
  %v23 = vld [vmem:[%s0 + $0x8] sm:$0xff]
  %v24 = vld [vmem:[%s0 + $0x10] sm:$0xff]
  %v25 = vld [vmem:[%s0 + $0x18] sm:$0xff]
  %v26 = vld [vmem:[%s0 + $0x20] sm:$0xff]
  %v27 = vld [vmem:[%s0 + $0x28] sm:$0xff]
  %v28 = vld [vmem:[%s0 + $0x30] sm:$0xff]
  %v29 = vld [vmem:[%s0 + $0x38] sm:$0xff]
  %v30 = vld [vmem:[%s0 + $0x40] sm:$0xff]
  %v31 = vld [vmem:[%s0 + $0x48] sm:$0xff]
  %v32 = vld [vmem:[%s0 + $0x50] sm:$0xff]
  %v33 = vld [vmem:[%s0 + $0x58] sm:$0xff]
  %v34 = vld [vmem:[%s0 + $0x60] sm:$0xff]
  %v35 = vld [vmem:[%s0 + $0x68] sm:$0xff]
  %v36 = vld [vmem:[%s0 + $0x70] sm:$0xff]
  %v37 = vld [vmem:[%s0 + $0x78] sm:$0xff]
  %v38 = vld [vmem:[%s0 + $0x80] sm:$0xff]
  %v39 = vld [vmem:[%s0 + $0x88] sm:$0xff]
  %v40 = vld [vmem:[%s2] sm:$0xff]
  %42 = vset.pattern.permute.xlu0 0
  %43 = vperm.xlu0 %42, %v40
  %v44 = vpop.permute.xlu0 %43
  %v64 = vunpack.c.l.b16 %v22
  %v65 = vunpack.c.h.b16 %v22
  %v66 = vunpack.c.l.b16 %v23
  %v67 = vunpack.c.h.b16 %v23
  %v68 = vunpack.c.l.b16 %v24
  %v69 = vunpack.c.h.b16 %v24
  %v70 = vunpack.c.l.b16 %v25
  %v71 = vunpack.c.h.b16 %v25
  %v72 = vunpack.c.l.b16 %v26
  %v73 = vunpack.c.h.b16 %v26
  %v74 = vunpack.c.l.b16 %v27
  %v75 = vunpack.c.h.b16 %v27
  %v76 = vunpack.c.l.b16 %v28
  %v77 = vunpack.c.h.b16 %v28
  %v78 = vunpack.c.l.b16 %v29
  %v79 = vunpack.c.h.b16 %v29
  %v80 = vunpack.c.l.b16 %v30
  %v81 = vunpack.c.h.b16 %v30
  %v82 = vunpack.c.l.b16 %v31
  %v83 = vunpack.c.h.b16 %v31
  %v84 = vunpack.c.l.b16 %v32
  %v85 = vunpack.c.h.b16 %v32
  %v86 = vunpack.c.l.b16 %v33
  %v87 = vunpack.c.h.b16 %v33
  %v88 = vunpack.c.l.b16 %v34
  %v89 = vunpack.c.h.b16 %v34
  %v90 = vunpack.c.l.b16 %v35
  %v91 = vunpack.c.h.b16 %v35
  %v92 = vunpack.c.l.b16 %v36
  %v93 = vunpack.c.h.b16 %v36
  %v94 = vunpack.c.l.b16 %v37
  %v95 = vunpack.c.h.b16 %v37
  %v96 = vunpack.c.l.b16 %v38
  %v97 = vunpack.c.h.b16 %v38
  %v98 = vunpack.c.l.b16 %v39
  %v99 = vunpack.c.h.b16 %v39
  %v100 = vpack.c.b16 %v68, %v64
  %v101 = vpack.c.b16 %v69, %v65
  %v102 = vpack.c.b16 %v70, %v66
  %v103 = vpack.c.b16 %v71, %v67
  %v104 = vpack.c.b16 %v76, %v72
  %v105 = vpack.c.b16 %v77, %v73
  %v106 = vpack.c.b16 %v78, %v74
  %v107 = vpack.c.b16 %v79, %v75
  %v108 = vpack.c.b16 %v84, %v80
  %v109 = vpack.c.b16 %v85, %v81
  %v110 = vpack.c.b16 %v86, %v82
  %v111 = vpack.c.b16 %v87, %v83
  %v112 = vpack.c.b16 %v92, %v88
  %v113 = vpack.c.b16 %v93, %v89
  %v114 = vpack.c.b16 %v94, %v90
  %v115 = vpack.c.b16 %v95, %v91
  %v116 = vpack.c.b16 %v96, %v96
  %v117 = vpack.c.b16 %v97, %v97
  %v118 = vpack.c.b16 %v98, %v98
  %v119 = vpack.c.b16 %v99, %v99
  %vm136 = vcmask 588800
  %v138 = vsel %vm136, %v21, 0
  %vm140 = vcmask 1043456
  %v142 = vsel %vm140, %v116, 0
  %v145 = vsel %vm140, %v117, 0
  %v148 = vsel %vm140, %v118, 0
  %v151 = vsel %vm140, %v119, 0
  %153 = vmatprep.subr.bf16.mxu0 %v101
  %154 = vmatpush1.bf16.msra.mxu0 %v100
  %155 = vmatprep.subr.bf16.mxu0 %v105
  %156 = vmatpush1.bf16.msra.mxu0 %v104
  %157 = vmatprep.subr.bf16.mxu0 %v109
  %158 = vmatpush1.bf16.msra.mxu0 %v108
  %159 = vmatprep.subr.bf16.mxu0 %v113
  %160 = vmatpush1.bf16.msra.mxu0 %v112
  %161 = vmatprep.subr.bf16.mxu0 %v145
  %162 = vmatpush1.bf16.msra.mxu0 %v142
  %163 = vmatprep.subr.bf16.mxu0 0
  %164 = vmatpush1.bf16.msra.mxu0 0
  %165 = vmatprep.subr.bf16.mxu0 0
  %166 = vmatpush1.bf16.msra.mxu0 0
  %167 = vmatprep.subr.bf16.mxu0 0
  %168 = vmatpush1.bf16.msra.mxu0 0
  %169 = vmatprep.subr.bf16.mxu0 0
  %170 = vmatpush1.bf16.msra.mxu0 0
  %171 = vmatprep.subr.bf16.mxu0 0
  %172 = vmatpush1.bf16.msra.mxu0 0
  %173 = vmatprep.subr.bf16.mxu0 0
  %174 = vmatpush1.bf16.msra.mxu0 0
  %175 = vmatprep.subr.bf16.mxu0 0
  %176 = vmatpush1.bf16.msra.mxu0 0
  %177 = vmatprep.subr.bf16.mxu0 0
  %178 = vmatpush1.bf16.msra.mxu0 0
  %179 = vmatprep.subr.bf16.mxu0 0
  %180 = vmatpush1.bf16.msra.mxu0 0
  %181 = vmatprep.subr.bf16.mxu0 0
  %182 = vmatpush1.bf16.msra.mxu0 0
  %183 = vmatprep.subr.bf16.mxu0 0
  %184 = vmatpush1.bf16.msra.mxu0 0
  %185 = vmatprep.mubr.bf16.mxu0 0
  %186 = vmatmul.mubr.bf16.gmra.mrb[0].mxu0 %v138
  %v187 = vpop.f32.mrb[0].mxu0
  %v188 = vadd.f32 %v44, %v187
  %v189 = vpop.f32.mrb[0].mxu0
  %v190 = vadd.f32 %v44, %v189
  %v191 = vpop.f32.mrb[0].mxu0
  %v192 = vpop.f32.mrb[0].mxu0
  %193 = vdwg.mxu0
  %194 = vmatprep.subr.bf16.mxu0 %v103
  %195 = vmatpush1.bf16.msra.mxu0 %v102
  %196 = vmatprep.subr.bf16.mxu0 %v107
  %197 = vmatpush1.bf16.msra.mxu0 %v106
  %198 = vmatprep.subr.bf16.mxu0 %v111
  %199 = vmatpush1.bf16.msra.mxu0 %v110
  %200 = vmatprep.subr.bf16.mxu0 %v115
  %201 = vmatpush1.bf16.msra.mxu0 %v114
  %202 = vmatprep.subr.bf16.mxu0 %v151
  %203 = vmatpush1.bf16.msra.mxu0 %v148
  %204 = vmatprep.subr.bf16.mxu0 0
  %205 = vmatpush1.bf16.msra.mxu0 0
  %206 = vmatprep.subr.bf16.mxu0 0
  %207 = vmatpush1.bf16.msra.mxu0 0
  %208 = vmatprep.subr.bf16.mxu0 0
  %209 = vmatpush1.bf16.msra.mxu0 0
  %210 = vmatprep.subr.bf16.mxu0 0
  %211 = vmatpush1.bf16.msra.mxu0 0
  %212 = vmatprep.subr.bf16.mxu0 0
  %213 = vmatpush1.bf16.msra.mxu0 0
  %214 = vmatprep.subr.bf16.mxu0 0
  %215 = vmatpush1.bf16.msra.mxu0 0
  %216 = vmatprep.subr.bf16.mxu0 0
  %217 = vmatpush1.bf16.msra.mxu0 0
  %218 = vmatprep.subr.bf16.mxu0 0
  %219 = vmatpush1.bf16.msra.mxu0 0
  %220 = vmatprep.subr.bf16.mxu0 0
  %221 = vmatpush1.bf16.msra.mxu0 0
  %222 = vmatprep.subr.bf16.mxu0 0
  %223 = vmatpush1.bf16.msra.mxu0 0
  %224 = vmatprep.subr.bf16.mxu0 0
  %225 = vmatpush1.bf16.msra.mxu0 0
  %226 = vmatprep.mubr.bf16.mxu0 0
  %227 = vmatmul.mubr.bf16.gmra.mrb[0].mxu0 %v138
  %v228 = vpop.f32.mrb[0].mxu0
  %v229 = vadd.f32 %v44, %v228
  %v230 = vpop.f32.mrb[0].mxu0
  %v231 = vadd.f32 %v44, %v230
  %v232 = vpop.f32.mrb[0].mxu0
  %v233 = vpop.f32.mrb[0].mxu0
  %234 = vdwg.mxu0
  %v235 = vadd.f32 %v188, %v190
  %v236 = vadd.f32 %v235, %v229
  %v237 = vadd.f32 %v236, %v231
  %238 = vadd.xlane.f32.xlu0 %v237
  %v239 = vpop.xlane.xlu0 %238
  %v240 = vmul.f32 %v239, 0.001953125
  %v241 = vsub.f32 %v188, %v240
  %v242 = vsub.f32 %v190, %v240
  %v243 = vsub.f32 %v229, %v240
  %v244 = vsub.f32 %v231, %v240
  %v245 = vmul.f32 %v241, %v241
  %v246 = vmul.f32 %v242, %v242
  %v247 = vmul.f32 %v243, %v243
  %v248 = vmul.f32 %v244, %v244
  %v249 = vadd.f32 %v245, %v246
  %v250 = vadd.f32 %v249, %v247
  %v251 = vadd.f32 %v250, %v248
  %252 = vadd.xlane.f32.xlu0 %v251
  %v253 = vpop.xlane.xlu0 %252
  %v254 = vmul.f32 %v253, 0.001953125
  %v255 = vadd.f32 %v254, 1e-05
  %v256 = vrsqrt.pop %v255
  %v257 = vmul.f32 %v241, %v256
  %v258 = vmul.f32 %v242, %v256
  %v259 = vmul.f32 %v243, %v256
  %v260 = vmul.f32 %v244, %v256
  %v261 = vld [vmem:[%s3] sm:$0xff]
  %263 = vset.pattern.permute.xlu0 0
  %264 = vperm.xlu0 %263, %v261
  %v265 = vpop.permute.xlu0 %264
  %v267 = vmul.f32 %v257, %v265
  %v268 = vmul.f32 %v258, %v265
  %v269 = vmul.f32 %v259, %v265
  %v270 = vmul.f32 %v260, %v265
  %v271 = vld [vmem:[%s4] sm:$0xff]
  %273 = vset.pattern.permute.xlu0 0
  %274 = vperm.xlu0 %273, %v271
  %v275 = vpop.permute.xlu0 %274
  %v277 = vadd.f32 %v267, %v275
  %v278 = vadd.f32 %v268, %v275
  %v279 = vadd.f32 %v269, %v275
  %v280 = vadd.f32 %v270, %v275
  %v281 = vmax.f32 %v277, 0.0
  %v282 = vmax.f32 %v278, 0.0
  %v283 = vmax.f32 %v279, 0.0
  %v284 = vmax.f32 %v280, 0.0
  %285 = vst [vmem:[%s5] sm:$0xff] %v281
  %286 = vst [vmem:[%s5 + $0x8] sm:$0xff] %v282
  %287 = vst [vmem:[%s5 + $0x10] sm:$0xff] %v283
  %288 = vst [vmem:[%s5 + $0x18] sm:$0xff] %v284
  // Predicated region
  $region22: #{_lambda_.23} parent=0 // pred_check
    _
  $region23: #{_lambda_.23} parent=0 // pred_check_branch
    %290 = sbr.rel (0) target = $region25
  $region24: #{_lambda_.23} parent=0 // pred_region
    _
  $region25: #{_lambda_.23} parent=0 // pred_fallthru
    _
  // Predicated region
  $region26: #{_lambda_.23} parent=0 // pred_check
    _
  $region27: #{_lambda_.23} parent=0 // pred_check_branch
    %292 = sbr.rel (0) target = $region29
  $region28: #{_lambda_.23} parent=0 // pred_region
    _
  $region29: #{_lambda_.23} parent=0 // pred_fallthru
    _

// kernel: _lambda_.24
$region0: #{_lambda_.24}
  #allocation0 [shape = 'u32[]', space=smem, size = 0x4, offset = 0x4, fixed_abs, tag = 'smem constant byte address 0x4 - core index']
  #allocation1 [shape = 'u32[144,128]{1,0:T(1,128)}', space=vmem, size = 0x12000, scoped, tag = 'internal scratch']
  %s0 = inlined_call_operand.vmem [shape: f32[4,1024], index: 0, kind: input, shape index: {}]
  %s1 = inlined_call_operand.vmem [shape: f32[1,1024], index: 1, kind: output, shape index: {}]
  %s2 = sld [smem:[#allocation0]]
  $region14: #{_lambda_.24} parent=0
    _
  %s4 = ssub.s32 1, %s2
  %s5 = scalar_select 0, %s4, %s2
  // Predicated region
  $region2: #{_lambda_.24} parent=0 // pred_check
    _
  $region3: #{_lambda_.24} parent=0 // pred_check_branch
    %7 = sbr.rel (0) target = $region5
  $region4: #{_lambda_.24} parent=0 // pred_region
    _
  $region5: #{_lambda_.24} parent=0 // pred_fallthru
    _
  %v8 = vld [vmem:[%s0] sm:$0xff]
  %v9 = vld [vmem:[%s0 + $0x8] sm:$0xff]
  %v10 = vld [vmem:[%s0 + $0x10] sm:$0xff]
  %v11 = vld [vmem:[%s0 + $0x18] sm:$0xff]
  %v16 = vcombine.high %v8, %v8
  %v17 = vcombine.high %v9, %v9
  %v18 = vcombine.high %v10, %v10
  %v19 = vcombine.high %v11, %v11
  %vm24 = vcmask 1043456
  %v25 = vsel %vm24, %v8, -inf
  %v26 = vrot.slane %v25, 4
  %v27 = vmax.f32 %v25, %v26
  %v28 = vrot.slane %v27, 2
  %v29 = vmax.f32 %v27, %v28
  %v30 = vrot.slane %v29, 1
  %v31 = vmax.f32 %v29, %v30
  %v32 = vsel %vm24, %v16, -inf
  %v33 = vrot.slane %v32, 4
  %v34 = vmax.f32 %v32, %v33
  %v35 = vrot.slane %v34, 2
  %v36 = vmax.f32 %v34, %v35
  %v37 = vrot.slane %v36, 1
  %v38 = vmax.f32 %v36, %v37
  %v39 = vsel %vm24, %v9, -inf
  %v40 = vrot.slane %v39, 4
  %v41 = vmax.f32 %v39, %v40
  %v42 = vrot.slane %v41, 2
  %v43 = vmax.f32 %v41, %v42
  %v44 = vrot.slane %v43, 1
  %v45 = vmax.f32 %v43, %v44
  %v46 = vsel %vm24, %v17, -inf
  %v47 = vrot.slane %v46, 4
  %v48 = vmax.f32 %v46, %v47
  %v49 = vrot.slane %v48, 2
  %v50 = vmax.f32 %v48, %v49
  %v51 = vrot.slane %v50, 1
  %v52 = vmax.f32 %v50, %v51
  %v53 = vsel %vm24, %v10, -inf
  %v54 = vrot.slane %v53, 4
  %v55 = vmax.f32 %v53, %v54
  %v56 = vrot.slane %v55, 2
  %v57 = vmax.f32 %v55, %v56
  %v58 = vrot.slane %v57, 1
  %v59 = vmax.f32 %v57, %v58
  %v60 = vsel %vm24, %v18, -inf
  %v61 = vrot.slane %v60, 4
  %v62 = vmax.f32 %v60, %v61
  %v63 = vrot.slane %v62, 2
  %v64 = vmax.f32 %v62, %v63
  %v65 = vrot.slane %v64, 1
  %v66 = vmax.f32 %v64, %v65
  %v67 = vsel %vm24, %v11, -inf
  %v68 = vrot.slane %v67, 4
  %v69 = vmax.f32 %v67, %v68
  %v70 = vrot.slane %v69, 2
  %v71 = vmax.f32 %v69, %v70
  %v72 = vrot.slane %v71, 1
  %v73 = vmax.f32 %v71, %v72
  %v74 = vsel %vm24, %v19, -inf
  %v75 = vrot.slane %v74, 4
  %v76 = vmax.f32 %v74, %v75
  %v77 = vrot.slane %v76, 2
  %v78 = vmax.f32 %v76, %v77
  %v79 = vrot.slane %v78, 1
  %v80 = vmax.f32 %v78, %v79
  %v89 = vcombine.low %v31, %v38
  %v90 = vcombine.low %v45, %v52
  %v91 = vcombine.low %v59, %v66
  %v92 = vcombine.low %v73, %v80
  %v94 = vunpack.c.l.s4 1966171168
  %v95 = vunpack.c.0.s8 %v94
  %v96 = vlaneseq
  %v97 = vshrl.u32 %v96, 7
  %v98 = vsub.s32 %v95, %v97
  %v99 = vrot.slane %v89, %v98
  %v101 = vunpack.c.l.s4 1966171168
  %v102 = vunpack.c.0.s8 %v101
  %v103 = vlaneseq
  %v104 = vshrl.u32 %v103, 7
  %v105 = vsub.s32 %v102, %v104
  %v106 = vrot.slane %v90, %v105
  %v108 = vunpack.c.l.s4 1966171168
  %v109 = vunpack.c.0.s8 %v108
  %v110 = vlaneseq
  %v111 = vshrl.u32 %v110, 7
  %v112 = vsub.s32 %v109, %v111
  %v113 = vrot.slane %v91, %v112
  %v115 = vunpack.c.l.s4 1966171168
  %v116 = vunpack.c.0.s8 %v115
  %v117 = vlaneseq
  %v118 = vshrl.u32 %v117, 7
  %v119 = vsub.s32 %v116, %v118
  %v120 = vrot.slane %v92, %v119
  %v121 = vcombine.low %v99, %v106
  %v122 = vcombine.low %v113, %v120
  %v124 = vunpack.c.l.s4 1966171168
  %v125 = vunpack.c.0.s8 %v124
  %v126 = vlaneseq
  %v127 = vshrl.u32 %v126, 7
  %v128 = vsub.s32 %v125, %v127
  %v129 = vrot.slane %v121, %v128
  %v131 = vunpack.c.l.s4 1966171168
  %v132 = vunpack.c.0.s8 %v131
  %v133 = vlaneseq
  %v134 = vshrl.u32 %v133, 7
  %v135 = vsub.s32 %v132, %v134
  %v136 = vrot.slane %v122, %v135
  %v137 = vcombine.low %v129, %v136
  %139 = vst [vmem:[%s1] sm:$0xff] %v137
  // Predicated region
  $region6: #{_lambda_.24} parent=0 // pred_check
    _
  $region7: #{_lambda_.24} parent=0 // pred_check_branch
    %141 = sbr.rel (0) target = $region9
  $region8: #{_lambda_.24} parent=0 // pred_region
    _
  $region9: #{_lambda_.24} parent=0 // pred_fallthru
    _
  // Predicated region
  $region10: #{_lambda_.24} parent=0 // pred_check
    _
  $region11: #{_lambda_.24} parent=0 // pred_check_branch
    %143 = sbr.rel (0) target = $region13
  $region12: #{_lambda_.24} parent=0 // pred_region
    _
  $region13: #{_lambda_.24} parent=0 // pred_fallthru
    _

// kernel: _lambda_.25
$region0: #{_lambda_.25}
  #allocation0 [shape = 'u32[]', space=smem, size = 0x4, offset = 0x4, fixed_abs, tag = 'smem constant byte address 0x4 - core index']
  #allocation1 [shape = 'u32[144,128]{1,0:T(1,128)}', space=vmem, size = 0x12000, scoped, tag = 'internal scratch']
  %s0 = inlined_call_operand.vmem [shape: bf16[72,128], index: 0, kind: input, shape index: {}]
  %s1 = inlined_call_operand.vmem [shape: bf16[16,72], index: 1, kind: input, shape index: {}]
  %s2 = inlined_call_operand.vmem [shape: f32[16,1], index: 2, kind: input, shape index: {}]
  %s3 = inlined_call_operand.vmem [shape: f32[16,1], index: 3, kind: input, shape index: {}]
  %s4 = inlined_call_operand.vmem [shape: f32[16,1], index: 4, kind: input, shape index: {}]
  %s5 = inlined_call_operand.vmem [shape: f32[16,128], index: 5, kind: output, shape index: {}]
  %s6 = sld [smem:[#allocation0]]
  $region30: #{_lambda_.25} parent=0
    _
  %s8 = ssub.s32 1, %s6
  %s9 = scalar_select 0, %s8, %s6
  // Predicated region
  $region2: #{_lambda_.25} parent=0 // pred_check
    _
  $region3: #{_lambda_.25} parent=0 // pred_check_branch
    %11 = sbr.rel (0) target = $region5
  $region4: #{_lambda_.25} parent=0 // pred_region
    _
  $region5: #{_lambda_.25} parent=0 // pred_fallthru
    _
  // Predicated region
  $region6: #{_lambda_.25} parent=0 // pred_check
    _
  $region7: #{_lambda_.25} parent=0 // pred_check_branch
    %13 = sbr.rel (0) target = $region9
  $region8: #{_lambda_.25} parent=0 // pred_region
    _
  $region9: #{_lambda_.25} parent=0 // pred_fallthru
    _
  // Predicated region
  $region10: #{_lambda_.25} parent=0 // pred_check
    _
  $region11: #{_lambda_.25} parent=0 // pred_check_branch
    %15 = sbr.rel (0) target = $region13
  $region12: #{_lambda_.25} parent=0 // pred_region
    _
  $region13: #{_lambda_.25} parent=0 // pred_fallthru
    _
  // Predicated region
  $region14: #{_lambda_.25} parent=0 // pred_check
    _
  $region15: #{_lambda_.25} parent=0 // pred_check_branch
    %17 = sbr.rel (0) target = $region17
  $region16: #{_lambda_.25} parent=0 // pred_region
    _
  $region17: #{_lambda_.25} parent=0 // pred_fallthru
    _
  // Predicated region
  $region18: #{_lambda_.25} parent=0 // pred_check
    _
  $region19: #{_lambda_.25} parent=0 // pred_check_branch
    %19 = sbr.rel (0) target = $region21
  $region20: #{_lambda_.25} parent=0 // pred_region
    _
  $region21: #{_lambda_.25} parent=0 // pred_fallthru
    _
  %v21 = vld [vmem:[%s1] sm:$0xf]
  %v22 = vld [vmem:[%s1 + $0x4] sm:$0xf]
  %v23 = vld [vmem:[%s0] sm:$0xf]
  %v24 = vld [vmem:[%s0 + $0x4] sm:$0xf]
  %v25 = vld [vmem:[%s0 + $0x8] sm:$0xf]
  %v26 = vld [vmem:[%s0 + $0xc] sm:$0xf]
  %v27 = vld [vmem:[%s0 + $0x10] sm:$0xf]
  %v28 = vld [vmem:[%s0 + $0x14] sm:$0xf]
  %v29 = vld [vmem:[%s0 + $0x18] sm:$0xf]
  %v30 = vld [vmem:[%s0 + $0x1c] sm:$0xf]
  %v31 = vld [vmem:[%s0 + $0x20] sm:$0xf]
  %v32 = vld [vmem:[%s2] sm:$0xff]
  %v33 = vld [vmem:[%s2 + $0x8] sm:$0xff]
  %35 = vset.pattern.permute.xlu0 0
  %36 = vperm.xlu0 %35, %v32
  %v37 = vpop.permute.xlu0 %36
  %40 = vset.pattern.permute.xlu0 0
  %41 = vperm.xlu0 %40, %v33
  %v42 = vpop.permute.xlu0 %41
  %v46 = vunpack.c.l.b16 %v21
  %v47 = vunpack.c.l.b16 %v22
  %v48 = vpack.c.b16 %v47, %v46
  %v58 = vunpack.c.l.b16 %v23
  %v59 = vunpack.c.l.b16 %v24
  %v60 = vunpack.c.l.b16 %v25
  %v61 = vunpack.c.l.b16 %v26
  %v62 = vunpack.c.l.b16 %v27
  %v63 = vunpack.c.l.b16 %v28
  %v64 = vunpack.c.l.b16 %v29
  %v65 = vunpack.c.l.b16 %v30
  %v66 = vunpack.c.l.b16 %v31
  %v67 = vpack.c.b16 %v59, %v58
  %v68 = vpack.c.b16 %v61, %v60
  %v69 = vpack.c.b16 %v63, %v62
  %v70 = vpack.c.b16 %v65, %v64
  %v71 = vpack.c.b16 %v66, %v66
  %vm76 = vcmask 588800
  %v78 = vsel %vm76, %v48, 0
  %vm80 = vcmask 1043456
  %v82 = vsel %vm80, %v71, 0
  %84 = vmatprep.subr.bf16.mxu0 0
  %85 = vmatpush1.bf16.msra.mxu0 %v67
  %86 = vmatprep.subr.bf16.mxu0 0
  %87 = vmatpush1.bf16.msra.mxu0 %v68
  %88 = vmatprep.subr.bf16.mxu0 0
  %89 = vmatpush1.bf16.msra.mxu0 %v69
  %90 = vmatprep.subr.bf16.mxu0 0
  %91 = vmatpush1.bf16.msra.mxu0 %v70
  %92 = vmatprep.subr.bf16.mxu0 0
  %93 = vmatpush1.bf16.msra.mxu0 %v82
  %94 = vmatprep.subr.bf16.mxu0 0
  %95 = vmatpush1.bf16.msra.mxu0 0
  %96 = vmatprep.subr.bf16.mxu0 0
  %97 = vmatpush1.bf16.msra.mxu0 0
  %98 = vmatprep.subr.bf16.mxu0 0
  %99 = vmatpush1.bf16.msra.mxu0 0
  %100 = vmatprep.subr.bf16.mxu0 0
  %101 = vmatpush1.bf16.msra.mxu0 0
  %102 = vmatprep.subr.bf16.mxu0 0
  %103 = vmatpush1.bf16.msra.mxu0 0
  %104 = vmatprep.subr.bf16.mxu0 0
  %105 = vmatpush1.bf16.msra.mxu0 0
  %106 = vmatprep.subr.bf16.mxu0 0
  %107 = vmatpush1.bf16.msra.mxu0 0
  %108 = vmatprep.subr.bf16.mxu0 0
  %109 = vmatpush1.bf16.msra.mxu0 0
  %110 = vmatprep.subr.bf16.mxu0 0
  %111 = vmatpush1.bf16.msra.mxu0 0
  %112 = vmatprep.subr.bf16.mxu0 0
  %113 = vmatpush1.bf16.msra.mxu0 0
  %114 = vmatprep.subr.bf16.mxu0 0
  %115 = vmatpush1.bf16.msra.mxu0 0
  %116 = vmatprep.mubr.bf16.mxu0 0
  %117 = vmatmul.mubr.bf16.gmra.mrb[0].mxu0 %v78
  %v118 = vpop.f32.mrb[0].mxu0
  %v119 = vadd.f32 %v37, %v118
  %v120 = vpop.f32.mrb[0].mxu0
  %v121 = vpop.f32.mrb[0].mxu0
  %v122 = vadd.f32 %v42, %v121
  %v123 = vpop.f32.mrb[0].mxu0
  %124 = vdwg.mxu0
  %125 = vadd.xlane.f32.xlu0 %v119
  %v126 = vpop.xlane.xlu0 %125
  %127 = vadd.xlane.f32.xlu0 %v122
  %v128 = vpop.xlane.xlu0 %127
  %v129 = vmul.f32 %v126, 0.0078125
  %v130 = vmul.f32 %v128, 0.0078125
  %v131 = vsub.f32 %v119, %v129
  %v132 = vsub.f32 %v122, %v130
  %v133 = vmul.f32 %v131, %v131
  %v134 = vmul.f32 %v132, %v132
  %135 = vadd.xlane.f32.xlu0 %v133
  %v136 = vpop.xlane.xlu0 %135
  %137 = vadd.xlane.f32.xlu0 %v134
  %v138 = vpop.xlane.xlu0 %137
  %v139 = vmul.f32 %v136, 0.0078125
  %v140 = vmul.f32 %v138, 0.0078125
  %v141 = vadd.f32 %v139, 1e-05
  %v142 = vadd.f32 %v140, 1e-05
  %v143 = vrsqrt.pop %v141
  %v144 = vrsqrt.pop %v142
  %v145 = vmul.f32 %v131, %v143
  %v146 = vmul.f32 %v132, %v144
  %v147 = vld [vmem:[%s3] sm:$0xff]
  %v148 = vld [vmem:[%s3 + $0x8] sm:$0xff]
  %150 = vset.pattern.permute.xlu0 0
  %151 = vperm.xlu0 %150, %v147
  %v152 = vpop.permute.xlu0 %151
  %155 = vset.pattern.permute.xlu0 0
  %156 = vperm.xlu0 %155, %v148
  %v157 = vpop.permute.xlu0 %156
  %v159 = vmul.f32 %v145, %v152
  %v160 = vmul.f32 %v146, %v157
  %v161 = vld [vmem:[%s4] sm:$0xff]
  %v162 = vld [vmem:[%s4 + $0x8] sm:$0xff]
  %164 = vset.pattern.permute.xlu0 0
  %165 = vperm.xlu0 %164, %v161
  %v166 = vpop.permute.xlu0 %165
  %169 = vset.pattern.permute.xlu0 0
  %170 = vperm.xlu0 %169, %v162
  %v171 = vpop.permute.xlu0 %170
  %v173 = vadd.f32 %v159, %v166
  %v174 = vadd.f32 %v160, %v171
  %v175 = vmax.f32 %v173, 0.0
  %v176 = vmax.f32 %v174, 0.0
  %177 = vst [vmem:[%s5] sm:$0xff] %v175
  %178 = vst [vmem:[%s5 + $0x8] sm:$0xff] %v176
  // Predicated region
  $region22: #{_lambda_.25} parent=0 // pred_check
    _
  $region23: #{_lambda_.25} parent=0 // pred_check_branch
    %180 = sbr.rel (0) target = $region25
  $region24: #{_lambda_.25} parent=0 // pred_region
    _
  $region25: #{_lambda_.25} parent=0 // pred_fallthru
    _
  // Predicated region
  $region26: #{_lambda_.25} parent=0 // pred_check
    _
  $region27: #{_lambda_.25} parent=0 // pred_check_branch
    %182 = sbr.rel (0) target = $region29
  $region28: #{_lambda_.25} parent=0 // pred_region
    _
  $region29: #{_lambda_.25} parent=0 // pred_fallthru
    _

// kernel: _lambda_.27
$region0: #{_lambda_.27}
  #allocation0 [shape = 'u32[]', space=smem, size = 0x4, offset = 0x4, fixed_abs, tag = 'smem constant byte address 0x4 - core index']
  #allocation1 [shape = 'u32[144,128]{1,0:T(1,128)}', space=vmem, size = 0x12000, scoped, tag = 'internal scratch']
  %s0 = inlined_call_operand.vmem [shape: f32[4,512], index: 0, kind: input, shape index: {}]
  %s1 = inlined_call_operand.vmem [shape: f32[1,512], index: 1, kind: output, shape index: {}]
  %s2 = sld [smem:[#allocation0]]
  $region14: #{_lambda_.27} parent=0
    _
  %s4 = ssub.s32 1, %s2
  %s5 = scalar_select 0, %s4, %s2
  // Predicated region
  $region2: #{_lambda_.27} parent=0 // pred_check
    _
  $region3: #{_lambda_.27} parent=0 // pred_check_branch
    %7 = sbr.rel (0) target = $region5
  $region4: #{_lambda_.27} parent=0 // pred_region
    _
  $region5: #{_lambda_.27} parent=0 // pred_fallthru
    _
  %v8 = vld [vmem:[%s0] sm:$0xff]
  %v9 = vld [vmem:[%s0 + $0x8] sm:$0xff]
  %v12 = vcombine.high %v8, %v8
  %v13 = vcombine.high %v9, %v9
  %vm16 = vcmask 1043456
  %v17 = vsel %vm16, %v8, -inf
  %v18 = vrot.slane %v17, 4
  %v19 = vmax.f32 %v17, %v18
  %v20 = vrot.slane %v19, 2
  %v21 = vmax.f32 %v19, %v20
  %v22 = vrot.slane %v21, 1
  %v23 = vmax.f32 %v21, %v22
  %v24 = vsel %vm16, %v12, -inf
  %v25 = vrot.slane %v24, 4
  %v26 = vmax.f32 %v24, %v25
  %v27 = vrot.slane %v26, 2
  %v28 = vmax.f32 %v26, %v27
  %v29 = vrot.slane %v28, 1
  %v30 = vmax.f32 %v28, %v29
  %v31 = vsel %vm16, %v9, -inf
  %v32 = vrot.slane %v31, 4
  %v33 = vmax.f32 %v31, %v32
  %v34 = vrot.slane %v33, 2
  %v35 = vmax.f32 %v33, %v34
  %v36 = vrot.slane %v35, 1
  %v37 = vmax.f32 %v35, %v36
  %v38 = vsel %vm16, %v13, -inf
  %v39 = vrot.slane %v38, 4
  %v40 = vmax.f32 %v38, %v39
  %v41 = vrot.slane %v40, 2
  %v42 = vmax.f32 %v40, %v41
  %v43 = vrot.slane %v42, 1
  %v44 = vmax.f32 %v42, %v43
  %v49 = vcombine.low %v23, %v30
  %v50 = vcombine.low %v37, %v44
  %v52 = vunpack.c.l.s4 1966171168
  %v53 = vunpack.c.0.s8 %v52
  %v54 = vlaneseq
  %v55 = vshrl.u32 %v54, 7
  %v56 = vsub.s32 %v53, %v55
  %v57 = vrot.slane %v49, %v56
  %v59 = vunpack.c.l.s4 1966171168
  %v60 = vunpack.c.0.s8 %v59
  %v61 = vlaneseq
  %v62 = vshrl.u32 %v61, 7
  %v63 = vsub.s32 %v60, %v62
  %v64 = vrot.slane %v50, %v63
  %v65 = vcombine.low %v57, %v64
  %v67 = vunpack.c.l.s4 1966171168
  %v68 = vunpack.c.0.s8 %v67
  %v69 = vlaneseq
  %v70 = vshrl.u32 %v69, 7
  %v71 = vsub.s32 %v68, %v70
  %v72 = vrot.slane %v65, %v71
  %v74 = vlaneseq
  %vm75 = vcmp.ge.s32.totalorder %v74, 0
  %vm76 = vcmp.lt.s32.totalorder %v74, 512
  %vm77 = vmand %vm75, %vm76
  %78 = vst.msk [vmem:[%s1] sm:$0xf] %vm77, %v72
  // Predicated region
  $region6: #{_lambda_.27} parent=0 // pred_check
    _
  $region7: #{_lambda_.27} parent=0 // pred_check_branch
    %80 = sbr.rel (0) target = $region9
  $region8: #{_lambda_.27} parent=0 // pred_region
    _
  $region9: #{_lambda_.27} parent=0 // pred_fallthru
    _
  // Predicated region
  $region10: #{_lambda_.27} parent=0 // pred_check
    _
  $region11: #{_lambda_.27} parent=0 // pred_check_branch
    %82 = sbr.rel (0) target = $region13
  $region12: #{_lambda_.27} parent=0 // pred_region
    _
  $region13: #{_lambda_.27} parent=0 // pred_fallthru
    _

// kernel: _lambda_.26
$region0: #{_lambda_.26}
  #allocation0 [shape = 'u32[]', space=smem, size = 0x4, offset = 0x4, fixed_abs, tag = 'smem constant byte address 0x4 - core index']
  #allocation1 [shape = 'u32[144,128]{1,0:T(1,128)}', space=vmem, size = 0x12000, scoped, tag = 'internal scratch']
  %s0 = inlined_call_operand.vmem [shape: bf16[144,128], index: 0, kind: input, shape index: {}]
  %s1 = inlined_call_operand.vmem [shape: bf16[16,144], index: 1, kind: input, shape index: {}]
  %s2 = inlined_call_operand.vmem [shape: f32[16,1], index: 2, kind: input, shape index: {}]
  %s3 = inlined_call_operand.vmem [shape: f32[16,1], index: 3, kind: input, shape index: {}]
  %s4 = inlined_call_operand.vmem [shape: f32[16,1], index: 4, kind: input, shape index: {}]
  %s5 = inlined_call_operand.vmem [shape: f32[16,128], index: 5, kind: output, shape index: {}]
  %s6 = sld [smem:[#allocation0]]
  $region30: #{_lambda_.26} parent=0
    _
  %s8 = ssub.s32 1, %s6
  %s9 = scalar_select 0, %s8, %s6
  // Predicated region
  $region2: #{_lambda_.26} parent=0 // pred_check
    _
  $region3: #{_lambda_.26} parent=0 // pred_check_branch
    %11 = sbr.rel (0) target = $region5
  $region4: #{_lambda_.26} parent=0 // pred_region
    _
  $region5: #{_lambda_.26} parent=0 // pred_fallthru
    _
  // Predicated region
  $region6: #{_lambda_.26} parent=0 // pred_check
    _
  $region7: #{_lambda_.26} parent=0 // pred_check_branch
    %13 = sbr.rel (0) target = $region9
  $region8: #{_lambda_.26} parent=0 // pred_region
    _
  $region9: #{_lambda_.26} parent=0 // pred_fallthru
    _
  // Predicated region
  $region10: #{_lambda_.26} parent=0 // pred_check
    _
  $region11: #{_lambda_.26} parent=0 // pred_check_branch
    %15 = sbr.rel (0) target = $region13
  $region12: #{_lambda_.26} parent=0 // pred_region
    _
  $region13: #{_lambda_.26} parent=0 // pred_fallthru
    _
  // Predicated region
  $region14: #{_lambda_.26} parent=0 // pred_check
    _
  $region15: #{_lambda_.26} parent=0 // pred_check_branch
    %17 = sbr.rel (0) target = $region17
  $region16: #{_lambda_.26} parent=0 // pred_region
    _
  $region17: #{_lambda_.26} parent=0 // pred_fallthru
    _
  // Predicated region
  $region18: #{_lambda_.26} parent=0 // pred_check
    _
  $region19: #{_lambda_.26} parent=0 // pred_check_branch
    %19 = sbr.rel (0) target = $region21
  $region20: #{_lambda_.26} parent=0 // pred_region
    _
  $region21: #{_lambda_.26} parent=0 // pred_fallthru
    _
  %v21 = vld [vmem:[%s1] sm:$0xff]
  %v22 = vld [vmem:[%s1 + $0x8] sm:$0xff]
  %v23 = vld [vmem:[%s0] sm:$0xf]
  %v24 = vld [vmem:[%s0 + $0x4] sm:$0xf]
  %v25 = vld [vmem:[%s0 + $0x8] sm:$0xf]
  %v26 = vld [vmem:[%s0 + $0xc] sm:$0xf]
  %v27 = vld [vmem:[%s0 + $0x10] sm:$0xf]
  %v28 = vld [vmem:[%s0 + $0x14] sm:$0xf]
  %v29 = vld [vmem:[%s0 + $0x18] sm:$0xf]
  %v30 = vld [vmem:[%s0 + $0x1c] sm:$0xf]
  %v31 = vld [vmem:[%s0 + $0x20] sm:$0xf]
  %v32 = vld [vmem:[%s0 + $0x24] sm:$0xf]
  %v33 = vld [vmem:[%s0 + $0x28] sm:$0xf]
  %v34 = vld [vmem:[%s0 + $0x2c] sm:$0xf]
  %v35 = vld [vmem:[%s0 + $0x30] sm:$0xf]
  %v36 = vld [vmem:[%s0 + $0x34] sm:$0xf]
  %v37 = vld [vmem:[%s0 + $0x38] sm:$0xf]
  %v38 = vld [vmem:[%s0 + $0x3c] sm:$0xf]
  %v39 = vld [vmem:[%s0 + $0x40] sm:$0xf]
  %v40 = vld [vmem:[%s0 + $0x44] sm:$0xf]
  %v41 = vld [vmem:[%s2] sm:$0xff]
  %v42 = vld [vmem:[%s2 + $0x8] sm:$0xff]
  %44 = vset.pattern.permute.xlu0 0
  %45 = vperm.xlu0 %44, %v41
  %v46 = vpop.permute.xlu0 %45
  %49 = vset.pattern.permute.xlu0 0
  %50 = vperm.xlu0 %49, %v42
  %v51 = vpop.permute.xlu0 %50
  %v55 = vunpack.c.l.b16 %v21
  %v56 = vunpack.c.h.b16 %v21
  %v57 = vunpack.c.l.b16 %v22
  %v58 = vunpack.c.h.b16 %v22
  %v59 = vpack.c.b16 %v57, %v55
  %v60 = vpack.c.b16 %v58, %v56
  %v80 = vunpack.c.l.b16 %v23
  %v81 = vunpack.c.l.b16 %v24
  %v82 = vunpack.c.l.b16 %v25
  %v83 = vunpack.c.l.b16 %v26
  %v84 = vunpack.c.l.b16 %v27
  %v85 = vunpack.c.l.b16 %v28
  %v86 = vunpack.c.l.b16 %v29
  %v87 = vunpack.c.l.b16 %v30
  %v88 = vunpack.c.l.b16 %v31
  %v89 = vunpack.c.l.b16 %v32
  %v90 = vunpack.c.l.b16 %v33
  %v91 = vunpack.c.l.b16 %v34
  %v92 = vunpack.c.l.b16 %v35
  %v93 = vunpack.c.l.b16 %v36
  %v94 = vunpack.c.l.b16 %v37
  %v95 = vunpack.c.l.b16 %v38
  %v96 = vunpack.c.l.b16 %v39
  %v97 = vunpack.c.l.b16 %v40
  %v98 = vpack.c.b16 %v81, %v80
  %v99 = vpack.c.b16 %v83, %v82
  %v100 = vpack.c.b16 %v85, %v84
  %v101 = vpack.c.b16 %v87, %v86
  %v102 = vpack.c.b16 %v89, %v88
  %v103 = vpack.c.b16 %v91, %v90
  %v104 = vpack.c.b16 %v93, %v92
  %v105 = vpack.c.b16 %v95, %v94
  %v106 = vpack.c.b16 %v97, %v96
  %vm116 = vcmask 130048
  %v118 = vsel %vm116, %v60, 0
  %120 = vmatprep.subr.bf16.mxu0 0
  %121 = vmatpush1.bf16.msra.mxu0 %v98
  %122 = vmatprep.subr.bf16.mxu0 0
  %123 = vmatpush1.bf16.msra.mxu0 %v99
  %124 = vmatprep.subr.bf16.mxu0 0
  %125 = vmatpush1.bf16.msra.mxu0 %v100
  %126 = vmatprep.subr.bf16.mxu0 0
  %127 = vmatpush1.bf16.msra.mxu0 %v101
  %128 = vmatprep.subr.bf16.mxu0 0
  %129 = vmatpush1.bf16.msra.mxu0 %v102
  %130 = vmatprep.subr.bf16.mxu0 0
  %131 = vmatpush1.bf16.msra.mxu0 %v103
  %132 = vmatprep.subr.bf16.mxu0 0
  %133 = vmatpush1.bf16.msra.mxu0 %v104
  %134 = vmatprep.subr.bf16.mxu0 0
  %135 = vmatpush1.bf16.msra.mxu0 %v105
  %136 = vmatprep.subr.bf16.mxu0 0
  %137 = vmatpush1.bf16.msra.mxu0 %v106
  %138 = vmatprep.subr.bf16.mxu0 0
  %139 = vmatpush1.bf16.msra.mxu0 0
  %140 = vmatprep.subr.bf16.mxu0 0
  %141 = vmatpush1.bf16.msra.mxu0 0
  %142 = vmatprep.subr.bf16.mxu0 0
  %143 = vmatpush1.bf16.msra.mxu0 0
  %144 = vmatprep.subr.bf16.mxu0 0
  %145 = vmatpush1.bf16.msra.mxu0 0
  %146 = vmatprep.subr.bf16.mxu0 0
  %147 = vmatpush1.bf16.msra.mxu0 0
  %148 = vmatprep.subr.bf16.mxu0 0
  %149 = vmatpush1.bf16.msra.mxu0 0
  %150 = vmatprep.subr.bf16.mxu0 0
  %151 = vmatpush1.bf16.msra.mxu0 0
  %152 = vmatprep.mubr.bf16.mxu0 %v118
  %153 = vmatmul.mubr.bf16.gmra.mrb[0].mxu0 %v59
  %v154 = vpop.f32.mrb[0].mxu0
  %v155 = vadd.f32 %v46, %v154
  %v156 = vpop.f32.mrb[0].mxu0
  %v157 = vpop.f32.mrb[0].mxu0
  %v158 = vadd.f32 %v51, %v157
  %v159 = vpop.f32.mrb[0].mxu0
  %160 = vdwg.mxu0
  %161 = vadd.xlane.f32.xlu0 %v155
  %v162 = vpop.xlane.xlu0 %161
  %163 = vadd.xlane.f32.xlu0 %v158
  %v164 = vpop.xlane.xlu0 %163
  %v165 = vmul.f32 %v162, 0.0078125
  %v166 = vmul.f32 %v164, 0.0078125
  %v167 = vsub.f32 %v155, %v165
  %v168 = vsub.f32 %v158, %v166
  %v169 = vmul.f32 %v167, %v167
  %v170 = vmul.f32 %v168, %v168
  %171 = vadd.xlane.f32.xlu0 %v169
  %v172 = vpop.xlane.xlu0 %171
  %173 = vadd.xlane.f32.xlu0 %v170
  %v174 = vpop.xlane.xlu0 %173
  %v175 = vmul.f32 %v172, 0.0078125
  %v176 = vmul.f32 %v174, 0.0078125
  %v177 = vadd.f32 %v175, 1e-05
  %v178 = vadd.f32 %v176, 1e-05
  %v179 = vrsqrt.pop %v177
  %v180 = vrsqrt.pop %v178
  %v181 = vmul.f32 %v167, %v179
  %v182 = vmul.f32 %v168, %v180
  %v183 = vld [vmem:[%s3] sm:$0xff]
  %v184 = vld [vmem:[%s3 + $0x8] sm:$0xff]
  %186 = vset.pattern.permute.xlu0 0
  %187 = vperm.xlu0 %186, %v183
  %v188 = vpop.permute.xlu0 %187
  %191 = vset.pattern.permute.xlu0 0
  %192 = vperm.xlu0 %191, %v184
  %v193 = vpop.permute.xlu0 %192
  %v195 = vmul.f32 %v181, %v188
  %v196 = vmul.f32 %v182, %v193
  %v197 = vld [vmem:[%s4] sm:$0xff]
  %v198 = vld [vmem:[%s4 + $0x8] sm:$0xff]
  %200 = vset.pattern.permute.xlu0 0
  %201 = vperm.xlu0 %200, %v197
  %v202 = vpop.permute.xlu0 %201
  %205 = vset.pattern.permute.xlu0 0
  %206 = vperm.xlu0 %205, %v198
  %v207 = vpop.permute.xlu0 %206
  %v209 = vadd.f32 %v195, %v202
  %v210 = vadd.f32 %v196, %v207
  %v211 = vmax.f32 %v209, 0.0
  %v212 = vmax.f32 %v210, 0.0
  %213 = vst [vmem:[%s5] sm:$0xff] %v211
  %214 = vst [vmem:[%s5 + $0x8] sm:$0xff] %v212
  // Predicated region
  $region22: #{_lambda_.26} parent=0 // pred_check
    _
  $region23: #{_lambda_.26} parent=0 // pred_check_branch
    %216 = sbr.rel (0) target = $region25
  $region24: #{_lambda_.26} parent=0 // pred_region
    _
  $region25: #{_lambda_.26} parent=0 // pred_fallthru
    _
  // Predicated region
  $region26: #{_lambda_.26} parent=0 // pred_check
    _
  $region27: #{_lambda_.26} parent=0 // pred_check_branch
    %218 = sbr.rel (0) target = $region29
  $region28: #{_lambda_.26} parent=0 // pred_region
    _
  $region29: #{_lambda_.26} parent=0 // pred_fallthru
    _

// kernel: _lambda_.28
$region0: #{_lambda_.28}
  #allocation0 [shape = 'u32[]', space=smem, size = 0x4, offset = 0x4, fixed_abs, tag = 'smem constant byte address 0x4 - core index']
  #allocation1 [shape = 'u32[144,128]{1,0:T(1,128)}', space=vmem, size = 0x12000, scoped, tag = 'internal scratch']
  %s0 = inlined_call_operand.vmem [shape: bf16[144,32], index: 0, kind: input, shape index: {}]
  %s1 = inlined_call_operand.vmem [shape: bf16[32,144], index: 1, kind: input, shape index: {}]
  %s2 = inlined_call_operand.vmem [shape: f32[32,1], index: 2, kind: input, shape index: {}]
  %s3 = inlined_call_operand.vmem [shape: f32[32,1], index: 3, kind: input, shape index: {}]
  %s4 = inlined_call_operand.vmem [shape: f32[32,1], index: 4, kind: input, shape index: {}]
  %s5 = inlined_call_operand.vmem [shape: f32[32,32], index: 5, kind: output, shape index: {}]
  %s6 = sld [smem:[#allocation0]]
  $region30: #{_lambda_.28} parent=0
    _
  %s8 = ssub.s32 1, %s6
  %s9 = scalar_select 0, %s8, %s6
  // Predicated region
  $region2: #{_lambda_.28} parent=0 // pred_check
    _
  $region3: #{_lambda_.28} parent=0 // pred_check_branch
    %11 = sbr.rel (0) target = $region5
  $region4: #{_lambda_.28} parent=0 // pred_region
    _
  $region5: #{_lambda_.28} parent=0 // pred_fallthru
    _
  // Predicated region
  $region6: #{_lambda_.28} parent=0 // pred_check
    _
  $region7: #{_lambda_.28} parent=0 // pred_check_branch
    %13 = sbr.rel (0) target = $region9
  $region8: #{_lambda_.28} parent=0 // pred_region
    _
  $region9: #{_lambda_.28} parent=0 // pred_fallthru
    _
  // Predicated region
  $region10: #{_lambda_.28} parent=0 // pred_check
    _
  $region11: #{_lambda_.28} parent=0 // pred_check_branch
    %15 = sbr.rel (0) target = $region13
  $region12: #{_lambda_.28} parent=0 // pred_region
    _
  $region13: #{_lambda_.28} parent=0 // pred_fallthru
    _
  // Predicated region
  $region14: #{_lambda_.28} parent=0 // pred_check
    _
  $region15: #{_lambda_.28} parent=0 // pred_check_branch
    %17 = sbr.rel (0) target = $region17
  $region16: #{_lambda_.28} parent=0 // pred_region
    _
  $region17: #{_lambda_.28} parent=0 // pred_fallthru
    _
  // Predicated region
  $region18: #{_lambda_.28} parent=0 // pred_check
    _
  $region19: #{_lambda_.28} parent=0 // pred_check_branch
    %19 = sbr.rel (0) target = $region21
  $region20: #{_lambda_.28} parent=0 // pred_region
    _
  $region21: #{_lambda_.28} parent=0 // pred_fallthru
    _
  %v21 = vld [vmem:[%s1] sm:$0xff]
  %v22 = vld [vmem:[%s1 + $0x8] sm:$0xff]
  %v23 = vld [vmem:[%s1 + $0x10] sm:$0xff]
  %v24 = vld [vmem:[%s1 + $0x18] sm:$0xff]
  %v25 = vld [vmem:[%s0] sm:$0xf]
  %v26 = vld [vmem:[%s0 + $0x4] sm:$0xf]
  %v27 = vld [vmem:[%s0 + $0x8] sm:$0xf]
  %v28 = vld [vmem:[%s0 + $0xc] sm:$0xf]
  %v29 = vld [vmem:[%s0 + $0x10] sm:$0xf]
  %v30 = vld [vmem:[%s0 + $0x14] sm:$0xf]
  %v31 = vld [vmem:[%s0 + $0x18] sm:$0xf]
  %v32 = vld [vmem:[%s0 + $0x1c] sm:$0xf]
  %v33 = vld [vmem:[%s0 + $0x20] sm:$0xf]
  %v34 = vld [vmem:[%s0 + $0x24] sm:$0xf]
  %v35 = vld [vmem:[%s0 + $0x28] sm:$0xf]
  %v36 = vld [vmem:[%s0 + $0x2c] sm:$0xf]
  %v37 = vld [vmem:[%s0 + $0x30] sm:$0xf]
  %v38 = vld [vmem:[%s0 + $0x34] sm:$0xf]
  %v39 = vld [vmem:[%s0 + $0x38] sm:$0xf]
  %v40 = vld [vmem:[%s0 + $0x3c] sm:$0xf]
  %v41 = vld [vmem:[%s0 + $0x40] sm:$0xf]
  %v42 = vld [vmem:[%s0 + $0x44] sm:$0xf]
  %v43 = vld [vmem:[%s2] sm:$0xff]
  %v44 = vld [vmem:[%s2 + $0x8] sm:$0xff]
  %v45 = vld [vmem:[%s2 + $0x10] sm:$0xff]
  %v46 = vld [vmem:[%s2 + $0x18] sm:$0xff]
  %48 = vset.pattern.permute.xlu0 0
  %49 = vperm.xlu0 %48, %v43
  %v50 = vpop.permute.xlu0 %49
  %53 = vset.pattern.permute.xlu0 0
  %54 = vperm.xlu0 %53, %v44
  %v55 = vpop.permute.xlu0 %54
  %58 = vset.pattern.permute.xlu0 0
  %59 = vperm.xlu0 %58, %v45
  %v60 = vpop.permute.xlu0 %59
  %63 = vset.pattern.permute.xlu0 0
  %64 = vperm.xlu0 %63, %v46
  %v65 = vpop.permute.xlu0 %64
  %v71 = vunpack.c.l.b16 %v21
  %v72 = vunpack.c.h.b16 %v21
  %v73 = vunpack.c.l.b16 %v22
  %v74 = vunpack.c.h.b16 %v22
  %v75 = vunpack.c.l.b16 %v23
  %v76 = vunpack.c.h.b16 %v23
  %v77 = vunpack.c.l.b16 %v24
  %v78 = vunpack.c.h.b16 %v24
  %v79 = vpack.c.b16 %v73, %v71
  %v80 = vpack.c.b16 %v74, %v72
  %v81 = vpack.c.b16 %v77, %v75
  %v82 = vpack.c.b16 %v78, %v76
  %v103 = vunpack.c.l.b16 %v25
  %v104 = vunpack.c.l.b16 %v26
  %v105 = vunpack.c.l.b16 %v27
  %v106 = vunpack.c.l.b16 %v28
  %v107 = vunpack.c.l.b16 %v29
  %v108 = vunpack.c.l.b16 %v30
  %v109 = vunpack.c.l.b16 %v31
  %v110 = vunpack.c.l.b16 %v32
  %v111 = vunpack.c.l.b16 %v33
  %v112 = vunpack.c.l.b16 %v34
  %v113 = vunpack.c.l.b16 %v35
  %v114 = vunpack.c.l.b16 %v36
  %v115 = vunpack.c.l.b16 %v37
  %v116 = vunpack.c.l.b16 %v38
  %v117 = vunpack.c.l.b16 %v39
  %v118 = vunpack.c.l.b16 %v40
  %v119 = vunpack.c.l.b16 %v41
  %v120 = vunpack.c.l.b16 %v42
  %v121 = vpack.c.b16 %v104, %v103
  %v122 = vpack.c.b16 %v106, %v105
  %v123 = vpack.c.b16 %v108, %v107
  %v124 = vpack.c.b16 %v110, %v109
  %v125 = vpack.c.b16 %v112, %v111
  %v126 = vpack.c.b16 %v114, %v113
  %v127 = vpack.c.b16 %v116, %v115
  %v128 = vpack.c.b16 %v118, %v117
  %v129 = vpack.c.b16 %v120, %v119
  %vm139 = vcmask 130048
  %v141 = vsel %vm139, %v80, 0
  %v144 = vsel %vm139, %v82, 0
  %146 = vmatprep.subr.bf16.mxu0 0
  %147 = vmatpush1.bf16.msra.mxu0 %v121
  %148 = vmatprep.subr.bf16.mxu0 0
  %149 = vmatpush1.bf16.msra.mxu0 %v122
  %150 = vmatprep.subr.bf16.mxu0 0
  %151 = vmatpush1.bf16.msra.mxu0 %v123
  %152 = vmatprep.subr.bf16.mxu0 0
  %153 = vmatpush1.bf16.msra.mxu0 %v124
  %154 = vmatprep.subr.bf16.mxu0 0
  %155 = vmatpush1.bf16.msra.mxu0 %v125
  %156 = vmatprep.subr.bf16.mxu0 0
  %157 = vmatpush1.bf16.msra.mxu0 %v126
  %158 = vmatprep.subr.bf16.mxu0 0
  %159 = vmatpush1.bf16.msra.mxu0 %v127
  %160 = vmatprep.subr.bf16.mxu0 0
  %161 = vmatpush1.bf16.msra.mxu0 %v128
  %162 = vmatprep.subr.bf16.mxu0 0
  %163 = vmatpush1.bf16.msra.mxu0 %v129
  %164 = vmatprep.subr.bf16.mxu0 0
  %165 = vmatpush1.bf16.msra.mxu0 0
  %166 = vmatprep.subr.bf16.mxu0 0
  %167 = vmatpush1.bf16.msra.mxu0 0
  %168 = vmatprep.subr.bf16.mxu0 0
  %169 = vmatpush1.bf16.msra.mxu0 0
  %170 = vmatprep.subr.bf16.mxu0 0
  %171 = vmatpush1.bf16.msra.mxu0 0
  %172 = vmatprep.subr.bf16.mxu0 0
  %173 = vmatpush1.bf16.msra.mxu0 0
  %174 = vmatprep.subr.bf16.mxu0 0
  %175 = vmatpush1.bf16.msra.mxu0 0
  %176 = vmatprep.subr.bf16.mxu0 0
  %177 = vmatpush1.bf16.msra.mxu0 0
  %178 = vmatprep.mubr.bf16.mxu0 %v141
  %179 = vmatmul.mubr.bf16.gmra.mrb[0].mxu0 %v79
  %v180 = vpop.f32.mrb[0].mxu0
  %v181 = vadd.f32 %v50, %v180
  %v182 = vpop.f32.mrb[0].mxu0
  %v183 = vpop.f32.mrb[0].mxu0
  %v184 = vadd.f32 %v55, %v183
  %v185 = vpop.f32.mrb[0].mxu0
  %186 = vmatprep.mubr.bf16.mxu0 %v144
  %187 = vmatmul.mubr.bf16.gmra.mrb[0].mxu0 %v81
  %v188 = vpop.f32.mrb[0].mxu0
  %v189 = vadd.f32 %v60, %v188
  %v190 = vpop.f32.mrb[0].mxu0
  %v191 = vpop.f32.mrb[0].mxu0
  %v192 = vadd.f32 %v65, %v191
  %v193 = vpop.f32.mrb[0].mxu0
  %194 = vdwg.mxu0
  %vm195 = vcmask 261120
  %v196 = vsel %vm195, %v181, 0.0
  %197 = vadd.xlane.f32.xlu0 %v196
  %v198 = vpop.xlane.xlu0 %197
  %v199 = vsel %vm195, %v184, 0.0
  %200 = vadd.xlane.f32.xlu0 %v199
  %v201 = vpop.xlane.xlu0 %200
  %v202 = vsel %vm195, %v189, 0.0
  %203 = vadd.xlane.f32.xlu0 %v202
  %v204 = vpop.xlane.xlu0 %203
  %v205 = vsel %vm195, %v192, 0.0
  %206 = vadd.xlane.f32.xlu0 %v205
  %v207 = vpop.xlane.xlu0 %206
  %v208 = vmul.f32 %v198, 0.03125
  %v209 = vmul.f32 %v201, 0.03125
  %v210 = vmul.f32 %v204, 0.03125
  %v211 = vmul.f32 %v207, 0.03125
  %v212 = vsub.f32 %v181, %v208
  %v213 = vsub.f32 %v184, %v209
  %v214 = vsub.f32 %v189, %v210
  %v215 = vsub.f32 %v192, %v211
  %v216 = vmul.f32 %v212, %v212
  %v217 = vmul.f32 %v213, %v213
  %v218 = vmul.f32 %v214, %v214
  %v219 = vmul.f32 %v215, %v215
  %v220 = vsel %vm195, %v216, 0.0
  %221 = vadd.xlane.f32.xlu0 %v220
  %v222 = vpop.xlane.xlu0 %221
  %v223 = vsel %vm195, %v217, 0.0
  %224 = vadd.xlane.f32.xlu0 %v223
  %v225 = vpop.xlane.xlu0 %224
  %v226 = vsel %vm195, %v218, 0.0
  %227 = vadd.xlane.f32.xlu0 %v226
  %v228 = vpop.xlane.xlu0 %227
  %v229 = vsel %vm195, %v219, 0.0
  %230 = vadd.xlane.f32.xlu0 %v229
  %v231 = vpop.xlane.xlu0 %230
  %v232 = vmul.f32 %v222, 0.03125
  %v233 = vmul.f32 %v225, 0.03125
  %v234 = vmul.f32 %v228, 0.03125
  %v235 = vmul.f32 %v231, 0.03125
  %v236 = vadd.f32 %v232, 1e-05
  %v237 = vadd.f32 %v233, 1e-05
  %v238 = vadd.f32 %v234, 1e-05
  %v239 = vadd.f32 %v235, 1e-05
  %v240 = vrsqrt.pop %v236
  %v241 = vrsqrt.pop %v237
  %v242 = vrsqrt.pop %v238
  %v243 = vrsqrt.pop %v239
  %v244 = vmul.f32 %v212, %v240
  %v245 = vmul.f32 %v213, %v241
  %v246 = vmul.f32 %v214, %v242
  %v247 = vmul.f32 %v215, %v243
  %v248 = vld [vmem:[%s3] sm:$0xff]
  %v249 = vld [vmem:[%s3 + $0x8] sm:$0xff]
  %v250 = vld [vmem:[%s3 + $0x10] sm:$0xff]
  %v251 = vld [vmem:[%s3 + $0x18] sm:$0xff]
  %253 = vset.pattern.permute.xlu0 0
  %254 = vperm.xlu0 %253, %v248
  %v255 = vpop.permute.xlu0 %254
  %258 = vset.pattern.permute.xlu0 0
  %259 = vperm.xlu0 %258, %v249
  %v260 = vpop.permute.xlu0 %259
  %263 = vset.pattern.permute.xlu0 0
  %264 = vperm.xlu0 %263, %v250
  %v265 = vpop.permute.xlu0 %264
  %268 = vset.pattern.permute.xlu0 0
  %269 = vperm.xlu0 %268, %v251
  %v270 = vpop.permute.xlu0 %269
  %v272 = vmul.f32 %v244, %v255
  %v273 = vmul.f32 %v245, %v260
  %v274 = vmul.f32 %v246, %v265
  %v275 = vmul.f32 %v247, %v270
  %v276 = vld [vmem:[%s4] sm:$0xff]
  %v277 = vld [vmem:[%s4 + $0x8] sm:$0xff]
  %v278 = vld [vmem:[%s4 + $0x10] sm:$0xff]
  %v279 = vld [vmem:[%s4 + $0x18] sm:$0xff]
  %281 = vset.pattern.permute.xlu0 0
  %282 = vperm.xlu0 %281, %v276
  %v283 = vpop.permute.xlu0 %282
  %286 = vset.pattern.permute.xlu0 0
  %287 = vperm.xlu0 %286, %v277
  %v288 = vpop.permute.xlu0 %287
  %291 = vset.pattern.permute.xlu0 0
  %292 = vperm.xlu0 %291, %v278
  %v293 = vpop.permute.xlu0 %292
  %296 = vset.pattern.permute.xlu0 0
  %297 = vperm.xlu0 %296, %v279
  %v298 = vpop.permute.xlu0 %297
  %v300 = vadd.f32 %v272, %v283
  %v301 = vadd.f32 %v273, %v288
  %v302 = vadd.f32 %v274, %v293
  %v303 = vadd.f32 %v275, %v298
  %v304 = vmax.f32 %v300, 0.0
  %v305 = vmax.f32 %v301, 0.0
  %v306 = vmax.f32 %v302, 0.0
  %v307 = vmax.f32 %v303, 0.0
  %308 = vst.msk [vmem:[%s5] sm:$0xff] %vm195, %v304
  %309 = vst.msk [vmem:[%s5 + $0x8] sm:$0xff] %vm195, %v305
  %310 = vst.msk [vmem:[%s5 + $0x10] sm:$0xff] %vm195, %v306
  %311 = vst.msk [vmem:[%s5 + $0x18] sm:$0xff] %vm195, %v307
  // Predicated region
  $region22: #{_lambda_.28} parent=0 // pred_check
    _
  $region23: #{_lambda_.28} parent=0 // pred_check_branch
    %313 = sbr.rel (0) target = $region25
  $region24: #{_lambda_.28} parent=0 // pred_region
    _
  $region25: #{_lambda_.28} parent=0 // pred_fallthru
    _
  // Predicated region
  $region26: #{_lambda_.28} parent=0 // pred_check
    _
  $region27: #{_lambda_.28} parent=0 // pred_check_branch
    %315 = sbr.rel (0) target = $region29
  $region28: #{_lambda_.28} parent=0 // pred_region
    _
  $region29: #{_lambda_.28} parent=0 // pred_fallthru
    _

// kernel: _lambda_.29
$region0: #{_lambda_.29}
  #allocation0 [shape = 'u32[]', space=smem, size = 0x4, offset = 0x4, fixed_abs, tag = 'smem constant byte address 0x4 - core index']
  #allocation1 [shape = 'u32[144,128]{1,0:T(1,128)}', space=vmem, size = 0x12000, scoped, tag = 'internal scratch']
  %s0 = inlined_call_operand.vmem [shape: bf16[288,32], index: 0, kind: input, shape index: {}]
  %s1 = inlined_call_operand.vmem [shape: bf16[32,288], index: 1, kind: input, shape index: {}]
  %s2 = inlined_call_operand.vmem [shape: f32[32,1], index: 2, kind: input, shape index: {}]
  %s3 = inlined_call_operand.vmem [shape: f32[32,1], index: 3, kind: input, shape index: {}]
  %s4 = inlined_call_operand.vmem [shape: f32[32,1], index: 4, kind: input, shape index: {}]
  %s5 = inlined_call_operand.vmem [shape: f32[32,32], index: 5, kind: output, shape index: {}]
  %s6 = sld [smem:[#allocation0]]
  $region30: #{_lambda_.29} parent=0
    _
  %s8 = ssub.s32 1, %s6
  %s9 = scalar_select 0, %s8, %s6
  // Predicated region
  $region2: #{_lambda_.29} parent=0 // pred_check
    _
  $region3: #{_lambda_.29} parent=0 // pred_check_branch
    %11 = sbr.rel (0) target = $region5
  $region4: #{_lambda_.29} parent=0 // pred_region
    _
  $region5: #{_lambda_.29} parent=0 // pred_fallthru
    _
  // Predicated region
  $region6: #{_lambda_.29} parent=0 // pred_check
    _
  $region7: #{_lambda_.29} parent=0 // pred_check_branch
    %13 = sbr.rel (0) target = $region9
  $region8: #{_lambda_.29} parent=0 // pred_region
    _
  $region9: #{_lambda_.29} parent=0 // pred_fallthru
    _
  // Predicated region
  $region10: #{_lambda_.29} parent=0 // pred_check
    _
  $region11: #{_lambda_.29} parent=0 // pred_check_branch
    %15 = sbr.rel (0) target = $region13
  $region12: #{_lambda_.29} parent=0 // pred_region
    _
  $region13: #{_lambda_.29} parent=0 // pred_fallthru
    _
  // Predicated region
  $region14: #{_lambda_.29} parent=0 // pred_check
    _
  $region15: #{_lambda_.29} parent=0 // pred_check_branch
    %17 = sbr.rel (0) target = $region17
  $region16: #{_lambda_.29} parent=0 // pred_region
    _
  $region17: #{_lambda_.29} parent=0 // pred_fallthru
    _
  // Predicated region
  $region18: #{_lambda_.29} parent=0 // pred_check
    _
  $region19: #{_lambda_.29} parent=0 // pred_check_branch
    %19 = sbr.rel (0) target = $region21
  $region20: #{_lambda_.29} parent=0 // pred_region
    _
  $region21: #{_lambda_.29} parent=0 // pred_fallthru
    _
  %v21 = vld [vmem:[%s1] sm:$0xff]
  %v22 = vld [vmem:[%s1 + $0x8] sm:$0xf]
  %v23 = vld [vmem:[%s1 + $0xc] sm:$0xff]
  %v24 = vld [vmem:[%s1 + $0x14] sm:$0xf]
  %v25 = vld [vmem:[%s1 + $0x18] sm:$0xff]
  %v26 = vld [vmem:[%s1 + $0x20] sm:$0xf]
  %v27 = vld [vmem:[%s1 + $0x24] sm:$0xff]
  %v28 = vld [vmem:[%s1 + $0x2c] sm:$0xf]
  %v29 = vld [vmem:[%s0] sm:$0xf]
  %v30 = vld [vmem:[%s0 + $0x4] sm:$0xf]
  %v31 = vld [vmem:[%s0 + $0x8] sm:$0xf]
  %v32 = vld [vmem:[%s0 + $0xc] sm:$0xf]
  %v33 = vld [vmem:[%s0 + $0x10] sm:$0xf]
  %v34 = vld [vmem:[%s0 + $0x14] sm:$0xf]
  %v35 = vld [vmem:[%s0 + $0x18] sm:$0xf]
  %v36 = vld [vmem:[%s0 + $0x1c] sm:$0xf]
  %v37 = vld [vmem:[%s0 + $0x20] sm:$0xf]
  %v38 = vld [vmem:[%s0 + $0x24] sm:$0xf]
  %v39 = vld [vmem:[%s0 + $0x28] sm:$0xf]
  %v40 = vld [vmem:[%s0 + $0x2c] sm:$0xf]
  %v41 = vld [vmem:[%s0 + $0x30] sm:$0xf]
  %v42 = vld [vmem:[%s0 + $0x34] sm:$0xf]
  %v43 = vld [vmem:[%s0 + $0x38] sm:$0xf]
  %v44 = vld [vmem:[%s0 + $0x3c] sm:$0xf]
  %v45 = vld [vmem:[%s0 + $0x40] sm:$0xf]
  %v46 = vld [vmem:[%s0 + $0x44] sm:$0xf]
  %v47 = vld [vmem:[%s0 + $0x48] sm:$0xf]
  %v48 = vld [vmem:[%s0 + $0x4c] sm:$0xf]
  %v49 = vld [vmem:[%s0 + $0x50] sm:$0xf]
  %v50 = vld [vmem:[%s0 + $0x54] sm:$0xf]
  %v51 = vld [vmem:[%s0 + $0x58] sm:$0xf]
  %v52 = vld [vmem:[%s0 + $0x5c] sm:$0xf]
  %v53 = vld [vmem:[%s0 + $0x60] sm:$0xf]
  %v54 = vld [vmem:[%s0 + $0x64] sm:$0xf]
  %v55 = vld [vmem:[%s0 + $0x68] sm:$0xf]
  %v56 = vld [vmem:[%s0 + $0x6c] sm:$0xf]
  %v57 = vld [vmem:[%s0 + $0x70] sm:$0xf]
  %v58 = vld [vmem:[%s0 + $0x74] sm:$0xf]
  %v59 = vld [vmem:[%s0 + $0x78] sm:$0xf]
  %v60 = vld [vmem:[%s0 + $0x7c] sm:$0xf]
  %v61 = vld [vmem:[%s0 + $0x80] sm:$0xf]
  %v62 = vld [vmem:[%s0 + $0x84] sm:$0xf]
  %v63 = vld [vmem:[%s0 + $0x88] sm:$0xf]
  %v64 = vld [vmem:[%s0 + $0x8c] sm:$0xf]
  %v65 = vld [vmem:[%s2] sm:$0xff]
  %v66 = vld [vmem:[%s2 + $0x8] sm:$0xff]
  %v67 = vld [vmem:[%s2 + $0x10] sm:$0xff]
  %v68 = vld [vmem:[%s2 + $0x18] sm:$0xff]
  %70 = vset.pattern.permute.xlu0 0
  %71 = vperm.xlu0 %70, %v65
  %v72 = vpop.permute.xlu0 %71
  %75 = vset.pattern.permute.xlu0 0
  %76 = vperm.xlu0 %75, %v66
  %v77 = vpop.permute.xlu0 %76
  %80 = vset.pattern.permute.xlu0 0
  %81 = vperm.xlu0 %80, %v67
  %v82 = vpop.permute.xlu0 %81
  %85 = vset.pattern.permute.xlu0 0
  %86 = vperm.xlu0 %85, %v68
  %v87 = vpop.permute.xlu0 %86
  %v97 = vunpack.c.l.b16 %v21
  %v98 = vunpack.c.h.b16 %v21
  %v99 = vunpack.c.l.b16 %v22
  %v100 = vunpack.c.l.b16 %v23
  %v101 = vunpack.c.h.b16 %v23
  %v102 = vunpack.c.l.b16 %v24
  %v103 = vunpack.c.l.b16 %v25
  %v104 = vunpack.c.h.b16 %v25
  %v105 = vunpack.c.l.b16 %v26
  %v106 = vunpack.c.l.b16 %v27
  %v107 = vunpack.c.h.b16 %v27
  %v108 = vunpack.c.l.b16 %v28
  %v109 = vpack.c.b16 %v100, %v97
  %v110 = vpack.c.b16 %v101, %v98
  %v111 = vpack.c.b16 %v102, %v99
  %v112 = vpack.c.b16 %v106, %v103
  %v113 = vpack.c.b16 %v107, %v104
  %v114 = vpack.c.b16 %v108, %v105
  %v155 = vunpack.c.l.b16 %v29
  %v156 = vunpack.c.l.b16 %v30
  %v157 = vunpack.c.l.b16 %v31
  %v158 = vunpack.c.l.b16 %v32
  %v159 = vunpack.c.l.b16 %v33
  %v160 = vunpack.c.l.b16 %v34
  %v161 = vunpack.c.l.b16 %v35
  %v162 = vunpack.c.l.b16 %v36
  %v163 = vunpack.c.l.b16 %v37
  %v164 = vunpack.c.l.b16 %v38
  %v165 = vunpack.c.l.b16 %v39
  %v166 = vunpack.c.l.b16 %v40
  %v167 = vunpack.c.l.b16 %v41
  %v168 = vunpack.c.l.b16 %v42
  %v169 = vunpack.c.l.b16 %v43
  %v170 = vunpack.c.l.b16 %v44
  %v171 = vunpack.c.l.b16 %v45
  %v172 = vunpack.c.l.b16 %v46
  %v173 = vunpack.c.l.b16 %v47
  %v174 = vunpack.c.l.b16 %v48
  %v175 = vunpack.c.l.b16 %v49
  %v176 = vunpack.c.l.b16 %v50
  %v177 = vunpack.c.l.b16 %v51
  %v178 = vunpack.c.l.b16 %v52
  %v179 = vunpack.c.l.b16 %v53
  %v180 = vunpack.c.l.b16 %v54
  %v181 = vunpack.c.l.b16 %v55
  %v182 = vunpack.c.l.b16 %v56
  %v183 = vunpack.c.l.b16 %v57
  %v184 = vunpack.c.l.b16 %v58
  %v185 = vunpack.c.l.b16 %v59
  %v186 = vunpack.c.l.b16 %v60
  %v187 = vunpack.c.l.b16 %v61
  %v188 = vunpack.c.l.b16 %v62
  %v189 = vunpack.c.l.b16 %v63
  %v190 = vunpack.c.l.b16 %v64
  %v191 = vpack.c.b16 %v156, %v155
  %v192 = vpack.c.b16 %v158, %v157
  %v193 = vpack.c.b16 %v160, %v159
  %v194 = vpack.c.b16 %v162, %v161
  %v195 = vpack.c.b16 %v164, %v163
  %v196 = vpack.c.b16 %v166, %v165
  %v197 = vpack.c.b16 %v168, %v167
  %v198 = vpack.c.b16 %v170, %v169
  %v199 = vpack.c.b16 %v172, %v171
  %v200 = vpack.c.b16 %v174, %v173
  %v201 = vpack.c.b16 %v176, %v175
  %v202 = vpack.c.b16 %v178, %v177
  %v203 = vpack.c.b16 %v180, %v179
  %v204 = vpack.c.b16 %v182, %v181
  %v205 = vpack.c.b16 %v184, %v183
  %v206 = vpack.c.b16 %v186, %v185
  %v207 = vpack.c.b16 %v188, %v187
  %v208 = vpack.c.b16 %v190, %v189
  %vm227 = vcmask 261120
  %v229 = vsel %vm227, %v111, 0
  %v232 = vsel %vm227, %v114, 0
  %234 = vmatprep.subr.bf16.mxu0 0
  %235 = vmatpush1.bf16.msra.mxu0 %v191
  %236 = vmatprep.subr.bf16.mxu0 0
  %237 = vmatpush1.bf16.msra.mxu0 %v192
  %238 = vmatprep.subr.bf16.mxu0 0
  %239 = vmatpush1.bf16.msra.mxu0 %v193
  %240 = vmatprep.subr.bf16.mxu0 0
  %241 = vmatpush1.bf16.msra.mxu0 %v194
  %242 = vmatprep.subr.bf16.mxu0 0
  %243 = vmatpush1.bf16.msra.mxu0 %v195
  %244 = vmatprep.subr.bf16.mxu0 0
  %245 = vmatpush1.bf16.msra.mxu0 %v196
  %246 = vmatprep.subr.bf16.mxu0 0
  %247 = vmatpush1.bf16.msra.mxu0 %v197
  %248 = vmatprep.subr.bf16.mxu0 0
  %249 = vmatpush1.bf16.msra.mxu0 %v198
  %250 = vmatprep.subr.bf16.mxu0 0
  %251 = vmatpush1.bf16.msra.mxu0 %v199
  %252 = vmatprep.subr.bf16.mxu0 0
  %253 = vmatpush1.bf16.msra.mxu0 %v200
  %254 = vmatprep.subr.bf16.mxu0 0
  %255 = vmatpush1.bf16.msra.mxu0 %v201
  %256 = vmatprep.subr.bf16.mxu0 0
  %257 = vmatpush1.bf16.msra.mxu0 %v202
  %258 = vmatprep.subr.bf16.mxu0 0
  %259 = vmatpush1.bf16.msra.mxu0 %v203
  %260 = vmatprep.subr.bf16.mxu0 0
  %261 = vmatpush1.bf16.msra.mxu0 %v204
  %262 = vmatprep.subr.bf16.mxu0 0
  %263 = vmatpush1.bf16.msra.mxu0 %v205
  %264 = vmatprep.subr.bf16.mxu0 0
  %265 = vmatpush1.bf16.msra.mxu0 %v206
  %266 = vmatprep.mubr.bf16.mxu0 %v110
  %267 = vmatmul.mubr.bf16.gmra.mrb[0].mxu0 %v109
  %v268 = vpop.f32.mrb[0].mxu0
  %v269 = vadd.f32 %v72, %v268
  %v270 = vpop.f32.mrb[0].mxu0
  %v271 = vpop.f32.mrb[0].mxu0
  %v272 = vadd.f32 %v77, %v271
  %v273 = vpop.f32.mrb[0].mxu0
  %274 = vmatprep.mubr.bf16.mxu0 %v113
  %275 = vmatmul.mubr.bf16.gmra.mrb[0].mxu0 %v112
  %v276 = vpop.f32.mrb[0].mxu0
  %v277 = vadd.f32 %v82, %v276
  %v278 = vpop.f32.mrb[0].mxu0
  %v279 = vpop.f32.mrb[0].mxu0
  %v280 = vadd.f32 %v87, %v279
  %v281 = vpop.f32.mrb[0].mxu0
  %282 = vdwg.mxu0
  %283 = vmatprep.subr.bf16.mxu0 0
  %284 = vmatpush1.bf16.msra.mxu0 %v207
  %285 = vmatprep.subr.bf16.mxu0 0
  %286 = vmatpush1.bf16.msra.mxu0 %v208
  %287 = vmatprep.subr.bf16.mxu0 0
  %288 = vmatpush1.bf16.msra.mxu0 0
  %289 = vmatprep.subr.bf16.mxu0 0
  %290 = vmatpush1.bf16.msra.mxu0 0
  %291 = vmatprep.subr.bf16.mxu0 0
  %292 = vmatpush1.bf16.msra.mxu0 0
  %293 = vmatprep.subr.bf16.mxu0 0
  %294 = vmatpush1.bf16.msra.mxu0 0
  %295 = vmatprep.subr.bf16.mxu0 0
  %296 = vmatpush1.bf16.msra.mxu0 0
  %297 = vmatprep.subr.bf16.mxu0 0
  %298 = vmatpush1.bf16.msra.mxu0 0
  %299 = vmatprep.subr.bf16.mxu0 0
  %300 = vmatpush1.bf16.msra.mxu0 0
  %301 = vmatprep.subr.bf16.mxu0 0
  %302 = vmatpush1.bf16.msra.mxu0 0
  %303 = vmatprep.subr.bf16.mxu0 0
  %304 = vmatpush1.bf16.msra.mxu0 0
  %305 = vmatprep.subr.bf16.mxu0 0
  %306 = vmatpush1.bf16.msra.mxu0 0
  %307 = vmatprep.subr.bf16.mxu0 0
  %308 = vmatpush1.bf16.msra.mxu0 0
  %309 = vmatprep.subr.bf16.mxu0 0
  %310 = vmatpush1.bf16.msra.mxu0 0
  %311 = vmatprep.subr.bf16.mxu0 0
  %312 = vmatpush1.bf16.msra.mxu0 0
  %313 = vmatprep.subr.bf16.mxu0 0
  %314 = vmatpush1.bf16.msra.mxu0 0
  %315 = vmatprep.mubr.bf16.mxu0 0
  %316 = vmatmul.mubr.bf16.gmra.mrb[0].mxu0 %v229
  %v317 = vpop.f32.mrb[0].mxu0
  %v318 = vadd.f32 %v269, %v317
  %v319 = vpop.f32.mrb[0].mxu0
  %v320 = vpop.f32.mrb[0].mxu0
  %v321 = vadd.f32 %v272, %v320
  %v322 = vpop.f32.mrb[0].mxu0
  %323 = vmatprep.mubr.bf16.mxu0 0
  %324 = vmatmul.mubr.bf16.gmra.mrb[0].mxu0 %v232
  %v325 = vpop.f32.mrb[0].mxu0
  %v326 = vadd.f32 %v277, %v325
  %v327 = vpop.f32.mrb[0].mxu0
  %v328 = vpop.f32.mrb[0].mxu0
  %v329 = vadd.f32 %v280, %v328
  %v330 = vpop.f32.mrb[0].mxu0
  %331 = vdwg.mxu0
  %v332 = vsel %vm227, %v318, 0.0
  %333 = vadd.xlane.f32.xlu0 %v332
  %v334 = vpop.xlane.xlu0 %333
  %v335 = vsel %vm227, %v321, 0.0
  %336 = vadd.xlane.f32.xlu0 %v335
  %v337 = vpop.xlane.xlu0 %336
  %v338 = vsel %vm227, %v326, 0.0
  %339 = vadd.xlane.f32.xlu0 %v338
  %v340 = vpop.xlane.xlu0 %339
  %v341 = vsel %vm227, %v329, 0.0
  %342 = vadd.xlane.f32.xlu0 %v341
  %v343 = vpop.xlane.xlu0 %342
  %v344 = vmul.f32 %v334, 0.03125
  %v345 = vmul.f32 %v337, 0.03125
  %v346 = vmul.f32 %v340, 0.03125
  %v347 = vmul.f32 %v343, 0.03125
  %v348 = vsub.f32 %v318, %v344
  %v349 = vsub.f32 %v321, %v345
  %v350 = vsub.f32 %v326, %v346
  %v351 = vsub.f32 %v329, %v347
  %v352 = vmul.f32 %v348, %v348
  %v353 = vmul.f32 %v349, %v349
  %v354 = vmul.f32 %v350, %v350
  %v355 = vmul.f32 %v351, %v351
  %v356 = vsel %vm227, %v352, 0.0
  %357 = vadd.xlane.f32.xlu0 %v356
  %v358 = vpop.xlane.xlu0 %357
  %v359 = vsel %vm227, %v353, 0.0
  %360 = vadd.xlane.f32.xlu0 %v359
  %v361 = vpop.xlane.xlu0 %360
  %v362 = vsel %vm227, %v354, 0.0
  %363 = vadd.xlane.f32.xlu0 %v362
  %v364 = vpop.xlane.xlu0 %363
  %v365 = vsel %vm227, %v355, 0.0
  %366 = vadd.xlane.f32.xlu0 %v365
  %v367 = vpop.xlane.xlu0 %366
  %v368 = vmul.f32 %v358, 0.03125
  %v369 = vmul.f32 %v361, 0.03125
  %v370 = vmul.f32 %v364, 0.03125
  %v371 = vmul.f32 %v367, 0.03125
  %v372 = vadd.f32 %v368, 1e-05
  %v373 = vadd.f32 %v369, 1e-05
  %v374 = vadd.f32 %v370, 1e-05
  %v375 = vadd.f32 %v371, 1e-05
  %v376 = vrsqrt.pop %v372
  %v377 = vrsqrt.pop %v373
  %v378 = vrsqrt.pop %v374
  %v379 = vrsqrt.pop %v375
  %v380 = vmul.f32 %v348, %v376
  %v381 = vmul.f32 %v349, %v377
  %v382 = vmul.f32 %v350, %v378
  %v383 = vmul.f32 %v351, %v379
  %v384 = vld [vmem:[%s3] sm:$0xff]
  %v385 = vld [vmem:[%s3 + $0x8] sm:$0xff]
  %v386 = vld [vmem:[%s3 + $0x10] sm:$0xff]
  %v387 = vld [vmem:[%s3 + $0x18] sm:$0xff]
  %389 = vset.pattern.permute.xlu0 0
  %390 = vperm.xlu0 %389, %v384
  %v391 = vpop.permute.xlu0 %390
  %394 = vset.pattern.permute.xlu0 0
  %395 = vperm.xlu0 %394, %v385
  %v396 = vpop.permute.xlu0 %395
  %399 = vset.pattern.permute.xlu0 0
  %400 = vperm.xlu0 %399, %v386
  %v401 = vpop.permute.xlu0 %400
  %404 = vset.pattern.permute.xlu0 0
  %405 = vperm.xlu0 %404, %v387
  %v406 = vpop.permute.xlu0 %405
  %v408 = vmul.f32 %v380, %v391
  %v409 = vmul.f32 %v381, %v396
  %v410 = vmul.f32 %v382, %v401
  %v411 = vmul.f32 %v383, %v406
  %v412 = vld [vmem:[%s4] sm:$0xff]
  %v413 = vld [vmem:[%s4 + $0x8] sm:$0xff]
  %v414 = vld [vmem:[%s4 + $0x10] sm:$0xff]
  %v415 = vld [vmem:[%s4 + $0x18] sm:$0xff]
  %417 = vset.pattern.permute.xlu0 0
  %418 = vperm.xlu0 %417, %v412
  %v419 = vpop.permute.xlu0 %418
  %422 = vset.pattern.permute.xlu0 0
  %423 = vperm.xlu0 %422, %v413
  %v424 = vpop.permute.xlu0 %423
  %427 = vset.pattern.permute.xlu0 0
  %428 = vperm.xlu0 %427, %v414
  %v429 = vpop.permute.xlu0 %428
  %432 = vset.pattern.permute.xlu0 0
  %433 = vperm.xlu0 %432, %v415
  %v434 = vpop.permute.xlu0 %433
  %v436 = vadd.f32 %v408, %v419
  %v437 = vadd.f32 %v409, %v424
  %v438 = vadd.f32 %v410, %v429
  %v439 = vadd.f32 %v411, %v434
  %v440 = vmax.f32 %v436, 0.0
  %v441 = vmax.f32 %v437, 0.0
  %v442 = vmax.f32 %v438, 0.0
  %v443 = vmax.f32 %v439, 0.0
  %444 = vst.msk [vmem:[%s5] sm:$0xff] %vm227, %v440
  %445 = vst.msk [vmem:[%s5 + $0x8] sm:$0xff] %vm227, %v441
  %446 = vst.msk [vmem:[%s5 + $0x10] sm:$0xff] %vm227, %v442
  %447 = vst.msk [vmem:[%s5 + $0x18] sm:$0xff] %vm227, %v443
  // Predicated region
  $region22: #{_lambda_.29} parent=0 // pred_check
    _
  $region23: #{_lambda_.29} parent=0 // pred_check_branch
    %449 = sbr.rel (0) target = $region25
  $region24: #{_lambda_.29} parent=0 // pred_region
    _
  $region25: #{_lambda_.29} parent=0 // pred_fallthru
    _
  // Predicated region
  $region26: #{_lambda_.29} parent=0 // pred_check
    _
  $region27: #{_lambda_.29} parent=0 // pred_check_branch
    %451 = sbr.rel (0) target = $region29
  $region28: #{_lambda_.29} parent=0 // pred_region
    _
  $region29: #{_lambda_.29} parent=0 // pred_fallthru
    _

// kernel: _lambda_.30
$region0: #{_lambda_.30}
  #allocation0 [shape = 'u32[]', space=smem, size = 0x4, offset = 0x4, fixed_abs, tag = 'smem constant byte address 0x4 - core index']
  #allocation1 [shape = 'u32[144,128]{1,0:T(1,128)}', space=vmem, size = 0x12000, scoped, tag = 'internal scratch']
  #allocation2 [shape = 'f32[1,1]{1,0:T(1,128)S(1)}', space=vmem, size = 0x200, scoped, tag = 'scoped memory for _lambda_.30']
  %s0 = inlined_call_operand.vmem [shape: bf16[288,32], index: 0, kind: input, shape index: {}]
  %s1 = inlined_call_operand.vmem [shape: bf16[1,288], index: 1, kind: input, shape index: {}]
  %s2 = inlined_call_operand.<no memory space> [shape: f32[1,1], index: 2, kind: input, shape index: {}]
  %s3 = inlined_call_operand.vmem [shape: f32[1,32], index: 3, kind: output, shape index: {}]
  %s4 = sld [smem:[#allocation0]]
  $region22: #{_lambda_.30} parent=0
    _
  %s6 = ssub.s32 1, %s4
  %s7 = scalar_select 0, %s6, %s4
  %v8 = vstv %s2
  %9 = vst [vmem:[#allocation2] sm:$0x1] %v8
  // Predicated region
  $region2: #{_lambda_.30} parent=0 // pred_check
    _
  $region3: #{_lambda_.30} parent=0 // pred_check_branch
    %11 = sbr.rel (0) target = $region5
  $region4: #{_lambda_.30} parent=0 // pred_region
    _
  $region5: #{_lambda_.30} parent=0 // pred_fallthru
    _
  // Predicated region
  $region6: #{_lambda_.30} parent=0 // pred_check
    _
  $region7: #{_lambda_.30} parent=0 // pred_check_branch
    %13 = sbr.rel (0) target = $region9
  $region8: #{_lambda_.30} parent=0 // pred_region
    _
  $region9: #{_lambda_.30} parent=0 // pred_fallthru
    _
  // Predicated region
  $region10: #{_lambda_.30} parent=0 // pred_check
    _
  $region11: #{_lambda_.30} parent=0 // pred_check_branch
    %15 = sbr.rel (0) target = $region13
  $region12: #{_lambda_.30} parent=0 // pred_region
    _
  $region13: #{_lambda_.30} parent=0 // pred_fallthru
    _
  %v17 = vld [vmem:[%s1] sm:$0x7]
  %v18 = vld [vmem:[%s0] sm:$0xf]
  %v19 = vld [vmem:[%s0 + $0x4] sm:$0xf]
  %v20 = vld [vmem:[%s0 + $0x8] sm:$0xf]
  %v21 = vld [vmem:[%s0 + $0xc] sm:$0xf]
  %v22 = vld [vmem:[%s0 + $0x10] sm:$0xf]
  %v23 = vld [vmem:[%s0 + $0x14] sm:$0xf]
  %v24 = vld [vmem:[%s0 + $0x18] sm:$0xf]
  %v25 = vld [vmem:[%s0 + $0x1c] sm:$0xf]
  %v26 = vld [vmem:[%s0 + $0x20] sm:$0xf]
  %v27 = vld [vmem:[%s0 + $0x24] sm:$0xf]
  %v28 = vld [vmem:[%s0 + $0x28] sm:$0xf]
  %v29 = vld [vmem:[%s0 + $0x2c] sm:$0xf]
  %v30 = vld [vmem:[%s0 + $0x30] sm:$0xf]
  %v31 = vld [vmem:[%s0 + $0x34] sm:$0xf]
  %v32 = vld [vmem:[%s0 + $0x38] sm:$0xf]
  %v33 = vld [vmem:[%s0 + $0x3c] sm:$0xf]
  %v34 = vld [vmem:[%s0 + $0x40] sm:$0xf]
  %v35 = vld [vmem:[%s0 + $0x44] sm:$0xf]
  %v36 = vld [vmem:[%s0 + $0x48] sm:$0xf]
  %v37 = vld [vmem:[%s0 + $0x4c] sm:$0xf]
  %v38 = vld [vmem:[%s0 + $0x50] sm:$0xf]
  %v39 = vld [vmem:[%s0 + $0x54] sm:$0xf]
  %v40 = vld [vmem:[%s0 + $0x58] sm:$0xf]
  %v41 = vld [vmem:[%s0 + $0x5c] sm:$0xf]
  %v42 = vld [vmem:[%s0 + $0x60] sm:$0xf]
  %v43 = vld [vmem:[%s0 + $0x64] sm:$0xf]
  %v44 = vld [vmem:[%s0 + $0x68] sm:$0xf]
  %v45 = vld [vmem:[%s0 + $0x6c] sm:$0xf]
  %v46 = vld [vmem:[%s0 + $0x70] sm:$0xf]
  %v47 = vld [vmem:[%s0 + $0x74] sm:$0xf]
  %v48 = vld [vmem:[%s0 + $0x78] sm:$0xf]
  %v49 = vld [vmem:[%s0 + $0x7c] sm:$0xf]
  %v50 = vld [vmem:[%s0 + $0x80] sm:$0xf]
  %v51 = vld [vmem:[%s0 + $0x84] sm:$0xf]
  %v52 = vld [vmem:[%s0 + $0x88] sm:$0xf]
  %v53 = vld [vmem:[%s0 + $0x8c] sm:$0xf]
  %v54 = vld [vmem:[#allocation2] sm:$0x1]
  %56 = vset.pattern.permute.xlu0 0
  %57 = vperm.xlu0 %56, %v54
  %v58 = vpop.permute.xlu0 %57
  %v60 = vlaneseq
  %v61 = vshrl.u32 %v60, 7
  %v62 = vsub.s32 0, %v61
  %v63 = vrot.slane %v58, %v62
  %v66 = vunpack.c.l.s4 1966171168
  %v67 = vunpack.c.0.s8 %v66
  %v68 = vlaneseq
  %v69 = vshrl.u32 %v68, 7
  %v70 = vsub.s32 %v67, %v69
  %v71 = vrot.slane %v17, %v70
  %v72 = vcombine.high %v71, %v71
  %v74 = vunpack.c.l.s4 1966171168
  %v75 = vunpack.c.0.s8 %v74
  %v76 = vlaneseq
  %v77 = vshrl.u32 %v76, 7
  %v78 = vsub.s32 %v75, %v77
  %v79 = vrot.slane %v71, %v78
  %v81 = vunpack.c.l.s4 1966171168
  %v82 = vunpack.c.0.s8 %v81
  %v83 = vlaneseq
  %v84 = vshrl.u32 %v83, 7
  %v85 = vsub.s32 %v82, %v84
  %v86 = vrot.slane %v72, %v85
  %v87 = vcombine.high %v79, %v79
  %v126 = vunpack.c.l.b16 %v18
  %v127 = vunpack.c.l.b16 %v19
  %v128 = vunpack.c.l.b16 %v20
  %v129 = vunpack.c.l.b16 %v21
  %v130 = vunpack.c.l.b16 %v22
  %v131 = vunpack.c.l.b16 %v23
  %v132 = vunpack.c.l.b16 %v24
  %v133 = vunpack.c.l.b16 %v25
  %v134 = vunpack.c.l.b16 %v26
  %v135 = vunpack.c.l.b16 %v27
  %v136 = vunpack.c.l.b16 %v28
  %v137 = vunpack.c.l.b16 %v29
  %v138 = vunpack.c.l.b16 %v30
  %v139 = vunpack.c.l.b16 %v31
  %v140 = vunpack.c.l.b16 %v32
  %v141 = vunpack.c.l.b16 %v33
  %v142 = vunpack.c.l.b16 %v34
  %v143 = vunpack.c.l.b16 %v35
  %v144 = vunpack.c.l.b16 %v36
  %v145 = vunpack.c.l.b16 %v37
  %v146 = vunpack.c.l.b16 %v38
  %v147 = vunpack.c.l.b16 %v39
  %v148 = vunpack.c.l.b16 %v40
  %v149 = vunpack.c.l.b16 %v41
  %v150 = vunpack.c.l.b16 %v42
  %v151 = vunpack.c.l.b16 %v43
  %v152 = vunpack.c.l.b16 %v44
  %v153 = vunpack.c.l.b16 %v45
  %v154 = vunpack.c.l.b16 %v46
  %v155 = vunpack.c.l.b16 %v47
  %v156 = vunpack.c.l.b16 %v48
  %v157 = vunpack.c.l.b16 %v49
  %v158 = vunpack.c.l.b16 %v50
  %v159 = vunpack.c.l.b16 %v51
  %v160 = vunpack.c.l.b16 %v52
  %v161 = vunpack.c.l.b16 %v53
  %v162 = vpack.c.b16 %v127, %v126
  %v163 = vpack.c.b16 %v129, %v128
  %v164 = vpack.c.b16 %v131, %v130
  %v165 = vpack.c.b16 %v133, %v132
  %v166 = vpack.c.b16 %v135, %v134
  %v167 = vpack.c.b16 %v137, %v136
  %v168 = vpack.c.b16 %v139, %v138
  %v169 = vpack.c.b16 %v141, %v140
  %v170 = vpack.c.b16 %v143, %v142
  %v171 = vpack.c.b16 %v145, %v144
  %v172 = vpack.c.b16 %v147, %v146
  %v173 = vpack.c.b16 %v149, %v148
  %v174 = vpack.c.b16 %v151, %v150
  %v175 = vpack.c.b16 %v153, %v152
  %v176 = vpack.c.b16 %v155, %v154
  %v177 = vpack.c.b16 %v157, %v156
  %v178 = vpack.c.b16 %v159, %v158
  %v179 = vpack.c.b16 %v161, %v160
  %vm198 = vcmask 261120
  %v200 = vsel %vm198, %v87, 0
  %202 = vmatprep.subr.bf16.mxu0 0
  %203 = vmatpush1.bf16.msra.mxu0 %v162
  %204 = vmatprep.subr.bf16.mxu0 0
  %205 = vmatpush1.bf16.msra.mxu0 %v163
  %206 = vmatprep.subr.bf16.mxu0 0
  %207 = vmatpush1.bf16.msra.mxu0 %v164
  %208 = vmatprep.subr.bf16.mxu0 0
  %209 = vmatpush1.bf16.msra.mxu0 %v165
  %210 = vmatprep.subr.bf16.mxu0 0
  %211 = vmatpush1.bf16.msra.mxu0 %v166
  %212 = vmatprep.subr.bf16.mxu0 0
  %213 = vmatpush1.bf16.msra.mxu0 %v167
  %214 = vmatprep.subr.bf16.mxu0 0
  %215 = vmatpush1.bf16.msra.mxu0 %v168
  %216 = vmatprep.subr.bf16.mxu0 0
  %217 = vmatpush1.bf16.msra.mxu0 %v169
  %218 = vmatprep.subr.bf16.mxu0 0
  %219 = vmatpush1.bf16.msra.mxu0 %v170
  %220 = vmatprep.subr.bf16.mxu0 0
  %221 = vmatpush1.bf16.msra.mxu0 %v171
  %222 = vmatprep.subr.bf16.mxu0 0
  %223 = vmatpush1.bf16.msra.mxu0 %v172
  %224 = vmatprep.subr.bf16.mxu0 0
  %225 = vmatpush1.bf16.msra.mxu0 %v173
  %226 = vmatprep.subr.bf16.mxu0 0
  %227 = vmatpush1.bf16.msra.mxu0 %v174
  %228 = vmatprep.subr.bf16.mxu0 0
  %229 = vmatpush1.bf16.msra.mxu0 %v175
  %230 = vmatprep.subr.bf16.mxu0 0
  %231 = vmatpush1.bf16.msra.mxu0 %v176
  %232 = vmatprep.subr.bf16.mxu0 0
  %233 = vmatpush1.bf16.msra.mxu0 %v177
  %234 = vmatprep.mubr.bf16.mxu0 %v86
  %235 = vmatmul.mubr.bf16.gmra.mrb[0].mxu0 %v79
  %v236 = vpop.f32.mrb[0].mxu0
  %v237 = vadd.f32 %v63, %v236
  %v238 = vpop.f32.mrb[0].mxu0
  %v239 = vpop.f32.mrb[0].mxu0
  %v240 = vpop.f32.mrb[0].mxu0
  %241 = vdwg.mxu0
  %242 = vmatprep.subr.bf16.mxu0 0
  %243 = vmatpush1.bf16.msra.mxu0 %v178
  %244 = vmatprep.subr.bf16.mxu0 0
  %245 = vmatpush1.bf16.msra.mxu0 %v179
  %246 = vmatprep.subr.bf16.mxu0 0
  %247 = vmatpush1.bf16.msra.mxu0 0
  %248 = vmatprep.subr.bf16.mxu0 0
  %249 = vmatpush1.bf16.msra.mxu0 0
  %250 = vmatprep.subr.bf16.mxu0 0
  %251 = vmatpush1.bf16.msra.mxu0 0
  %252 = vmatprep.subr.bf16.mxu0 0
  %253 = vmatpush1.bf16.msra.mxu0 0
  %254 = vmatprep.subr.bf16.mxu0 0
  %255 = vmatpush1.bf16.msra.mxu0 0
  %256 = vmatprep.subr.bf16.mxu0 0
  %257 = vmatpush1.bf16.msra.mxu0 0
  %258 = vmatprep.subr.bf16.mxu0 0
  %259 = vmatpush1.bf16.msra.mxu0 0
  %260 = vmatprep.subr.bf16.mxu0 0
  %261 = vmatpush1.bf16.msra.mxu0 0
  %262 = vmatprep.subr.bf16.mxu0 0
  %263 = vmatpush1.bf16.msra.mxu0 0
  %264 = vmatprep.subr.bf16.mxu0 0
  %265 = vmatpush1.bf16.msra.mxu0 0
  %266 = vmatprep.subr.bf16.mxu0 0
  %267 = vmatpush1.bf16.msra.mxu0 0
  %268 = vmatprep.subr.bf16.mxu0 0
  %269 = vmatpush1.bf16.msra.mxu0 0
  %270 = vmatprep.subr.bf16.mxu0 0
  %271 = vmatpush1.bf16.msra.mxu0 0
  %272 = vmatprep.subr.bf16.mxu0 0
  %273 = vmatpush1.bf16.msra.mxu0 0
  %274 = vmatprep.mubr.bf16.mxu0 0
  %275 = vmatmul.mubr.bf16.gmra.mrb[0].mxu0 %v200
  %v276 = vpop.f32.mrb[0].mxu0
  %v277 = vadd.f32 %v237, %v276
  %v278 = vpop.f32.mrb[0].mxu0
  %v279 = vpop.f32.mrb[0].mxu0
  %v280 = vpop.f32.mrb[0].mxu0
  %281 = vdwg.mxu0
  %v282 = vxor.u32 %v277, 2147483648
  %v283 = vmul.f32 %v282, 1.442695
  %v284 = vpow.pop %v283
  %v285 = vadd.f32 %v284, 1.0
  %v286 = vrcp.pop %v285
  %v287 = vmul.f32 1.0, %v286
  %vm288 = vcmask 253952
  %289 = vst.msk [vmem:[%s3] sm:$0x1] %vm288, %v287
  // Predicated region
  $region14: #{_lambda_.30} parent=0 // pred_check
    _
  $region15: #{_lambda_.30} parent=0 // pred_check_branch
    %291 = sbr.rel (0) target = $region17
  $region16: #{_lambda_.30} parent=0 // pred_region
    _
  $region17: #{_lambda_.30} parent=0 // pred_fallthru
    _
  // Predicated region
  $region18: #{_lambda_.30} parent=0 // pred_check
    _
  $region19: #{_lambda_.30} parent=0 // pred_check_branch
    %293 = sbr.rel (0) target = $region21
  $region20: #{_lambda_.30} parent=0 // pred_region
    _
  $region21: #{_lambda_.30} parent=0 // pred_fallthru
    _

// kernel: _lambda_.31
$region0: #{_lambda_.31}
  #allocation0 [shape = 'u32[]', space=smem, size = 0x4, offset = 0x4, fixed_abs, tag = 'smem constant byte address 0x4 - core index']
  #allocation1 [shape = 'u32[144,128]{1,0:T(1,128)}', space=vmem, size = 0x12000, scoped, tag = 'internal scratch']
  %s0 = inlined_call_operand.vmem [shape: bf16[9,32], index: 0, kind: input, shape index: {}]
  %s1 = inlined_call_operand.vmem [shape: bf16[32,9], index: 1, kind: input, shape index: {}]
  %s2 = inlined_call_operand.vmem [shape: f32[32,1], index: 2, kind: input, shape index: {}]
  %s3 = inlined_call_operand.vmem [shape: f32[32,1], index: 3, kind: input, shape index: {}]
  %s4 = inlined_call_operand.vmem [shape: f32[32,1], index: 4, kind: input, shape index: {}]
  %s5 = inlined_call_operand.vmem [shape: f32[32,32], index: 5, kind: output, shape index: {}]
  %s6 = sld [smem:[#allocation0]]
  $region30: #{_lambda_.31} parent=0
    _
  %s8 = ssub.s32 1, %s6
  %s9 = scalar_select 0, %s8, %s6
  // Predicated region
  $region2: #{_lambda_.31} parent=0 // pred_check
    _
  $region3: #{_lambda_.31} parent=0 // pred_check_branch
    %11 = sbr.rel (0) target = $region5
  $region4: #{_lambda_.31} parent=0 // pred_region
    _
  $region5: #{_lambda_.31} parent=0 // pred_fallthru
    _
  // Predicated region
  $region6: #{_lambda_.31} parent=0 // pred_check
    _
  $region7: #{_lambda_.31} parent=0 // pred_check_branch
    %13 = sbr.rel (0) target = $region9
  $region8: #{_lambda_.31} parent=0 // pred_region
    _
  $region9: #{_lambda_.31} parent=0 // pred_fallthru
    _
  // Predicated region
  $region10: #{_lambda_.31} parent=0 // pred_check
    _
  $region11: #{_lambda_.31} parent=0 // pred_check_branch
    %15 = sbr.rel (0) target = $region13
  $region12: #{_lambda_.31} parent=0 // pred_region
    _
  $region13: #{_lambda_.31} parent=0 // pred_fallthru
    _
  // Predicated region
  $region14: #{_lambda_.31} parent=0 // pred_check
    _
  $region15: #{_lambda_.31} parent=0 // pred_check_branch
    %17 = sbr.rel (0) target = $region17
  $region16: #{_lambda_.31} parent=0 // pred_region
    _
  $region17: #{_lambda_.31} parent=0 // pred_fallthru
    _
  // Predicated region
  $region18: #{_lambda_.31} parent=0 // pred_check
    _
  $region19: #{_lambda_.31} parent=0 // pred_check_branch
    %19 = sbr.rel (0) target = $region21
  $region20: #{_lambda_.31} parent=0 // pred_region
    _
  $region21: #{_lambda_.31} parent=0 // pred_fallthru
    _
  %v21 = vld [vmem:[%s1] sm:$0xf]
  %v22 = vld [vmem:[%s1 + $0x4] sm:$0xf]
  %v23 = vld [vmem:[%s1 + $0x8] sm:$0xf]
  %v24 = vld [vmem:[%s1 + $0xc] sm:$0xf]
  %v25 = vld [vmem:[%s0] sm:$0xf]
  %v26 = vld [vmem:[%s0 + $0x4] sm:$0x1]
  %v27 = vld [vmem:[%s2] sm:$0xff]
  %v28 = vld [vmem:[%s2 + $0x8] sm:$0xff]
  %v29 = vld [vmem:[%s2 + $0x10] sm:$0xff]
  %v30 = vld [vmem:[%s2 + $0x18] sm:$0xff]
  %32 = vset.pattern.permute.xlu0 0
  %33 = vperm.xlu0 %32, %v27
  %v34 = vpop.permute.xlu0 %33
  %37 = vset.pattern.permute.xlu0 0
  %38 = vperm.xlu0 %37, %v28
  %v39 = vpop.permute.xlu0 %38
  %42 = vset.pattern.permute.xlu0 0
  %43 = vperm.xlu0 %42, %v29
  %v44 = vpop.permute.xlu0 %43
  %47 = vset.pattern.permute.xlu0 0
  %48 = vperm.xlu0 %47, %v30
  %v49 = vpop.permute.xlu0 %48
  %v55 = vunpack.c.l.b16 %v21
  %v56 = vunpack.c.l.b16 %v22
  %v57 = vunpack.c.l.b16 %v23
  %v58 = vunpack.c.l.b16 %v24
  %v59 = vpack.c.b16 %v56, %v55
  %v60 = vpack.c.b16 %v58, %v57
  %v63 = vunpack.c.l.b16 %v25
  %v64 = vunpack.c.l.b16 %v26
  %v65 = vpack.c.b16 %v64, %v63
  %vm66 = vcmask 72704
  %v68 = vsel %vm66, %v59, 0
  %v71 = vsel %vm66, %v60, 0
  %vm73 = vcmask 1043456
  %vm74 = vcmask 1044480
  %v75 = vsel %vm73, 4294967295, 65535
  %v76 = vsel %vm74, %v75, 0
  %v78 = vand.u32 %v65, %v76
  %80 = vmatprep.subr.bf16.mxu0 0
  %81 = vmatpush1.bf16.msra.mxu0 %v78
  %82 = vmatprep.subr.bf16.mxu0 0
  %83 = vmatpush1.bf16.msra.mxu0 0
  %84 = vmatprep.subr.bf16.mxu0 0
  %85 = vmatpush1.bf16.msra.mxu0 0
  %86 = vmatprep.subr.bf16.mxu0 0
  %87 = vmatpush1.bf16.msra.mxu0 0
  %88 = vmatprep.subr.bf16.mxu0 0
  %89 = vmatpush1.bf16.msra.mxu0 0
  %90 = vmatprep.subr.bf16.mxu0 0
  %91 = vmatpush1.bf16.msra.mxu0 0
  %92 = vmatprep.subr.bf16.mxu0 0
  %93 = vmatpush1.bf16.msra.mxu0 0
  %94 = vmatprep.subr.bf16.mxu0 0
  %95 = vmatpush1.bf16.msra.mxu0 0
  %96 = vmatprep.subr.bf16.mxu0 0
  %97 = vmatpush1.bf16.msra.mxu0 0
  %98 = vmatprep.subr.bf16.mxu0 0
  %99 = vmatpush1.bf16.msra.mxu0 0
  %100 = vmatprep.subr.bf16.mxu0 0
  %101 = vmatpush1.bf16.msra.mxu0 0
  %102 = vmatprep.subr.bf16.mxu0 0
  %103 = vmatpush1.bf16.msra.mxu0 0
  %104 = vmatprep.subr.bf16.mxu0 0
  %105 = vmatpush1.bf16.msra.mxu0 0
  %106 = vmatprep.subr.bf16.mxu0 0
  %107 = vmatpush1.bf16.msra.mxu0 0
  %108 = vmatprep.subr.bf16.mxu0 0
  %109 = vmatpush1.bf16.msra.mxu0 0
  %110 = vmatprep.subr.bf16.mxu0 0
  %111 = vmatpush1.bf16.msra.mxu0 0
  %112 = vmatprep.mubr.bf16.mxu0 0
  %113 = vmatmul.mubr.bf16.gmra.mrb[0].mxu0 %v68
  %v114 = vpop.f32.mrb[0].mxu0
  %v115 = vadd.f32 %v34, %v114
  %v116 = vpop.f32.mrb[0].mxu0
  %v117 = vpop.f32.mrb[0].mxu0
  %v118 = vadd.f32 %v39, %v117
  %v119 = vpop.f32.mrb[0].mxu0
  %120 = vmatprep.mubr.bf16.mxu0 0
  %121 = vmatmul.mubr.bf16.gmra.mrb[0].mxu0 %v71
  %v122 = vpop.f32.mrb[0].mxu0
  %v123 = vadd.f32 %v44, %v122
  %v124 = vpop.f32.mrb[0].mxu0
  %v125 = vpop.f32.mrb[0].mxu0
  %v126 = vadd.f32 %v49, %v125
  %v127 = vpop.f32.mrb[0].mxu0
  %128 = vdwg.mxu0
  %vm129 = vcmask 261120
  %v130 = vsel %vm129, %v115, 0.0
  %131 = vadd.xlane.f32.xlu0 %v130
  %v132 = vpop.xlane.xlu0 %131
  %v133 = vsel %vm129, %v118, 0.0
  %134 = vadd.xlane.f32.xlu0 %v133
  %v135 = vpop.xlane.xlu0 %134
  %v136 = vsel %vm129, %v123, 0.0
  %137 = vadd.xlane.f32.xlu0 %v136
  %v138 = vpop.xlane.xlu0 %137
  %v139 = vsel %vm129, %v126, 0.0
  %140 = vadd.xlane.f32.xlu0 %v139
  %v141 = vpop.xlane.xlu0 %140
  %v142 = vmul.f32 %v132, 0.03125
  %v143 = vmul.f32 %v135, 0.03125
  %v144 = vmul.f32 %v138, 0.03125
  %v145 = vmul.f32 %v141, 0.03125
  %v146 = vsub.f32 %v115, %v142
  %v147 = vsub.f32 %v118, %v143
  %v148 = vsub.f32 %v123, %v144
  %v149 = vsub.f32 %v126, %v145
  %v150 = vmul.f32 %v146, %v146
  %v151 = vmul.f32 %v147, %v147
  %v152 = vmul.f32 %v148, %v148
  %v153 = vmul.f32 %v149, %v149
  %v154 = vsel %vm129, %v150, 0.0
  %155 = vadd.xlane.f32.xlu0 %v154
  %v156 = vpop.xlane.xlu0 %155
  %v157 = vsel %vm129, %v151, 0.0
  %158 = vadd.xlane.f32.xlu0 %v157
  %v159 = vpop.xlane.xlu0 %158
  %v160 = vsel %vm129, %v152, 0.0
  %161 = vadd.xlane.f32.xlu0 %v160
  %v162 = vpop.xlane.xlu0 %161
  %v163 = vsel %vm129, %v153, 0.0
  %164 = vadd.xlane.f32.xlu0 %v163
  %v165 = vpop.xlane.xlu0 %164
  %v166 = vmul.f32 %v156, 0.03125
  %v167 = vmul.f32 %v159, 0.03125
  %v168 = vmul.f32 %v162, 0.03125
  %v169 = vmul.f32 %v165, 0.03125
  %v170 = vadd.f32 %v166, 1e-05
  %v171 = vadd.f32 %v167, 1e-05
  %v172 = vadd.f32 %v168, 1e-05
  %v173 = vadd.f32 %v169, 1e-05
  %v174 = vrsqrt.pop %v170
  %v175 = vrsqrt.pop %v171
  %v176 = vrsqrt.pop %v172
  %v177 = vrsqrt.pop %v173
  %v178 = vmul.f32 %v146, %v174
  %v179 = vmul.f32 %v147, %v175
  %v180 = vmul.f32 %v148, %v176
  %v181 = vmul.f32 %v149, %v177
  %v182 = vld [vmem:[%s3] sm:$0xff]
  %v183 = vld [vmem:[%s3 + $0x8] sm:$0xff]
  %v184 = vld [vmem:[%s3 + $0x10] sm:$0xff]
  %v185 = vld [vmem:[%s3 + $0x18] sm:$0xff]
  %187 = vset.pattern.permute.xlu0 0
  %188 = vperm.xlu0 %187, %v182
  %v189 = vpop.permute.xlu0 %188
  %192 = vset.pattern.permute.xlu0 0
  %193 = vperm.xlu0 %192, %v183
  %v194 = vpop.permute.xlu0 %193
  %197 = vset.pattern.permute.xlu0 0
  %198 = vperm.xlu0 %197, %v184
  %v199 = vpop.permute.xlu0 %198
  %202 = vset.pattern.permute.xlu0 0
  %203 = vperm.xlu0 %202, %v185
  %v204 = vpop.permute.xlu0 %203
  %v206 = vmul.f32 %v178, %v189
  %v207 = vmul.f32 %v179, %v194
  %v208 = vmul.f32 %v180, %v199
  %v209 = vmul.f32 %v181, %v204
  %v210 = vld [vmem:[%s4] sm:$0xff]
  %v211 = vld [vmem:[%s4 + $0x8] sm:$0xff]
  %v212 = vld [vmem:[%s4 + $0x10] sm:$0xff]
  %v213 = vld [vmem:[%s4 + $0x18] sm:$0xff]
  %215 = vset.pattern.permute.xlu0 0
  %216 = vperm.xlu0 %215, %v210
  %v217 = vpop.permute.xlu0 %216
  %220 = vset.pattern.permute.xlu0 0
  %221 = vperm.xlu0 %220, %v211
  %v222 = vpop.permute.xlu0 %221
  %225 = vset.pattern.permute.xlu0 0
  %226 = vperm.xlu0 %225, %v212
  %v227 = vpop.permute.xlu0 %226
  %230 = vset.pattern.permute.xlu0 0
  %231 = vperm.xlu0 %230, %v213
  %v232 = vpop.permute.xlu0 %231
  %v234 = vadd.f32 %v206, %v217
  %v235 = vadd.f32 %v207, %v222
  %v236 = vadd.f32 %v208, %v227
  %v237 = vadd.f32 %v209, %v232
  %v238 = vmax.f32 %v234, 0.0
  %v239 = vmax.f32 %v235, 0.0
  %v240 = vmax.f32 %v236, 0.0
  %v241 = vmax.f32 %v237, 0.0
  %242 = vst.msk [vmem:[%s5] sm:$0xff] %vm129, %v238
  %243 = vst.msk [vmem:[%s5 + $0x8] sm:$0xff] %vm129, %v239
  %244 = vst.msk [vmem:[%s5 + $0x10] sm:$0xff] %vm129, %v240
  %245 = vst.msk [vmem:[%s5 + $0x18] sm:$0xff] %vm129, %v241
  // Predicated region
  $region22: #{_lambda_.31} parent=0 // pred_check
    _
  $region23: #{_lambda_.31} parent=0 // pred_check_branch
    %247 = sbr.rel (0) target = $region25
  $region24: #{_lambda_.31} parent=0 // pred_region
    _
  $region25: #{_lambda_.31} parent=0 // pred_fallthru
    _
  // Predicated region
  $region26: #{_lambda_.31} parent=0 // pred_check
    _
  $region27: #{_lambda_.31} parent=0 // pred_check_branch
    %249 = sbr.rel (0) target = $region29
  $region28: #{_lambda_.31} parent=0 // pred_region
    _
  $region29: #{_lambda_.31} parent=0 // pred_fallthru
    _

// kernel: _lambda_.34
$region0: #{_lambda_.34}
  #allocation0 [shape = 'u32[]', space=smem, size = 0x4, offset = 0x4, fixed_abs, tag = 'smem constant byte address 0x4 - core index']
  #allocation1 [shape = 'u32[144,128]{1,0:T(1,128)}', space=vmem, size = 0x12000, scoped, tag = 'internal scratch']
  %s0 = inlined_call_operand.vmem [shape: f32[16,128], index: 0, kind: input, shape index: {}]
  %s1 = inlined_call_operand.vmem [shape: f32[1,128], index: 1, kind: input, shape index: {}]
  %s2 = inlined_call_operand.vmem [shape: f32[16,16], index: 2, kind: input, shape index: {}]
  %s3 = inlined_call_operand.vmem [shape: f32[16,1], index: 3, kind: input, shape index: {}]
  %s4 = inlined_call_operand.vmem [shape: f32[16,1], index: 4, kind: input, shape index: {}]
  %s5 = inlined_call_operand.vmem [shape: f32[16,1], index: 5, kind: input, shape index: {}]
  %s6 = inlined_call_operand.vmem [shape: f32[16,128], index: 6, kind: output, shape index: {}]
  %s7 = sld [smem:[#allocation0]]
  $region34: #{_lambda_.34} parent=0
    _
  %s9 = ssub.s32 1, %s7
  %s10 = scalar_select 0, %s9, %s7
  // Predicated region
  $region2: #{_lambda_.34} parent=0 // pred_check
    _
  $region3: #{_lambda_.34} parent=0 // pred_check_branch
    %12 = sbr.rel (0) target = $region5
  $region4: #{_lambda_.34} parent=0 // pred_region
    _
  $region5: #{_lambda_.34} parent=0 // pred_fallthru
    _
  // Predicated region
  $region6: #{_lambda_.34} parent=0 // pred_check
    _
  $region7: #{_lambda_.34} parent=0 // pred_check_branch
    %14 = sbr.rel (0) target = $region9
  $region8: #{_lambda_.34} parent=0 // pred_region
    _
  $region9: #{_lambda_.34} parent=0 // pred_fallthru
    _
  // Predicated region
  $region10: #{_lambda_.34} parent=0 // pred_check
    _
  $region11: #{_lambda_.34} parent=0 // pred_check_branch
    %16 = sbr.rel (0) target = $region13
  $region12: #{_lambda_.34} parent=0 // pred_region
    _
  $region13: #{_lambda_.34} parent=0 // pred_fallthru
    _
  // Predicated region
  $region14: #{_lambda_.34} parent=0 // pred_check
    _
  $region15: #{_lambda_.34} parent=0 // pred_check_branch
    %18 = sbr.rel (0) target = $region17
  $region16: #{_lambda_.34} parent=0 // pred_region
    _
  $region17: #{_lambda_.34} parent=0 // pred_fallthru
    _
  // Predicated region
  $region18: #{_lambda_.34} parent=0 // pred_check
    _
  $region19: #{_lambda_.34} parent=0 // pred_check_branch
    %20 = sbr.rel (0) target = $region21
  $region20: #{_lambda_.34} parent=0 // pred_region
    _
  $region21: #{_lambda_.34} parent=0 // pred_fallthru
    _
  // Predicated region
  $region22: #{_lambda_.34} parent=0 // pred_check
    _
  $region23: #{_lambda_.34} parent=0 // pred_check_branch
    %22 = sbr.rel (0) target = $region25
  $region24: #{_lambda_.34} parent=0 // pred_region
    _
  $region25: #{_lambda_.34} parent=0 // pred_fallthru
    _
  %v23 = vld [vmem:[%s0] sm:$0xff]
  %v24 = vld [vmem:[%s0 + $0x8] sm:$0xff]
  %v25 = vld [vmem:[%s1] sm:$0x1]
  %v27 = vlaneseq
  %v28 = vshrl.u32 %v27, 7
  %v29 = vsub.s32 0, %v28
  %v30 = vrot.slane %v25, %v29
  %v32 = vmul.f32 %v23, %v30
  %v33 = vmul.f32 %v24, %v30
  %v34 = vld [vmem:[%s2] sm:$0xff]
  %v35 = vld [vmem:[%s2 + $0x8] sm:$0xff]
  %v36 = vld [vmem:[%s3] sm:$0xff]
  %v37 = vld [vmem:[%s3 + $0x8] sm:$0xff]
  %39 = vset.pattern.permute.xlu0 0
  %40 = vperm.xlu0 %39, %v36
  %v41 = vpop.permute.xlu0 %40
  %44 = vset.pattern.permute.xlu0 0
  %45 = vperm.xlu0 %44, %v37
  %v46 = vpop.permute.xlu0 %45
  %vm48 = vcmask 130048
  %v50 = vsel %vm48, %v34, 0
  %v53 = vsel %vm48, %v35, 0
  %55 = vmatprep.subr.mxu0 0.0
  %56 = vmatpush1.msra.mxu0 %v32
  %57 = vmatprep.subr.mxu0 0.0
  %58 = vmatpush1.msra.mxu0 %v33
  %59 = vmatprep.subr.mxu0 0.0
  %60 = vmatpush1.msra.mxu0 0.0
  %61 = vmatprep.subr.mxu0 0.0
  %62 = vmatpush1.msra.mxu0 0.0
  %63 = vmatprep.subr.mxu0 0.0
  %64 = vmatpush1.msra.mxu0 0.0
  %65 = vmatprep.subr.mxu0 0.0
  %66 = vmatpush1.msra.mxu0 0.0
  %67 = vmatprep.subr.mxu0 0.0
  %68 = vmatpush1.msra.mxu0 0.0
  %69 = vmatprep.subr.mxu0 0.0
  %70 = vmatpush1.msra.mxu0 0.0
  %71 = vmatprep.subr.mxu0 0.0
  %72 = vmatpush1.msra.mxu0 0.0
  %73 = vmatprep.subr.mxu0 0.0
  %74 = vmatpush1.msra.mxu0 0.0
  %75 = vmatprep.subr.mxu0 0.0
  %76 = vmatpush1.msra.mxu0 0.0
  %77 = vmatprep.subr.mxu0 0.0
  %78 = vmatpush1.msra.mxu0 0.0
  %79 = vmatprep.subr.mxu0 0.0
  %80 = vmatpush1.msra.mxu0 0.0
  %81 = vmatprep.subr.mxu0 0.0
  %82 = vmatpush1.msra.mxu0 0.0
  %83 = vmatprep.subr.mxu0 0.0
  %84 = vmatpush1.msra.mxu0 0.0
  %85 = vmatprep.subr.mxu0 0.0
  %86 = vmatpush1.msra.mxu0 0.0
  %87 = vmatprep.subr.mxu0 0.0
  %88 = vmatpush1.msra.mxu0 0.0
  %89 = vmatprep.subr.mxu0 0.0
  %90 = vmatpush1.msra.mxu0 0.0
  %91 = vmatprep.subr.mxu0 0.0
  %92 = vmatpush1.msra.mxu0 0.0
  %93 = vmatprep.subr.mxu0 0.0
  %94 = vmatpush1.msra.mxu0 0.0
  %95 = vmatprep.subr.mxu0 0.0
  %96 = vmatpush1.msra.mxu0 0.0
  %97 = vmatprep.subr.mxu0 0.0
  %98 = vmatpush1.msra.mxu0 0.0
  %99 = vmatprep.subr.mxu0 0.0
  %100 = vmatpush1.msra.mxu0 0.0
  %101 = vmatprep.subr.mxu0 0.0
  %102 = vmatpush1.msra.mxu0 0.0
  %103 = vmatprep.subr.mxu0 0.0
  %104 = vmatpush1.msra.mxu0 0.0
  %105 = vmatprep.subr.mxu0 0.0
  %106 = vmatpush1.msra.mxu0 0.0
  %107 = vmatprep.subr.mxu0 0.0
  %108 = vmatpush1.msra.mxu0 0.0
  %109 = vmatprep.subr.mxu0 0.0
  %110 = vmatpush1.msra.mxu0 0.0
  %111 = vmatprep.subr.mxu0 0.0
  %112 = vmatpush1.msra.mxu0 0.0
  %113 = vmatprep.subr.mxu0 0.0
  %114 = vmatpush1.msra.mxu0 0.0
  %115 = vmatprep.subr.mxu0 0.0
  %116 = vmatpush1.msra.mxu0 0.0
  %117 = vmatprep.subr.mxu0 0.0
  %118 = vmatpush1.msra.mxu0 0.0
  %119 = vmatprep.mubr.f32.mxu0 0.0
  %120 = vmatmul.mubr.f32.gmra.mrb[0].mxu0 %v50
  %v121 = vpop.f32.mrb[0].mxu0
  %v122 = vadd.f32 %v41, %v121
  %v123 = vpop.f32.mrb[0].mxu0
  %124 = vmatprep.mubr.f32.mxu0 0.0
  %125 = vmatmul.mubr.f32.gmra.mrb[0].mxu0 %v53
  %v126 = vpop.f32.mrb[0].mxu0
  %v127 = vadd.f32 %v46, %v126
  %v128 = vpop.f32.mrb[0].mxu0
  %129 = vdwg.mxu0
  %130 = vadd.xlane.f32.xlu0 %v122
  %v131 = vpop.xlane.xlu0 %130
  %132 = vadd.xlane.f32.xlu0 %v127
  %v133 = vpop.xlane.xlu0 %132
  %v134 = vmul.f32 %v131, 0.0078125
  %v135 = vmul.f32 %v133, 0.0078125
  %v136 = vsub.f32 %v122, %v134
  %v137 = vsub.f32 %v127, %v135
  %v138 = vmul.f32 %v136, %v136
  %v139 = vmul.f32 %v137, %v137
  %140 = vadd.xlane.f32.xlu0 %v138
  %v141 = vpop.xlane.xlu0 %140
  %142 = vadd.xlane.f32.xlu0 %v139
  %v143 = vpop.xlane.xlu0 %142
  %v144 = vmul.f32 %v141, 0.0078125
  %v145 = vmul.f32 %v143, 0.0078125
  %v146 = vadd.f32 %v144, 1e-05
  %v147 = vadd.f32 %v145, 1e-05
  %v148 = vrsqrt.pop %v146
  %v149 = vrsqrt.pop %v147
  %v150 = vmul.f32 %v136, %v148
  %v151 = vmul.f32 %v137, %v149
  %v152 = vld [vmem:[%s4] sm:$0xff]
  %v153 = vld [vmem:[%s4 + $0x8] sm:$0xff]
  %155 = vset.pattern.permute.xlu0 0
  %156 = vperm.xlu0 %155, %v152
  %v157 = vpop.permute.xlu0 %156
  %160 = vset.pattern.permute.xlu0 0
  %161 = vperm.xlu0 %160, %v153
  %v162 = vpop.permute.xlu0 %161
  %v164 = vmul.f32 %v150, %v157
  %v165 = vmul.f32 %v151, %v162
  %v166 = vld [vmem:[%s5] sm:$0xff]
  %v167 = vld [vmem:[%s5 + $0x8] sm:$0xff]
  %169 = vset.pattern.permute.xlu0 0
  %170 = vperm.xlu0 %169, %v166
  %v171 = vpop.permute.xlu0 %170
  %174 = vset.pattern.permute.xlu0 0
  %175 = vperm.xlu0 %174, %v167
  %v176 = vpop.permute.xlu0 %175
  %v178 = vadd.f32 %v164, %v171
  %v179 = vadd.f32 %v165, %v176
  %180 = vst [vmem:[%s6] sm:$0xff] %v178
  %181 = vst [vmem:[%s6 + $0x8] sm:$0xff] %v179
  // Predicated region
  $region26: #{_lambda_.34} parent=0 // pred_check
    _
  $region27: #{_lambda_.34} parent=0 // pred_check_branch
    %183 = sbr.rel (0) target = $region29
  $region28: #{_lambda_.34} parent=0 // pred_region
    _
  $region29: #{_lambda_.34} parent=0 // pred_fallthru
    _
  // Predicated region
  $region30: #{_lambda_.34} parent=0 // pred_check
    _
  $region31: #{_lambda_.34} parent=0 // pred_check_branch
    %185 = sbr.rel (0) target = $region33
  $region32: #{_lambda_.34} parent=0 // pred_region
    _
  $region33: #{_lambda_.34} parent=0 // pred_fallthru
    _

// kernel: _lambda_.33
$region0: #{_lambda_.33}
  #allocation0 [shape = 'u32[]', space=smem, size = 0x4, offset = 0x4, fixed_abs, tag = 'smem constant byte address 0x4 - core index']
  #allocation1 [shape = 'u32[144,128]{1,0:T(1,128)}', space=vmem, size = 0x12000, scoped, tag = 'internal scratch']
  #allocation2 [shape = 'f32[1,1]{1,0:T(1,128)S(1)}', space=vmem, size = 0x200, scoped, tag = 'scoped memory for _lambda_.33']
  %s0 = inlined_call_operand.vmem [shape: bf16[64,32], index: 0, kind: input, shape index: {}]
  %s1 = inlined_call_operand.vmem [shape: bf16[8,64], index: 1, kind: input, shape index: {}]
  %s2 = inlined_call_operand.vmem [shape: f32[32,32], index: 2, kind: input, shape index: {}]
  %s3 = inlined_call_operand.vmem [shape: f32[8,32], index: 3, kind: input, shape index: {}]
  %s4 = inlined_call_operand.vmem [shape: f32[8,1], index: 4, kind: input, shape index: {}]
  %s5 = inlined_call_operand.vmem [shape: f32[1,8], index: 5, kind: input, shape index: {}]
  %s6 = inlined_call_operand.<no memory space> [shape: f32[1,1], index: 6, kind: input, shape index: {}]
  %s7 = inlined_call_operand.vmem [shape: f32[1,32], index: 7, kind: output, shape index: {}]
  %s8 = sld [smem:[#allocation0]]
  $region38: #{_lambda_.33} parent=0
    _
  %s10 = ssub.s32 1, %s8
  %s11 = scalar_select 0, %s10, %s8
  %v12 = vstv %s6
  %13 = vst [vmem:[#allocation2] sm:$0x1] %v12
  // Predicated region
  $region2: #{_lambda_.33} parent=0 // pred_check
    _
  $region3: #{_lambda_.33} parent=0 // pred_check_branch
    %15 = sbr.rel (0) target = $region5
  $region4: #{_lambda_.33} parent=0 // pred_region
    _
  $region5: #{_lambda_.33} parent=0 // pred_fallthru
    _
  // Predicated region
  $region6: #{_lambda_.33} parent=0 // pred_check
    _
  $region7: #{_lambda_.33} parent=0 // pred_check_branch
    %17 = sbr.rel (0) target = $region9
  $region8: #{_lambda_.33} parent=0 // pred_region
    _
  $region9: #{_lambda_.33} parent=0 // pred_fallthru
    _
  // Predicated region
  $region10: #{_lambda_.33} parent=0 // pred_check
    _
  $region11: #{_lambda_.33} parent=0 // pred_check_branch
    %19 = sbr.rel (0) target = $region13
  $region12: #{_lambda_.33} parent=0 // pred_region
    _
  $region13: #{_lambda_.33} parent=0 // pred_fallthru
    _
  // Predicated region
  $region14: #{_lambda_.33} parent=0 // pred_check
    _
  $region15: #{_lambda_.33} parent=0 // pred_check_branch
    %21 = sbr.rel (0) target = $region17
  $region16: #{_lambda_.33} parent=0 // pred_region
    _
  $region17: #{_lambda_.33} parent=0 // pred_fallthru
    _
  // Predicated region
  $region18: #{_lambda_.33} parent=0 // pred_check
    _
  $region19: #{_lambda_.33} parent=0 // pred_check_branch
    %23 = sbr.rel (0) target = $region21
  $region20: #{_lambda_.33} parent=0 // pred_region
    _
  $region21: #{_lambda_.33} parent=0 // pred_fallthru
    _
  // Predicated region
  $region22: #{_lambda_.33} parent=0 // pred_check
    _
  $region23: #{_lambda_.33} parent=0 // pred_check_branch
    %25 = sbr.rel (0) target = $region25
  $region24: #{_lambda_.33} parent=0 // pred_region
    _
  $region25: #{_lambda_.33} parent=0 // pred_fallthru
    _
  // Predicated region
  $region26: #{_lambda_.33} parent=0 // pred_check
    _
  $region27: #{_lambda_.33} parent=0 // pred_check_branch
    %27 = sbr.rel (0) target = $region29
  $region28: #{_lambda_.33} parent=0 // pred_region
    _
  $region29: #{_lambda_.33} parent=0 // pred_fallthru
    _
  %v29 = vld [vmem:[%s1] sm:$0xf]
  %v30 = vld [vmem:[%s0] sm:$0xf]
  %v31 = vld [vmem:[%s0 + $0x4] sm:$0xf]
  %v32 = vld [vmem:[%s0 + $0x8] sm:$0xf]
  %v33 = vld [vmem:[%s0 + $0xc] sm:$0xf]
  %v34 = vld [vmem:[%s0 + $0x10] sm:$0xf]
  %v35 = vld [vmem:[%s0 + $0x14] sm:$0xf]
  %v36 = vld [vmem:[%s0 + $0x18] sm:$0xf]
  %v37 = vld [vmem:[%s0 + $0x1c] sm:$0xf]
  %v38 = vld [vmem:[%s3] sm:$0xff]
  %v39 = vld [vmem:[%s2] sm:$0xff]
  %v40 = vld [vmem:[%s2 + $0x8] sm:$0xff]
  %v41 = vld [vmem:[%s2 + $0x10] sm:$0xff]
  %v42 = vld [vmem:[%s2 + $0x18] sm:$0xff]
  %vm43 = vcmask 261120
  %v45 = vsel %vm43, %v38, 0
  %47 = vmatprep.subr.mxu0 0.0
  %48 = vmatpush1.msra.mxu0 %v39
  %49 = vmatprep.subr.mxu0 0.0
  %50 = vmatpush1.msra.mxu0 %v40
  %51 = vmatprep.subr.mxu0 0.0
  %52 = vmatpush1.msra.mxu0 %v41
  %53 = vmatprep.subr.mxu0 0.0
  %54 = vmatpush1.msra.mxu0 %v42
  %55 = vmatprep.subr.mxu0 0.0
  %56 = vmatpush1.msra.mxu0 0.0
  %57 = vmatprep.subr.mxu0 0.0
  %58 = vmatpush1.msra.mxu0 0.0
  %59 = vmatprep.subr.mxu0 0.0
  %60 = vmatpush1.msra.mxu0 0.0
  %61 = vmatprep.subr.mxu0 0.0
  %62 = vmatpush1.msra.mxu0 0.0
  %63 = vmatprep.subr.mxu0 0.0
  %64 = vmatpush1.msra.mxu0 0.0
  %65 = vmatprep.subr.mxu0 0.0
  %66 = vmatpush1.msra.mxu0 0.0
  %67 = vmatprep.subr.mxu0 0.0
  %68 = vmatpush1.msra.mxu0 0.0
  %69 = vmatprep.subr.mxu0 0.0
  %70 = vmatpush1.msra.mxu0 0.0
  %71 = vmatprep.subr.mxu0 0.0
  %72 = vmatpush1.msra.mxu0 0.0
  %73 = vmatprep.subr.mxu0 0.0
  %74 = vmatpush1.msra.mxu0 0.0
  %75 = vmatprep.subr.mxu0 0.0
  %76 = vmatpush1.msra.mxu0 0.0
  %77 = vmatprep.subr.mxu0 0.0
  %78 = vmatpush1.msra.mxu0 0.0
  %79 = vmatprep.subr.mxu0 0.0
  %80 = vmatpush1.msra.mxu0 0.0
  %81 = vmatprep.subr.mxu0 0.0
  %82 = vmatpush1.msra.mxu0 0.0
  %83 = vmatprep.subr.mxu0 0.0
  %84 = vmatpush1.msra.mxu0 0.0
  %85 = vmatprep.subr.mxu0 0.0
  %86 = vmatpush1.msra.mxu0 0.0
  %87 = vmatprep.subr.mxu0 0.0
  %88 = vmatpush1.msra.mxu0 0.0
  %89 = vmatprep.subr.mxu0 0.0
  %90 = vmatpush1.msra.mxu0 0.0
  %91 = vmatprep.subr.mxu0 0.0
  %92 = vmatpush1.msra.mxu0 0.0
  %93 = vmatprep.subr.mxu0 0.0
  %94 = vmatpush1.msra.mxu0 0.0
  %95 = vmatprep.subr.mxu0 0.0
  %96 = vmatpush1.msra.mxu0 0.0
  %97 = vmatprep.subr.mxu0 0.0
  %98 = vmatpush1.msra.mxu0 0.0
  %99 = vmatprep.subr.mxu0 0.0
  %100 = vmatpush1.msra.mxu0 0.0
  %101 = vmatprep.subr.mxu0 0.0
  %102 = vmatpush1.msra.mxu0 0.0
  %103 = vmatprep.subr.mxu0 0.0
  %104 = vmatpush1.msra.mxu0 0.0
  %105 = vmatprep.subr.mxu0 0.0
  %106 = vmatpush1.msra.mxu0 0.0
  %107 = vmatprep.subr.mxu0 0.0
  %108 = vmatpush1.msra.mxu0 0.0
  %109 = vmatprep.subr.mxu0 0.0
  %110 = vmatpush1.msra.mxu0 0.0
  %111 = vmatprep.mubr.f32.mxu0 0.0
  %112 = vmatmul.mubr.f32.gmra.mrb[0].mxu0 %v45
  %v113 = vpop.f32.mrb[0].mxu0
  %v114 = vadd.f32 0.0, %v113
  %v115 = vpop.f32.mrb[0].mxu0
  %116 = vdwg.mxu0
  %v125 = vunpack.c.l.b16 %v30
  %v126 = vunpack.c.l.b16 %v31
  %v127 = vunpack.c.l.b16 %v32
  %v128 = vunpack.c.l.b16 %v33
  %v129 = vunpack.c.l.b16 %v34
  %v130 = vunpack.c.l.b16 %v35
  %v131 = vunpack.c.l.b16 %v36
  %v132 = vunpack.c.l.b16 %v37
  %v133 = vpack.c.b16 %v126, %v125
  %v134 = vpack.c.b16 %v128, %v127
  %v135 = vpack.c.b16 %v130, %v129
  %v136 = vpack.c.b16 %v132, %v131
  %vm141 = vcmask 523264
  %v143 = vsel %vm141, %v29, 0
  %145 = vmatprep.subr.bf16.mxu0 0
  %146 = vmatpush1.bf16.msra.mxu0 %v133
  %147 = vmatprep.subr.bf16.mxu0 0
  %148 = vmatpush1.bf16.msra.mxu0 %v134
  %149 = vmatprep.subr.bf16.mxu0 0
  %150 = vmatpush1.bf16.msra.mxu0 %v135
  %151 = vmatprep.subr.bf16.mxu0 0
  %152 = vmatpush1.bf16.msra.mxu0 %v136
  %153 = vmatprep.subr.bf16.mxu0 0
  %154 = vmatpush1.bf16.msra.mxu0 0
  %155 = vmatprep.subr.bf16.mxu0 0
  %156 = vmatpush1.bf16.msra.mxu0 0
  %157 = vmatprep.subr.bf16.mxu0 0
  %158 = vmatpush1.bf16.msra.mxu0 0
  %159 = vmatprep.subr.bf16.mxu0 0
  %160 = vmatpush1.bf16.msra.mxu0 0
  %161 = vmatprep.subr.bf16.mxu0 0
  %162 = vmatpush1.bf16.msra.mxu0 0
  %163 = vmatprep.subr.bf16.mxu0 0
  %164 = vmatpush1.bf16.msra.mxu0 0
  %165 = vmatprep.subr.bf16.mxu0 0
  %166 = vmatpush1.bf16.msra.mxu0 0
  %167 = vmatprep.subr.bf16.mxu0 0
  %168 = vmatpush1.bf16.msra.mxu0 0
  %169 = vmatprep.subr.bf16.mxu0 0
  %170 = vmatpush1.bf16.msra.mxu0 0
  %171 = vmatprep.subr.bf16.mxu0 0
  %172 = vmatpush1.bf16.msra.mxu0 0
  %173 = vmatprep.subr.bf16.mxu0 0
  %174 = vmatpush1.bf16.msra.mxu0 0
  %175 = vmatprep.subr.bf16.mxu0 0
  %176 = vmatpush1.bf16.msra.mxu0 0
  %177 = vmatprep.mubr.bf16.mxu0 0
  %178 = vmatmul.mubr.bf16.gmra.mrb[0].mxu0 %v143
  %v179 = vpop.f32.mrb[0].mxu0
  %v180 = vadd.f32 %v114, %v179
  %v181 = vpop.f32.mrb[0].mxu0
  %v182 = vpop.f32.mrb[0].mxu0
  %v183 = vpop.f32.mrb[0].mxu0
  %184 = vdwg.mxu0
  %v185 = vld [vmem:[%s4] sm:$0xff]
  %187 = vset.pattern.permute.xlu0 0
  %188 = vperm.xlu0 %187, %v185
  %v189 = vpop.permute.xlu0 %188
  %v191 = vadd.f32 %v180, %v189
  %v192 = vmax.f32 %v191, 0.0
  %v193 = vld [vmem:[%s5] sm:$0x1]
  %v194 = vld [vmem:[#allocation2] sm:$0x1]
  %196 = vset.pattern.permute.xlu0 0
  %197 = vperm.xlu0 %196, %v194
  %v198 = vpop.permute.xlu0 %197
  %v200 = vlaneseq
  %v201 = vshrl.u32 %v200, 7
  %v202 = vsub.s32 0, %v201
  %v203 = vrot.slane %v198, %v202
  %vm204 = vcmask 64512
  %v206 = vsel %vm204, %v193, 0
  %208 = vmatprep.subr.mxu0 0.0
  %209 = vmatpush1.msra.mxu0 %v192
  %210 = vmatprep.subr.mxu0 0.0
  %211 = vmatpush1.msra.mxu0 0.0
  %212 = vmatprep.subr.mxu0 0.0
  %213 = vmatpush1.msra.mxu0 0.0
  %214 = vmatprep.subr.mxu0 0.0
  %215 = vmatpush1.msra.mxu0 0.0
  %216 = vmatprep.subr.mxu0 0.0
  %217 = vmatpush1.msra.mxu0 0.0
  %218 = vmatprep.subr.mxu0 0.0
  %219 = vmatpush1.msra.mxu0 0.0
  %220 = vmatprep.subr.mxu0 0.0
  %221 = vmatpush1.msra.mxu0 0.0
  %222 = vmatprep.subr.mxu0 0.0
  %223 = vmatpush1.msra.mxu0 0.0
  %224 = vmatprep.subr.mxu0 0.0
  %225 = vmatpush1.msra.mxu0 0.0
  %226 = vmatprep.subr.mxu0 0.0
  %227 = vmatpush1.msra.mxu0 0.0
  %228 = vmatprep.subr.mxu0 0.0
  %229 = vmatpush1.msra.mxu0 0.0
  %230 = vmatprep.subr.mxu0 0.0
  %231 = vmatpush1.msra.mxu0 0.0
  %232 = vmatprep.subr.mxu0 0.0
  %233 = vmatpush1.msra.mxu0 0.0
  %234 = vmatprep.subr.mxu0 0.0
  %235 = vmatpush1.msra.mxu0 0.0
  %236 = vmatprep.subr.mxu0 0.0
  %237 = vmatpush1.msra.mxu0 0.0
  %238 = vmatprep.subr.mxu0 0.0
  %239 = vmatpush1.msra.mxu0 0.0
  %240 = vmatprep.subr.mxu0 0.0
  %241 = vmatpush1.msra.mxu0 0.0
  %242 = vmatprep.subr.mxu0 0.0
  %243 = vmatpush1.msra.mxu0 0.0
  %244 = vmatprep.subr.mxu0 0.0
  %245 = vmatpush1.msra.mxu0 0.0
  %246 = vmatprep.subr.mxu0 0.0
  %247 = vmatpush1.msra.mxu0 0.0
  %248 = vmatprep.subr.mxu0 0.0
  %249 = vmatpush1.msra.mxu0 0.0
  %250 = vmatprep.subr.mxu0 0.0
  %251 = vmatpush1.msra.mxu0 0.0
  %252 = vmatprep.subr.mxu0 0.0
  %253 = vmatpush1.msra.mxu0 0.0
  %254 = vmatprep.subr.mxu0 0.0
  %255 = vmatpush1.msra.mxu0 0.0
  %256 = vmatprep.subr.mxu0 0.0
  %257 = vmatpush1.msra.mxu0 0.0
  %258 = vmatprep.subr.mxu0 0.0
  %259 = vmatpush1.msra.mxu0 0.0
  %260 = vmatprep.subr.mxu0 0.0
  %261 = vmatpush1.msra.mxu0 0.0
  %262 = vmatprep.subr.mxu0 0.0
  %263 = vmatpush1.msra.mxu0 0.0
  %264 = vmatprep.subr.mxu0 0.0
  %265 = vmatpush1.msra.mxu0 0.0
  %266 = vmatprep.subr.mxu0 0.0
  %267 = vmatpush1.msra.mxu0 0.0
  %268 = vmatprep.subr.mxu0 0.0
  %269 = vmatpush1.msra.mxu0 0.0
  %270 = vmatprep.subr.mxu0 0.0
  %271 = vmatpush1.msra.mxu0 0.0
  %272 = vmatprep.mubr.f32.mxu0 0.0
  %273 = vmatmul.mubr.f32.gmra.mrb[0].mxu0 %v206
  %v274 = vpop.f32.mrb[0].mxu0
  %v275 = vadd.f32 %v203, %v274
  %v276 = vpop.f32.mrb[0].mxu0
  %277 = vdwg.mxu0
  %v278 = vxor.u32 %v275, 2147483648
  %v279 = vmul.f32 %v278, 1.442695
  %v280 = vpow.pop %v279
  %v281 = vadd.f32 %v280, 1.0
  %v282 = vrcp.pop %v281
  %v283 = vmul.f32 1.0, %v282
  %vm284 = vcmask 253952
  %285 = vst.msk [vmem:[%s7] sm:$0x1] %vm284, %v283
  // Predicated region
  $region30: #{_lambda_.33} parent=0 // pred_check
    _
  $region31: #{_lambda_.33} parent=0 // pred_check_branch
    %287 = sbr.rel (0) target = $region33
  $region32: #{_lambda_.33} parent=0 // pred_region
    _
  $region33: #{_lambda_.33} parent=0 // pred_fallthru
    _
  // Predicated region
  $region34: #{_lambda_.33} parent=0 // pred_check
    _
  $region35: #{_lambda_.33} parent=0 // pred_check_branch
    %289 = sbr.rel (0) target = $region37
  $region36: #{_lambda_.33} parent=0 // pred_region
    _
  $region37: #{_lambda_.33} parent=0 // pred_fallthru
    _

// kernel: tile.10
$region0: #{tile.10}
  #allocation0 [shape = 's32[1]{0}', space=sflag, size = 0x4, scoped, tag = 'scoped memory for tile.10']
  %s0 = inlined_call_operand.vmem [shape: f32[16], index: 0, kind: input, shape index: {}]
  %s1 = inlined_call_operand.vmem [shape: f32[4,16], index: 1, kind: output, shape index: {}]
  // Predicated region
  $region2: #{tile.10} parent=0 // pred_check
    _
  $region3: #{tile.10} parent=0 // pred_check_branch
    %3 = sbr.rel (0) target = $region5
  $region4: #{tile.10} parent=0 // pred_region
    _
  $region5: #{tile.10} parent=0 // pred_fallthru
    _
  %v4 = vld [vmem:[%s0] ss:$0 sm:$0xff]
  %5 = vst [vmem:[%s1] sm:$0xf] %v4

// kernel: tile.0
$region0: #{tile.0}
  %s0 = inlined_call_operand.vmem [shape: f32[4,16], index: 0, kind: input, shape index: {}]
  %s1 = inlined_call_operand.vmem [shape: f32[64,1], index: 1, kind: output, shape index: {}]
  $region1: #{tile.0} parent=0
    #allocation0 [shape = 'u8[4096]{0}', space=vmem, size = 0x1000, scoped, tag = 'scoped mem for input reshape']
    %s3 = sshllo.u32 0, 4
    %v4 = vld [vmem:[%s0] sm:%s3]
    %5 = vst [vmem:[#allocation0] sm:%s3] %v4
    %v6 = vld [vmem:[#allocation0] sm:$0xf]
    %vm7 = vcmask 7168
    %8 = vst.msk [vmem:[%s1] ss:$16 sm:$0x3] %vm7, %v6
    %9 = vst.msk [vmem:[%s1] ss:$16 sm:$0xc] %vm7, %v6
    %v10 = vld [vmem:[#allocation0] sm:$0xf]
    %11 = vrot.lane.b32.xlu0 %v10, 127
    %v12 = vpop.permute.xlu0 %11
    %vm13 = vcmask 7168
    %s14 = scalar_lea.vmem %s1, 1
    %15 = vst.msk [vmem:[%s14] ss:$16 sm:$0x3] %vm13, %v12
    %s16 = scalar_lea.vmem %s1, 1
    %17 = vst.msk [vmem:[%s16] ss:$16 sm:$0xc] %vm13, %v12
    %v18 = vld [vmem:[#allocation0] sm:$0xf]
    %19 = vrot.lane.b32.xlu0 %v18, 126
    %v20 = vpop.permute.xlu0 %19
    %vm21 = vcmask 7168
    %s22 = scalar_lea.vmem %s1, 2
    %23 = vst.msk [vmem:[%s22] ss:$16 sm:$0x3] %vm21, %v20
    %s24 = scalar_lea.vmem %s1, 2
    %25 = vst.msk [vmem:[%s24] ss:$16 sm:$0xc] %vm21, %v20
    %v26 = vld [vmem:[#allocation0] sm:$0xf]
    %27 = vrot.lane.b32.xlu0 %v26, 125
    %v28 = vpop.permute.xlu0 %27
    %vm29 = vcmask 7168
    %s30 = scalar_lea.vmem %s1, 3
    %31 = vst.msk [vmem:[%s30] ss:$16 sm:$0x3] %vm29, %v28
    %s32 = scalar_lea.vmem %s1, 3
    %33 = vst.msk [vmem:[%s32] ss:$16 sm:$0xc] %vm29, %v28
    %v34 = vld [vmem:[#allocation0] sm:$0xf]
    %35 = vrot.lane.b32.xlu0 %v34, 124
    %v36 = vpop.permute.xlu0 %35
    %vm37 = vcmask 7168
    %s38 = scalar_lea.vmem %s1, 4
    %39 = vst.msk [vmem:[%s38] ss:$16 sm:$0x3] %vm37, %v36
    %s40 = scalar_lea.vmem %s1, 4
    %41 = vst.msk [vmem:[%s40] ss:$16 sm:$0xc] %vm37, %v36
    %v42 = vld [vmem:[#allocation0] sm:$0xf]
    %43 = vrot.lane.b32.xlu0 %v42, 123
    %v44 = vpop.permute.xlu0 %43
    %vm45 = vcmask 7168
    %s46 = scalar_lea.vmem %s1, 5
    %47 = vst.msk [vmem:[%s46] ss:$16 sm:$0x3] %vm45, %v44
    %s48 = scalar_lea.vmem %s1, 5
    %49 = vst.msk [vmem:[%s48] ss:$16 sm:$0xc] %vm45, %v44
    %v50 = vld [vmem:[#allocation0] sm:$0xf]
    %51 = vrot.lane.b32.xlu0 %v50, 122
    %v52 = vpop.permute.xlu0 %51
    %vm53 = vcmask 7168
    %s54 = scalar_lea.vmem %s1, 6
    %55 = vst.msk [vmem:[%s54] ss:$16 sm:$0x3] %vm53, %v52
    %s56 = scalar_lea.vmem %s1, 6
    %57 = vst.msk [vmem:[%s56] ss:$16 sm:$0xc] %vm53, %v52
    %v58 = vld [vmem:[#allocation0] sm:$0xf]
    %59 = vrot.lane.b32.xlu0 %v58, 121
    %v60 = vpop.permute.xlu0 %59
    %vm61 = vcmask 7168
    %s62 = scalar_lea.vmem %s1, 7
    %63 = vst.msk [vmem:[%s62] ss:$16 sm:$0x3] %vm61, %v60
    %s64 = scalar_lea.vmem %s1, 7
    %65 = vst.msk [vmem:[%s64] ss:$16 sm:$0xc] %vm61, %v60
    %v66 = vld [vmem:[#allocation0] sm:$0xf]
    %67 = vrot.lane.b32.xlu0 %v66, 120
    %v68 = vpop.permute.xlu0 %67
    %vm69 = vcmask 7168
    %s70 = scalar_lea.vmem %s1, 8
    %71 = vst.msk [vmem:[%s70] ss:$16 sm:$0x3] %vm69, %v68
    %s72 = scalar_lea.vmem %s1, 8
    %73 = vst.msk [vmem:[%s72] ss:$16 sm:$0xc] %vm69, %v68
    %v74 = vld [vmem:[#allocation0] sm:$0xf]
    %75 = vrot.lane.b32.xlu0 %v74, 119
    %v76 = vpop.permute.xlu0 %75
    %vm77 = vcmask 7168
    %s78 = scalar_lea.vmem %s1, 9
    %79 = vst.msk [vmem:[%s78] ss:$16 sm:$0x3] %vm77, %v76
    %s80 = scalar_lea.vmem %s1, 9
    %81 = vst.msk [vmem:[%s80] ss:$16 sm:$0xc] %vm77, %v76
    %v82 = vld [vmem:[#allocation0] sm:$0xf]
    %83 = vrot.lane.b32.xlu0 %v82, 118
    %v84 = vpop.permute.xlu0 %83
    %vm85 = vcmask 7168
    %s86 = scalar_lea.vmem %s1, 10
    %87 = vst.msk [vmem:[%s86] ss:$16 sm:$0x3] %vm85, %v84
    %s88 = scalar_lea.vmem %s1, 10
    %89 = vst.msk [vmem:[%s88] ss:$16 sm:$0xc] %vm85, %v84
    %v90 = vld [vmem:[#allocation0] sm:$0xf]
    %91 = vrot.lane.b32.xlu0 %v90, 117
    %v92 = vpop.permute.xlu0 %91
    %vm93 = vcmask 7168
    %s94 = scalar_lea.vmem %s1, 11
    %95 = vst.msk [vmem:[%s94] ss:$16 sm:$0x3] %vm93, %v92
    %s96 = scalar_lea.vmem %s1, 11
    %97 = vst.msk [vmem:[%s96] ss:$16 sm:$0xc] %vm93, %v92
    %v98 = vld [vmem:[#allocation0] sm:$0xf]
    %99 = vrot.lane.b32.xlu0 %v98, 116
    %v100 = vpop.permute.xlu0 %99
    %vm101 = vcmask 7168
    %s102 = scalar_lea.vmem %s1, 12
    %103 = vst.msk [vmem:[%s102] ss:$16 sm:$0x3] %vm101, %v100
    %s104 = scalar_lea.vmem %s1, 12
    %105 = vst.msk [vmem:[%s104] ss:$16 sm:$0xc] %vm101, %v100
    %v106 = vld [vmem:[#allocation0] sm:$0xf]
    %107 = vrot.lane.b32.xlu0 %v106, 115
    %v108 = vpop.permute.xlu0 %107
    %vm109 = vcmask 7168
    %s110 = scalar_lea.vmem %s1, 13
    %111 = vst.msk [vmem:[%s110] ss:$16 sm:$0x3] %vm109, %v108
    %s112 = scalar_lea.vmem %s1, 13
    %113 = vst.msk [vmem:[%s112] ss:$16 sm:$0xc] %vm109, %v108
    %v114 = vld [vmem:[#allocation0] sm:$0xf]
    %115 = vrot.lane.b32.xlu0 %v114, 114
    %v116 = vpop.permute.xlu0 %115
    %vm117 = vcmask 7168
    %s118 = scalar_lea.vmem %s1, 14
    %119 = vst.msk [vmem:[%s118] ss:$16 sm:$0x3] %vm117, %v116
    %s120 = scalar_lea.vmem %s1, 14
    %121 = vst.msk [vmem:[%s120] ss:$16 sm:$0xc] %vm117, %v116
    %v122 = vld [vmem:[#allocation0] sm:$0xf]
    %123 = vrot.lane.b32.xlu0 %v122, 113
    %v124 = vpop.permute.xlu0 %123
    %vm125 = vcmask 7168
    %s126 = scalar_lea.vmem %s1, 15
    %127 = vst.msk [vmem:[%s126] ss:$16 sm:$0x3] %vm125, %v124
    %s128 = scalar_lea.vmem %s1, 15
    %129 = vst.msk [vmem:[%s128] ss:$16 sm:$0xc] %vm125, %v124

// kernel: _lambda_.35
$region0: #{_lambda_.35}
  #allocation0 [shape = 'u32[]', space=smem, size = 0x4, offset = 0x4, fixed_abs, tag = 'smem constant byte address 0x4 - core index']
  #allocation1 [shape = 'u32[144,128]{1,0:T(1,128)}', space=vmem, size = 0x12000, scoped, tag = 'internal scratch']
  %s0 = inlined_call_operand.vmem [shape: bf16[288,32], index: 0, kind: input, shape index: {}]
  %s1 = inlined_call_operand.vmem [shape: bf16[64,288], index: 1, kind: input, shape index: {}]
  %s2 = inlined_call_operand.vmem [shape: f32[64,1], index: 2, kind: input, shape index: {}]
  %s3 = inlined_call_operand.vmem [shape: f32[64,32], index: 3, kind: output, shape index: {}]
  %s4 = sld [smem:[#allocation0]]
  $region22: #{_lambda_.35} parent=0
    _
  %s6 = ssub.s32 1, %s4
  %s7 = scalar_select 0, %s6, %s4
  // Predicated region
  $region2: #{_lambda_.35} parent=0 // pred_check
    _
  $region3: #{_lambda_.35} parent=0 // pred_check_branch
    %9 = sbr.rel (0) target = $region5
  $region4: #{_lambda_.35} parent=0 // pred_region
    _
  $region5: #{_lambda_.35} parent=0 // pred_fallthru
    _
  // Predicated region
  $region6: #{_lambda_.35} parent=0 // pred_check
    _
  $region7: #{_lambda_.35} parent=0 // pred_check_branch
    %11 = sbr.rel (0) target = $region9
  $region8: #{_lambda_.35} parent=0 // pred_region
    _
  $region9: #{_lambda_.35} parent=0 // pred_fallthru
    _
  // Predicated region
  $region10: #{_lambda_.35} parent=0 // pred_check
    _
  $region11: #{_lambda_.35} parent=0 // pred_check_branch
    %13 = sbr.rel (0) target = $region13
  $region12: #{_lambda_.35} parent=0 // pred_region
    _
  $region13: #{_lambda_.35} parent=0 // pred_fallthru
    _
  %v15 = vld [vmem:[%s1] sm:$0xff]
  %v16 = vld [vmem:[%s1 + $0x8] sm:$0xf]
  %v17 = vld [vmem:[%s1 + $0xc] sm:$0xff]
  %v18 = vld [vmem:[%s1 + $0x14] sm:$0xf]
  %v19 = vld [vmem:[%s1 + $0x18] sm:$0xff]
  %v20 = vld [vmem:[%s1 + $0x20] sm:$0xf]
  %v21 = vld [vmem:[%s1 + $0x24] sm:$0xff]
  %v22 = vld [vmem:[%s1 + $0x2c] sm:$0xf]
  %v23 = vld [vmem:[%s1 + $0x30] sm:$0xff]
  %v24 = vld [vmem:[%s1 + $0x38] sm:$0xf]
  %v25 = vld [vmem:[%s1 + $0x3c] sm:$0xff]
  %v26 = vld [vmem:[%s1 + $0x44] sm:$0xf]
  %v27 = vld [vmem:[%s1 + $0x48] sm:$0xff]
  %v28 = vld [vmem:[%s1 + $0x50] sm:$0xf]
  %v29 = vld [vmem:[%s1 + $0x54] sm:$0xff]
  %v30 = vld [vmem:[%s1 + $0x5c] sm:$0xf]
  %v31 = vld [vmem:[%s0] sm:$0xf]
  %v32 = vld [vmem:[%s0 + $0x4] sm:$0xf]
  %v33 = vld [vmem:[%s0 + $0x8] sm:$0xf]
  %v34 = vld [vmem:[%s0 + $0xc] sm:$0xf]
  %v35 = vld [vmem:[%s0 + $0x10] sm:$0xf]
  %v36 = vld [vmem:[%s0 + $0x14] sm:$0xf]
  %v37 = vld [vmem:[%s0 + $0x18] sm:$0xf]
  %v38 = vld [vmem:[%s0 + $0x1c] sm:$0xf]
  %v39 = vld [vmem:[%s0 + $0x20] sm:$0xf]
  %v40 = vld [vmem:[%s0 + $0x24] sm:$0xf]
  %v41 = vld [vmem:[%s0 + $0x28] sm:$0xf]
  %v42 = vld [vmem:[%s0 + $0x2c] sm:$0xf]
  %v43 = vld [vmem:[%s0 + $0x30] sm:$0xf]
  %v44 = vld [vmem:[%s0 + $0x34] sm:$0xf]
  %v45 = vld [vmem:[%s0 + $0x38] sm:$0xf]
  %v46 = vld [vmem:[%s0 + $0x3c] sm:$0xf]
  %v47 = vld [vmem:[%s0 + $0x40] sm:$0xf]
  %v48 = vld [vmem:[%s0 + $0x44] sm:$0xf]
  %v49 = vld [vmem:[%s0 + $0x48] sm:$0xf]
  %v50 = vld [vmem:[%s0 + $0x4c] sm:$0xf]
  %v51 = vld [vmem:[%s0 + $0x50] sm:$0xf]
  %v52 = vld [vmem:[%s0 + $0x54] sm:$0xf]
  %v53 = vld [vmem:[%s0 + $0x58] sm:$0xf]
  %v54 = vld [vmem:[%s0 + $0x5c] sm:$0xf]
  %v55 = vld [vmem:[%s0 + $0x60] sm:$0xf]
  %v56 = vld [vmem:[%s0 + $0x64] sm:$0xf]
  %v57 = vld [vmem:[%s0 + $0x68] sm:$0xf]
  %v58 = vld [vmem:[%s0 + $0x6c] sm:$0xf]
  %v59 = vld [vmem:[%s0 + $0x70] sm:$0xf]
  %v60 = vld [vmem:[%s0 + $0x74] sm:$0xf]
  %v61 = vld [vmem:[%s0 + $0x78] sm:$0xf]
  %v62 = vld [vmem:[%s0 + $0x7c] sm:$0xf]
  %v63 = vld [vmem:[%s0 + $0x80] sm:$0xf]
  %v64 = vld [vmem:[%s0 + $0x84] sm:$0xf]
  %v65 = vld [vmem:[%s0 + $0x88] sm:$0xf]
  %v66 = vld [vmem:[%s0 + $0x8c] sm:$0xf]
  %v67 = vld [vmem:[%s2] sm:$0xff]
  %v68 = vld [vmem:[%s2 + $0x8] sm:$0xff]
  %v69 = vld [vmem:[%s2 + $0x10] sm:$0xff]
  %v70 = vld [vmem:[%s2 + $0x18] sm:$0xff]
  %v71 = vld [vmem:[%s2 + $0x20] sm:$0xff]
  %v72 = vld [vmem:[%s2 + $0x28] sm:$0xff]
  %v73 = vld [vmem:[%s2 + $0x30] sm:$0xff]
  %v74 = vld [vmem:[%s2 + $0x38] sm:$0xff]
  %76 = vset.pattern.permute.xlu0 0
  %77 = vperm.xlu0 %76, %v67
  %v78 = vpop.permute.xlu0 %77
  %81 = vset.pattern.permute.xlu0 0
  %82 = vperm.xlu0 %81, %v68
  %v83 = vpop.permute.xlu0 %82
  %86 = vset.pattern.permute.xlu0 0
  %87 = vperm.xlu0 %86, %v69
  %v88 = vpop.permute.xlu0 %87
  %91 = vset.pattern.permute.xlu0 0
  %92 = vperm.xlu0 %91, %v70
  %v93 = vpop.permute.xlu0 %92
  %96 = vset.pattern.permute.xlu0 0
  %97 = vperm.xlu0 %96, %v71
  %v98 = vpop.permute.xlu0 %97
  %101 = vset.pattern.permute.xlu0 0
  %102 = vperm.xlu0 %101, %v72
  %v103 = vpop.permute.xlu0 %102
  %106 = vset.pattern.permute.xlu0 0
  %107 = vperm.xlu0 %106, %v73
  %v108 = vpop.permute.xlu0 %107
  %111 = vset.pattern.permute.xlu0 0
  %112 = vperm.xlu0 %111, %v74
  %v113 = vpop.permute.xlu0 %112
  %v131 = vunpack.c.l.b16 %v15
  %v132 = vunpack.c.h.b16 %v15
  %v133 = vunpack.c.l.b16 %v16
  %v134 = vunpack.c.l.b16 %v17
  %v135 = vunpack.c.h.b16 %v17
  %v136 = vunpack.c.l.b16 %v18
  %v137 = vunpack.c.l.b16 %v19
  %v138 = vunpack.c.h.b16 %v19
  %v139 = vunpack.c.l.b16 %v20
  %v140 = vunpack.c.l.b16 %v21
  %v141 = vunpack.c.h.b16 %v21
  %v142 = vunpack.c.l.b16 %v22
  %v143 = vunpack.c.l.b16 %v23
  %v144 = vunpack.c.h.b16 %v23
  %v145 = vunpack.c.l.b16 %v24
  %v146 = vunpack.c.l.b16 %v25
  %v147 = vunpack.c.h.b16 %v25
  %v148 = vunpack.c.l.b16 %v26
  %v149 = vunpack.c.l.b16 %v27
  %v150 = vunpack.c.h.b16 %v27
  %v151 = vunpack.c.l.b16 %v28
  %v152 = vunpack.c.l.b16 %v29
  %v153 = vunpack.c.h.b16 %v29
  %v154 = vunpack.c.l.b16 %v30
  %v155 = vpack.c.b16 %v134, %v131
  %v156 = vpack.c.b16 %v135, %v132
  %v157 = vpack.c.b16 %v136, %v133
  %v158 = vpack.c.b16 %v140, %v137
  %v159 = vpack.c.b16 %v141, %v138
  %v160 = vpack.c.b16 %v142, %v139
  %v161 = vpack.c.b16 %v146, %v143
  %v162 = vpack.c.b16 %v147, %v144
  %v163 = vpack.c.b16 %v148, %v145
  %v164 = vpack.c.b16 %v152, %v149
  %v165 = vpack.c.b16 %v153, %v150
  %v166 = vpack.c.b16 %v154, %v151
  %v211 = vunpack.c.l.b16 %v31
  %v212 = vunpack.c.l.b16 %v32
  %v213 = vunpack.c.l.b16 %v33
  %v214 = vunpack.c.l.b16 %v34
  %v215 = vunpack.c.l.b16 %v35
  %v216 = vunpack.c.l.b16 %v36
  %v217 = vunpack.c.l.b16 %v37
  %v218 = vunpack.c.l.b16 %v38
  %v219 = vunpack.c.l.b16 %v39
  %v220 = vunpack.c.l.b16 %v40
  %v221 = vunpack.c.l.b16 %v41
  %v222 = vunpack.c.l.b16 %v42
  %v223 = vunpack.c.l.b16 %v43
  %v224 = vunpack.c.l.b16 %v44
  %v225 = vunpack.c.l.b16 %v45
  %v226 = vunpack.c.l.b16 %v46
  %v227 = vunpack.c.l.b16 %v47
  %v228 = vunpack.c.l.b16 %v48
  %v229 = vunpack.c.l.b16 %v49
  %v230 = vunpack.c.l.b16 %v50
  %v231 = vunpack.c.l.b16 %v51
  %v232 = vunpack.c.l.b16 %v52
  %v233 = vunpack.c.l.b16 %v53
  %v234 = vunpack.c.l.b16 %v54
  %v235 = vunpack.c.l.b16 %v55
  %v236 = vunpack.c.l.b16 %v56
  %v237 = vunpack.c.l.b16 %v57
  %v238 = vunpack.c.l.b16 %v58
  %v239 = vunpack.c.l.b16 %v59
  %v240 = vunpack.c.l.b16 %v60
  %v241 = vunpack.c.l.b16 %v61
  %v242 = vunpack.c.l.b16 %v62
  %v243 = vunpack.c.l.b16 %v63
  %v244 = vunpack.c.l.b16 %v64
  %v245 = vunpack.c.l.b16 %v65
  %v246 = vunpack.c.l.b16 %v66
  %v247 = vpack.c.b16 %v212, %v211
  %v248 = vpack.c.b16 %v214, %v213
  %v249 = vpack.c.b16 %v216, %v215
  %v250 = vpack.c.b16 %v218, %v217
  %v251 = vpack.c.b16 %v220, %v219
  %v252 = vpack.c.b16 %v222, %v221
  %v253 = vpack.c.b16 %v224, %v223
  %v254 = vpack.c.b16 %v226, %v225
  %v255 = vpack.c.b16 %v228, %v227
  %v256 = vpack.c.b16 %v230, %v229
  %v257 = vpack.c.b16 %v232, %v231
  %v258 = vpack.c.b16 %v234, %v233
  %v259 = vpack.c.b16 %v236, %v235
  %v260 = vpack.c.b16 %v238, %v237
  %v261 = vpack.c.b16 %v240, %v239
  %v262 = vpack.c.b16 %v242, %v241
  %v263 = vpack.c.b16 %v244, %v243
  %v264 = vpack.c.b16 %v246, %v245
  %vm283 = vcmask 261120
  %v285 = vsel %vm283, %v157, 0
  %v288 = vsel %vm283, %v160, 0
  %v291 = vsel %vm283, %v163, 0
  %v294 = vsel %vm283, %v166, 0
  %296 = vmatprep.subr.bf16.mxu0 0
  %297 = vmatpush1.bf16.msra.mxu0 %v247
  %298 = vmatprep.subr.bf16.mxu0 0
  %299 = vmatpush1.bf16.msra.mxu0 %v248
  %300 = vmatprep.subr.bf16.mxu0 0
  %301 = vmatpush1.bf16.msra.mxu0 %v249
  %302 = vmatprep.subr.bf16.mxu0 0
  %303 = vmatpush1.bf16.msra.mxu0 %v250
  %304 = vmatprep.subr.bf16.mxu0 0
  %305 = vmatpush1.bf16.msra.mxu0 %v251
  %306 = vmatprep.subr.bf16.mxu0 0
  %307 = vmatpush1.bf16.msra.mxu0 %v252
  %308 = vmatprep.subr.bf16.mxu0 0
  %309 = vmatpush1.bf16.msra.mxu0 %v253
  %310 = vmatprep.subr.bf16.mxu0 0
  %311 = vmatpush1.bf16.msra.mxu0 %v254
  %312 = vmatprep.subr.bf16.mxu0 0
  %313 = vmatpush1.bf16.msra.mxu0 %v255
  %314 = vmatprep.subr.bf16.mxu0 0
  %315 = vmatpush1.bf16.msra.mxu0 %v256
  %316 = vmatprep.subr.bf16.mxu0 0
  %317 = vmatpush1.bf16.msra.mxu0 %v257
  %318 = vmatprep.subr.bf16.mxu0 0
  %319 = vmatpush1.bf16.msra.mxu0 %v258
  %320 = vmatprep.subr.bf16.mxu0 0
  %321 = vmatpush1.bf16.msra.mxu0 %v259
  %322 = vmatprep.subr.bf16.mxu0 0
  %323 = vmatpush1.bf16.msra.mxu0 %v260
  %324 = vmatprep.subr.bf16.mxu0 0
  %325 = vmatpush1.bf16.msra.mxu0 %v261
  %326 = vmatprep.subr.bf16.mxu0 0
  %327 = vmatpush1.bf16.msra.mxu0 %v262
  %328 = vmatprep.mubr.bf16.mxu0 %v156
  %329 = vmatmul.mubr.bf16.gmra.mrb[0].mxu0 %v155
  %v330 = vpop.f32.mrb[0].mxu0
  %v331 = vadd.f32 %v78, %v330
  %v332 = vpop.f32.mrb[0].mxu0
  %v333 = vpop.f32.mrb[0].mxu0
  %v334 = vadd.f32 %v83, %v333
  %v335 = vpop.f32.mrb[0].mxu0
  %336 = vmatprep.mubr.bf16.mxu0 %v159
  %337 = vmatmul.mubr.bf16.gmra.mrb[0].mxu0 %v158
  %v338 = vpop.f32.mrb[0].mxu0
  %v339 = vadd.f32 %v88, %v338
  %v340 = vpop.f32.mrb[0].mxu0
  %v341 = vpop.f32.mrb[0].mxu0
  %v342 = vadd.f32 %v93, %v341
  %v343 = vpop.f32.mrb[0].mxu0
  %344 = vmatprep.mubr.bf16.mxu0 %v162
  %345 = vmatmul.mubr.bf16.gmra.mrb[0].mxu0 %v161
  %v346 = vpop.f32.mrb[0].mxu0
  %v347 = vadd.f32 %v98, %v346
  %v348 = vpop.f32.mrb[0].mxu0
  %v349 = vpop.f32.mrb[0].mxu0
  %v350 = vadd.f32 %v103, %v349
  %v351 = vpop.f32.mrb[0].mxu0
  %352 = vmatprep.mubr.bf16.mxu0 %v165
  %353 = vmatmul.mubr.bf16.gmra.mrb[0].mxu0 %v164
  %v354 = vpop.f32.mrb[0].mxu0
  %v355 = vadd.f32 %v108, %v354
  %v356 = vpop.f32.mrb[0].mxu0
  %v357 = vpop.f32.mrb[0].mxu0
  %v358 = vadd.f32 %v113, %v357
  %v359 = vpop.f32.mrb[0].mxu0
  %360 = vdwg.mxu0
  %361 = vmatprep.subr.bf16.mxu0 0
  %362 = vmatpush1.bf16.msra.mxu0 %v263
  %363 = vmatprep.subr.bf16.mxu0 0
  %364 = vmatpush1.bf16.msra.mxu0 %v264
  %365 = vmatprep.subr.bf16.mxu0 0
  %366 = vmatpush1.bf16.msra.mxu0 0
  %367 = vmatprep.subr.bf16.mxu0 0
  %368 = vmatpush1.bf16.msra.mxu0 0
  %369 = vmatprep.subr.bf16.mxu0 0
  %370 = vmatpush1.bf16.msra.mxu0 0
  %371 = vmatprep.subr.bf16.mxu0 0
  %372 = vmatpush1.bf16.msra.mxu0 0
  %373 = vmatprep.subr.bf16.mxu0 0
  %374 = vmatpush1.bf16.msra.mxu0 0
  %375 = vmatprep.subr.bf16.mxu0 0
  %376 = vmatpush1.bf16.msra.mxu0 0
  %377 = vmatprep.subr.bf16.mxu0 0
  %378 = vmatpush1.bf16.msra.mxu0 0
  %379 = vmatprep.subr.bf16.mxu0 0
  %380 = vmatpush1.bf16.msra.mxu0 0
  %381 = vmatprep.subr.bf16.mxu0 0
  %382 = vmatpush1.bf16.msra.mxu0 0
  %383 = vmatprep.subr.bf16.mxu0 0
  %384 = vmatpush1.bf16.msra.mxu0 0
  %385 = vmatprep.subr.bf16.mxu0 0
  %386 = vmatpush1.bf16.msra.mxu0 0
  %387 = vmatprep.subr.bf16.mxu0 0
  %388 = vmatpush1.bf16.msra.mxu0 0
  %389 = vmatprep.subr.bf16.mxu0 0
  %390 = vmatpush1.bf16.msra.mxu0 0
  %391 = vmatprep.subr.bf16.mxu0 0
  %392 = vmatpush1.bf16.msra.mxu0 0
  %393 = vmatprep.mubr.bf16.mxu0 0
  %394 = vmatmul.mubr.bf16.gmra.mrb[0].mxu0 %v285
  %v395 = vpop.f32.mrb[0].mxu0
  %v396 = vadd.f32 %v331, %v395
  %v397 = vpop.f32.mrb[0].mxu0
  %v398 = vpop.f32.mrb[0].mxu0
  %v399 = vadd.f32 %v334, %v398
  %v400 = vpop.f32.mrb[0].mxu0
  %401 = vmatprep.mubr.bf16.mxu0 0
  %402 = vmatmul.mubr.bf16.gmra.mrb[0].mxu0 %v288
  %v403 = vpop.f32.mrb[0].mxu0
  %v404 = vadd.f32 %v339, %v403
  %v405 = vpop.f32.mrb[0].mxu0
  %v406 = vpop.f32.mrb[0].mxu0
  %v407 = vadd.f32 %v342, %v406
  %v408 = vpop.f32.mrb[0].mxu0
  %409 = vmatprep.mubr.bf16.mxu0 0
  %410 = vmatmul.mubr.bf16.gmra.mrb[0].mxu0 %v291
  %v411 = vpop.f32.mrb[0].mxu0
  %v412 = vadd.f32 %v347, %v411
  %v413 = vpop.f32.mrb[0].mxu0
  %v414 = vpop.f32.mrb[0].mxu0
  %v415 = vadd.f32 %v350, %v414
  %v416 = vpop.f32.mrb[0].mxu0
  %417 = vmatprep.mubr.bf16.mxu0 0
  %418 = vmatmul.mubr.bf16.gmra.mrb[0].mxu0 %v294
  %v419 = vpop.f32.mrb[0].mxu0
  %v420 = vadd.f32 %v355, %v419
  %v421 = vpop.f32.mrb[0].mxu0
  %v422 = vpop.f32.mrb[0].mxu0
  %v423 = vadd.f32 %v358, %v422
  %v424 = vpop.f32.mrb[0].mxu0
  %425 = vdwg.mxu0
  %426 = vst.msk [vmem:[%s3] sm:$0xff] %vm283, %v396
  %427 = vst.msk [vmem:[%s3 + $0x8] sm:$0xff] %vm283, %v399
  %428 = vst.msk [vmem:[%s3 + $0x10] sm:$0xff] %vm283, %v404
  %429 = vst.msk [vmem:[%s3 + $0x18] sm:$0xff] %vm283, %v407
  %430 = vst.msk [vmem:[%s3 + $0x20] sm:$0xff] %vm283, %v412
  %431 = vst.msk [vmem:[%s3 + $0x28] sm:$0xff] %vm283, %v415
  %432 = vst.msk [vmem:[%s3 + $0x30] sm:$0xff] %vm283, %v420
  %433 = vst.msk [vmem:[%s3 + $0x38] sm:$0xff] %vm283, %v423
  // Predicated region
  $region14: #{_lambda_.35} parent=0 // pred_check
    _
  $region15: #{_lambda_.35} parent=0 // pred_check_branch
    %435 = sbr.rel (0) target = $region17
  $region16: #{_lambda_.35} parent=0 // pred_region
    _
  $region17: #{_lambda_.35} parent=0 // pred_fallthru
    _
  // Predicated region
  $region18: #{_lambda_.35} parent=0 // pred_check
    _
  $region19: #{_lambda_.35} parent=0 // pred_check_branch
    %437 = sbr.rel (0) target = $region21
  $region20: #{_lambda_.35} parent=0 // pred_region
    _
  $region21: #{_lambda_.35} parent=0 // pred_fallthru
    _

// kernel: _lambda_.36
$region0: #{_lambda_.36}
  #allocation0 [shape = 'u32[]', space=smem, size = 0x4, offset = 0x4, fixed_abs, tag = 'smem constant byte address 0x4 - core index']
  #allocation1 [shape = 'u32[144,128]{1,0:T(1,128)}', space=vmem, size = 0x12000, scoped, tag = 'internal scratch']
  %s0 = inlined_call_operand.vmem [shape: bf16[288,128], index: 0, kind: input, shape index: {}]
  %s1 = inlined_call_operand.vmem [shape: bf16[16,288], index: 1, kind: input, shape index: {}]
  %s2 = inlined_call_operand.vmem [shape: f32[16,1], index: 2, kind: input, shape index: {}]
  %s3 = inlined_call_operand.vmem [shape: f32[16,128], index: 3, kind: output, shape index: {}]
  %s4 = sld [smem:[#allocation0]]
  $region22: #{_lambda_.36} parent=0
    _
  %s6 = ssub.s32 1, %s4
  %s7 = scalar_select 0, %s6, %s4
  // Predicated region
  $region2: #{_lambda_.36} parent=0 // pred_check
    _
  $region3: #{_lambda_.36} parent=0 // pred_check_branch
    %9 = sbr.rel (0) target = $region5
  $region4: #{_lambda_.36} parent=0 // pred_region
    _
  $region5: #{_lambda_.36} parent=0 // pred_fallthru
    _
  // Predicated region
  $region6: #{_lambda_.36} parent=0 // pred_check
    _
  $region7: #{_lambda_.36} parent=0 // pred_check_branch
    %11 = sbr.rel (0) target = $region9
  $region8: #{_lambda_.36} parent=0 // pred_region
    _
  $region9: #{_lambda_.36} parent=0 // pred_fallthru
    _
  // Predicated region
  $region10: #{_lambda_.36} parent=0 // pred_check
    _
  $region11: #{_lambda_.36} parent=0 // pred_check_branch
    %13 = sbr.rel (0) target = $region13
  $region12: #{_lambda_.36} parent=0 // pred_region
    _
  $region13: #{_lambda_.36} parent=0 // pred_fallthru
    _
  %v15 = vld [vmem:[%s1] sm:$0xff]
  %v16 = vld [vmem:[%s1 + $0x8] sm:$0xf]
  %v17 = vld [vmem:[%s1 + $0xc] sm:$0xff]
  %v18 = vld [vmem:[%s1 + $0x14] sm:$0xf]
  %v19 = vld [vmem:[%s0] sm:$0xf]
  %v20 = vld [vmem:[%s0 + $0x4] sm:$0xf]
  %v21 = vld [vmem:[%s0 + $0x8] sm:$0xf]
  %v22 = vld [vmem:[%s0 + $0xc] sm:$0xf]
  %v23 = vld [vmem:[%s0 + $0x10] sm:$0xf]
  %v24 = vld [vmem:[%s0 + $0x14] sm:$0xf]
  %v25 = vld [vmem:[%s0 + $0x18] sm:$0xf]
  %v26 = vld [vmem:[%s0 + $0x1c] sm:$0xf]
  %v27 = vld [vmem:[%s0 + $0x20] sm:$0xf]
  %v28 = vld [vmem:[%s0 + $0x24] sm:$0xf]
  %v29 = vld [vmem:[%s0 + $0x28] sm:$0xf]
  %v30 = vld [vmem:[%s0 + $0x2c] sm:$0xf]
  %v31 = vld [vmem:[%s0 + $0x30] sm:$0xf]
  %v32 = vld [vmem:[%s0 + $0x34] sm:$0xf]
  %v33 = vld [vmem:[%s0 + $0x38] sm:$0xf]
  %v34 = vld [vmem:[%s0 + $0x3c] sm:$0xf]
  %v35 = vld [vmem:[%s0 + $0x40] sm:$0xf]
  %v36 = vld [vmem:[%s0 + $0x44] sm:$0xf]
  %v37 = vld [vmem:[%s0 + $0x48] sm:$0xf]
  %v38 = vld [vmem:[%s0 + $0x4c] sm:$0xf]
  %v39 = vld [vmem:[%s0 + $0x50] sm:$0xf]
  %v40 = vld [vmem:[%s0 + $0x54] sm:$0xf]
  %v41 = vld [vmem:[%s0 + $0x58] sm:$0xf]
  %v42 = vld [vmem:[%s0 + $0x5c] sm:$0xf]
  %v43 = vld [vmem:[%s0 + $0x60] sm:$0xf]
  %v44 = vld [vmem:[%s0 + $0x64] sm:$0xf]
  %v45 = vld [vmem:[%s0 + $0x68] sm:$0xf]
  %v46 = vld [vmem:[%s0 + $0x6c] sm:$0xf]
  %v47 = vld [vmem:[%s0 + $0x70] sm:$0xf]
  %v48 = vld [vmem:[%s0 + $0x74] sm:$0xf]
  %v49 = vld [vmem:[%s0 + $0x78] sm:$0xf]
  %v50 = vld [vmem:[%s0 + $0x7c] sm:$0xf]
  %v51 = vld [vmem:[%s0 + $0x80] sm:$0xf]
  %v52 = vld [vmem:[%s0 + $0x84] sm:$0xf]
  %v53 = vld [vmem:[%s0 + $0x88] sm:$0xf]
  %v54 = vld [vmem:[%s0 + $0x8c] sm:$0xf]
  %v55 = vld [vmem:[%s2] sm:$0xff]
  %v56 = vld [vmem:[%s2 + $0x8] sm:$0xff]
  %58 = vset.pattern.permute.xlu0 0
  %59 = vperm.xlu0 %58, %v55
  %v60 = vpop.permute.xlu0 %59
  %63 = vset.pattern.permute.xlu0 0
  %64 = vperm.xlu0 %63, %v56
  %v65 = vpop.permute.xlu0 %64
  %v71 = vunpack.c.l.b16 %v15
  %v72 = vunpack.c.h.b16 %v15
  %v73 = vunpack.c.l.b16 %v16
  %v74 = vunpack.c.l.b16 %v17
  %v75 = vunpack.c.h.b16 %v17
  %v76 = vunpack.c.l.b16 %v18
  %v77 = vpack.c.b16 %v74, %v71
  %v78 = vpack.c.b16 %v75, %v72
  %v79 = vpack.c.b16 %v76, %v73
  %v118 = vunpack.c.l.b16 %v19
  %v119 = vunpack.c.l.b16 %v20
  %v120 = vunpack.c.l.b16 %v21
  %v121 = vunpack.c.l.b16 %v22
  %v122 = vunpack.c.l.b16 %v23
  %v123 = vunpack.c.l.b16 %v24
  %v124 = vunpack.c.l.b16 %v25
  %v125 = vunpack.c.l.b16 %v26
  %v126 = vunpack.c.l.b16 %v27
  %v127 = vunpack.c.l.b16 %v28
  %v128 = vunpack.c.l.b16 %v29
  %v129 = vunpack.c.l.b16 %v30
  %v130 = vunpack.c.l.b16 %v31
  %v131 = vunpack.c.l.b16 %v32
  %v132 = vunpack.c.l.b16 %v33
  %v133 = vunpack.c.l.b16 %v34
  %v134 = vunpack.c.l.b16 %v35
  %v135 = vunpack.c.l.b16 %v36
  %v136 = vunpack.c.l.b16 %v37
  %v137 = vunpack.c.l.b16 %v38
  %v138 = vunpack.c.l.b16 %v39
  %v139 = vunpack.c.l.b16 %v40
  %v140 = vunpack.c.l.b16 %v41
  %v141 = vunpack.c.l.b16 %v42
  %v142 = vunpack.c.l.b16 %v43
  %v143 = vunpack.c.l.b16 %v44
  %v144 = vunpack.c.l.b16 %v45
  %v145 = vunpack.c.l.b16 %v46
  %v146 = vunpack.c.l.b16 %v47
  %v147 = vunpack.c.l.b16 %v48
  %v148 = vunpack.c.l.b16 %v49
  %v149 = vunpack.c.l.b16 %v50
  %v150 = vunpack.c.l.b16 %v51
  %v151 = vunpack.c.l.b16 %v52
  %v152 = vunpack.c.l.b16 %v53
  %v153 = vunpack.c.l.b16 %v54
  %v154 = vpack.c.b16 %v119, %v118
  %v155 = vpack.c.b16 %v121, %v120
  %v156 = vpack.c.b16 %v123, %v122
  %v157 = vpack.c.b16 %v125, %v124
  %v158 = vpack.c.b16 %v127, %v126
  %v159 = vpack.c.b16 %v129, %v128
  %v160 = vpack.c.b16 %v131, %v130
  %v161 = vpack.c.b16 %v133, %v132
  %v162 = vpack.c.b16 %v135, %v134
  %v163 = vpack.c.b16 %v137, %v136
  %v164 = vpack.c.b16 %v139, %v138
  %v165 = vpack.c.b16 %v141, %v140
  %v166 = vpack.c.b16 %v143, %v142
  %v167 = vpack.c.b16 %v145, %v144
  %v168 = vpack.c.b16 %v147, %v146
  %v169 = vpack.c.b16 %v149, %v148
  %v170 = vpack.c.b16 %v151, %v150
  %v171 = vpack.c.b16 %v153, %v152
  %vm190 = vcmask 261120
  %v192 = vsel %vm190, %v79, 0
  %194 = vmatprep.subr.bf16.mxu0 0
  %195 = vmatpush1.bf16.msra.mxu0 %v154
  %196 = vmatprep.subr.bf16.mxu0 0
  %197 = vmatpush1.bf16.msra.mxu0 %v155
  %198 = vmatprep.subr.bf16.mxu0 0
  %199 = vmatpush1.bf16.msra.mxu0 %v156
  %200 = vmatprep.subr.bf16.mxu0 0
  %201 = vmatpush1.bf16.msra.mxu0 %v157
  %202 = vmatprep.subr.bf16.mxu0 0
  %203 = vmatpush1.bf16.msra.mxu0 %v158
  %204 = vmatprep.subr.bf16.mxu0 0
  %205 = vmatpush1.bf16.msra.mxu0 %v159
  %206 = vmatprep.subr.bf16.mxu0 0
  %207 = vmatpush1.bf16.msra.mxu0 %v160
  %208 = vmatprep.subr.bf16.mxu0 0
  %209 = vmatpush1.bf16.msra.mxu0 %v161
  %210 = vmatprep.subr.bf16.mxu0 0
  %211 = vmatpush1.bf16.msra.mxu0 %v162
  %212 = vmatprep.subr.bf16.mxu0 0
  %213 = vmatpush1.bf16.msra.mxu0 %v163
  %214 = vmatprep.subr.bf16.mxu0 0
  %215 = vmatpush1.bf16.msra.mxu0 %v164
  %216 = vmatprep.subr.bf16.mxu0 0
  %217 = vmatpush1.bf16.msra.mxu0 %v165
  %218 = vmatprep.subr.bf16.mxu0 0
  %219 = vmatpush1.bf16.msra.mxu0 %v166
  %220 = vmatprep.subr.bf16.mxu0 0
  %221 = vmatpush1.bf16.msra.mxu0 %v167
  %222 = vmatprep.subr.bf16.mxu0 0
  %223 = vmatpush1.bf16.msra.mxu0 %v168
  %224 = vmatprep.subr.bf16.mxu0 0
  %225 = vmatpush1.bf16.msra.mxu0 %v169
  %226 = vmatprep.mubr.bf16.mxu0 %v78
  %227 = vmatmul.mubr.bf16.gmra.mrb[0].mxu0 %v77
  %v228 = vpop.f32.mrb[0].mxu0
  %v229 = vadd.f32 %v60, %v228
  %v230 = vpop.f32.mrb[0].mxu0
  %v231 = vpop.f32.mrb[0].mxu0
  %v232 = vadd.f32 %v65, %v231
  %v233 = vpop.f32.mrb[0].mxu0
  %234 = vdwg.mxu0
  %235 = vmatprep.subr.bf16.mxu0 0
  %236 = vmatpush1.bf16.msra.mxu0 %v170
  %237 = vmatprep.subr.bf16.mxu0 0
  %238 = vmatpush1.bf16.msra.mxu0 %v171
  %239 = vmatprep.subr.bf16.mxu0 0
  %240 = vmatpush1.bf16.msra.mxu0 0
  %241 = vmatprep.subr.bf16.mxu0 0
  %242 = vmatpush1.bf16.msra.mxu0 0
  %243 = vmatprep.subr.bf16.mxu0 0
  %244 = vmatpush1.bf16.msra.mxu0 0
  %245 = vmatprep.subr.bf16.mxu0 0
  %246 = vmatpush1.bf16.msra.mxu0 0
  %247 = vmatprep.subr.bf16.mxu0 0
  %248 = vmatpush1.bf16.msra.mxu0 0
  %249 = vmatprep.subr.bf16.mxu0 0
  %250 = vmatpush1.bf16.msra.mxu0 0
  %251 = vmatprep.subr.bf16.mxu0 0
  %252 = vmatpush1.bf16.msra.mxu0 0
  %253 = vmatprep.subr.bf16.mxu0 0
  %254 = vmatpush1.bf16.msra.mxu0 0
  %255 = vmatprep.subr.bf16.mxu0 0
  %256 = vmatpush1.bf16.msra.mxu0 0
  %257 = vmatprep.subr.bf16.mxu0 0
  %258 = vmatpush1.bf16.msra.mxu0 0
  %259 = vmatprep.subr.bf16.mxu0 0
  %260 = vmatpush1.bf16.msra.mxu0 0
  %261 = vmatprep.subr.bf16.mxu0 0
  %262 = vmatpush1.bf16.msra.mxu0 0
  %263 = vmatprep.subr.bf16.mxu0 0
  %264 = vmatpush1.bf16.msra.mxu0 0
  %265 = vmatprep.subr.bf16.mxu0 0
  %266 = vmatpush1.bf16.msra.mxu0 0
  %267 = vmatprep.mubr.bf16.mxu0 0
  %268 = vmatmul.mubr.bf16.gmra.mrb[0].mxu0 %v192
  %v269 = vpop.f32.mrb[0].mxu0
  %v270 = vadd.f32 %v229, %v269
  %v271 = vpop.f32.mrb[0].mxu0
  %v272 = vpop.f32.mrb[0].mxu0
  %v273 = vadd.f32 %v232, %v272
  %v274 = vpop.f32.mrb[0].mxu0
  %275 = vdwg.mxu0
  %v276 = vmax.f32 %v270, 0.0
  %v277 = vmax.f32 %v273, 0.0
  %278 = vst [vmem:[%s3] sm:$0xff] %v276
  %279 = vst [vmem:[%s3 + $0x8] sm:$0xff] %v277
  // Predicated region
  $region14: #{_lambda_.36} parent=0 // pred_check
    _
  $region15: #{_lambda_.36} parent=0 // pred_check_branch
    %281 = sbr.rel (0) target = $region17
  $region16: #{_lambda_.36} parent=0 // pred_region
    _
  $region17: #{_lambda_.36} parent=0 // pred_fallthru
    _
  // Predicated region
  $region18: #{_lambda_.36} parent=0 // pred_check
    _
  $region19: #{_lambda_.36} parent=0 // pred_check_branch
    %283 = sbr.rel (0) target = $region21
  $region20: #{_lambda_.36} parent=0 // pred_region
    _
  $region21: #{_lambda_.36} parent=0 // pred_fallthru
    _

// kernel: _lambda_.37
$region0: #{_lambda_.37}
  #allocation0 [shape = 'u32[]', space=smem, size = 0x4, offset = 0x4, fixed_abs, tag = 'smem constant byte address 0x4 - core index']
  #allocation1 [shape = 'u32[144,128]{1,0:T(1,128)}', space=vmem, size = 0x12000, scoped, tag = 'internal scratch']
  %s0 = inlined_call_operand.vmem [shape: bf16[144,128], index: 0, kind: input, shape index: {}]
  %s1 = inlined_call_operand.vmem [shape: bf16[16,144], index: 1, kind: input, shape index: {}]
  %s2 = inlined_call_operand.vmem [shape: f32[16,1], index: 2, kind: input, shape index: {}]
  %s3 = inlined_call_operand.vmem [shape: f32[16,128], index: 3, kind: output, shape index: {}]
  %s4 = sld [smem:[#allocation0]]
  $region22: #{_lambda_.37} parent=0
    _
  %s6 = ssub.s32 1, %s4
  %s7 = scalar_select 0, %s6, %s4
  // Predicated region
  $region2: #{_lambda_.37} parent=0 // pred_check
    _
  $region3: #{_lambda_.37} parent=0 // pred_check_branch
    %9 = sbr.rel (0) target = $region5
  $region4: #{_lambda_.37} parent=0 // pred_region
    _
  $region5: #{_lambda_.37} parent=0 // pred_fallthru
    _
  // Predicated region
  $region6: #{_lambda_.37} parent=0 // pred_check
    _
  $region7: #{_lambda_.37} parent=0 // pred_check_branch
    %11 = sbr.rel (0) target = $region9
  $region8: #{_lambda_.37} parent=0 // pred_region
    _
  $region9: #{_lambda_.37} parent=0 // pred_fallthru
    _
  // Predicated region
  $region10: #{_lambda_.37} parent=0 // pred_check
    _
  $region11: #{_lambda_.37} parent=0 // pred_check_branch
    %13 = sbr.rel (0) target = $region13
  $region12: #{_lambda_.37} parent=0 // pred_region
    _
  $region13: #{_lambda_.37} parent=0 // pred_fallthru
    _
  %v15 = vld [vmem:[%s1] sm:$0xff]
  %v16 = vld [vmem:[%s1 + $0x8] sm:$0xff]
  %v17 = vld [vmem:[%s0] sm:$0xf]
  %v18 = vld [vmem:[%s0 + $0x4] sm:$0xf]
  %v19 = vld [vmem:[%s0 + $0x8] sm:$0xf]
  %v20 = vld [vmem:[%s0 + $0xc] sm:$0xf]
  %v21 = vld [vmem:[%s0 + $0x10] sm:$0xf]
  %v22 = vld [vmem:[%s0 + $0x14] sm:$0xf]
  %v23 = vld [vmem:[%s0 + $0x18] sm:$0xf]
  %v24 = vld [vmem:[%s0 + $0x1c] sm:$0xf]
  %v25 = vld [vmem:[%s0 + $0x20] sm:$0xf]
  %v26 = vld [vmem:[%s0 + $0x24] sm:$0xf]
  %v27 = vld [vmem:[%s0 + $0x28] sm:$0xf]
  %v28 = vld [vmem:[%s0 + $0x2c] sm:$0xf]
  %v29 = vld [vmem:[%s0 + $0x30] sm:$0xf]
  %v30 = vld [vmem:[%s0 + $0x34] sm:$0xf]
  %v31 = vld [vmem:[%s0 + $0x38] sm:$0xf]
  %v32 = vld [vmem:[%s0 + $0x3c] sm:$0xf]
  %v33 = vld [vmem:[%s0 + $0x40] sm:$0xf]
  %v34 = vld [vmem:[%s0 + $0x44] sm:$0xf]
  %v35 = vld [vmem:[%s2] sm:$0xff]
  %v36 = vld [vmem:[%s2 + $0x8] sm:$0xff]
  %38 = vset.pattern.permute.xlu0 0
  %39 = vperm.xlu0 %38, %v35
  %v40 = vpop.permute.xlu0 %39
  %43 = vset.pattern.permute.xlu0 0
  %44 = vperm.xlu0 %43, %v36
  %v45 = vpop.permute.xlu0 %44
  %v49 = vunpack.c.l.b16 %v15
  %v50 = vunpack.c.h.b16 %v15
  %v51 = vunpack.c.l.b16 %v16
  %v52 = vunpack.c.h.b16 %v16
  %v53 = vpack.c.b16 %v51, %v49
  %v54 = vpack.c.b16 %v52, %v50
  %v74 = vunpack.c.l.b16 %v17
  %v75 = vunpack.c.l.b16 %v18
  %v76 = vunpack.c.l.b16 %v19
  %v77 = vunpack.c.l.b16 %v20
  %v78 = vunpack.c.l.b16 %v21
  %v79 = vunpack.c.l.b16 %v22
  %v80 = vunpack.c.l.b16 %v23
  %v81 = vunpack.c.l.b16 %v24
  %v82 = vunpack.c.l.b16 %v25
  %v83 = vunpack.c.l.b16 %v26
  %v84 = vunpack.c.l.b16 %v27
  %v85 = vunpack.c.l.b16 %v28
  %v86 = vunpack.c.l.b16 %v29
  %v87 = vunpack.c.l.b16 %v30
  %v88 = vunpack.c.l.b16 %v31
  %v89 = vunpack.c.l.b16 %v32
  %v90 = vunpack.c.l.b16 %v33
  %v91 = vunpack.c.l.b16 %v34
  %v92 = vpack.c.b16 %v75, %v74
  %v93 = vpack.c.b16 %v77, %v76
  %v94 = vpack.c.b16 %v79, %v78
  %v95 = vpack.c.b16 %v81, %v80
  %v96 = vpack.c.b16 %v83, %v82
  %v97 = vpack.c.b16 %v85, %v84
  %v98 = vpack.c.b16 %v87, %v86
  %v99 = vpack.c.b16 %v89, %v88
  %v100 = vpack.c.b16 %v91, %v90
  %vm110 = vcmask 130048
  %v112 = vsel %vm110, %v54, 0
  %114 = vmatprep.subr.bf16.mxu0 0
  %115 = vmatpush1.bf16.msra.mxu0 %v92
  %116 = vmatprep.subr.bf16.mxu0 0
  %117 = vmatpush1.bf16.msra.mxu0 %v93
  %118 = vmatprep.subr.bf16.mxu0 0
  %119 = vmatpush1.bf16.msra.mxu0 %v94
  %120 = vmatprep.subr.bf16.mxu0 0
  %121 = vmatpush1.bf16.msra.mxu0 %v95
  %122 = vmatprep.subr.bf16.mxu0 0
  %123 = vmatpush1.bf16.msra.mxu0 %v96
  %124 = vmatprep.subr.bf16.mxu0 0
  %125 = vmatpush1.bf16.msra.mxu0 %v97
  %126 = vmatprep.subr.bf16.mxu0 0
  %127 = vmatpush1.bf16.msra.mxu0 %v98
  %128 = vmatprep.subr.bf16.mxu0 0
  %129 = vmatpush1.bf16.msra.mxu0 %v99
  %130 = vmatprep.subr.bf16.mxu0 0
  %131 = vmatpush1.bf16.msra.mxu0 %v100
  %132 = vmatprep.subr.bf16.mxu0 0
  %133 = vmatpush1.bf16.msra.mxu0 0
  %134 = vmatprep.subr.bf16.mxu0 0
  %135 = vmatpush1.bf16.msra.mxu0 0
  %136 = vmatprep.subr.bf16.mxu0 0
  %137 = vmatpush1.bf16.msra.mxu0 0
  %138 = vmatprep.subr.bf16.mxu0 0
  %139 = vmatpush1.bf16.msra.mxu0 0
  %140 = vmatprep.subr.bf16.mxu0 0
  %141 = vmatpush1.bf16.msra.mxu0 0
  %142 = vmatprep.subr.bf16.mxu0 0
  %143 = vmatpush1.bf16.msra.mxu0 0
  %144 = vmatprep.subr.bf16.mxu0 0
  %145 = vmatpush1.bf16.msra.mxu0 0
  %146 = vmatprep.mubr.bf16.mxu0 %v112
  %147 = vmatmul.mubr.bf16.gmra.mrb[0].mxu0 %v53
  %v148 = vpop.f32.mrb[0].mxu0
  %v149 = vadd.f32 %v40, %v148
  %v150 = vpop.f32.mrb[0].mxu0
  %v151 = vpop.f32.mrb[0].mxu0
  %v152 = vadd.f32 %v45, %v151
  %v153 = vpop.f32.mrb[0].mxu0
  %154 = vdwg.mxu0
  %v155 = vmax.f32 %v149, 0.0
  %v156 = vmax.f32 %v152, 0.0
  %157 = vst [vmem:[%s3] sm:$0xff] %v155
  %158 = vst [vmem:[%s3 + $0x8] sm:$0xff] %v156
  // Predicated region
  $region14: #{_lambda_.37} parent=0 // pred_check
    _
  $region15: #{_lambda_.37} parent=0 // pred_check_branch
    %160 = sbr.rel (0) target = $region17
  $region16: #{_lambda_.37} parent=0 // pred_region
    _
  $region17: #{_lambda_.37} parent=0 // pred_fallthru
    _
  // Predicated region
  $region18: #{_lambda_.37} parent=0 // pred_check
    _
  $region19: #{_lambda_.37} parent=0 // pred_check_branch
    %162 = sbr.rel (0) target = $region21
  $region20: #{_lambda_.37} parent=0 // pred_region
    _
  $region21: #{_lambda_.37} parent=0 // pred_fallthru
    _

// kernel: _lambda_.38
$region0: #{_lambda_.38}
  #allocation0 [shape = 'u32[]', space=smem, size = 0x4, offset = 0x4, fixed_abs, tag = 'smem constant byte address 0x4 - core index']
  #allocation1 [shape = 'u32[144,128]{1,0:T(1,128)}', space=vmem, size = 0x12000, scoped, tag = 'internal scratch']
  #allocation2 [shape = 'f32[1,1]{1,0:T(1,128)S(1)}', space=vmem, size = 0x200, scoped, tag = 'scoped memory for _lambda_.38']
  %s0 = inlined_call_operand.vmem [shape: bf16[32,128], index: 0, kind: input, shape index: {}]
  %s1 = inlined_call_operand.vmem [shape: bf16[4,32], index: 1, kind: input, shape index: {}]
  %s2 = inlined_call_operand.vmem [shape: f32[16,128], index: 2, kind: input, shape index: {}]
  %s3 = inlined_call_operand.vmem [shape: f32[4,16], index: 3, kind: input, shape index: {}]
  %s4 = inlined_call_operand.vmem [shape: f32[4,1], index: 4, kind: input, shape index: {}]
  %s5 = inlined_call_operand.vmem [shape: f32[1,4], index: 5, kind: input, shape index: {}]
  %s6 = inlined_call_operand.<no memory space> [shape: f32[1,1], index: 6, kind: input, shape index: {}]
  %s7 = inlined_call_operand.vmem [shape: f32[1,128], index: 7, kind: output, shape index: {}]
  %s8 = sld [smem:[#allocation0]]
  $region38: #{_lambda_.38} parent=0
    _
  %s10 = ssub.s32 1, %s8
  %s11 = scalar_select 0, %s10, %s8
  %v12 = vstv %s6
  %13 = vst [vmem:[#allocation2] sm:$0x1] %v12
  // Predicated region
  $region2: #{_lambda_.38} parent=0 // pred_check
    _
  $region3: #{_lambda_.38} parent=0 // pred_check_branch
    %15 = sbr.rel (0) target = $region5
  $region4: #{_lambda_.38} parent=0 // pred_region
    _
  $region5: #{_lambda_.38} parent=0 // pred_fallthru
    _
  // Predicated region
  $region6: #{_lambda_.38} parent=0 // pred_check
    _
  $region7: #{_lambda_.38} parent=0 // pred_check_branch
    %17 = sbr.rel (0) target = $region9
  $region8: #{_lambda_.38} parent=0 // pred_region
    _
  $region9: #{_lambda_.38} parent=0 // pred_fallthru
    _
  // Predicated region
  $region10: #{_lambda_.38} parent=0 // pred_check
    _
  $region11: #{_lambda_.38} parent=0 // pred_check_branch
    %19 = sbr.rel (0) target = $region13
  $region12: #{_lambda_.38} parent=0 // pred_region
    _
  $region13: #{_lambda_.38} parent=0 // pred_fallthru
    _
  // Predicated region
  $region14: #{_lambda_.38} parent=0 // pred_check
    _
  $region15: #{_lambda_.38} parent=0 // pred_check_branch
    %21 = sbr.rel (0) target = $region17
  $region16: #{_lambda_.38} parent=0 // pred_region
    _
  $region17: #{_lambda_.38} parent=0 // pred_fallthru
    _
  // Predicated region
  $region18: #{_lambda_.38} parent=0 // pred_check
    _
  $region19: #{_lambda_.38} parent=0 // pred_check_branch
    %23 = sbr.rel (0) target = $region21
  $region20: #{_lambda_.38} parent=0 // pred_region
    _
  $region21: #{_lambda_.38} parent=0 // pred_fallthru
    _
  // Predicated region
  $region22: #{_lambda_.38} parent=0 // pred_check
    _
  $region23: #{_lambda_.38} parent=0 // pred_check_branch
    %25 = sbr.rel (0) target = $region25
  $region24: #{_lambda_.38} parent=0 // pred_region
    _
  $region25: #{_lambda_.38} parent=0 // pred_fallthru
    _
  // Predicated region
  $region26: #{_lambda_.38} parent=0 // pred_check
    _
  $region27: #{_lambda_.38} parent=0 // pred_check_branch
    %27 = sbr.rel (0) target = $region29
  $region28: #{_lambda_.38} parent=0 // pred_region
    _
  $region29: #{_lambda_.38} parent=0 // pred_fallthru
    _
  %v29 = vld [vmem:[%s1] sm:$0x3]
  %v30 = vld [vmem:[%s0] sm:$0xf]
  %v31 = vld [vmem:[%s0 + $0x4] sm:$0xf]
  %v32 = vld [vmem:[%s0 + $0x8] sm:$0xf]
  %v33 = vld [vmem:[%s0 + $0xc] sm:$0xf]
  %v34 = vld [vmem:[%s3] sm:$0xf]
  %v35 = vld [vmem:[%s2] sm:$0xff]
  %v36 = vld [vmem:[%s2 + $0x8] sm:$0xff]
  %vm37 = vcmask 130048
  %v39 = vsel %vm37, %v34, 0
  %41 = vmatprep.subr.mxu0 0.0
  %42 = vmatpush1.msra.mxu0 %v35
  %43 = vmatprep.subr.mxu0 0.0
  %44 = vmatpush1.msra.mxu0 %v36
  %45 = vmatprep.subr.mxu0 0.0
  %46 = vmatpush1.msra.mxu0 0.0
  %47 = vmatprep.subr.mxu0 0.0
  %48 = vmatpush1.msra.mxu0 0.0
  %49 = vmatprep.subr.mxu0 0.0
  %50 = vmatpush1.msra.mxu0 0.0
  %51 = vmatprep.subr.mxu0 0.0
  %52 = vmatpush1.msra.mxu0 0.0
  %53 = vmatprep.subr.mxu0 0.0
  %54 = vmatpush1.msra.mxu0 0.0
  %55 = vmatprep.subr.mxu0 0.0
  %56 = vmatpush1.msra.mxu0 0.0
  %57 = vmatprep.subr.mxu0 0.0
  %58 = vmatpush1.msra.mxu0 0.0
  %59 = vmatprep.subr.mxu0 0.0
  %60 = vmatpush1.msra.mxu0 0.0
  %61 = vmatprep.subr.mxu0 0.0
  %62 = vmatpush1.msra.mxu0 0.0
  %63 = vmatprep.subr.mxu0 0.0
  %64 = vmatpush1.msra.mxu0 0.0
  %65 = vmatprep.subr.mxu0 0.0
  %66 = vmatpush1.msra.mxu0 0.0
  %67 = vmatprep.subr.mxu0 0.0
  %68 = vmatpush1.msra.mxu0 0.0
  %69 = vmatprep.subr.mxu0 0.0
  %70 = vmatpush1.msra.mxu0 0.0
  %71 = vmatprep.subr.mxu0 0.0
  %72 = vmatpush1.msra.mxu0 0.0
  %73 = vmatprep.subr.mxu0 0.0
  %74 = vmatpush1.msra.mxu0 0.0
  %75 = vmatprep.subr.mxu0 0.0
  %76 = vmatpush1.msra.mxu0 0.0
  %77 = vmatprep.subr.mxu0 0.0
  %78 = vmatpush1.msra.mxu0 0.0
  %79 = vmatprep.subr.mxu0 0.0
  %80 = vmatpush1.msra.mxu0 0.0
  %81 = vmatprep.subr.mxu0 0.0
  %82 = vmatpush1.msra.mxu0 0.0
  %83 = vmatprep.subr.mxu0 0.0
  %84 = vmatpush1.msra.mxu0 0.0
  %85 = vmatprep.subr.mxu0 0.0
  %86 = vmatpush1.msra.mxu0 0.0
  %87 = vmatprep.subr.mxu0 0.0
  %88 = vmatpush1.msra.mxu0 0.0
  %89 = vmatprep.subr.mxu0 0.0
  %90 = vmatpush1.msra.mxu0 0.0
  %91 = vmatprep.subr.mxu0 0.0
  %92 = vmatpush1.msra.mxu0 0.0
  %93 = vmatprep.subr.mxu0 0.0
  %94 = vmatpush1.msra.mxu0 0.0
  %95 = vmatprep.subr.mxu0 0.0
  %96 = vmatpush1.msra.mxu0 0.0
  %97 = vmatprep.subr.mxu0 0.0
  %98 = vmatpush1.msra.mxu0 0.0
  %99 = vmatprep.subr.mxu0 0.0
  %100 = vmatpush1.msra.mxu0 0.0
  %101 = vmatprep.subr.mxu0 0.0
  %102 = vmatpush1.msra.mxu0 0.0
  %103 = vmatprep.subr.mxu0 0.0
  %104 = vmatpush1.msra.mxu0 0.0
  %105 = vmatprep.mubr.f32.mxu0 0.0
  %106 = vmatmul.mubr.f32.gmra.mrb[0].mxu0 %v39
  %v107 = vpop.f32.mrb[0].mxu0
  %v108 = vadd.f32 0.0, %v107
  %v109 = vpop.f32.mrb[0].mxu0
  %110 = vdwg.mxu0
  %v115 = vunpack.c.l.b16 %v30
  %v116 = vunpack.c.l.b16 %v31
  %v117 = vunpack.c.l.b16 %v32
  %v118 = vunpack.c.l.b16 %v33
  %v119 = vpack.c.b16 %v116, %v115
  %v120 = vpack.c.b16 %v118, %v117
  %vm123 = vcmask 261120
  %v125 = vsel %vm123, %v29, 0
  %127 = vmatprep.subr.bf16.mxu0 0
  %128 = vmatpush1.bf16.msra.mxu0 %v119
  %129 = vmatprep.subr.bf16.mxu0 0
  %130 = vmatpush1.bf16.msra.mxu0 %v120
  %131 = vmatprep.subr.bf16.mxu0 0
  %132 = vmatpush1.bf16.msra.mxu0 0
  %133 = vmatprep.subr.bf16.mxu0 0
  %134 = vmatpush1.bf16.msra.mxu0 0
  %135 = vmatprep.subr.bf16.mxu0 0
  %136 = vmatpush1.bf16.msra.mxu0 0
  %137 = vmatprep.subr.bf16.mxu0 0
  %138 = vmatpush1.bf16.msra.mxu0 0
  %139 = vmatprep.subr.bf16.mxu0 0
  %140 = vmatpush1.bf16.msra.mxu0 0
  %141 = vmatprep.subr.bf16.mxu0 0
  %142 = vmatpush1.bf16.msra.mxu0 0
  %143 = vmatprep.subr.bf16.mxu0 0
  %144 = vmatpush1.bf16.msra.mxu0 0
  %145 = vmatprep.subr.bf16.mxu0 0
  %146 = vmatpush1.bf16.msra.mxu0 0
  %147 = vmatprep.subr.bf16.mxu0 0
  %148 = vmatpush1.bf16.msra.mxu0 0
  %149 = vmatprep.subr.bf16.mxu0 0
  %150 = vmatpush1.bf16.msra.mxu0 0
  %151 = vmatprep.subr.bf16.mxu0 0
  %152 = vmatpush1.bf16.msra.mxu0 0
  %153 = vmatprep.subr.bf16.mxu0 0
  %154 = vmatpush1.bf16.msra.mxu0 0
  %155 = vmatprep.subr.bf16.mxu0 0
  %156 = vmatpush1.bf16.msra.mxu0 0
  %157 = vmatprep.subr.bf16.mxu0 0
  %158 = vmatpush1.bf16.msra.mxu0 0
  %159 = vmatprep.mubr.bf16.mxu0 0
  %160 = vmatmul.mubr.bf16.gmra.mrb[0].mxu0 %v125
  %v161 = vpop.f32.mrb[0].mxu0
  %v162 = vadd.f32 %v108, %v161
  %v163 = vpop.f32.mrb[0].mxu0
  %v164 = vpop.f32.mrb[0].mxu0
  %v165 = vpop.f32.mrb[0].mxu0
  %166 = vdwg.mxu0
  %v167 = vld [vmem:[%s4] sm:$0xf]
  %169 = vset.pattern.permute.xlu0 0
  %170 = vperm.xlu0 %169, %v167
  %v171 = vpop.permute.xlu0 %170
  %v173 = vadd.f32 %v162, %v171
  %v174 = vmax.f32 %v173, 0.0
  %v175 = vld [vmem:[%s5] sm:$0x1]
  %v176 = vld [vmem:[#allocation2] sm:$0x1]
  %178 = vset.pattern.permute.xlu0 0
  %179 = vperm.xlu0 %178, %v176
  %v180 = vpop.permute.xlu0 %179
  %v182 = vlaneseq
  %v183 = vshrl.u32 %v182, 7
  %v184 = vsub.s32 0, %v183
  %v185 = vrot.slane %v180, %v184
  %vm186 = vcmask 31744
  %v188 = vsel %vm186, %v175, 0
  %vm190 = vcmask 1043456
  %v192 = vsel %vm190, %v174, 0
  %194 = vmatprep.subr.mxu0 0.0
  %195 = vmatpush1.msra.mxu0 %v192
  %196 = vmatprep.subr.mxu0 0.0
  %197 = vmatpush1.msra.mxu0 0.0
  %198 = vmatprep.subr.mxu0 0.0
  %199 = vmatpush1.msra.mxu0 0.0
  %200 = vmatprep.subr.mxu0 0.0
  %201 = vmatpush1.msra.mxu0 0.0
  %202 = vmatprep.subr.mxu0 0.0
  %203 = vmatpush1.msra.mxu0 0.0
  %204 = vmatprep.subr.mxu0 0.0
  %205 = vmatpush1.msra.mxu0 0.0
  %206 = vmatprep.subr.mxu0 0.0
  %207 = vmatpush1.msra.mxu0 0.0
  %208 = vmatprep.subr.mxu0 0.0
  %209 = vmatpush1.msra.mxu0 0.0
  %210 = vmatprep.subr.mxu0 0.0
  %211 = vmatpush1.msra.mxu0 0.0
  %212 = vmatprep.subr.mxu0 0.0
  %213 = vmatpush1.msra.mxu0 0.0
  %214 = vmatprep.subr.mxu0 0.0
  %215 = vmatpush1.msra.mxu0 0.0
  %216 = vmatprep.subr.mxu0 0.0
  %217 = vmatpush1.msra.mxu0 0.0
  %218 = vmatprep.subr.mxu0 0.0
  %219 = vmatpush1.msra.mxu0 0.0
  %220 = vmatprep.subr.mxu0 0.0
  %221 = vmatpush1.msra.mxu0 0.0
  %222 = vmatprep.subr.mxu0 0.0
  %223 = vmatpush1.msra.mxu0 0.0
  %224 = vmatprep.subr.mxu0 0.0
  %225 = vmatpush1.msra.mxu0 0.0
  %226 = vmatprep.subr.mxu0 0.0
  %227 = vmatpush1.msra.mxu0 0.0
  %228 = vmatprep.subr.mxu0 0.0
  %229 = vmatpush1.msra.mxu0 0.0
  %230 = vmatprep.subr.mxu0 0.0
  %231 = vmatpush1.msra.mxu0 0.0
  %232 = vmatprep.subr.mxu0 0.0
  %233 = vmatpush1.msra.mxu0 0.0
  %234 = vmatprep.subr.mxu0 0.0
  %235 = vmatpush1.msra.mxu0 0.0
  %236 = vmatprep.subr.mxu0 0.0
  %237 = vmatpush1.msra.mxu0 0.0
  %238 = vmatprep.subr.mxu0 0.0
  %239 = vmatpush1.msra.mxu0 0.0
  %240 = vmatprep.subr.mxu0 0.0
  %241 = vmatpush1.msra.mxu0 0.0
  %242 = vmatprep.subr.mxu0 0.0
  %243 = vmatpush1.msra.mxu0 0.0
  %244 = vmatprep.subr.mxu0 0.0
  %245 = vmatpush1.msra.mxu0 0.0
  %246 = vmatprep.subr.mxu0 0.0
  %247 = vmatpush1.msra.mxu0 0.0
  %248 = vmatprep.subr.mxu0 0.0
  %249 = vmatpush1.msra.mxu0 0.0
  %250 = vmatprep.subr.mxu0 0.0
  %251 = vmatpush1.msra.mxu0 0.0
  %252 = vmatprep.subr.mxu0 0.0
  %253 = vmatpush1.msra.mxu0 0.0
  %254 = vmatprep.subr.mxu0 0.0
  %255 = vmatpush1.msra.mxu0 0.0
  %256 = vmatprep.subr.mxu0 0.0
  %257 = vmatpush1.msra.mxu0 0.0
  %258 = vmatprep.mubr.f32.mxu0 0.0
  %259 = vmatmul.mubr.f32.gmra.mrb[0].mxu0 %v188
  %v260 = vpop.f32.mrb[0].mxu0
  %v261 = vadd.f32 %v185, %v260
  %v262 = vpop.f32.mrb[0].mxu0
  %263 = vdwg.mxu0
  %v264 = vxor.u32 %v261, 2147483648
  %v265 = vmul.f32 %v264, 1.442695
  %v266 = vpow.pop %v265
  %v267 = vadd.f32 %v266, 1.0
  %v268 = vrcp.pop %v267
  %v269 = vmul.f32 1.0, %v268
  %270 = vst [vmem:[%s7] sm:$0x1] %v269
  // Predicated region
  $region30: #{_lambda_.38} parent=0 // pred_check
    _
  $region31: #{_lambda_.38} parent=0 // pred_check_branch
    %272 = sbr.rel (0) target = $region33
  $region32: #{_lambda_.38} parent=0 // pred_region
    _
  $region33: #{_lambda_.38} parent=0 // pred_fallthru
    _
  // Predicated region
  $region34: #{_lambda_.38} parent=0 // pred_check
    _
  $region35: #{_lambda_.38} parent=0 // pred_check_branch
    %274 = sbr.rel (0) target = $region37
  $region36: #{_lambda_.38} parent=0 // pred_region
    _
  $region37: #{_lambda_.38} parent=0 // pred_fallthru
    _

// kernel: _lambda_.39
$region0: #{_lambda_.39}
  #allocation0 [shape = 'u32[]', space=smem, size = 0x4, offset = 0x4, fixed_abs, tag = 'smem constant byte address 0x4 - core index']
  #allocation1 [shape = 'u32[144,128]{1,0:T(1,128)}', space=vmem, size = 0x12000, scoped, tag = 'internal scratch']
  %s0 = inlined_call_operand.vmem [shape: f32[8,512], index: 0, kind: input, shape index: {}]
  %s1 = inlined_call_operand.vmem [shape: f32[1,512], index: 1, kind: input, shape index: {}]
  %s2 = inlined_call_operand.vmem [shape: f32[8,8], index: 2, kind: input, shape index: {}]
  %s3 = inlined_call_operand.vmem [shape: f32[8,1], index: 3, kind: input, shape index: {}]
  %s4 = inlined_call_operand.vmem [shape: f32[8,1], index: 4, kind: input, shape index: {}]
  %s5 = inlined_call_operand.vmem [shape: f32[8,1], index: 5, kind: input, shape index: {}]
  %s6 = inlined_call_operand.vmem [shape: f32[8,512], index: 6, kind: output, shape index: {}]
  %s7 = sld [smem:[#allocation0]]
  $region34: #{_lambda_.39} parent=0
    _
  %s9 = ssub.s32 1, %s7
  %s10 = scalar_select 0, %s9, %s7
  // Predicated region
  $region2: #{_lambda_.39} parent=0 // pred_check
    _
  $region3: #{_lambda_.39} parent=0 // pred_check_branch
    %12 = sbr.rel (0) target = $region5
  $region4: #{_lambda_.39} parent=0 // pred_region
    _
  $region5: #{_lambda_.39} parent=0 // pred_fallthru
    _
  // Predicated region
  $region6: #{_lambda_.39} parent=0 // pred_check
    _
  $region7: #{_lambda_.39} parent=0 // pred_check_branch
    %14 = sbr.rel (0) target = $region9
  $region8: #{_lambda_.39} parent=0 // pred_region
    _
  $region9: #{_lambda_.39} parent=0 // pred_fallthru
    _
  // Predicated region
  $region10: #{_lambda_.39} parent=0 // pred_check
    _
  $region11: #{_lambda_.39} parent=0 // pred_check_branch
    %16 = sbr.rel (0) target = $region13
  $region12: #{_lambda_.39} parent=0 // pred_region
    _
  $region13: #{_lambda_.39} parent=0 // pred_fallthru
    _
  // Predicated region
  $region14: #{_lambda_.39} parent=0 // pred_check
    _
  $region15: #{_lambda_.39} parent=0 // pred_check_branch
    %18 = sbr.rel (0) target = $region17
  $region16: #{_lambda_.39} parent=0 // pred_region
    _
  $region17: #{_lambda_.39} parent=0 // pred_fallthru
    _
  // Predicated region
  $region18: #{_lambda_.39} parent=0 // pred_check
    _
  $region19: #{_lambda_.39} parent=0 // pred_check_branch
    %20 = sbr.rel (0) target = $region21
  $region20: #{_lambda_.39} parent=0 // pred_region
    _
  $region21: #{_lambda_.39} parent=0 // pred_fallthru
    _
  // Predicated region
  $region22: #{_lambda_.39} parent=0 // pred_check
    _
  $region23: #{_lambda_.39} parent=0 // pred_check_branch
    %22 = sbr.rel (0) target = $region25
  $region24: #{_lambda_.39} parent=0 // pred_region
    _
  $region25: #{_lambda_.39} parent=0 // pred_fallthru
    _
  %v23 = vld [vmem:[%s0] sm:$0xff]
  %v24 = vld [vmem:[%s0 + $0x8] sm:$0xff]
  %v25 = vld [vmem:[%s0 + $0x10] sm:$0xff]
  %v26 = vld [vmem:[%s0 + $0x18] sm:$0xff]
  %v27 = vld [vmem:[%s1] sm:$0xf]
  %v29 = vlaneseq
  %v30 = vshrl.u32 %v29, 7
  %v31 = vsub.s32 0, %v30
  %v32 = vrot.slane %v27, %v31
  %v33 = vlaneseq
  %v34 = vshrl.u32 %v33, 7
  %v35 = vsub.s32 1, %v34
  %v36 = vrot.slane %v27, %v35
  %v37 = vlaneseq
  %v38 = vshrl.u32 %v37, 7
  %v39 = vsub.s32 2, %v38
  %v40 = vrot.slane %v27, %v39
  %v41 = vlaneseq
  %v42 = vshrl.u32 %v41, 7
  %v43 = vsub.s32 3, %v42
  %v44 = vrot.slane %v27, %v43
  %v49 = vmul.f32 %v23, %v32
  %v50 = vmul.f32 %v24, %v36
  %v51 = vmul.f32 %v25, %v40
  %v52 = vmul.f32 %v26, %v44
  %v53 = vld [vmem:[%s2] sm:$0xff]
  %v54 = vld [vmem:[%s3] sm:$0xff]
  %56 = vset.pattern.permute.xlu0 0
  %57 = vperm.xlu0 %56, %v54
  %v58 = vpop.permute.xlu0 %57
  %vm60 = vcmask 64512
  %v62 = vsel %vm60, %v53, 0
  %64 = vmatprep.subr.mxu0 %v50
  %65 = vmatpush1.msra.mxu0 %v49
  %66 = vmatprep.subr.mxu0 0.0
  %67 = vmatpush1.msra.mxu0 0.0
  %68 = vmatprep.subr.mxu0 0.0
  %69 = vmatpush1.msra.mxu0 0.0
  %70 = vmatprep.subr.mxu0 0.0
  %71 = vmatpush1.msra.mxu0 0.0
  %72 = vmatprep.subr.mxu0 0.0
  %73 = vmatpush1.msra.mxu0 0.0
  %74 = vmatprep.subr.mxu0 0.0
  %75 = vmatpush1.msra.mxu0 0.0
  %76 = vmatprep.subr.mxu0 0.0
  %77 = vmatpush1.msra.mxu0 0.0
  %78 = vmatprep.subr.mxu0 0.0
  %79 = vmatpush1.msra.mxu0 0.0
  %80 = vmatprep.subr.mxu0 0.0
  %81 = vmatpush1.msra.mxu0 0.0
  %82 = vmatprep.subr.mxu0 0.0
  %83 = vmatpush1.msra.mxu0 0.0
  %84 = vmatprep.subr.mxu0 0.0
  %85 = vmatpush1.msra.mxu0 0.0
  %86 = vmatprep.subr.mxu0 0.0
  %87 = vmatpush1.msra.mxu0 0.0
  %88 = vmatprep.subr.mxu0 0.0
  %89 = vmatpush1.msra.mxu0 0.0
  %90 = vmatprep.subr.mxu0 0.0
  %91 = vmatpush1.msra.mxu0 0.0
  %92 = vmatprep.subr.mxu0 0.0
  %93 = vmatpush1.msra.mxu0 0.0
  %94 = vmatprep.subr.mxu0 0.0
  %95 = vmatpush1.msra.mxu0 0.0
  %96 = vmatprep.subr.mxu0 0.0
  %97 = vmatpush1.msra.mxu0 0.0
  %98 = vmatprep.subr.mxu0 0.0
  %99 = vmatpush1.msra.mxu0 0.0
  %100 = vmatprep.subr.mxu0 0.0
  %101 = vmatpush1.msra.mxu0 0.0
  %102 = vmatprep.subr.mxu0 0.0
  %103 = vmatpush1.msra.mxu0 0.0
  %104 = vmatprep.subr.mxu0 0.0
  %105 = vmatpush1.msra.mxu0 0.0
  %106 = vmatprep.subr.mxu0 0.0
  %107 = vmatpush1.msra.mxu0 0.0
  %108 = vmatprep.subr.mxu0 0.0
  %109 = vmatpush1.msra.mxu0 0.0
  %110 = vmatprep.subr.mxu0 0.0
  %111 = vmatpush1.msra.mxu0 0.0
  %112 = vmatprep.subr.mxu0 0.0
  %113 = vmatpush1.msra.mxu0 0.0
  %114 = vmatprep.subr.mxu0 0.0
  %115 = vmatpush1.msra.mxu0 0.0
  %116 = vmatprep.subr.mxu0 0.0
  %117 = vmatpush1.msra.mxu0 0.0
  %118 = vmatprep.subr.mxu0 0.0
  %119 = vmatpush1.msra.mxu0 0.0
  %120 = vmatprep.subr.mxu0 0.0
  %121 = vmatpush1.msra.mxu0 0.0
  %122 = vmatprep.subr.mxu0 0.0
  %123 = vmatpush1.msra.mxu0 0.0
  %124 = vmatprep.subr.mxu0 0.0
  %125 = vmatpush1.msra.mxu0 0.0
  %126 = vmatprep.subr.mxu0 0.0
  %127 = vmatpush1.msra.mxu0 0.0
  %128 = vmatprep.mubr.f32.mxu0 0.0
  %129 = vmatmul.mubr.f32.gmra.mrb[0].mxu0 %v62
  %v130 = vpop.f32.mrb[0].mxu0
  %v131 = vadd.f32 %v58, %v130
  %v132 = vpop.f32.mrb[0].mxu0
  %v133 = vadd.f32 %v58, %v132
  %134 = vdwg.mxu0
  %135 = vmatprep.subr.mxu0 %v52
  %136 = vmatpush1.msra.mxu0 %v51
  %137 = vmatprep.subr.mxu0 0.0
  %138 = vmatpush1.msra.mxu0 0.0
  %139 = vmatprep.subr.mxu0 0.0
  %140 = vmatpush1.msra.mxu0 0.0
  %141 = vmatprep.subr.mxu0 0.0
  %142 = vmatpush1.msra.mxu0 0.0
  %143 = vmatprep.subr.mxu0 0.0
  %144 = vmatpush1.msra.mxu0 0.0
  %145 = vmatprep.subr.mxu0 0.0
  %146 = vmatpush1.msra.mxu0 0.0
  %147 = vmatprep.subr.mxu0 0.0
  %148 = vmatpush1.msra.mxu0 0.0
  %149 = vmatprep.subr.mxu0 0.0
  %150 = vmatpush1.msra.mxu0 0.0
  %151 = vmatprep.subr.mxu0 0.0
  %152 = vmatpush1.msra.mxu0 0.0
  %153 = vmatprep.subr.mxu0 0.0
  %154 = vmatpush1.msra.mxu0 0.0
  %155 = vmatprep.subr.mxu0 0.0
  %156 = vmatpush1.msra.mxu0 0.0
  %157 = vmatprep.subr.mxu0 0.0
  %158 = vmatpush1.msra.mxu0 0.0
  %159 = vmatprep.subr.mxu0 0.0
  %160 = vmatpush1.msra.mxu0 0.0
  %161 = vmatprep.subr.mxu0 0.0
  %162 = vmatpush1.msra.mxu0 0.0
  %163 = vmatprep.subr.mxu0 0.0
  %164 = vmatpush1.msra.mxu0 0.0
  %165 = vmatprep.subr.mxu0 0.0
  %166 = vmatpush1.msra.mxu0 0.0
  %167 = vmatprep.subr.mxu0 0.0
  %168 = vmatpush1.msra.mxu0 0.0
  %169 = vmatprep.subr.mxu0 0.0
  %170 = vmatpush1.msra.mxu0 0.0
  %171 = vmatprep.subr.mxu0 0.0
  %172 = vmatpush1.msra.mxu0 0.0
  %173 = vmatprep.subr.mxu0 0.0
  %174 = vmatpush1.msra.mxu0 0.0
  %175 = vmatprep.subr.mxu0 0.0
  %176 = vmatpush1.msra.mxu0 0.0
  %177 = vmatprep.subr.mxu0 0.0
  %178 = vmatpush1.msra.mxu0 0.0
  %179 = vmatprep.subr.mxu0 0.0
  %180 = vmatpush1.msra.mxu0 0.0
  %181 = vmatprep.subr.mxu0 0.0
  %182 = vmatpush1.msra.mxu0 0.0
  %183 = vmatprep.subr.mxu0 0.0
  %184 = vmatpush1.msra.mxu0 0.0
  %185 = vmatprep.subr.mxu0 0.0
  %186 = vmatpush1.msra.mxu0 0.0
  %187 = vmatprep.subr.mxu0 0.0
  %188 = vmatpush1.msra.mxu0 0.0
  %189 = vmatprep.subr.mxu0 0.0
  %190 = vmatpush1.msra.mxu0 0.0
  %191 = vmatprep.subr.mxu0 0.0
  %192 = vmatpush1.msra.mxu0 0.0
  %193 = vmatprep.subr.mxu0 0.0
  %194 = vmatpush1.msra.mxu0 0.0
  %195 = vmatprep.subr.mxu0 0.0
  %196 = vmatpush1.msra.mxu0 0.0
  %197 = vmatprep.subr.mxu0 0.0
  %198 = vmatpush1.msra.mxu0 0.0
  %199 = vmatprep.mubr.f32.mxu0 0.0
  %200 = vmatmul.mubr.f32.gmra.mrb[0].mxu0 %v62
  %v201 = vpop.f32.mrb[0].mxu0
  %v202 = vadd.f32 %v58, %v201
  %v203 = vpop.f32.mrb[0].mxu0
  %v204 = vadd.f32 %v58, %v203
  %205 = vdwg.mxu0
  %v206 = vadd.f32 %v131, %v133
  %v207 = vadd.f32 %v206, %v202
  %v208 = vadd.f32 %v207, %v204
  %209 = vadd.xlane.f32.xlu0 %v208
  %v210 = vpop.xlane.xlu0 %209
  %v211 = vmul.f32 %v210, 0.001953125
  %v212 = vsub.f32 %v131, %v211
  %v213 = vsub.f32 %v133, %v211
  %v214 = vsub.f32 %v202, %v211
  %v215 = vsub.f32 %v204, %v211
  %v216 = vmul.f32 %v212, %v212
  %v217 = vmul.f32 %v213, %v213
  %v218 = vmul.f32 %v214, %v214
  %v219 = vmul.f32 %v215, %v215
  %v220 = vadd.f32 %v216, %v217
  %v221 = vadd.f32 %v220, %v218
  %v222 = vadd.f32 %v221, %v219
  %223 = vadd.xlane.f32.xlu0 %v222
  %v224 = vpop.xlane.xlu0 %223
  %v225 = vmul.f32 %v224, 0.001953125
  %v226 = vadd.f32 %v225, 1e-05
  %v227 = vrsqrt.pop %v226
  %v228 = vmul.f32 %v212, %v227
  %v229 = vmul.f32 %v213, %v227
  %v230 = vmul.f32 %v214, %v227
  %v231 = vmul.f32 %v215, %v227
  %v232 = vld [vmem:[%s4] sm:$0xff]
  %234 = vset.pattern.permute.xlu0 0
  %235 = vperm.xlu0 %234, %v232
  %v236 = vpop.permute.xlu0 %235
  %v238 = vmul.f32 %v228, %v236
  %v239 = vmul.f32 %v229, %v236
  %v240 = vmul.f32 %v230, %v236
  %v241 = vmul.f32 %v231, %v236
  %v242 = vld [vmem:[%s5] sm:$0xff]
  %244 = vset.pattern.permute.xlu0 0
  %245 = vperm.xlu0 %244, %v242
  %v246 = vpop.permute.xlu0 %245
  %v248 = vadd.f32 %v238, %v246
  %v249 = vadd.f32 %v239, %v246
  %v250 = vadd.f32 %v240, %v246
  %v251 = vadd.f32 %v241, %v246
  %252 = vst [vmem:[%s6] sm:$0xff] %v248
  %253 = vst [vmem:[%s6 + $0x8] sm:$0xff] %v249
  %254 = vst [vmem:[%s6 + $0x10] sm:$0xff] %v250
  %255 = vst [vmem:[%s6 + $0x18] sm:$0xff] %v251
  // Predicated region
  $region26: #{_lambda_.39} parent=0 // pred_check
    _
  $region27: #{_lambda_.39} parent=0 // pred_check_branch
    %257 = sbr.rel (0) target = $region29
  $region28: #{_lambda_.39} parent=0 // pred_region
    _
  $region29: #{_lambda_.39} parent=0 // pred_fallthru
    _
  // Predicated region
  $region30: #{_lambda_.39} parent=0 // pred_check
    _
  $region31: #{_lambda_.39} parent=0 // pred_check_branch
    %259 = sbr.rel (0) target = $region33
  $region32: #{_lambda_.39} parent=0 // pred_region
    _
  $region33: #{_lambda_.39} parent=0 // pred_fallthru
    _

// kernel: tile.14
$region0: #{tile.14}
  #allocation0 [shape = 's32[1]{0}', space=sflag, size = 0x4, scoped, tag = 'scoped memory for tile.14']
  %s0 = inlined_call_operand.vmem [shape: f32[8], index: 0, kind: input, shape index: {}]
  %s1 = inlined_call_operand.vmem [shape: f32[4,8], index: 1, kind: output, shape index: {}]
  // Predicated region
  $region2: #{tile.14} parent=0 // pred_check
    _
  $region3: #{tile.14} parent=0 // pred_check_branch
    %3 = sbr.rel (0) target = $region5
  $region4: #{tile.14} parent=0 // pred_region
    _
  $region5: #{tile.14} parent=0 // pred_fallthru
    _
  %v4 = vld [vmem:[%s0] ss:$0 sm:$0xff]
  %5 = vst [vmem:[%s1] sm:$0xf] %v4

// kernel: tile.1
$region0: #{tile.1}
  %s0 = inlined_call_operand.vmem [shape: f32[4,8], index: 0, kind: input, shape index: {}]
  %s1 = inlined_call_operand.vmem [shape: f32[32,1], index: 1, kind: output, shape index: {}]
  $region1: #{tile.1} parent=0
    #allocation0 [shape = 'u8[4096]{0}', space=vmem, size = 0x1000, scoped, tag = 'scoped mem for input reshape']
    %s3 = sshllo.u32 0, 4
    %v4 = vld [vmem:[%s0] sm:%s3]
    %5 = vst [vmem:[#allocation0] sm:%s3] %v4
    %v6 = vld [vmem:[#allocation0] sm:$0xf]
    %vm7 = vcmask 7168
    %8 = vst.msk [vmem:[%s1] ss:$8 sm:$0xf] %vm7, %v6
    %v9 = vld [vmem:[#allocation0] sm:$0xf]
    %10 = vrot.lane.b32.xlu0 %v9, 127
    %v11 = vpop.permute.xlu0 %10
    %vm12 = vcmask 7168
    %s13 = scalar_lea.vmem %s1, 1
    %14 = vst.msk [vmem:[%s13] ss:$8 sm:$0xf] %vm12, %v11
    %v15 = vld [vmem:[#allocation0] sm:$0xf]
    %16 = vrot.lane.b32.xlu0 %v15, 126
    %v17 = vpop.permute.xlu0 %16
    %vm18 = vcmask 7168
    %s19 = scalar_lea.vmem %s1, 2
    %20 = vst.msk [vmem:[%s19] ss:$8 sm:$0xf] %vm18, %v17
    %v21 = vld [vmem:[#allocation0] sm:$0xf]
    %22 = vrot.lane.b32.xlu0 %v21, 125
    %v23 = vpop.permute.xlu0 %22
    %vm24 = vcmask 7168
    %s25 = scalar_lea.vmem %s1, 3
    %26 = vst.msk [vmem:[%s25] ss:$8 sm:$0xf] %vm24, %v23
    %v27 = vld [vmem:[#allocation0] sm:$0xf]
    %28 = vrot.lane.b32.xlu0 %v27, 124
    %v29 = vpop.permute.xlu0 %28
    %vm30 = vcmask 7168
    %s31 = scalar_lea.vmem %s1, 4
    %32 = vst.msk [vmem:[%s31] ss:$8 sm:$0xf] %vm30, %v29
    %v33 = vld [vmem:[#allocation0] sm:$0xf]
    %34 = vrot.lane.b32.xlu0 %v33, 123
    %v35 = vpop.permute.xlu0 %34
    %vm36 = vcmask 7168
    %s37 = scalar_lea.vmem %s1, 5
    %38 = vst.msk [vmem:[%s37] ss:$8 sm:$0xf] %vm36, %v35
    %v39 = vld [vmem:[#allocation0] sm:$0xf]
    %40 = vrot.lane.b32.xlu0 %v39, 122
    %v41 = vpop.permute.xlu0 %40
    %vm42 = vcmask 7168
    %s43 = scalar_lea.vmem %s1, 6
    %44 = vst.msk [vmem:[%s43] ss:$8 sm:$0xf] %vm42, %v41
    %v45 = vld [vmem:[#allocation0] sm:$0xf]
    %46 = vrot.lane.b32.xlu0 %v45, 121
    %v47 = vpop.permute.xlu0 %46
    %vm48 = vcmask 7168
    %s49 = scalar_lea.vmem %s1, 7
    %50 = vst.msk [vmem:[%s49] ss:$8 sm:$0xf] %vm48, %v47

// kernel: _lambda_.40
$region0: #{_lambda_.40}
  #allocation0 [shape = 'u32[]', space=smem, size = 0x4, offset = 0x4, fixed_abs, tag = 'smem constant byte address 0x4 - core index']
  #allocation1 [shape = 'u32[144,128]{1,0:T(1,128)}', space=vmem, size = 0x12000, scoped, tag = 'internal scratch']
  %s0 = inlined_call_operand.vmem [shape: bf16[144,128], index: 0, kind: input, shape index: {}]
  %s1 = inlined_call_operand.vmem [shape: bf16[32,144], index: 1, kind: input, shape index: {}]
  %s2 = inlined_call_operand.vmem [shape: f32[32,1], index: 2, kind: input, shape index: {}]
  %s3 = inlined_call_operand.vmem [shape: f32[32,128], index: 3, kind: output, shape index: {}]
  %s4 = sld [smem:[#allocation0]]
  $region22: #{_lambda_.40} parent=0
    _
  %s6 = ssub.s32 1, %s4
  %s7 = scalar_select 0, %s6, %s4
  // Predicated region
  $region2: #{_lambda_.40} parent=0 // pred_check
    _
  $region3: #{_lambda_.40} parent=0 // pred_check_branch
    %9 = sbr.rel (0) target = $region5
  $region4: #{_lambda_.40} parent=0 // pred_region
    _
  $region5: #{_lambda_.40} parent=0 // pred_fallthru
    _
  // Predicated region
  $region6: #{_lambda_.40} parent=0 // pred_check
    _
  $region7: #{_lambda_.40} parent=0 // pred_check_branch
    %11 = sbr.rel (0) target = $region9
  $region8: #{_lambda_.40} parent=0 // pred_region
    _
  $region9: #{_lambda_.40} parent=0 // pred_fallthru
    _
  // Predicated region
  $region10: #{_lambda_.40} parent=0 // pred_check
    _
  $region11: #{_lambda_.40} parent=0 // pred_check_branch
    %13 = sbr.rel (0) target = $region13
  $region12: #{_lambda_.40} parent=0 // pred_region
    _
  $region13: #{_lambda_.40} parent=0 // pred_fallthru
    _
  %v15 = vld [vmem:[%s1] sm:$0xff]
  %v16 = vld [vmem:[%s1 + $0x8] sm:$0xff]
  %v17 = vld [vmem:[%s1 + $0x10] sm:$0xff]
  %v18 = vld [vmem:[%s1 + $0x18] sm:$0xff]
  %v19 = vld [vmem:[%s0] sm:$0xf]
  %v20 = vld [vmem:[%s0 + $0x4] sm:$0xf]
  %v21 = vld [vmem:[%s0 + $0x8] sm:$0xf]
  %v22 = vld [vmem:[%s0 + $0xc] sm:$0xf]
  %v23 = vld [vmem:[%s0 + $0x10] sm:$0xf]
  %v24 = vld [vmem:[%s0 + $0x14] sm:$0xf]
  %v25 = vld [vmem:[%s0 + $0x18] sm:$0xf]
  %v26 = vld [vmem:[%s0 + $0x1c] sm:$0xf]
  %v27 = vld [vmem:[%s0 + $0x20] sm:$0xf]
  %v28 = vld [vmem:[%s0 + $0x24] sm:$0xf]
  %v29 = vld [vmem:[%s0 + $0x28] sm:$0xf]
  %v30 = vld [vmem:[%s0 + $0x2c] sm:$0xf]
  %v31 = vld [vmem:[%s0 + $0x30] sm:$0xf]
  %v32 = vld [vmem:[%s0 + $0x34] sm:$0xf]
  %v33 = vld [vmem:[%s0 + $0x38] sm:$0xf]
  %v34 = vld [vmem:[%s0 + $0x3c] sm:$0xf]
  %v35 = vld [vmem:[%s0 + $0x40] sm:$0xf]
  %v36 = vld [vmem:[%s0 + $0x44] sm:$0xf]
  %v37 = vld [vmem:[%s2] sm:$0xff]
  %v38 = vld [vmem:[%s2 + $0x8] sm:$0xff]
  %v39 = vld [vmem:[%s2 + $0x10] sm:$0xff]
  %v40 = vld [vmem:[%s2 + $0x18] sm:$0xff]
  %42 = vset.pattern.permute.xlu0 0
  %43 = vperm.xlu0 %42, %v37
  %v44 = vpop.permute.xlu0 %43
  %47 = vset.pattern.permute.xlu0 0
  %48 = vperm.xlu0 %47, %v38
  %v49 = vpop.permute.xlu0 %48
  %52 = vset.pattern.permute.xlu0 0
  %53 = vperm.xlu0 %52, %v39
  %v54 = vpop.permute.xlu0 %53
  %57 = vset.pattern.permute.xlu0 0
  %58 = vperm.xlu0 %57, %v40
  %v59 = vpop.permute.xlu0 %58
  %v65 = vunpack.c.l.b16 %v15
  %v66 = vunpack.c.h.b16 %v15
  %v67 = vunpack.c.l.b16 %v16
  %v68 = vunpack.c.h.b16 %v16
  %v69 = vunpack.c.l.b16 %v17
  %v70 = vunpack.c.h.b16 %v17
  %v71 = vunpack.c.l.b16 %v18
  %v72 = vunpack.c.h.b16 %v18
  %v73 = vpack.c.b16 %v67, %v65
  %v74 = vpack.c.b16 %v68, %v66
  %v75 = vpack.c.b16 %v71, %v69
  %v76 = vpack.c.b16 %v72, %v70
  %v97 = vunpack.c.l.b16 %v19
  %v98 = vunpack.c.l.b16 %v20
  %v99 = vunpack.c.l.b16 %v21
  %v100 = vunpack.c.l.b16 %v22
  %v101 = vunpack.c.l.b16 %v23
  %v102 = vunpack.c.l.b16 %v24
  %v103 = vunpack.c.l.b16 %v25
  %v104 = vunpack.c.l.b16 %v26
  %v105 = vunpack.c.l.b16 %v27
  %v106 = vunpack.c.l.b16 %v28
  %v107 = vunpack.c.l.b16 %v29
  %v108 = vunpack.c.l.b16 %v30
  %v109 = vunpack.c.l.b16 %v31
  %v110 = vunpack.c.l.b16 %v32
  %v111 = vunpack.c.l.b16 %v33
  %v112 = vunpack.c.l.b16 %v34
  %v113 = vunpack.c.l.b16 %v35
  %v114 = vunpack.c.l.b16 %v36
  %v115 = vpack.c.b16 %v98, %v97
  %v116 = vpack.c.b16 %v100, %v99
  %v117 = vpack.c.b16 %v102, %v101
  %v118 = vpack.c.b16 %v104, %v103
  %v119 = vpack.c.b16 %v106, %v105
  %v120 = vpack.c.b16 %v108, %v107
  %v121 = vpack.c.b16 %v110, %v109
  %v122 = vpack.c.b16 %v112, %v111
  %v123 = vpack.c.b16 %v114, %v113
  %vm133 = vcmask 130048
  %v135 = vsel %vm133, %v74, 0
  %v138 = vsel %vm133, %v76, 0
  %140 = vmatprep.subr.bf16.mxu0 0
  %141 = vmatpush1.bf16.msra.mxu0 %v115
  %142 = vmatprep.subr.bf16.mxu0 0
  %143 = vmatpush1.bf16.msra.mxu0 %v116
  %144 = vmatprep.subr.bf16.mxu0 0
  %145 = vmatpush1.bf16.msra.mxu0 %v117
  %146 = vmatprep.subr.bf16.mxu0 0
  %147 = vmatpush1.bf16.msra.mxu0 %v118
  %148 = vmatprep.subr.bf16.mxu0 0
  %149 = vmatpush1.bf16.msra.mxu0 %v119
  %150 = vmatprep.subr.bf16.mxu0 0
  %151 = vmatpush1.bf16.msra.mxu0 %v120
  %152 = vmatprep.subr.bf16.mxu0 0
  %153 = vmatpush1.bf16.msra.mxu0 %v121
  %154 = vmatprep.subr.bf16.mxu0 0
  %155 = vmatpush1.bf16.msra.mxu0 %v122
  %156 = vmatprep.subr.bf16.mxu0 0
  %157 = vmatpush1.bf16.msra.mxu0 %v123
  %158 = vmatprep.subr.bf16.mxu0 0
  %159 = vmatpush1.bf16.msra.mxu0 0
  %160 = vmatprep.subr.bf16.mxu0 0
  %161 = vmatpush1.bf16.msra.mxu0 0
  %162 = vmatprep.subr.bf16.mxu0 0
  %163 = vmatpush1.bf16.msra.mxu0 0
  %164 = vmatprep.subr.bf16.mxu0 0
  %165 = vmatpush1.bf16.msra.mxu0 0
  %166 = vmatprep.subr.bf16.mxu0 0
  %167 = vmatpush1.bf16.msra.mxu0 0
  %168 = vmatprep.subr.bf16.mxu0 0
  %169 = vmatpush1.bf16.msra.mxu0 0
  %170 = vmatprep.subr.bf16.mxu0 0
  %171 = vmatpush1.bf16.msra.mxu0 0
  %172 = vmatprep.mubr.bf16.mxu0 %v135
  %173 = vmatmul.mubr.bf16.gmra.mrb[0].mxu0 %v73
  %v174 = vpop.f32.mrb[0].mxu0
  %v175 = vadd.f32 %v44, %v174
  %v176 = vpop.f32.mrb[0].mxu0
  %v177 = vpop.f32.mrb[0].mxu0
  %v178 = vadd.f32 %v49, %v177
  %v179 = vpop.f32.mrb[0].mxu0
  %180 = vmatprep.mubr.bf16.mxu0 %v138
  %181 = vmatmul.mubr.bf16.gmra.mrb[0].mxu0 %v75
  %v182 = vpop.f32.mrb[0].mxu0
  %v183 = vadd.f32 %v54, %v182
  %v184 = vpop.f32.mrb[0].mxu0
  %v185 = vpop.f32.mrb[0].mxu0
  %v186 = vadd.f32 %v59, %v185
  %v187 = vpop.f32.mrb[0].mxu0
  %188 = vdwg.mxu0
  %189 = vst [vmem:[%s3] sm:$0xff] %v175
  %190 = vst [vmem:[%s3 + $0x8] sm:$0xff] %v178
  %191 = vst [vmem:[%s3 + $0x10] sm:$0xff] %v183
  %192 = vst [vmem:[%s3 + $0x18] sm:$0xff] %v186
  // Predicated region
  $region14: #{_lambda_.40} parent=0 // pred_check
    _
  $region15: #{_lambda_.40} parent=0 // pred_check_branch
    %194 = sbr.rel (0) target = $region17
  $region16: #{_lambda_.40} parent=0 // pred_region
    _
  $region17: #{_lambda_.40} parent=0 // pred_fallthru
    _
  // Predicated region
  $region18: #{_lambda_.40} parent=0 // pred_check
    _
  $region19: #{_lambda_.40} parent=0 // pred_check_branch
    %196 = sbr.rel (0) target = $region21
  $region20: #{_lambda_.40} parent=0 // pred_region
    _
  $region21: #{_lambda_.40} parent=0 // pred_fallthru
    _

// kernel: _lambda_.43
$region0: #{_lambda_.43}
  #allocation0 [shape = 'u32[]', space=smem, size = 0x4, offset = 0x4, fixed_abs, tag = 'smem constant byte address 0x4 - core index']
  #allocation1 [shape = 'u32[144,128]{1,0:T(1,128)}', space=vmem, size = 0x12000, scoped, tag = 'internal scratch']
  #allocation2 [shape = 'f32[1,1]{1,0:T(1,128)S(1)}', space=vmem, size = 0x200, scoped, tag = 'scoped memory for _lambda_.43']
  %s0 = inlined_call_operand.vmem [shape: bf16[8,512], index: 0, kind: input, shape index: {}]
  %s1 = inlined_call_operand.vmem [shape: bf16[1,8], index: 1, kind: input, shape index: {}]
  %s2 = inlined_call_operand.<no memory space> [shape: f32[1,1], index: 2, kind: input, shape index: {}]
  %s3 = inlined_call_operand.vmem [shape: f32[1,512], index: 3, kind: output, shape index: {}]
  %s4 = sld [smem:[#allocation0]]
  $region22: #{_lambda_.43} parent=0
    _
  %s6 = ssub.s32 1, %s4
  %s7 = scalar_select 0, %s6, %s4
  %v8 = vstv %s2
  %9 = vst [vmem:[#allocation2] sm:$0x1] %v8
  // Predicated region
  $region2: #{_lambda_.43} parent=0 // pred_check
    _
  $region3: #{_lambda_.43} parent=0 // pred_check_branch
    %11 = sbr.rel (0) target = $region5
  $region4: #{_lambda_.43} parent=0 // pred_region
    _
  $region5: #{_lambda_.43} parent=0 // pred_fallthru
    _
  // Predicated region
  $region6: #{_lambda_.43} parent=0 // pred_check
    _
  $region7: #{_lambda_.43} parent=0 // pred_check_branch
    %13 = sbr.rel (0) target = $region9
  $region8: #{_lambda_.43} parent=0 // pred_region
    _
  $region9: #{_lambda_.43} parent=0 // pred_fallthru
    _
  // Predicated region
  $region10: #{_lambda_.43} parent=0 // pred_check
    _
  $region11: #{_lambda_.43} parent=0 // pred_check_branch
    %15 = sbr.rel (0) target = $region13
  $region12: #{_lambda_.43} parent=0 // pred_region
    _
  $region13: #{_lambda_.43} parent=0 // pred_fallthru
    _
  %v17 = vld [vmem:[%s1] sm:$0x1]
  %v18 = vld [vmem:[%s0] sm:$0xff]
  %v19 = vld [vmem:[%s0 + $0x8] sm:$0xff]
  %v20 = vld [vmem:[#allocation2] sm:$0x1]
  %22 = vset.pattern.permute.xlu0 0
  %23 = vperm.xlu0 %22, %v20
  %v24 = vpop.permute.xlu0 %23
  %v26 = vlaneseq
  %v27 = vshrl.u32 %v26, 7
  %v28 = vsub.s32 0, %v27
  %v29 = vrot.slane %v24, %v28
  %v32 = vunpack.c.l.b16 %v18
  %v33 = vunpack.c.h.b16 %v18
  %v34 = vunpack.c.l.b16 %v19
  %v35 = vunpack.c.h.b16 %v19
  %v36 = vpack.c.b16 %v32, %v32
  %v37 = vpack.c.b16 %v33, %v33
  %v38 = vpack.c.b16 %v34, %v34
  %v39 = vpack.c.b16 %v35, %v35
  %vm40 = vcmask 64512
  %v42 = vsel %vm40, %v17, 0
  %vm44 = vcmask 1043456
  %v46 = vsel %vm44, %v36, 0
  %v49 = vsel %vm44, %v37, 0
  %v52 = vsel %vm44, %v38, 0
  %v55 = vsel %vm44, %v39, 0
  %57 = vmatprep.subr.bf16.mxu0 %v49
  %58 = vmatpush1.bf16.msra.mxu0 %v46
  %59 = vmatprep.subr.bf16.mxu0 0
  %60 = vmatpush1.bf16.msra.mxu0 0
  %61 = vmatprep.subr.bf16.mxu0 0
  %62 = vmatpush1.bf16.msra.mxu0 0
  %63 = vmatprep.subr.bf16.mxu0 0
  %64 = vmatpush1.bf16.msra.mxu0 0
  %65 = vmatprep.subr.bf16.mxu0 0
  %66 = vmatpush1.bf16.msra.mxu0 0
  %67 = vmatprep.subr.bf16.mxu0 0
  %68 = vmatpush1.bf16.msra.mxu0 0
  %69 = vmatprep.subr.bf16.mxu0 0
  %70 = vmatpush1.bf16.msra.mxu0 0
  %71 = vmatprep.subr.bf16.mxu0 0
  %72 = vmatpush1.bf16.msra.mxu0 0
  %73 = vmatprep.subr.bf16.mxu0 0
  %74 = vmatpush1.bf16.msra.mxu0 0
  %75 = vmatprep.subr.bf16.mxu0 0
  %76 = vmatpush1.bf16.msra.mxu0 0
  %77 = vmatprep.subr.bf16.mxu0 0
  %78 = vmatpush1.bf16.msra.mxu0 0
  %79 = vmatprep.subr.bf16.mxu0 0
  %80 = vmatpush1.bf16.msra.mxu0 0
  %81 = vmatprep.subr.bf16.mxu0 0
  %82 = vmatpush1.bf16.msra.mxu0 0
  %83 = vmatprep.subr.bf16.mxu0 0
  %84 = vmatpush1.bf16.msra.mxu0 0
  %85 = vmatprep.subr.bf16.mxu0 0
  %86 = vmatpush1.bf16.msra.mxu0 0
  %87 = vmatprep.subr.bf16.mxu0 0
  %88 = vmatpush1.bf16.msra.mxu0 0
  %89 = vmatprep.mubr.bf16.mxu0 0
  %90 = vmatmul.mubr.bf16.gmra.mrb[0].mxu0 %v42
  %v91 = vpop.f32.mrb[0].mxu0
  %v92 = vadd.f32 %v29, %v91
  %v93 = vpop.f32.mrb[0].mxu0
  %v94 = vadd.f32 %v29, %v93
  %v95 = vpop.f32.mrb[0].mxu0
  %v96 = vpop.f32.mrb[0].mxu0
  %97 = vdwg.mxu0
  %98 = vmatprep.subr.bf16.mxu0 %v55
  %99 = vmatpush1.bf16.msra.mxu0 %v52
  %100 = vmatprep.subr.bf16.mxu0 0
  %101 = vmatpush1.bf16.msra.mxu0 0
  %102 = vmatprep.subr.bf16.mxu0 0
  %103 = vmatpush1.bf16.msra.mxu0 0
  %104 = vmatprep.subr.bf16.mxu0 0
  %105 = vmatpush1.bf16.msra.mxu0 0
  %106 = vmatprep.subr.bf16.mxu0 0
  %107 = vmatpush1.bf16.msra.mxu0 0
  %108 = vmatprep.subr.bf16.mxu0 0
  %109 = vmatpush1.bf16.msra.mxu0 0
  %110 = vmatprep.subr.bf16.mxu0 0
  %111 = vmatpush1.bf16.msra.mxu0 0
  %112 = vmatprep.subr.bf16.mxu0 0
  %113 = vmatpush1.bf16.msra.mxu0 0
  %114 = vmatprep.subr.bf16.mxu0 0
  %115 = vmatpush1.bf16.msra.mxu0 0
  %116 = vmatprep.subr.bf16.mxu0 0
  %117 = vmatpush1.bf16.msra.mxu0 0
  %118 = vmatprep.subr.bf16.mxu0 0
  %119 = vmatpush1.bf16.msra.mxu0 0
  %120 = vmatprep.subr.bf16.mxu0 0
  %121 = vmatpush1.bf16.msra.mxu0 0
  %122 = vmatprep.subr.bf16.mxu0 0
  %123 = vmatpush1.bf16.msra.mxu0 0
  %124 = vmatprep.subr.bf16.mxu0 0
  %125 = vmatpush1.bf16.msra.mxu0 0
  %126 = vmatprep.subr.bf16.mxu0 0
  %127 = vmatpush1.bf16.msra.mxu0 0
  %128 = vmatprep.subr.bf16.mxu0 0
  %129 = vmatpush1.bf16.msra.mxu0 0
  %130 = vmatprep.mubr.bf16.mxu0 0
  %131 = vmatmul.mubr.bf16.gmra.mrb[0].mxu0 %v42
  %v132 = vpop.f32.mrb[0].mxu0
  %v133 = vadd.f32 %v29, %v132
  %v134 = vpop.f32.mrb[0].mxu0
  %v135 = vadd.f32 %v29, %v134
  %v136 = vpop.f32.mrb[0].mxu0
  %v137 = vpop.f32.mrb[0].mxu0
  %138 = vdwg.mxu0
  %v139 = vxor.u32 %v92, 2147483648
  %v140 = vxor.u32 %v94, 2147483648
  %v141 = vxor.u32 %v133, 2147483648
  %v142 = vxor.u32 %v135, 2147483648
  %v143 = vmul.f32 %v139, 1.442695
  %v144 = vpow.pop %v143
  %v145 = vmul.f32 %v140, 1.442695
  %v146 = vpow.pop %v145
  %v147 = vmul.f32 %v141, 1.442695
  %v148 = vpow.pop %v147
  %v149 = vmul.f32 %v142, 1.442695
  %v150 = vpow.pop %v149
  %v151 = vadd.f32 %v144, 1.0
  %v152 = vadd.f32 %v146, 1.0
  %v153 = vadd.f32 %v148, 1.0
  %v154 = vadd.f32 %v150, 1.0
  %v155 = vrcp.pop %v151
  %v156 = vmul.f32 1.0, %v155
  %v157 = vrcp.pop %v152
  %v158 = vmul.f32 1.0, %v157
  %v159 = vrcp.pop %v153
  %v160 = vmul.f32 1.0, %v159
  %v161 = vrcp.pop %v154
  %v162 = vmul.f32 1.0, %v161
  %v167 = vcombine.low %v156, %v158
  %v168 = vcombine.low %v160, %v162
  %v170 = vunpack.c.l.s4 1966171168
  %v171 = vunpack.c.0.s8 %v170
  %v172 = vlaneseq
  %v173 = vshrl.u32 %v172, 7
  %v174 = vsub.s32 %v171, %v173
  %v175 = vrot.slane %v167, %v174
  %v177 = vunpack.c.l.s4 1966171168
  %v178 = vunpack.c.0.s8 %v177
  %v179 = vlaneseq
  %v180 = vshrl.u32 %v179, 7
  %v181 = vsub.s32 %v178, %v180
  %v182 = vrot.slane %v168, %v181
  %v183 = vcombine.low %v175, %v182
  %v185 = vunpack.c.l.s4 1966171168
  %v186 = vunpack.c.0.s8 %v185
  %v187 = vlaneseq
  %v188 = vshrl.u32 %v187, 7
  %v189 = vsub.s32 %v186, %v188
  %v190 = vrot.slane %v183, %v189
  %v192 = vlaneseq
  %vm193 = vcmp.ge.s32.totalorder %v192, 0
  %vm194 = vcmp.lt.s32.totalorder %v192, 512
  %vm195 = vmand %vm193, %vm194
  %196 = vst.msk [vmem:[%s3] sm:$0xf] %vm195, %v190
  // Predicated region
  $region14: #{_lambda_.43} parent=0 // pred_check
    _
  $region15: #{_lambda_.43} parent=0 // pred_check_branch
    %198 = sbr.rel (0) target = $region17
  $region16: #{_lambda_.43} parent=0 // pred_region
    _
  $region17: #{_lambda_.43} parent=0 // pred_fallthru
    _
  // Predicated region
  $region18: #{_lambda_.43} parent=0 // pred_check
    _
  $region19: #{_lambda_.43} parent=0 // pred_check_branch
    %200 = sbr.rel (0) target = $region21
  $region20: #{_lambda_.43} parent=0 // pred_region
    _
  $region21: #{_lambda_.43} parent=0 // pred_fallthru
    _

// kernel: _lambda_.42
$region0: #{_lambda_.42}
  #allocation0 [shape = 'u32[]', space=smem, size = 0x4, offset = 0x4, fixed_abs, tag = 'smem constant byte address 0x4 - core index']
  #allocation1 [shape = 'u32[144,128]{1,0:T(1,128)}', space=vmem, size = 0x12000, scoped, tag = 'internal scratch']
  %s0 = inlined_call_operand.vmem [shape: bf16[72,512], index: 0, kind: input, shape index: {}]
  %s1 = inlined_call_operand.vmem [shape: bf16[8,72], index: 1, kind: input, shape index: {}]
  %s2 = inlined_call_operand.vmem [shape: f32[8,1], index: 2, kind: input, shape index: {}]
  %s3 = inlined_call_operand.vmem [shape: f32[8,512], index: 3, kind: output, shape index: {}]
  %s4 = sld [smem:[#allocation0]]
  $region22: #{_lambda_.42} parent=0
    _
  %s6 = ssub.s32 1, %s4
  %s7 = scalar_select 0, %s6, %s4
  // Predicated region
  $region2: #{_lambda_.42} parent=0 // pred_check
    _
  $region3: #{_lambda_.42} parent=0 // pred_check_branch
    %9 = sbr.rel (0) target = $region5
  $region4: #{_lambda_.42} parent=0 // pred_region
    _
  $region5: #{_lambda_.42} parent=0 // pred_fallthru
    _
  // Predicated region
  $region6: #{_lambda_.42} parent=0 // pred_check
    _
  $region7: #{_lambda_.42} parent=0 // pred_check_branch
    %11 = sbr.rel (0) target = $region9
  $region8: #{_lambda_.42} parent=0 // pred_region
    _
  $region9: #{_lambda_.42} parent=0 // pred_fallthru
    _
  // Predicated region
  $region10: #{_lambda_.42} parent=0 // pred_check
    _
  $region11: #{_lambda_.42} parent=0 // pred_check_branch
    %13 = sbr.rel (0) target = $region13
  $region12: #{_lambda_.42} parent=0 // pred_region
    _
  $region13: #{_lambda_.42} parent=0 // pred_fallthru
    _
  %v15 = vld [vmem:[%s1] sm:$0xf]
  %v16 = vld [vmem:[%s0] sm:$0xff]
  %v17 = vld [vmem:[%s0 + $0x8] sm:$0xff]
  %v18 = vld [vmem:[%s0 + $0x10] sm:$0xff]
  %v19 = vld [vmem:[%s0 + $0x18] sm:$0xff]
  %v20 = vld [vmem:[%s0 + $0x20] sm:$0xff]
  %v21 = vld [vmem:[%s0 + $0x28] sm:$0xff]
  %v22 = vld [vmem:[%s0 + $0x30] sm:$0xff]
  %v23 = vld [vmem:[%s0 + $0x38] sm:$0xff]
  %v24 = vld [vmem:[%s0 + $0x40] sm:$0xff]
  %v25 = vld [vmem:[%s0 + $0x48] sm:$0xff]
  %v26 = vld [vmem:[%s0 + $0x50] sm:$0xff]
  %v27 = vld [vmem:[%s0 + $0x58] sm:$0xff]
  %v28 = vld [vmem:[%s0 + $0x60] sm:$0xff]
  %v29 = vld [vmem:[%s0 + $0x68] sm:$0xff]
  %v30 = vld [vmem:[%s0 + $0x70] sm:$0xff]
  %v31 = vld [vmem:[%s0 + $0x78] sm:$0xff]
  %v32 = vld [vmem:[%s0 + $0x80] sm:$0xff]
  %v33 = vld [vmem:[%s0 + $0x88] sm:$0xff]
  %v34 = vld [vmem:[%s2] sm:$0xff]
  %36 = vset.pattern.permute.xlu0 0
  %37 = vperm.xlu0 %36, %v34
  %v38 = vpop.permute.xlu0 %37
  %v58 = vunpack.c.l.b16 %v16
  %v59 = vunpack.c.h.b16 %v16
  %v60 = vunpack.c.l.b16 %v17
  %v61 = vunpack.c.h.b16 %v17
  %v62 = vunpack.c.l.b16 %v18
  %v63 = vunpack.c.h.b16 %v18
  %v64 = vunpack.c.l.b16 %v19
  %v65 = vunpack.c.h.b16 %v19
  %v66 = vunpack.c.l.b16 %v20
  %v67 = vunpack.c.h.b16 %v20
  %v68 = vunpack.c.l.b16 %v21
  %v69 = vunpack.c.h.b16 %v21
  %v70 = vunpack.c.l.b16 %v22
  %v71 = vunpack.c.h.b16 %v22
  %v72 = vunpack.c.l.b16 %v23
  %v73 = vunpack.c.h.b16 %v23
  %v74 = vunpack.c.l.b16 %v24
  %v75 = vunpack.c.h.b16 %v24
  %v76 = vunpack.c.l.b16 %v25
  %v77 = vunpack.c.h.b16 %v25
  %v78 = vunpack.c.l.b16 %v26
  %v79 = vunpack.c.h.b16 %v26
  %v80 = vunpack.c.l.b16 %v27
  %v81 = vunpack.c.h.b16 %v27
  %v82 = vunpack.c.l.b16 %v28
  %v83 = vunpack.c.h.b16 %v28
  %v84 = vunpack.c.l.b16 %v29
  %v85 = vunpack.c.h.b16 %v29
  %v86 = vunpack.c.l.b16 %v30
  %v87 = vunpack.c.h.b16 %v30
  %v88 = vunpack.c.l.b16 %v31
  %v89 = vunpack.c.h.b16 %v31
  %v90 = vunpack.c.l.b16 %v32
  %v91 = vunpack.c.h.b16 %v32
  %v92 = vunpack.c.l.b16 %v33
  %v93 = vunpack.c.h.b16 %v33
  %v94 = vpack.c.b16 %v62, %v58
  %v95 = vpack.c.b16 %v63, %v59
  %v96 = vpack.c.b16 %v64, %v60
  %v97 = vpack.c.b16 %v65, %v61
  %v98 = vpack.c.b16 %v70, %v66
  %v99 = vpack.c.b16 %v71, %v67
  %v100 = vpack.c.b16 %v72, %v68
  %v101 = vpack.c.b16 %v73, %v69
  %v102 = vpack.c.b16 %v78, %v74
  %v103 = vpack.c.b16 %v79, %v75
  %v104 = vpack.c.b16 %v80, %v76
  %v105 = vpack.c.b16 %v81, %v77
  %v106 = vpack.c.b16 %v86, %v82
  %v107 = vpack.c.b16 %v87, %v83
  %v108 = vpack.c.b16 %v88, %v84
  %v109 = vpack.c.b16 %v89, %v85
  %v110 = vpack.c.b16 %v90, %v90
  %v111 = vpack.c.b16 %v91, %v91
  %v112 = vpack.c.b16 %v92, %v92
  %v113 = vpack.c.b16 %v93, %v93
  %vm130 = vcmask 588800
  %v132 = vsel %vm130, %v15, 0
  %vm134 = vcmask 1043456
  %v136 = vsel %vm134, %v110, 0
  %v139 = vsel %vm134, %v111, 0
  %v142 = vsel %vm134, %v112, 0
  %v145 = vsel %vm134, %v113, 0
  %147 = vmatprep.subr.bf16.mxu0 %v95
  %148 = vmatpush1.bf16.msra.mxu0 %v94
  %149 = vmatprep.subr.bf16.mxu0 %v99
  %150 = vmatpush1.bf16.msra.mxu0 %v98
  %151 = vmatprep.subr.bf16.mxu0 %v103
  %152 = vmatpush1.bf16.msra.mxu0 %v102
  %153 = vmatprep.subr.bf16.mxu0 %v107
  %154 = vmatpush1.bf16.msra.mxu0 %v106
  %155 = vmatprep.subr.bf16.mxu0 %v139
  %156 = vmatpush1.bf16.msra.mxu0 %v136
  %157 = vmatprep.subr.bf16.mxu0 0
  %158 = vmatpush1.bf16.msra.mxu0 0
  %159 = vmatprep.subr.bf16.mxu0 0
  %160 = vmatpush1.bf16.msra.mxu0 0
  %161 = vmatprep.subr.bf16.mxu0 0
  %162 = vmatpush1.bf16.msra.mxu0 0
  %163 = vmatprep.subr.bf16.mxu0 0
  %164 = vmatpush1.bf16.msra.mxu0 0
  %165 = vmatprep.subr.bf16.mxu0 0
  %166 = vmatpush1.bf16.msra.mxu0 0
  %167 = vmatprep.subr.bf16.mxu0 0
  %168 = vmatpush1.bf16.msra.mxu0 0
  %169 = vmatprep.subr.bf16.mxu0 0
  %170 = vmatpush1.bf16.msra.mxu0 0
  %171 = vmatprep.subr.bf16.mxu0 0
  %172 = vmatpush1.bf16.msra.mxu0 0
  %173 = vmatprep.subr.bf16.mxu0 0
  %174 = vmatpush1.bf16.msra.mxu0 0
  %175 = vmatprep.subr.bf16.mxu0 0
  %176 = vmatpush1.bf16.msra.mxu0 0
  %177 = vmatprep.subr.bf16.mxu0 0
  %178 = vmatpush1.bf16.msra.mxu0 0
  %179 = vmatprep.mubr.bf16.mxu0 0
  %180 = vmatmul.mubr.bf16.gmra.mrb[0].mxu0 %v132
  %v181 = vpop.f32.mrb[0].mxu0
  %v182 = vadd.f32 %v38, %v181
  %v183 = vpop.f32.mrb[0].mxu0
  %v184 = vadd.f32 %v38, %v183
  %v185 = vpop.f32.mrb[0].mxu0
  %v186 = vpop.f32.mrb[0].mxu0
  %187 = vdwg.mxu0
  %188 = vmatprep.subr.bf16.mxu0 %v97
  %189 = vmatpush1.bf16.msra.mxu0 %v96
  %190 = vmatprep.subr.bf16.mxu0 %v101
  %191 = vmatpush1.bf16.msra.mxu0 %v100
  %192 = vmatprep.subr.bf16.mxu0 %v105
  %193 = vmatpush1.bf16.msra.mxu0 %v104
  %194 = vmatprep.subr.bf16.mxu0 %v109
  %195 = vmatpush1.bf16.msra.mxu0 %v108
  %196 = vmatprep.subr.bf16.mxu0 %v145
  %197 = vmatpush1.bf16.msra.mxu0 %v142
  %198 = vmatprep.subr.bf16.mxu0 0
  %199 = vmatpush1.bf16.msra.mxu0 0
  %200 = vmatprep.subr.bf16.mxu0 0
  %201 = vmatpush1.bf16.msra.mxu0 0
  %202 = vmatprep.subr.bf16.mxu0 0
  %203 = vmatpush1.bf16.msra.mxu0 0
  %204 = vmatprep.subr.bf16.mxu0 0
  %205 = vmatpush1.bf16.msra.mxu0 0
  %206 = vmatprep.subr.bf16.mxu0 0
  %207 = vmatpush1.bf16.msra.mxu0 0
  %208 = vmatprep.subr.bf16.mxu0 0
  %209 = vmatpush1.bf16.msra.mxu0 0
  %210 = vmatprep.subr.bf16.mxu0 0
  %211 = vmatpush1.bf16.msra.mxu0 0
  %212 = vmatprep.subr.bf16.mxu0 0
  %213 = vmatpush1.bf16.msra.mxu0 0
  %214 = vmatprep.subr.bf16.mxu0 0
  %215 = vmatpush1.bf16.msra.mxu0 0
  %216 = vmatprep.subr.bf16.mxu0 0
  %217 = vmatpush1.bf16.msra.mxu0 0
  %218 = vmatprep.subr.bf16.mxu0 0
  %219 = vmatpush1.bf16.msra.mxu0 0
  %220 = vmatprep.mubr.bf16.mxu0 0
  %221 = vmatmul.mubr.bf16.gmra.mrb[0].mxu0 %v132
  %v222 = vpop.f32.mrb[0].mxu0
  %v223 = vadd.f32 %v38, %v222
  %v224 = vpop.f32.mrb[0].mxu0
  %v225 = vadd.f32 %v38, %v224
  %v226 = vpop.f32.mrb[0].mxu0
  %v227 = vpop.f32.mrb[0].mxu0
  %228 = vdwg.mxu0
  %v229 = vmax.f32 %v182, 0.0
  %v230 = vmax.f32 %v184, 0.0
  %v231 = vmax.f32 %v223, 0.0
  %v232 = vmax.f32 %v225, 0.0
  %233 = vst [vmem:[%s3] sm:$0xff] %v229
  %234 = vst [vmem:[%s3 + $0x8] sm:$0xff] %v230
  %235 = vst [vmem:[%s3 + $0x10] sm:$0xff] %v231
  %236 = vst [vmem:[%s3 + $0x18] sm:$0xff] %v232
  // Predicated region
  $region14: #{_lambda_.42} parent=0 // pred_check
    _
  $region15: #{_lambda_.42} parent=0 // pred_check_branch
    %238 = sbr.rel (0) target = $region17
  $region16: #{_lambda_.42} parent=0 // pred_region
    _
  $region17: #{_lambda_.42} parent=0 // pred_fallthru
    _
  // Predicated region
  $region18: #{_lambda_.42} parent=0 // pred_check
    _
  $region19: #{_lambda_.42} parent=0 // pred_check_branch
    %240 = sbr.rel (0) target = $region21
  $region20: #{_lambda_.42} parent=0 // pred_region
    _
  $region21: #{_lambda_.42} parent=0 // pred_fallthru
    _

// kernel: _lambda_.41
$region0: #{_lambda_.41}
  #allocation0 [shape = 'u32[]', space=smem, size = 0x4, offset = 0x4, fixed_abs, tag = 'smem constant byte address 0x4 - core index']
  #allocation1 [shape = 'u32[144,128]{1,0:T(1,128)}', space=vmem, size = 0x12000, scoped, tag = 'internal scratch']
  %s0 = inlined_call_operand.vmem [shape: bf16[144,512], index: 0, kind: input, shape index: {}]
  %s1 = inlined_call_operand.vmem [shape: bf16[8,144], index: 1, kind: input, shape index: {}]
  %s2 = inlined_call_operand.vmem [shape: f32[8,1], index: 2, kind: input, shape index: {}]
  %s3 = inlined_call_operand.vmem [shape: f32[8,512], index: 3, kind: output, shape index: {}]
  %s4 = sld [smem:[#allocation0]]
  $region22: #{_lambda_.41} parent=0
    _
  %s6 = ssub.s32 1, %s4
  %s7 = scalar_select 0, %s6, %s4
  // Predicated region
  $region2: #{_lambda_.41} parent=0 // pred_check
    _
  $region3: #{_lambda_.41} parent=0 // pred_check_branch
    %9 = sbr.rel (0) target = $region5
  $region4: #{_lambda_.41} parent=0 // pred_region
    _
  $region5: #{_lambda_.41} parent=0 // pred_fallthru
    _
  // Predicated region
  $region6: #{_lambda_.41} parent=0 // pred_check
    _
  $region7: #{_lambda_.41} parent=0 // pred_check_branch
    %11 = sbr.rel (0) target = $region9
  $region8: #{_lambda_.41} parent=0 // pred_region
    _
  $region9: #{_lambda_.41} parent=0 // pred_fallthru
    _
  // Predicated region
  $region10: #{_lambda_.41} parent=0 // pred_check
    _
  $region11: #{_lambda_.41} parent=0 // pred_check_branch
    %13 = sbr.rel (0) target = $region13
  $region12: #{_lambda_.41} parent=0 // pred_region
    _
  $region13: #{_lambda_.41} parent=0 // pred_fallthru
    _
  %v15 = vld [vmem:[%s1] sm:$0xff]
  %v16 = vld [vmem:[%s0] sm:$0xff]
  %v17 = vld [vmem:[%s0 + $0x8] sm:$0xff]
  %v18 = vld [vmem:[%s0 + $0x10] sm:$0xff]
  %v19 = vld [vmem:[%s0 + $0x18] sm:$0xff]
  %v20 = vld [vmem:[%s0 + $0x20] sm:$0xff]
  %v21 = vld [vmem:[%s0 + $0x28] sm:$0xff]
  %v22 = vld [vmem:[%s0 + $0x30] sm:$0xff]
  %v23 = vld [vmem:[%s0 + $0x38] sm:$0xff]
  %v24 = vld [vmem:[%s0 + $0x40] sm:$0xff]
  %v25 = vld [vmem:[%s0 + $0x48] sm:$0xff]
  %v26 = vld [vmem:[%s0 + $0x50] sm:$0xff]
  %v27 = vld [vmem:[%s0 + $0x58] sm:$0xff]
  %v28 = vld [vmem:[%s0 + $0x60] sm:$0xff]
  %v29 = vld [vmem:[%s0 + $0x68] sm:$0xff]
  %v30 = vld [vmem:[%s0 + $0x70] sm:$0xff]
  %v31 = vld [vmem:[%s0 + $0x78] sm:$0xff]
  %v32 = vld [vmem:[%s0 + $0x80] sm:$0xff]
  %v33 = vld [vmem:[%s0 + $0x88] sm:$0xff]
  %v34 = vld [vmem:[%s0 + $0x90] sm:$0xff]
  %v35 = vld [vmem:[%s0 + $0x98] sm:$0xff]
  %v36 = vld [vmem:[%s0 + $0xa0] sm:$0xff]
  %v37 = vld [vmem:[%s0 + $0xa8] sm:$0xff]
  %v38 = vld [vmem:[%s0 + $0xb0] sm:$0xff]
  %v39 = vld [vmem:[%s0 + $0xb8] sm:$0xff]
  %v40 = vld [vmem:[%s0 + $0xc0] sm:$0xff]
  %v41 = vld [vmem:[%s0 + $0xc8] sm:$0xff]
  %v42 = vld [vmem:[%s0 + $0xd0] sm:$0xff]
  %v43 = vld [vmem:[%s0 + $0xd8] sm:$0xff]
  %v44 = vld [vmem:[%s0 + $0xe0] sm:$0xff]
  %v45 = vld [vmem:[%s0 + $0xe8] sm:$0xff]
  %v46 = vld [vmem:[%s0 + $0xf0] sm:$0xff]
  %v47 = vld [vmem:[%s0 + $0xf8] sm:$0xff]
  %v48 = vld [vmem:[%s0 + $0x100] sm:$0xff]
  %v49 = vld [vmem:[%s0 + $0x108] sm:$0xff]
  %v50 = vld [vmem:[%s0 + $0x110] sm:$0xff]
  %v51 = vld [vmem:[%s0 + $0x118] sm:$0xff]
  %v52 = vld [vmem:[%s2] sm:$0xff]
  %54 = vset.pattern.permute.xlu0 0
  %55 = vperm.xlu0 %54, %v52
  %v56 = vpop.permute.xlu0 %55
  %v59 = vunpack.c.l.b16 %v15
  %v60 = vunpack.c.h.b16 %v15
  %v61 = vpack.c.b16 %v59, %v59
  %v62 = vpack.c.b16 %v60, %v60
  %v100 = vunpack.c.l.b16 %v16
  %v101 = vunpack.c.h.b16 %v16
  %v102 = vunpack.c.l.b16 %v17
  %v103 = vunpack.c.h.b16 %v17
  %v104 = vunpack.c.l.b16 %v18
  %v105 = vunpack.c.h.b16 %v18
  %v106 = vunpack.c.l.b16 %v19
  %v107 = vunpack.c.h.b16 %v19
  %v108 = vunpack.c.l.b16 %v20
  %v109 = vunpack.c.h.b16 %v20
  %v110 = vunpack.c.l.b16 %v21
  %v111 = vunpack.c.h.b16 %v21
  %v112 = vunpack.c.l.b16 %v22
  %v113 = vunpack.c.h.b16 %v22
  %v114 = vunpack.c.l.b16 %v23
  %v115 = vunpack.c.h.b16 %v23
  %v116 = vunpack.c.l.b16 %v24
  %v117 = vunpack.c.h.b16 %v24
  %v118 = vunpack.c.l.b16 %v25
  %v119 = vunpack.c.h.b16 %v25
  %v120 = vunpack.c.l.b16 %v26
  %v121 = vunpack.c.h.b16 %v26
  %v122 = vunpack.c.l.b16 %v27
  %v123 = vunpack.c.h.b16 %v27
  %v124 = vunpack.c.l.b16 %v28
  %v125 = vunpack.c.h.b16 %v28
  %v126 = vunpack.c.l.b16 %v29
  %v127 = vunpack.c.h.b16 %v29
  %v128 = vunpack.c.l.b16 %v30
  %v129 = vunpack.c.h.b16 %v30
  %v130 = vunpack.c.l.b16 %v31
  %v131 = vunpack.c.h.b16 %v31
  %v132 = vunpack.c.l.b16 %v32
  %v133 = vunpack.c.h.b16 %v32
  %v134 = vunpack.c.l.b16 %v33
  %v135 = vunpack.c.h.b16 %v33
  %v136 = vunpack.c.l.b16 %v34
  %v137 = vunpack.c.h.b16 %v34
  %v138 = vunpack.c.l.b16 %v35
  %v139 = vunpack.c.h.b16 %v35
  %v140 = vunpack.c.l.b16 %v36
  %v141 = vunpack.c.h.b16 %v36
  %v142 = vunpack.c.l.b16 %v37
  %v143 = vunpack.c.h.b16 %v37
  %v144 = vunpack.c.l.b16 %v38
  %v145 = vunpack.c.h.b16 %v38
  %v146 = vunpack.c.l.b16 %v39
  %v147 = vunpack.c.h.b16 %v39
  %v148 = vunpack.c.l.b16 %v40
  %v149 = vunpack.c.h.b16 %v40
  %v150 = vunpack.c.l.b16 %v41
  %v151 = vunpack.c.h.b16 %v41
  %v152 = vunpack.c.l.b16 %v42
  %v153 = vunpack.c.h.b16 %v42
  %v154 = vunpack.c.l.b16 %v43
  %v155 = vunpack.c.h.b16 %v43
  %v156 = vunpack.c.l.b16 %v44
  %v157 = vunpack.c.h.b16 %v44
  %v158 = vunpack.c.l.b16 %v45
  %v159 = vunpack.c.h.b16 %v45
  %v160 = vunpack.c.l.b16 %v46
  %v161 = vunpack.c.h.b16 %v46
  %v162 = vunpack.c.l.b16 %v47
  %v163 = vunpack.c.h.b16 %v47
  %v164 = vunpack.c.l.b16 %v48
  %v165 = vunpack.c.h.b16 %v48
  %v166 = vunpack.c.l.b16 %v49
  %v167 = vunpack.c.h.b16 %v49
  %v168 = vunpack.c.l.b16 %v50
  %v169 = vunpack.c.h.b16 %v50
  %v170 = vunpack.c.l.b16 %v51
  %v171 = vunpack.c.h.b16 %v51
  %v172 = vpack.c.b16 %v104, %v100
  %v173 = vpack.c.b16 %v105, %v101
  %v174 = vpack.c.b16 %v106, %v102
  %v175 = vpack.c.b16 %v107, %v103
  %v176 = vpack.c.b16 %v112, %v108
  %v177 = vpack.c.b16 %v113, %v109
  %v178 = vpack.c.b16 %v114, %v110
  %v179 = vpack.c.b16 %v115, %v111
  %v180 = vpack.c.b16 %v120, %v116
  %v181 = vpack.c.b16 %v121, %v117
  %v182 = vpack.c.b16 %v122, %v118
  %v183 = vpack.c.b16 %v123, %v119
  %v184 = vpack.c.b16 %v128, %v124
  %v185 = vpack.c.b16 %v129, %v125
  %v186 = vpack.c.b16 %v130, %v126
  %v187 = vpack.c.b16 %v131, %v127
  %v188 = vpack.c.b16 %v136, %v132
  %v189 = vpack.c.b16 %v137, %v133
  %v190 = vpack.c.b16 %v138, %v134
  %v191 = vpack.c.b16 %v139, %v135
  %v192 = vpack.c.b16 %v144, %v140
  %v193 = vpack.c.b16 %v145, %v141
  %v194 = vpack.c.b16 %v146, %v142
  %v195 = vpack.c.b16 %v147, %v143
  %v196 = vpack.c.b16 %v152, %v148
  %v197 = vpack.c.b16 %v153, %v149
  %v198 = vpack.c.b16 %v154, %v150
  %v199 = vpack.c.b16 %v155, %v151
  %v200 = vpack.c.b16 %v160, %v156
  %v201 = vpack.c.b16 %v161, %v157
  %v202 = vpack.c.b16 %v162, %v158
  %v203 = vpack.c.b16 %v163, %v159
  %v204 = vpack.c.b16 %v168, %v164
  %v205 = vpack.c.b16 %v169, %v165
  %v206 = vpack.c.b16 %v170, %v166
  %v207 = vpack.c.b16 %v171, %v167
  %vm244 = vcmask 130048
  %v246 = vsel %vm244, %v62, 0
  %248 = vmatprep.subr.bf16.mxu0 %v173
  %249 = vmatpush1.bf16.msra.mxu0 %v172
  %250 = vmatprep.subr.bf16.mxu0 %v177
  %251 = vmatpush1.bf16.msra.mxu0 %v176
  %252 = vmatprep.subr.bf16.mxu0 %v181
  %253 = vmatpush1.bf16.msra.mxu0 %v180
  %254 = vmatprep.subr.bf16.mxu0 %v185
  %255 = vmatpush1.bf16.msra.mxu0 %v184
  %256 = vmatprep.subr.bf16.mxu0 %v189
  %257 = vmatpush1.bf16.msra.mxu0 %v188
  %258 = vmatprep.subr.bf16.mxu0 %v193
  %259 = vmatpush1.bf16.msra.mxu0 %v192
  %260 = vmatprep.subr.bf16.mxu0 %v197
  %261 = vmatpush1.bf16.msra.mxu0 %v196
  %262 = vmatprep.subr.bf16.mxu0 %v201
  %263 = vmatpush1.bf16.msra.mxu0 %v200
  %264 = vmatprep.subr.bf16.mxu0 %v205
  %265 = vmatpush1.bf16.msra.mxu0 %v204
  %266 = vmatprep.subr.bf16.mxu0 0
  %267 = vmatpush1.bf16.msra.mxu0 0
  %268 = vmatprep.subr.bf16.mxu0 0
  %269 = vmatpush1.bf16.msra.mxu0 0
  %270 = vmatprep.subr.bf16.mxu0 0
  %271 = vmatpush1.bf16.msra.mxu0 0
  %272 = vmatprep.subr.bf16.mxu0 0
  %273 = vmatpush1.bf16.msra.mxu0 0
  %274 = vmatprep.subr.bf16.mxu0 0
  %275 = vmatpush1.bf16.msra.mxu0 0
  %276 = vmatprep.subr.bf16.mxu0 0
  %277 = vmatpush1.bf16.msra.mxu0 0
  %278 = vmatprep.subr.bf16.mxu0 0
  %279 = vmatpush1.bf16.msra.mxu0 0
  %280 = vmatprep.mubr.bf16.mxu0 %v246
  %281 = vmatmul.mubr.bf16.gmra.mrb[0].mxu0 %v61
  %v282 = vpop.f32.mrb[0].mxu0
  %v283 = vadd.f32 %v56, %v282
  %v284 = vpop.f32.mrb[0].mxu0
  %v285 = vadd.f32 %v56, %v284
  %v286 = vpop.f32.mrb[0].mxu0
  %v287 = vpop.f32.mrb[0].mxu0
  %288 = vdwg.mxu0
  %289 = vmatprep.subr.bf16.mxu0 %v175
  %290 = vmatpush1.bf16.msra.mxu0 %v174
  %291 = vmatprep.subr.bf16.mxu0 %v179
  %292 = vmatpush1.bf16.msra.mxu0 %v178
  %293 = vmatprep.subr.bf16.mxu0 %v183
  %294 = vmatpush1.bf16.msra.mxu0 %v182
  %295 = vmatprep.subr.bf16.mxu0 %v187
  %296 = vmatpush1.bf16.msra.mxu0 %v186
  %297 = vmatprep.subr.bf16.mxu0 %v191
  %298 = vmatpush1.bf16.msra.mxu0 %v190
  %299 = vmatprep.subr.bf16.mxu0 %v195
  %300 = vmatpush1.bf16.msra.mxu0 %v194
  %301 = vmatprep.subr.bf16.mxu0 %v199
  %302 = vmatpush1.bf16.msra.mxu0 %v198
  %303 = vmatprep.subr.bf16.mxu0 %v203
  %304 = vmatpush1.bf16.msra.mxu0 %v202
  %305 = vmatprep.subr.bf16.mxu0 %v207
  %306 = vmatpush1.bf16.msra.mxu0 %v206
  %307 = vmatprep.subr.bf16.mxu0 0
  %308 = vmatpush1.bf16.msra.mxu0 0
  %309 = vmatprep.subr.bf16.mxu0 0
  %310 = vmatpush1.bf16.msra.mxu0 0
  %311 = vmatprep.subr.bf16.mxu0 0
  %312 = vmatpush1.bf16.msra.mxu0 0
  %313 = vmatprep.subr.bf16.mxu0 0
  %314 = vmatpush1.bf16.msra.mxu0 0
  %315 = vmatprep.subr.bf16.mxu0 0
  %316 = vmatpush1.bf16.msra.mxu0 0
  %317 = vmatprep.subr.bf16.mxu0 0
  %318 = vmatpush1.bf16.msra.mxu0 0
  %319 = vmatprep.subr.bf16.mxu0 0
  %320 = vmatpush1.bf16.msra.mxu0 0
  %321 = vmatprep.mubr.bf16.mxu0 %v246
  %322 = vmatmul.mubr.bf16.gmra.mrb[0].mxu0 %v61
  %v323 = vpop.f32.mrb[0].mxu0
  %v324 = vadd.f32 %v56, %v323
  %v325 = vpop.f32.mrb[0].mxu0
  %v326 = vadd.f32 %v56, %v325
  %v327 = vpop.f32.mrb[0].mxu0
  %v328 = vpop.f32.mrb[0].mxu0
  %329 = vdwg.mxu0
  %v330 = vmax.f32 %v283, 0.0
  %v331 = vmax.f32 %v285, 0.0
  %v332 = vmax.f32 %v324, 0.0
  %v333 = vmax.f32 %v326, 0.0
  %334 = vst [vmem:[%s3] sm:$0xff] %v330
  %335 = vst [vmem:[%s3 + $0x8] sm:$0xff] %v331
  %336 = vst [vmem:[%s3 + $0x10] sm:$0xff] %v332
  %337 = vst [vmem:[%s3 + $0x18] sm:$0xff] %v333
  // Predicated region
  $region14: #{_lambda_.41} parent=0 // pred_check
    _
  $region15: #{_lambda_.41} parent=0 // pred_check_branch
    %339 = sbr.rel (0) target = $region17
  $region16: #{_lambda_.41} parent=0 // pred_region
    _
  $region17: #{_lambda_.41} parent=0 // pred_fallthru
    _
  // Predicated region
  $region18: #{_lambda_.41} parent=0 // pred_check
    _
  $region19: #{_lambda_.41} parent=0 // pred_check_branch
    %341 = sbr.rel (0) target = $region21
  $region20: #{_lambda_.41} parent=0 // pred_region
    _
  $region21: #{_lambda_.41} parent=0 // pred_fallthru
    _

</llo_original>
